<compile_context>
chip_gen: v5e
topology: v5e:2x2
jax: 0.10.0
libtpu: 0.0.40
codegen_flags: <defaults>
</compile_context>

<pallas_src>
import functools

import jax
import jax.numpy as jnp
from jax.experimental import pallas as pl
from jax.experimental.pallas import tpu as pltpu

# Module constants (from model.py)
N_EMBD = 384
N_HEAD = 6
HEAD_SIZE = N_EMBD // N_HEAD   # 64
BLOCK_SIZE = 30                # max sequence length (causal mask buffer size)
LN_EPS = 1e-5


def _layer_norm(x, gamma, beta):
    mu = jnp.mean(x, axis=-1, keepdims=True)
    var = jnp.mean((x - mu) ** 2, axis=-1, keepdims=True)
    return (x - mu) * jax.lax.rsqrt(var + LN_EPS) * gamma + beta


def block_kernel(x_ref,
                 wqkv_ref, wo_ref, bo_ref,
                 w1_ref, b1_ref, w2_ref, b2_ref,
                 g1_ref, be1_ref, g2_ref, be2_ref,
                 out_ref,
                 ctx_ref,
                 *, b_blk, t_pad):
    C = N_EMBD
    M = b_blk * t_pad

    # (b_blk, t_pad, C) -> flattened token slab (M, C), f32 for VPU/EUP math.
    x = x_ref[...].astype(jnp.float32).reshape(M, C)

    # ---------------- LayerNorm 1 (f32) ----------------
    h = _layer_norm(x, g1_ref[0], be1_ref[0])

    # ---------------- fused QKV projection (bf16 MXU, f32 accumulation) -------
    qkv = jnp.dot(h.astype(jnp.bfloat16), wqkv_ref[...],
                  preferred_element_type=jnp.float32)                # (M, 3C) f32
    # single bf16 cast of the whole qkv (instead of three (M, C) casts)
    qkv_b = qkv.astype(jnp.bfloat16).reshape(b_blk, t_pad, 3 * C)

    # causal mask (lower triangular), static per grid step.
    row = jax.lax.broadcasted_iota(jnp.int32, (t_pad, t_pad), 0)
    col = jax.lax.broadcasted_iota(jnp.int32, (t_pad, t_pad), 1)
    causal = row >= col

    # NOTE: PyTorch reference scales by n_embd**-0.5 (not head_size**-0.5).
    scale = C ** (-0.5)

    # ---------------- multi-head causal self-attention ----------------
    # Each head's context goes straight into the (M, C) f32 VMEM scratch
    # accumulator (store bounds live ranges; no concat / live ctx_parts list).
    for hd in range(N_HEAD):
        qs = slice(hd * HEAD_SIZE, (hd + 1) * HEAD_SIZE)
        ks = slice(C + hd * HEAD_SIZE, C + (hd + 1) * HEAD_SIZE)
        vs = slice(2 * C + hd * HEAD_SIZE, 2 * C + (hd + 1) * HEAD_SIZE)
        qh = qkv_b[..., qs]                                    # (b, T, hs) bf16
        kh = qkv_b[..., ks]
        vh = qkv_b[..., vs]
        s = jnp.einsum('bqd,bkd->bqk', qh, kh,
                       preferred_element_type=jnp.float32) * scale   # (b, T, T) f32
        s = jnp.where(causal, s, -jnp.inf)
        s = s - jnp.max(s, axis=-1, keepdims=True)
        p = jnp.exp(s)
        p = p * pl.reciprocal(jnp.sum(p, axis=-1, keepdims=True), approx=True)
        ctx_h = jnp.einsum('bqk,bkd->bqd', p.astype(jnp.bfloat16), vh,
                           preferred_element_type=jnp.float32)        # (b, T, hs)
        ctx_ref[:, qs] = ctx_h.reshape(M, HEAD_SIZE)

    # output projection + residual 1
    sa = jnp.dot(ctx_ref[...].astype(jnp.bfloat16), wo_ref[...],
                 preferred_element_type=jnp.float32) + bo_ref[0]
    x1 = x + sa

    # ---------------- LayerNorm 2 (f32) ----------------
    h2 = _layer_norm(x1, g2_ref[0], be2_ref[0])

    # ---------------- FeedForward (C -> 4C -> C), bf16 MXU operands -----------
    ff = jnp.dot(h2.astype(jnp.bfloat16), w1_ref[...],
                 preferred_element_type=jnp.float32) + b1_ref[0]
    ff = jnp.maximum(ff, 0.0)                                          # ReLU
    ff = jnp.dot(ff.astype(jnp.bfloat16), w2_ref[...],
                 preferred_element_type=jnp.float32) + b2_ref[0]

    out_ref[...] = (x1 + ff).reshape(b_blk, t_pad, C).astype(out_ref.dtype)


def fuse_params(params):
    """One-time parameter prep (hoisted out of the forward pass):
    fuse QKV into a single (C, 3C) weight and cast MXU weights to bf16."""
    (wq, wk, wv, wo, bo, w1, b1, w2, b2, g1, be1, g2, be2) = params
    wqkv = jnp.concatenate([wq, wk, wv], axis=1).astype(jnp.bfloat16)   # (C, 3C)
    return (wqkv, wo.astype(jnp.bfloat16), bo,
            w1.astype(jnp.bfloat16), b1,
            w2.astype(jnp.bfloat16), b2,
            g1, be1, g2, be2)


def _choose_b_blk(B, t_pad, target_rows=512):
    """Pick batch block so flattened M = b_blk * t_pad ~ target_rows, but keep
    >= 2 grid steps when cheaply possible so dual-TensorCore chips (v7x) shard
    the parallel axis."""
    b_blk = max(1, min(B, target_rows // t_pad))
    if b_blk >= B and B > 1:
        half = (B + 1) // 2
        if half * t_pad >= 128 or B * t_pad <= target_rows:
            b_blk = half
    return max(1, b_blk)


def _vmem_limit_bytes():
    """~half of physical VMEM: 64 MiB on v5e/v6e (128 MiB), 32 MiB on v7x (64 MiB)."""
    try:
        cap = int(pltpu.get_tpu_info().vmem_capacity_bytes)
    except Exception:
        cap = 128 << 20
    return int(min(max(cap // 2, 32 << 20), 96 << 20))


def _const_spec(a):
    """BlockSpec for grid-invariant operands (weights/biases): constant index_map,
    single-buffered (no point double-buffering a block that never changes)."""
    idx = lambda i: (0,) * a.ndim
    try:
        return pl.BlockSpec(a.shape, idx, pipeline_mode=pl.Buffered(1))
    except Exception:
        return pl.BlockSpec(a.shape, idx)


def transformer_block(x, fused_params):
    """x: (B, T, C) float32, T <= BLOCK_SIZE. fused_params from fuse_params()."""
    B, T, C = x.shape
    assert C == N_EMBD and T <= BLOCK_SIZE

    (wqkv, wo, bo, w1, b1, w2, b2, g1, be1, g2, be2) = fused_params

    # Pad T to a multiple of 8 (sublane alignment) and B to a multiple of b_blk.
    t_pad = max(8, ((T + 7) // 8) * 8)
    b_blk = _choose_b_blk(B, t_pad)
    b_pad = ((B + b_blk - 1) // b_blk) * b_blk

    xp = x
    if t_pad != T or b_pad != B:
        xp = jnp.pad(x, ((0, b_pad - B), (0, t_pad - T), (0, 0)))

    grid = (b_pad // b_blk,)
    kernel = functools.partial(block_kernel, b_blk=b_blk, t_pad=t_pad)

    out = pl.pallas_call(
        kernel,
        out_shape=jax.ShapeDtypeStruct((b_pad, t_pad, C), x.dtype),
        grid_spec=pltpu.PrefetchScalarGridSpec(
            num_scalar_prefetch=0,
            grid=grid,
            in_specs=[
                pl.BlockSpec((b_blk, t_pad, C), lambda i: (i, 0, 0)),   # x
                _const_spec(wqkv), _const_spec(wo), _const_spec(bo),
                _const_spec(w1), _const_spec(b1), _const_spec(w2), _const_spec(b2),
                _const_spec(g1), _const_spec(be1), _const_spec(g2), _const_spec(be2),
            ],
            out_specs=pl.BlockSpec((b_blk, t_pad, C), lambda i: (i, 0, 0)),
            scratch_shapes=[pltpu.VMEM((b_blk * t_pad, C), jnp.float32)],  # ctx acc
        ),
        compiler_params=pltpu.CompilerParams(
            dimension_semantics=("parallel",),
            vmem_limit_bytes=_vmem_limit_bytes(),
        ),
    )(xp, wqkv, wo, bo, w1, b1, w2, b2, g1, be1, g2, be2)

    return out[:B, :T]


def reference_block(x, params):
    """Pure-JAX (f32) reference of the PyTorch Block forward (eval mode)."""
    (wq, wk, wv, wo, bo, w1, b1, w2, b2, g1, be1, g2, be2) = params
    B, T, C = x.shape

    def ln(z, g, b):
        mu = jnp.mean(z, axis=-1, keepdims=True)
        var = jnp.mean((z - mu) ** 2, axis=-1, keepdims=True)
        return (z - mu) / jnp.sqrt(var + LN_EPS) * g[0] + b[0]

    h = ln(x, g1, be1)
    q = h @ wq
    k = h @ wk
    v = h @ wv
    qh = q.reshape(B, T, N_HEAD, HEAD_SIZE).transpose(0, 2, 1, 3)
    kh = k.reshape(B, T, N_HEAD, HEAD_SIZE).transpose(0, 2, 1, 3)
    vh = v.reshape(B, T, N_HEAD, HEAD_SIZE).transpose(0, 2, 1, 3)
    wei = jnp.einsum('bhtd,bhsd->bhts', qh, kh) * (C ** -0.5)
    mask = jnp.tril(jnp.ones((T, T), bool))
    wei = jnp.where(mask[None, None], wei, -jnp.inf)
    wei = jax.nn.softmax(wei, axis=-1)
    attn = jnp.einsum('bhts,bhsd->bhtd', wei, vh).transpose(0, 2, 1, 3).reshape(B, T, C)
    x1 = x + attn @ wo + bo[0]
    h2 = ln(x1, g2, be2)
    ff = jnp.maximum(h2 @ w1 + b1[0], 0.0) @ w2 + b2[0]
    return x1 + ff


def init_params(key):
    ks = jax.random.split(key, 8)
    s = 0.02
    wq = jax.random.normal(ks[0], (N_EMBD, N_EMBD), jnp.float32) * s
    wk = jax.random.normal(ks[1], (N_EMBD, N_EMBD), jnp.float32) * s
    wv = jax.random.normal(ks[2], (N_EMBD, N_EMBD), jnp.float32) * s
    wo = jax.random.normal(ks[3], (N_EMBD, N_EMBD), jnp.float32) * s
    bo = jax.random.normal(ks[4], (1, N_EMBD), jnp.float32) * s
    w1 = jax.random.normal(ks[5], (N_EMBD, 4 * N_EMBD), jnp.float32) * s
    b1 = jax.random.normal(ks[6], (1, 4 * N_EMBD), jnp.float32) * s
    w2 = jax.random.normal(ks[7], (4 * N_EMBD, N_EMBD), jnp.float32) * s
    b2 = jnp.zeros((1, N_EMBD), jnp.float32)
    g1 = jnp.ones((1, N_EMBD), jnp.float32)
    be1 = jnp.zeros((1, N_EMBD), jnp.float32)
    g2 = jnp.ones((1, N_EMBD), jnp.float32)
    be2 = jnp.zeros((1, N_EMBD), jnp.float32)
    return (wq, wk, wv, wo, bo, w1, b1, w2, b2, g1, be1, g2, be2)


if __name__ == "__main__":
    key = jax.random.PRNGKey(0)
    kx, kp = jax.random.split(key)

    B, T = 2, 8   # small batch / sequence (T <= block_size = 30)
    x = jax.random.normal(kx, (B, T, N_EMBD), jnp.float32)
    params = init_params(kp)

    # one-time parameter prep (fused QKV, bf16 weights) — reused across calls
    fused = jax.block_until_ready(fuse_params(params))

    out = transformer_block(x, fused)
    out = jax.block_until_ready(out)

    ref = reference_block(x, params)
    assert out.shape == (B, T, N_EMBD)
    # bf16 MXU operands + approx reciprocal in softmax -> compare vs f32 reference
    # with bf16-level tolerance.
    assert jnp.allclose(out, ref, atol=2e-2, rtol=2e-2), "mismatch vs reference"

    print("KERNEL_OK")
</pallas_src>

<mosaic_0001>
module attributes {stable_mosaic.version = 11 : i64} {
  func.func @block_kernel(%arg0: i32, %arg1: memref<1x8x384xf32, #tpu.memory_space<vmem>>, %arg2: memref<384x1152xbf16, #tpu.memory_space<vmem>>, %arg3: memref<384x384xbf16, #tpu.memory_space<vmem>>, %arg4: memref<1x384xf32, #tpu.memory_space<vmem>>, %arg5: memref<384x1536xbf16, #tpu.memory_space<vmem>>, %arg6: memref<1x1536xf32, #tpu.memory_space<vmem>>, %arg7: memref<1536x384xbf16, #tpu.memory_space<vmem>>, %arg8: memref<1x384xf32, #tpu.memory_space<vmem>>, %arg9: memref<1x384xf32, #tpu.memory_space<vmem>>, %arg10: memref<1x384xf32, #tpu.memory_space<vmem>>, %arg11: memref<1x384xf32, #tpu.memory_space<vmem>>, %arg12: memref<1x384xf32, #tpu.memory_space<vmem>>, %arg13: memref<1x8x384xf32, #tpu.memory_space<vmem>>, %arg14: memref<8x384xf32, #tpu.memory_space<vmem>>) attributes {dimension_semantics = [#tpu.dimension_semantics<parallel>], iteration_bounds = array<i64: 2>, scalar_prefetch = 0 : i64, scratch_operands = 1 : i64, tpu.core_type = #tpu.core_type<tc>, window_params = [{transform_indices = @transform_0, window_bounds = array<i64: 1, 8, 384>}, {pipeline_mode = #tpu.pipeline_mode<synchronous>, transform_indices = @transform_1, window_bounds = array<i64: 384, 1152>}, {pipeline_mode = #tpu.pipeline_mode<synchronous>, transform_indices = @transform_2, window_bounds = array<i64: 384, 384>}, {pipeline_mode = #tpu.pipeline_mode<synchronous>, transform_indices = @transform_3, window_bounds = array<i64: 1, 384>}, {pipeline_mode = #tpu.pipeline_mode<synchronous>, transform_indices = @transform_4, window_bounds = array<i64: 384, 1536>}, {pipeline_mode = #tpu.pipeline_mode<synchronous>, transform_indices = @transform_5, window_bounds = array<i64: 1, 1536>}, {pipeline_mode = #tpu.pipeline_mode<synchronous>, transform_indices = @transform_6, window_bounds = array<i64: 1536, 384>}, {pipeline_mode = #tpu.pipeline_mode<synchronous>, transform_indices = @transform_7, window_bounds = array<i64: 1, 384>}, {pipeline_mode = #tpu.pipeline_mode<synchronous>, transform_indices = @transform_8, window_bounds = array<i64: 1, 384>}, {pipeline_mode = #tpu.pipeline_mode<synchronous>, transform_indices = @transform_9, window_bounds = array<i64: 1, 384>}, {pipeline_mode = #tpu.pipeline_mode<synchronous>, transform_indices = @transform_10, window_bounds = array<i64: 1, 384>}, {pipeline_mode = #tpu.pipeline_mode<synchronous>, transform_indices = @transform_11, window_bounds = array<i64: 1, 384>}, {transform_indices = @transform_12, window_bounds = array<i64: 1, 8, 384>}]} {
    %c0 = arith.constant 0 : index
    %c0_0 = arith.constant 0 : index
    %c0_1 = arith.constant 0 : index
    %0 = vector.load %arg1[%c0, %c0_0, %c0_1] : memref<1x8x384xf32, #tpu.memory_space<vmem>>, vector<1x8x384xf32>
    %1 = vector.shape_cast %0 : vector<1x8x384xf32> to vector<8x384xf32>
    %c0_2 = arith.constant 0 : index
    %c0_3 = arith.constant 0 : index
    %2 = vector.load %arg9[%c0_2, %c0_3] : memref<1x384xf32, #tpu.memory_space<vmem>>, vector<1x384xf32>
    %3 = vector.shape_cast %2 : vector<1x384xf32> to vector<384xf32>
    %c0_4 = arith.constant 0 : index
    %c0_5 = arith.constant 0 : index
    %4 = vector.load %arg10[%c0_4, %c0_5] : memref<1x384xf32, #tpu.memory_space<vmem>>, vector<1x384xf32>
    %5 = vector.shape_cast %4 : vector<1x384xf32> to vector<384xf32>
    %cst = arith.constant dense<0.000000e+00> : vector<8xf32>
    %6 = vector.multi_reduction <add>, %1, %cst [1] : vector<8x384xf32> to vector<8xf32>
    %7 = vector.shape_cast %6 : vector<8xf32> to vector<8x1xf32>
    %cst_6 = arith.constant 3.840000e+02 : f32
    %8 = vector.broadcast %cst_6 : f32 to vector<8x1xf32>
    %9 = arith.divf %7, %8 : vector<8x1xf32>
    %10 = vector.broadcast %9 : vector<8x1xf32> to vector<8x384xf32>
    %11 = arith.subf %1, %10 : vector<8x384xf32>
    %12 = arith.mulf %11, %11 : vector<8x384xf32>
    %cst_7 = arith.constant dense<0.000000e+00> : vector<8xf32>
    %13 = vector.multi_reduction <add>, %12, %cst_7 [1] : vector<8x384xf32> to vector<8xf32>
    %14 = vector.shape_cast %13 : vector<8xf32> to vector<8x1xf32>
    %cst_8 = arith.constant 3.840000e+02 : f32
    %15 = vector.broadcast %cst_8 : f32 to vector<8x1xf32>
    %16 = arith.divf %14, %15 : vector<8x1xf32>
    %17 = vector.broadcast %9 : vector<8x1xf32> to vector<8x384xf32>
    %18 = arith.subf %1, %17 : vector<8x384xf32>
    %cst_9 = arith.constant 9.99999974E-6 : f32
    %19 = vector.broadcast %cst_9 : f32 to vector<8x1xf32>
    %20 = arith.addf %16, %19 : vector<8x1xf32>
    %21 = math.rsqrt %20 : vector<8x1xf32>
    %22 = vector.broadcast %21 : vector<8x1xf32> to vector<8x384xf32>
    %23 = arith.mulf %18, %22 : vector<8x384xf32>
    %24 = vector.shape_cast %3 : vector<384xf32> to vector<1x384xf32>
    %25 = vector.broadcast %24 : vector<1x384xf32> to vector<8x384xf32>
    %26 = arith.mulf %23, %25 : vector<8x384xf32>
    %27 = vector.shape_cast %5 : vector<384xf32> to vector<1x384xf32>
    %28 = vector.broadcast %27 : vector<1x384xf32> to vector<8x384xf32>
    %29 = arith.addf %26, %28 : vector<8x384xf32>
    %30 = arith.truncf %29 : vector<8x384xf32> to vector<8x384xbf16>
    %c0_10 = arith.constant 0 : index
    %c0_11 = arith.constant 0 : index
    %31 = vector.load %arg2[%c0_10, %c0_11] : memref<384x1152xbf16, #tpu.memory_space<vmem>>, vector<384x1152xbf16>
    %cst_12 = arith.constant dense<0.000000e+00> : vector<8x1152xf32>
    %32 = tpu.matmul %30, %31, %cst_12 {dimension_numbers = #tpu.dot_dimension_numbers<[1], [0], [0], [1], [0, 0, 1, 1], [], []>} : vector<8x384xbf16>, vector<384x1152xbf16>, vector<8x1152xf32> -> vector<8x1152xf32>
    %33 = arith.truncf %32 : vector<8x1152xf32> to vector<8x1152xbf16>
    %34 = vector.shape_cast %33 : vector<8x1152xbf16> to vector<1x8x1152xbf16>
    %35 = tpu.iota {dimensions = array<i32: 0>} : vector<8x8xi32>
    %36 = tpu.iota {dimensions = array<i32: 1>} : vector<8x8xi32>
    %37 = arith.cmpi sge, %35, %36 : vector<8x8xi32>
    %38 = vector.extract_strided_slice %34 {offsets = [0, 0, 0], sizes = [1, 8, 64], strides = [1, 1, 1]} : vector<1x8x1152xbf16> to vector<1x8x64xbf16>
    %39 = vector.extract_strided_slice %34 {offsets = [0, 0, 384], sizes = [1, 8, 64], strides = [1, 1, 1]} : vector<1x8x1152xbf16> to vector<1x8x64xbf16>
    %40 = vector.extract_strided_slice %34 {offsets = [0, 0, 768], sizes = [1, 8, 64], strides = [1, 1, 1]} : vector<1x8x1152xbf16> to vector<1x8x64xbf16>
    "tpu.trace_start"() <{level = 10 : i32, message = "bqd,bkd->bqk"}> : () -> ()
    %cst_13 = arith.constant dense<0.000000e+00> : vector<1x8x8xf32>
    %41 = tpu.matmul %38, %39, %cst_13 {dimension_numbers = #tpu.dot_dimension_numbers<[2], [2], [1], [1], [0, 0, 0, 1, 1, 1], [0], [0]>} : vector<1x8x64xbf16>, vector<1x8x64xbf16>, vector<1x8x8xf32> -> vector<1x8x8xf32>
    "tpu.trace_stop"() : () -> ()
    %cst_14 = arith.constant 0.0510310382 : f32
    %42 = vector.broadcast %cst_14 : f32 to vector<1x8x8xf32>
    %43 = arith.mulf %41, %42 : vector<1x8x8xf32>
    %cst_15 = arith.constant 0xFF800000 : f32
    %44 = vector.shape_cast %37 : vector<8x8xi1> to vector<1x8x8xi1>
    %45 = vector.broadcast %cst_15 : f32 to vector<1x8x8xf32>
    %46 = arith.select %44, %43, %45 : vector<1x8x8xi1>, vector<1x8x8xf32>
    %cst_16 = arith.constant dense<0xFF800000> : vector<1x8xf32>
    %47 = vector.multi_reduction <maximumf>, %46, %cst_16 [2] : vector<1x8x8xf32> to vector<1x8xf32>
    %48 = vector.shape_cast %47 : vector<1x8xf32> to vector<1x8x1xf32>
    %49 = vector.broadcast %48 : vector<1x8x1xf32> to vector<1x8x8xf32>
    %50 = arith.subf %46, %49 : vector<1x8x8xf32>
    %51 = math.exp %50 : vector<1x8x8xf32>
    %cst_17 = arith.constant dense<0.000000e+00> : vector<1x8xf32>
    %52 = vector.multi_reduction <add>, %51, %cst_17 [2] : vector<1x8x8xf32> to vector<1x8xf32>
    %53 = vector.shape_cast %52 : vector<1x8xf32> to vector<1x8x1xf32>
    %54 = tpu.reciprocal %53 {approx = true} : vector<1x8x1xf32> -> vector<1x8x1xf32>
    %55 = vector.broadcast %54 : vector<1x8x1xf32> to vector<1x8x8xf32>
    %56 = arith.mulf %51, %55 : vector<1x8x8xf32>
    %57 = arith.truncf %56 : vector<1x8x8xf32> to vector<1x8x8xbf16>
    "tpu.trace_start"() <{level = 10 : i32, message = "bqk,bkd->bqd"}> : () -> ()
    %cst_18 = arith.constant dense<0.000000e+00> : vector<1x8x64xf32>
    %58 = tpu.matmul %57, %40, %cst_18 {dimension_numbers = #tpu.dot_dimension_numbers<[2], [1], [1], [2], [0, 0, 0, 1, 1, 2], [0], [0]>} : vector<1x8x8xbf16>, vector<1x8x64xbf16>, vector<1x8x64xf32> -> vector<1x8x64xf32>
    "tpu.trace_stop"() : () -> ()
    %59 = vector.shape_cast %58 : vector<1x8x64xf32> to vector<8x64xf32>
    %c0_19 = arith.constant 0 : index
    %c0_20 = arith.constant 0 : index
    %60 = vector.load %arg14[%c0_19, %c0_20] : memref<8x384xf32, #tpu.memory_space<vmem>>, vector<8x64xf32>
    tpu.vector_store %arg14[%c0_19, %c0_20], %59 {strides = array<i32>} : memref<8x384xf32, #tpu.memory_space<vmem>>, vector<8x64xf32>,
    %61 = vector.extract_strided_slice %34 {offsets = [0, 0, 64], sizes = [1, 8, 64], strides = [1, 1, 1]} : vector<1x8x1152xbf16> to vector<1x8x64xbf16>
    %62 = vector.extract_strided_slice %34 {offsets = [0, 0, 448], sizes = [1, 8, 64], strides = [1, 1, 1]} : vector<1x8x1152xbf16> to vector<1x8x64xbf16>
    %63 = vector.extract_strided_slice %34 {offsets = [0, 0, 832], sizes = [1, 8, 64], strides = [1, 1, 1]} : vector<1x8x1152xbf16> to vector<1x8x64xbf16>
    "tpu.trace_start"() <{level = 10 : i32, message = "bqd,bkd->bqk"}> : () -> ()
    %cst_21 = arith.constant dense<0.000000e+00> : vector<1x8x8xf32>
    %64 = tpu.matmul %61, %62, %cst_21 {dimension_numbers = #tpu.dot_dimension_numbers<[2], [2], [1], [1], [0, 0, 0, 1, 1, 1], [0], [0]>} : vector<1x8x64xbf16>, vector<1x8x64xbf16>, vector<1x8x8xf32> -> vector<1x8x8xf32>
    "tpu.trace_stop"() : () -> ()
    %cst_22 = arith.constant 0.0510310382 : f32
    %65 = vector.broadcast %cst_22 : f32 to vector<1x8x8xf32>
    %66 = arith.mulf %64, %65 : vector<1x8x8xf32>
    %cst_23 = arith.constant 0xFF800000 : f32
    %67 = vector.shape_cast %37 : vector<8x8xi1> to vector<1x8x8xi1>
    %68 = vector.broadcast %cst_23 : f32 to vector<1x8x8xf32>
    %69 = arith.select %67, %66, %68 : vector<1x8x8xi1>, vector<1x8x8xf32>
    %cst_24 = arith.constant dense<0xFF800000> : vector<1x8xf32>
    %70 = vector.multi_reduction <maximumf>, %69, %cst_24 [2] : vector<1x8x8xf32> to vector<1x8xf32>
    %71 = vector.shape_cast %70 : vector<1x8xf32> to vector<1x8x1xf32>
    %72 = vector.broadcast %71 : vector<1x8x1xf32> to vector<1x8x8xf32>
    %73 = arith.subf %69, %72 : vector<1x8x8xf32>
    %74 = math.exp %73 : vector<1x8x8xf32>
    %cst_25 = arith.constant dense<0.000000e+00> : vector<1x8xf32>
    %75 = vector.multi_reduction <add>, %74, %cst_25 [2] : vector<1x8x8xf32> to vector<1x8xf32>
    %76 = vector.shape_cast %75 : vector<1x8xf32> to vector<1x8x1xf32>
    %77 = tpu.reciprocal %76 {approx = true} : vector<1x8x1xf32> -> vector<1x8x1xf32>
    %78 = vector.broadcast %77 : vector<1x8x1xf32> to vector<1x8x8xf32>
    %79 = arith.mulf %74, %78 : vector<1x8x8xf32>
    %80 = arith.truncf %79 : vector<1x8x8xf32> to vector<1x8x8xbf16>
    "tpu.trace_start"() <{level = 10 : i32, message = "bqk,bkd->bqd"}> : () -> ()
    %cst_26 = arith.constant dense<0.000000e+00> : vector<1x8x64xf32>
    %81 = tpu.matmul %80, %63, %cst_26 {dimension_numbers = #tpu.dot_dimension_numbers<[2], [1], [1], [2], [0, 0, 0, 1, 1, 2], [0], [0]>} : vector<1x8x8xbf16>, vector<1x8x64xbf16>, vector<1x8x64xf32> -> vector<1x8x64xf32>
    "tpu.trace_stop"() : () -> ()
    %82 = vector.shape_cast %81 : vector<1x8x64xf32> to vector<8x64xf32>
    %c0_27 = arith.constant 0 : index
    %c64 = arith.constant 64 : index
    %83 = vector.load %arg14[%c0_27, %c64] : memref<8x384xf32, #tpu.memory_space<vmem>>, vector<8x64xf32>
    tpu.vector_store %arg14[%c0_27, %c64], %82 {strides = array<i32>} : memref<8x384xf32, #tpu.memory_space<vmem>>, vector<8x64xf32>,
    %84 = vector.extract_strided_slice %34 {offsets = [0, 0, 128], sizes = [1, 8, 64], strides = [1, 1, 1]} : vector<1x8x1152xbf16> to vector<1x8x64xbf16>
    %85 = vector.extract_strided_slice %34 {offsets = [0, 0, 512], sizes = [1, 8, 64], strides = [1, 1, 1]} : vector<1x8x1152xbf16> to vector<1x8x64xbf16>
    %86 = vector.extract_strided_slice %34 {offsets = [0, 0, 896], sizes = [1, 8, 64], strides = [1, 1, 1]} : vector<1x8x1152xbf16> to vector<1x8x64xbf16>
    "tpu.trace_start"() <{level = 10 : i32, message = "bqd,bkd->bqk"}> : () -> ()
    %cst_28 = arith.constant dense<0.000000e+00> : vector<1x8x8xf32>
    %87 = tpu.matmul %84, %85, %cst_28 {dimension_numbers = #tpu.dot_dimension_numbers<[2], [2], [1], [1], [0, 0, 0, 1, 1, 1], [0], [0]>} : vector<1x8x64xbf16>, vector<1x8x64xbf16>, vector<1x8x8xf32> -> vector<1x8x8xf32>
    "tpu.trace_stop"() : () -> ()
    %cst_29 = arith.constant 0.0510310382 : f32
    %88 = vector.broadcast %cst_29 : f32 to vector<1x8x8xf32>
    %89 = arith.mulf %87, %88 : vector<1x8x8xf32>
    %cst_30 = arith.constant 0xFF800000 : f32
    %90 = vector.shape_cast %37 : vector<8x8xi1> to vector<1x8x8xi1>
    %91 = vector.broadcast %cst_30 : f32 to vector<1x8x8xf32>
    %92 = arith.select %90, %89, %91 : vector<1x8x8xi1>, vector<1x8x8xf32>
    %cst_31 = arith.constant dense<0xFF800000> : vector<1x8xf32>
    %93 = vector.multi_reduction <maximumf>, %92, %cst_31 [2] : vector<1x8x8xf32> to vector<1x8xf32>
    %94 = vector.shape_cast %93 : vector<1x8xf32> to vector<1x8x1xf32>
    %95 = vector.broadcast %94 : vector<1x8x1xf32> to vector<1x8x8xf32>
    %96 = arith.subf %92, %95 : vector<1x8x8xf32>
    %97 = math.exp %96 : vector<1x8x8xf32>
    %cst_32 = arith.constant dense<0.000000e+00> : vector<1x8xf32>
    %98 = vector.multi_reduction <add>, %97, %cst_32 [2] : vector<1x8x8xf32> to vector<1x8xf32>
    %99 = vector.shape_cast %98 : vector<1x8xf32> to vector<1x8x1xf32>
    %100 = tpu.reciprocal %99 {approx = true} : vector<1x8x1xf32> -> vector<1x8x1xf32>
    %101 = vector.broadcast %100 : vector<1x8x1xf32> to vector<1x8x8xf32>
    %102 = arith.mulf %97, %101 : vector<1x8x8xf32>
    %103 = arith.truncf %102 : vector<1x8x8xf32> to vector<1x8x8xbf16>
    "tpu.trace_start"() <{level = 10 : i32, message = "bqk,bkd->bqd"}> : () -> ()
    %cst_33 = arith.constant dense<0.000000e+00> : vector<1x8x64xf32>
    %104 = tpu.matmul %103, %86, %cst_33 {dimension_numbers = #tpu.dot_dimension_numbers<[2], [1], [1], [2], [0, 0, 0, 1, 1, 2], [0], [0]>} : vector<1x8x8xbf16>, vector<1x8x64xbf16>, vector<1x8x64xf32> -> vector<1x8x64xf32>
    "tpu.trace_stop"() : () -> ()
    %105 = vector.shape_cast %104 : vector<1x8x64xf32> to vector<8x64xf32>
    %c0_34 = arith.constant 0 : index
    %c128 = arith.constant 128 : index
    %106 = vector.load %arg14[%c0_34, %c128] : memref<8x384xf32, #tpu.memory_space<vmem>>, vector<8x64xf32>
    tpu.vector_store %arg14[%c0_34, %c128], %105 {strides = array<i32>} : memref<8x384xf32, #tpu.memory_space<vmem>>, vector<8x64xf32>,
    %107 = vector.extract_strided_slice %34 {offsets = [0, 0, 192], sizes = [1, 8, 64], strides = [1, 1, 1]} : vector<1x8x1152xbf16> to vector<1x8x64xbf16>
    %108 = vector.extract_strided_slice %34 {offsets = [0, 0, 576], sizes = [1, 8, 64], strides = [1, 1, 1]} : vector<1x8x1152xbf16> to vector<1x8x64xbf16>
    %109 = vector.extract_strided_slice %34 {offsets = [0, 0, 960], sizes = [1, 8, 64], strides = [1, 1, 1]} : vector<1x8x1152xbf16> to vector<1x8x64xbf16>
    "tpu.trace_start"() <{level = 10 : i32, message = "bqd,bkd->bqk"}> : () -> ()
    %cst_35 = arith.constant dense<0.000000e+00> : vector<1x8x8xf32>
    %110 = tpu.matmul %107, %108, %cst_35 {dimension_numbers = #tpu.dot_dimension_numbers<[2], [2], [1], [1], [0, 0, 0, 1, 1, 1], [0], [0]>} : vector<1x8x64xbf16>, vector<1x8x64xbf16>, vector<1x8x8xf32> -> vector<1x8x8xf32>
    "tpu.trace_stop"() : () -> ()
    %cst_36 = arith.constant 0.0510310382 : f32
    %111 = vector.broadcast %cst_36 : f32 to vector<1x8x8xf32>
    %112 = arith.mulf %110, %111 : vector<1x8x8xf32>
    %cst_37 = arith.constant 0xFF800000 : f32
    %113 = vector.shape_cast %37 : vector<8x8xi1> to vector<1x8x8xi1>
    %114 = vector.broadcast %cst_37 : f32 to vector<1x8x8xf32>
    %115 = arith.select %113, %112, %114 : vector<1x8x8xi1>, vector<1x8x8xf32>
    %cst_38 = arith.constant dense<0xFF800000> : vector<1x8xf32>
    %116 = vector.multi_reduction <maximumf>, %115, %cst_38 [2] : vector<1x8x8xf32> to vector<1x8xf32>
    %117 = vector.shape_cast %116 : vector<1x8xf32> to vector<1x8x1xf32>
    %118 = vector.broadcast %117 : vector<1x8x1xf32> to vector<1x8x8xf32>
    %119 = arith.subf %115, %118 : vector<1x8x8xf32>
    %120 = math.exp %119 : vector<1x8x8xf32>
    %cst_39 = arith.constant dense<0.000000e+00> : vector<1x8xf32>
    %121 = vector.multi_reduction <add>, %120, %cst_39 [2] : vector<1x8x8xf32> to vector<1x8xf32>
    %122 = vector.shape_cast %121 : vector<1x8xf32> to vector<1x8x1xf32>
    %123 = tpu.reciprocal %122 {approx = true} : vector<1x8x1xf32> -> vector<1x8x1xf32>
    %124 = vector.broadcast %123 : vector<1x8x1xf32> to vector<1x8x8xf32>
    %125 = arith.mulf %120, %124 : vector<1x8x8xf32>
    %126 = arith.truncf %125 : vector<1x8x8xf32> to vector<1x8x8xbf16>
    "tpu.trace_start"() <{level = 10 : i32, message = "bqk,bkd->bqd"}> : () -> ()
    %cst_40 = arith.constant dense<0.000000e+00> : vector<1x8x64xf32>
    %127 = tpu.matmul %126, %109, %cst_40 {dimension_numbers = #tpu.dot_dimension_numbers<[2], [1], [1], [2], [0, 0, 0, 1, 1, 2], [0], [0]>} : vector<1x8x8xbf16>, vector<1x8x64xbf16>, vector<1x8x64xf32> -> vector<1x8x64xf32>
    "tpu.trace_stop"() : () -> ()
    %128 = vector.shape_cast %127 : vector<1x8x64xf32> to vector<8x64xf32>
    %c0_41 = arith.constant 0 : index
    %c192 = arith.constant 192 : index
    %129 = vector.load %arg14[%c0_41, %c192] : memref<8x384xf32, #tpu.memory_space<vmem>>, vector<8x64xf32>
    tpu.vector_store %arg14[%c0_41, %c192], %128 {strides = array<i32>} : memref<8x384xf32, #tpu.memory_space<vmem>>, vector<8x64xf32>,
    %130 = vector.extract_strided_slice %34 {offsets = [0, 0, 256], sizes = [1, 8, 64], strides = [1, 1, 1]} : vector<1x8x1152xbf16> to vector<1x8x64xbf16>
    %131 = vector.extract_strided_slice %34 {offsets = [0, 0, 640], sizes = [1, 8, 64], strides = [1, 1, 1]} : vector<1x8x1152xbf16> to vector<1x8x64xbf16>
    %132 = vector.extract_strided_slice %34 {offsets = [0, 0, 1024], sizes = [1, 8, 64], strides = [1, 1, 1]} : vector<1x8x1152xbf16> to vector<1x8x64xbf16>
    "tpu.trace_start"() <{level = 10 : i32, message = "bqd,bkd->bqk"}> : () -> ()
    %cst_42 = arith.constant dense<0.000000e+00> : vector<1x8x8xf32>
    %133 = tpu.matmul %130, %131, %cst_42 {dimension_numbers = #tpu.dot_dimension_numbers<[2], [2], [1], [1], [0, 0, 0, 1, 1, 1], [0], [0]>} : vector<1x8x64xbf16>, vector<1x8x64xbf16>, vector<1x8x8xf32> -> vector<1x8x8xf32>
    "tpu.trace_stop"() : () -> ()
    %cst_43 = arith.constant 0.0510310382 : f32
    %134 = vector.broadcast %cst_43 : f32 to vector<1x8x8xf32>
    %135 = arith.mulf %133, %134 : vector<1x8x8xf32>
    %cst_44 = arith.constant 0xFF800000 : f32
    %136 = vector.shape_cast %37 : vector<8x8xi1> to vector<1x8x8xi1>
    %137 = vector.broadcast %cst_44 : f32 to vector<1x8x8xf32>
    %138 = arith.select %136, %135, %137 : vector<1x8x8xi1>, vector<1x8x8xf32>
    %cst_45 = arith.constant dense<0xFF800000> : vector<1x8xf32>
    %139 = vector.multi_reduction <maximumf>, %138, %cst_45 [2] : vector<1x8x8xf32> to vector<1x8xf32>
    %140 = vector.shape_cast %139 : vector<1x8xf32> to vector<1x8x1xf32>
    %141 = vector.broadcast %140 : vector<1x8x1xf32> to vector<1x8x8xf32>
    %142 = arith.subf %138, %141 : vector<1x8x8xf32>
    %143 = math.exp %142 : vector<1x8x8xf32>
    %cst_46 = arith.constant dense<0.000000e+00> : vector<1x8xf32>
    %144 = vector.multi_reduction <add>, %143, %cst_46 [2] : vector<1x8x8xf32> to vector<1x8xf32>
    %145 = vector.shape_cast %144 : vector<1x8xf32> to vector<1x8x1xf32>
    %146 = tpu.reciprocal %145 {approx = true} : vector<1x8x1xf32> -> vector<1x8x1xf32>
    %147 = vector.broadcast %146 : vector<1x8x1xf32> to vector<1x8x8xf32>
    %148 = arith.mulf %143, %147 : vector<1x8x8xf32>
    %149 = arith.truncf %148 : vector<1x8x8xf32> to vector<1x8x8xbf16>
    "tpu.trace_start"() <{level = 10 : i32, message = "bqk,bkd->bqd"}> : () -> ()
    %cst_47 = arith.constant dense<0.000000e+00> : vector<1x8x64xf32>
    %150 = tpu.matmul %149, %132, %cst_47 {dimension_numbers = #tpu.dot_dimension_numbers<[2], [1], [1], [2], [0, 0, 0, 1, 1, 2], [0], [0]>} : vector<1x8x8xbf16>, vector<1x8x64xbf16>, vector<1x8x64xf32> -> vector<1x8x64xf32>
    "tpu.trace_stop"() : () -> ()
    %151 = vector.shape_cast %150 : vector<1x8x64xf32> to vector<8x64xf32>
    %c0_48 = arith.constant 0 : index
    %c256 = arith.constant 256 : index
    %152 = vector.load %arg14[%c0_48, %c256] : memref<8x384xf32, #tpu.memory_space<vmem>>, vector<8x64xf32>
    tpu.vector_store %arg14[%c0_48, %c256], %151 {strides = array<i32>} : memref<8x384xf32, #tpu.memory_space<vmem>>, vector<8x64xf32>,
    %153 = vector.extract_strided_slice %34 {offsets = [0, 0, 320], sizes = [1, 8, 64], strides = [1, 1, 1]} : vector<1x8x1152xbf16> to vector<1x8x64xbf16>
    %154 = vector.extract_strided_slice %34 {offsets = [0, 0, 704], sizes = [1, 8, 64], strides = [1, 1, 1]} : vector<1x8x1152xbf16> to vector<1x8x64xbf16>
    %155 = vector.extract_strided_slice %34 {offsets = [0, 0, 1088], sizes = [1, 8, 64], strides = [1, 1, 1]} : vector<1x8x1152xbf16> to vector<1x8x64xbf16>
    "tpu.trace_start"() <{level = 10 : i32, message = "bqd,bkd->bqk"}> : () -> ()
    %cst_49 = arith.constant dense<0.000000e+00> : vector<1x8x8xf32>
    %156 = tpu.matmul %153, %154, %cst_49 {dimension_numbers = #tpu.dot_dimension_numbers<[2], [2], [1], [1], [0, 0, 0, 1, 1, 1], [0], [0]>} : vector<1x8x64xbf16>, vector<1x8x64xbf16>, vector<1x8x8xf32> -> vector<1x8x8xf32>
    "tpu.trace_stop"() : () -> ()
    %cst_50 = arith.constant 0.0510310382 : f32
    %157 = vector.broadcast %cst_50 : f32 to vector<1x8x8xf32>
    %158 = arith.mulf %156, %157 : vector<1x8x8xf32>
    %cst_51 = arith.constant 0xFF800000 : f32
    %159 = vector.shape_cast %37 : vector<8x8xi1> to vector<1x8x8xi1>
    %160 = vector.broadcast %cst_51 : f32 to vector<1x8x8xf32>
    %161 = arith.select %159, %158, %160 : vector<1x8x8xi1>, vector<1x8x8xf32>
    %cst_52 = arith.constant dense<0xFF800000> : vector<1x8xf32>
    %162 = vector.multi_reduction <maximumf>, %161, %cst_52 [2] : vector<1x8x8xf32> to vector<1x8xf32>
    %163 = vector.shape_cast %162 : vector<1x8xf32> to vector<1x8x1xf32>
    %164 = vector.broadcast %163 : vector<1x8x1xf32> to vector<1x8x8xf32>
    %165 = arith.subf %161, %164 : vector<1x8x8xf32>
    %166 = math.exp %165 : vector<1x8x8xf32>
    %cst_53 = arith.constant dense<0.000000e+00> : vector<1x8xf32>
    %167 = vector.multi_reduction <add>, %166, %cst_53 [2] : vector<1x8x8xf32> to vector<1x8xf32>
    %168 = vector.shape_cast %167 : vector<1x8xf32> to vector<1x8x1xf32>
    %169 = tpu.reciprocal %168 {approx = true} : vector<1x8x1xf32> -> vector<1x8x1xf32>
    %170 = vector.broadcast %169 : vector<1x8x1xf32> to vector<1x8x8xf32>
    %171 = arith.mulf %166, %170 : vector<1x8x8xf32>
    %172 = arith.truncf %171 : vector<1x8x8xf32> to vector<1x8x8xbf16>
    "tpu.trace_start"() <{level = 10 : i32, message = "bqk,bkd->bqd"}> : () -> ()
    %cst_54 = arith.constant dense<0.000000e+00> : vector<1x8x64xf32>
    %173 = tpu.matmul %172, %155, %cst_54 {dimension_numbers = #tpu.dot_dimension_numbers<[2], [1], [1], [2], [0, 0, 0, 1, 1, 2], [0], [0]>} : vector<1x8x8xbf16>, vector<1x8x64xbf16>, vector<1x8x64xf32> -> vector<1x8x64xf32>
    "tpu.trace_stop"() : () -> ()
    %174 = vector.shape_cast %173 : vector<1x8x64xf32> to vector<8x64xf32>
    %c0_55 = arith.constant 0 : index
    %c320 = arith.constant 320 : index
    %175 = vector.load %arg14[%c0_55, %c320] : memref<8x384xf32, #tpu.memory_space<vmem>>, vector<8x64xf32>
    tpu.vector_store %arg14[%c0_55, %c320], %174 {strides = array<i32>} : memref<8x384xf32, #tpu.memory_space<vmem>>, vector<8x64xf32>,
    %c0_56 = arith.constant 0 : index
    %c0_57 = arith.constant 0 : index
    %176 = vector.load %arg14[%c0_56, %c0_57] : memref<8x384xf32, #tpu.memory_space<vmem>>, vector<8x384xf32>
    %177 = arith.truncf %176 : vector<8x384xf32> to vector<8x384xbf16>
    %c0_58 = arith.constant 0 : index
    %c0_59 = arith.constant 0 : index
    %178 = vector.load %arg3[%c0_58, %c0_59] : memref<384x384xbf16, #tpu.memory_space<vmem>>, vector<384x384xbf16>
    %cst_60 = arith.constant dense<0.000000e+00> : vector<8x384xf32>
    %179 = tpu.matmul %177, %178, %cst_60 {dimension_numbers = #tpu.dot_dimension_numbers<[1], [0], [0], [1], [0, 0, 1, 1], [], []>} : vector<8x384xbf16>, vector<384x384xbf16>, vector<8x384xf32> -> vector<8x384xf32>
    %c0_61 = arith.constant 0 : index
    %c0_62 = arith.constant 0 : index
    %180 = vector.load %arg4[%c0_61, %c0_62] : memref<1x384xf32, #tpu.memory_space<vmem>>, vector<1x384xf32>
    %181 = vector.shape_cast %180 : vector<1x384xf32> to vector<384xf32>
    %182 = vector.shape_cast %181 : vector<384xf32> to vector<1x384xf32>
    %183 = vector.broadcast %182 : vector<1x384xf32> to vector<8x384xf32>
    %184 = arith.addf %179, %183 : vector<8x384xf32>
    %185 = arith.addf %1, %184 : vector<8x384xf32>
    %c0_63 = arith.constant 0 : index
    %c0_64 = arith.constant 0 : index
    %186 = vector.load %arg11[%c0_63, %c0_64] : memref<1x384xf32, #tpu.memory_space<vmem>>, vector<1x384xf32>
    %187 = vector.shape_cast %186 : vector<1x384xf32> to vector<384xf32>
    %c0_65 = arith.constant 0 : index
    %c0_66 = arith.constant 0 : index
    %188 = vector.load %arg12[%c0_65, %c0_66] : memref<1x384xf32, #tpu.memory_space<vmem>>, vector<1x384xf32>
    %189 = vector.shape_cast %188 : vector<1x384xf32> to vector<384xf32>
    %cst_67 = arith.constant dense<0.000000e+00> : vector<8xf32>
    %190 = vector.multi_reduction <add>, %185, %cst_67 [1] : vector<8x384xf32> to vector<8xf32>
    %191 = vector.shape_cast %190 : vector<8xf32> to vector<8x1xf32>
    %cst_68 = arith.constant 3.840000e+02 : f32
    %192 = vector.broadcast %cst_68 : f32 to vector<8x1xf32>
    %193 = arith.divf %191, %192 : vector<8x1xf32>
    %194 = vector.broadcast %193 : vector<8x1xf32> to vector<8x384xf32>
    %195 = arith.subf %185, %194 : vector<8x384xf32>
    %196 = arith.mulf %195, %195 : vector<8x384xf32>
    %cst_69 = arith.constant dense<0.000000e+00> : vector<8xf32>
    %197 = vector.multi_reduction <add>, %196, %cst_69 [1] : vector<8x384xf32> to vector<8xf32>
    %198 = vector.shape_cast %197 : vector<8xf32> to vector<8x1xf32>
    %cst_70 = arith.constant 3.840000e+02 : f32
    %199 = vector.broadcast %cst_70 : f32 to vector<8x1xf32>
    %200 = arith.divf %198, %199 : vector<8x1xf32>
    %201 = vector.broadcast %193 : vector<8x1xf32> to vector<8x384xf32>
    %202 = arith.subf %185, %201 : vector<8x384xf32>
    %cst_71 = arith.constant 9.99999974E-6 : f32
    %203 = vector.broadcast %cst_71 : f32 to vector<8x1xf32>
    %204 = arith.addf %200, %203 : vector<8x1xf32>
    %205 = math.rsqrt %204 : vector<8x1xf32>
    %206 = vector.broadcast %205 : vector<8x1xf32> to vector<8x384xf32>
    %207 = arith.mulf %202, %206 : vector<8x384xf32>
    %208 = vector.shape_cast %187 : vector<384xf32> to vector<1x384xf32>
    %209 = vector.broadcast %208 : vector<1x384xf32> to vector<8x384xf32>
    %210 = arith.mulf %207, %209 : vector<8x384xf32>
    %211 = vector.shape_cast %189 : vector<384xf32> to vector<1x384xf32>
    %212 = vector.broadcast %211 : vector<1x384xf32> to vector<8x384xf32>
    %213 = arith.addf %210, %212 : vector<8x384xf32>
    %214 = arith.truncf %213 : vector<8x384xf32> to vector<8x384xbf16>
    %c0_72 = arith.constant 0 : index
    %c0_73 = arith.constant 0 : index
    %215 = vector.load %arg5[%c0_72, %c0_73] : memref<384x1536xbf16, #tpu.memory_space<vmem>>, vector<384x1536xbf16>
    %cst_74 = arith.constant dense<0.000000e+00> : vector<8x1536xf32>
    %216 = tpu.matmul %214, %215, %cst_74 {dimension_numbers = #tpu.dot_dimension_numbers<[1], [0], [0], [1], [0, 0, 1, 1], [], []>} : vector<8x384xbf16>, vector<384x1536xbf16>, vector<8x1536xf32> -> vector<8x1536xf32>
    %c0_75 = arith.constant 0 : index
    %c0_76 = arith.constant 0 : index
    %217 = vector.load %arg6[%c0_75, %c0_76] : memref<1x1536xf32, #tpu.memory_space<vmem>>, vector<1x1536xf32>
    %218 = vector.shape_cast %217 : vector<1x1536xf32> to vector<1536xf32>
    %219 = vector.shape_cast %218 : vector<1536xf32> to vector<1x1536xf32>
    %220 = vector.broadcast %219 : vector<1x1536xf32> to vector<8x1536xf32>
    %221 = arith.addf %216, %220 : vector<8x1536xf32>
    %cst_77 = arith.constant 0.000000e+00 : f32
    %222 = vector.broadcast %cst_77 : f32 to vector<8x1536xf32>
    %223 = arith.maximumf %221, %222 : vector<8x1536xf32>
    %224 = arith.truncf %223 : vector<8x1536xf32> to vector<8x1536xbf16>
    %c0_78 = arith.constant 0 : index
    %c0_79 = arith.constant 0 : index
    %225 = vector.load %arg7[%c0_78, %c0_79] : memref<1536x384xbf16, #tpu.memory_space<vmem>>, vector<1536x384xbf16>
    %cst_80 = arith.constant dense<0.000000e+00> : vector<8x384xf32>
    %226 = tpu.matmul %224, %225, %cst_80 {dimension_numbers = #tpu.dot_dimension_numbers<[1], [0], [0], [1], [0, 0, 1, 1], [], []>} : vector<8x1536xbf16>, vector<1536x384xbf16>, vector<8x384xf32> -> vector<8x384xf32>
    %c0_81 = arith.constant 0 : index
    %c0_82 = arith.constant 0 : index
    %227 = vector.load %arg8[%c0_81, %c0_82] : memref<1x384xf32, #tpu.memory_space<vmem>>, vector<1x384xf32>
    %228 = vector.shape_cast %227 : vector<1x384xf32> to vector<384xf32>
    %229 = vector.shape_cast %228 : vector<384xf32> to vector<1x384xf32>
    %230 = vector.broadcast %229 : vector<1x384xf32> to vector<8x384xf32>
    %231 = arith.addf %226, %230 : vector<8x384xf32>
    %232 = arith.addf %185, %231 : vector<8x384xf32>
    %233 = vector.shape_cast %232 : vector<8x384xf32> to vector<1x8x384xf32>
    %c0_83 = arith.constant 0 : index
    %c0_84 = arith.constant 0 : index
    %c0_85 = arith.constant 0 : index
    %234 = vector.load %arg13[%c0_83, %c0_84, %c0_85] : memref<1x8x384xf32, #tpu.memory_space<vmem>>, vector<1x8x384xf32>
    tpu.vector_store %arg13[%c0_83, %c0_84, %c0_85], %233 {strides = array<i32>} : memref<1x8x384xf32, #tpu.memory_space<vmem>>, vector<1x8x384xf32>,
    return
  }
  func.func @transform_0(%arg0: i32) -> (i32, i32, i32) {
    %c0_i32 = arith.constant 0 : i32
    %c0_i32_0 = arith.constant 0 : i32
    %c0_i32_1 = arith.constant 0 : i32
    return %arg0, %c0_i32, %c0_i32_0 : i32, i32, i32
  }
  func.func @transform_1(%arg0: i32) -> (i32, i32) {
    %c0_i32 = arith.constant 0 : i32
    %c0_i32_0 = arith.constant 0 : i32
    %c0_i32_1 = arith.constant 0 : i32
    return %c0_i32, %c0_i32_0 : i32, i32
  }
  func.func @transform_2(%arg0: i32) -> (i32, i32) {
    %c0_i32 = arith.constant 0 : i32
    %c0_i32_0 = arith.constant 0 : i32
    %c0_i32_1 = arith.constant 0 : i32
    return %c0_i32, %c0_i32_0 : i32, i32
  }
  func.func @transform_3(%arg0: i32) -> (i32, i32) {
    %c0_i32 = arith.constant 0 : i32
    %c0_i32_0 = arith.constant 0 : i32
    %c0_i32_1 = arith.constant 0 : i32
    return %c0_i32, %c0_i32_0 : i32, i32
  }
  func.func @transform_4(%arg0: i32) -> (i32, i32) {
    %c0_i32 = arith.constant 0 : i32
    %c0_i32_0 = arith.constant 0 : i32
    %c0_i32_1 = arith.constant 0 : i32
    return %c0_i32, %c0_i32_0 : i32, i32
  }
  func.func @transform_5(%arg0: i32) -> (i32, i32) {
    %c0_i32 = arith.constant 0 : i32
    %c0_i32_0 = arith.constant 0 : i32
    %c0_i32_1 = arith.constant 0 : i32
    return %c0_i32, %c0_i32_0 : i32, i32
  }
  func.func @transform_6(%arg0: i32) -> (i32, i32) {
    %c0_i32 = arith.constant 0 : i32
    %c0_i32_0 = arith.constant 0 : i32
    %c0_i32_1 = arith.constant 0 : i32
    return %c0_i32, %c0_i32_0 : i32, i32
  }
  func.func @transform_7(%arg0: i32) -> (i32, i32) {
    %c0_i32 = arith.constant 0 : i32
    %c0_i32_0 = arith.constant 0 : i32
    %c0_i32_1 = arith.constant 0 : i32
    return %c0_i32, %c0_i32_0 : i32, i32
  }
  func.func @transform_8(%arg0: i32) -> (i32, i32) {
    %c0_i32 = arith.constant 0 : i32
    %c0_i32_0 = arith.constant 0 : i32
    %c0_i32_1 = arith.constant 0 : i32
    return %c0_i32, %c0_i32_0 : i32, i32
  }
  func.func @transform_9(%arg0: i32) -> (i32, i32) {
    %c0_i32 = arith.constant 0 : i32
    %c0_i32_0 = arith.constant 0 : i32
    %c0_i32_1 = arith.constant 0 : i32
    return %c0_i32, %c0_i32_0 : i32, i32
  }
  func.func @transform_10(%arg0: i32) -> (i32, i32) {
    %c0_i32 = arith.constant 0 : i32
    %c0_i32_0 = arith.constant 0 : i32
    %c0_i32_1 = arith.constant 0 : i32
    return %c0_i32, %c0_i32_0 : i32, i32
  }
  func.func @transform_11(%arg0: i32) -> (i32, i32) {
    %c0_i32 = arith.constant 0 : i32
    %c0_i32_0 = arith.constant 0 : i32
    %c0_i32_1 = arith.constant 0 : i32
    return %c0_i32, %c0_i32_0 : i32, i32
  }
  func.func @transform_12(%arg0: i32) -> (i32, i32, i32) {
    %c0_i32 = arith.constant 0 : i32
    %c0_i32_0 = arith.constant 0 : i32
    %c0_i32_1 = arith.constant 0 : i32
    return %arg0, %c0_i32, %c0_i32_0 : i32, i32, i32
  }
}

</mosaic_0001>

<llo_original>
// kernel: tpu_custom_call.1
$region0: #{tpu_custom_call.1}
  #allocation0 [shape = 'u32[]', space=smem, size = 0x4, offset = 0x4, fixed_abs, tag = 'smem constant byte address 0x4 - core index']
  #allocation1 [shape = 'u32[72,128]{1,0:T(1,128)}', space=vmem, size = 0x9000, scoped, tag = 'internal scratch']
  #allocation2 [shape = 'f32[8,384]{1,0:T(8,128)}', space=vmem, size = 0x3000, scoped, tag = 'scratch operand']
  %s0 = inlined_call_operand.hbm [shape: f32[2,8,384], index: 0, kind: input, shape index: {}]
  %s1 = inlined_call_operand.hbm [shape: bf16[384,1152], index: 1, kind: input, shape index: {}]
  %s2 = inlined_call_operand.hbm [shape: bf16[384,384], index: 2, kind: input, shape index: {}]
  %s3 = inlined_call_operand.hbm [shape: f32[1,384], index: 3, kind: input, shape index: {}]
  %s4 = inlined_call_operand.hbm [shape: bf16[384,1536], index: 4, kind: input, shape index: {}]
  %s5 = inlined_call_operand.hbm [shape: f32[1,1536], index: 5, kind: input, shape index: {}]
  %s6 = inlined_call_operand.hbm [shape: bf16[1536,384], index: 6, kind: input, shape index: {}]
  %s7 = inlined_call_operand.hbm [shape: f32[1,384], index: 7, kind: input, shape index: {}]
  %s8 = inlined_call_operand.hbm [shape: f32[1,384], index: 8, kind: input, shape index: {}]
  %s9 = inlined_call_operand.hbm [shape: f32[1,384], index: 9, kind: input, shape index: {}]
  %s10 = inlined_call_operand.hbm [shape: f32[1,384], index: 10, kind: input, shape index: {}]
  %s11 = inlined_call_operand.hbm [shape: f32[1,384], index: 11, kind: input, shape index: {}]
  %s12 = inlined_call_operand.hbm [shape: f32[2,8,384], index: 12, kind: output, shape index: {}]
  %s13 = sld [smem:[#allocation0]]
  $region129: #{tpu_custom_call.1} parent=0
    _
  %s15 = ssub.s32 1, %s13
  %s16 = scalar_select 0, %s15, %s13
  $region1: #{tpu_custom_call.1} parent=0
    #allocation3 [shape = 'u8[24576]{0}', space=vmem, size = 0x6000, scoped, tag = 'input window, operand 0']
    #allocation4 [shape = 's32[2]{0}', space=sflag, size = 0x8, scoped, tag = 'scoped memory for tpu_custom_call.1']
    #allocation5 [shape = 's32[2]{0}', space=sflag, size = 0x8, scoped, tag = 'scoped memory for tpu_custom_call.1']
    #allocation6 [shape = 'u8[884736]{0}', space=vmem, size = 0xd8000, scoped, tag = 'input window, operand 1, single buffered']
    #allocation7 [shape = 's32[1]{0}', space=sflag, size = 0x4, scoped, tag = 'scoped memory for tpu_custom_call.1']
    #allocation8 [shape = 'u8[294912]{0}', space=vmem, size = 0x48000, scoped, tag = 'input window, operand 2, single buffered']
    #allocation9 [shape = 'u8[1536]{0}', space=vmem, size = 0x800, scoped, tag = 'input window, operand 3, single buffered']
    #allocation10 [shape = 's32[1]{0}', space=sflag, size = 0x4, scoped, tag = 'scoped memory for tpu_custom_call.1']
    #allocation11 [shape = 'u8[1179648]{0}', space=vmem, size = 0x120000, scoped, tag = 'input window, operand 4, single buffered']
    #allocation12 [shape = 'u8[6144]{0}', space=vmem, size = 0x1800, scoped, tag = 'input window, operand 5, single buffered']
    #allocation13 [shape = 's32[1]{0}', space=sflag, size = 0x4, scoped, tag = 'scoped memory for tpu_custom_call.1']
    #allocation14 [shape = 'u8[1179648]{0}', space=vmem, size = 0x120000, scoped, tag = 'input window, operand 6, single buffered']
    #allocation15 [shape = 'u8[1536]{0}', space=vmem, size = 0x800, scoped, tag = 'input window, operand 7, single buffered']
    #allocation16 [shape = 's32[1]{0}', space=sflag, size = 0x4, scoped, tag = 'scoped memory for tpu_custom_call.1']
    #allocation17 [shape = 'u8[1536]{0}', space=vmem, size = 0x800, scoped, tag = 'input window, operand 8, single buffered']
    #allocation18 [shape = 'u8[1536]{0}', space=vmem, size = 0x800, scoped, tag = 'input window, operand 9, single buffered']
    #allocation19 [shape = 's32[1]{0}', space=sflag, size = 0x4, scoped, tag = 'scoped memory for tpu_custom_call.1']
    #allocation20 [shape = 'u8[1536]{0}', space=vmem, size = 0x800, scoped, tag = 'input window, operand 10, single buffered']
    #allocation21 [shape = 'u8[1536]{0}', space=vmem, size = 0x800, scoped, tag = 'input window, operand 11, single buffered']
    #allocation22 [shape = 's32[1]{0}', space=sflag, size = 0x4, scoped, tag = 'scoped memory for tpu_custom_call.1']
    #allocation23 [shape = 'u8[24576]{0}', space=vmem, size = 0x6000, scoped, tag = 'output window, operand 0']
    %17 = vsyncpa [#allocation4], 0
    %s18 = scalar_lea.sflag [#allocation4], 1
    %19 = vsyncpa %s18, 0
    %20 = vsyncpa [#allocation7], 0
    %21 = vsyncpa [#allocation10], 0
    %22 = vsyncpa [#allocation13], 0
    %23 = vsyncpa [#allocation16], 0
    %24 = vsyncpa [#allocation19], 0
    %25 = vsyncpa [#allocation22], 0
    %26 = vsyncpa [#allocation5], 0
    %s27 = scalar_lea.sflag [#allocation5], 1
    %28 = vsyncpa %s27, 0
    loop: start=0, step=1, limit=4
    $region2: #{tpu_custom_call.1} parent=1 // loop_pre_header
      _
    $region3: #{tpu_custom_call.1} parent=1 // loop_header
      %s30 = sphi 0, %s34
      %p31 = scmp.ge.s32.totalorder %s30, 4
      %s40 = sphi 0, %s42
      %s43 = sphi 0, %s40
      %s44 = sphi 0, %s43
      %s60 = sphi 0, %s44
      %s64 = sphi 0, %s64
      %s66 = sphi 0, %s64
      %s67 = sphi 0, %s66
      %s81 = sphi 0, %s67
      %s85 = sphi 0, %s85
      %s87 = sphi 0, %s85
      %s88 = sphi 0, %s87
      %s102 = sphi 0, %s88
      %s106 = sphi 0, %s106
      %s108 = sphi 0, %s106
      %s109 = sphi 0, %s108
      %s123 = sphi 0, %s109
      %s127 = sphi 0, %s127
      %s129 = sphi 0, %s127
      %s130 = sphi 0, %s129
      %s144 = sphi 0, %s130
      %s148 = sphi 0, %s148
      %s150 = sphi 0, %s148
      %s151 = sphi 0, %s150
      %s165 = sphi 0, %s151
      %s169 = sphi 0, %s169
      %s171 = sphi 0, %s169
      %s172 = sphi 0, %s171
      %s186 = sphi 0, %s172
      %s190 = sphi 0, %s190
      %s192 = sphi 0, %s190
      %s193 = sphi 0, %s192
      %s207 = sphi 0, %s193
      %s211 = sphi 0, %s211
      %s213 = sphi 0, %s211
      %s214 = sphi 0, %s213
      %s228 = sphi 0, %s214
      %s232 = sphi 0, %s232
      %s234 = sphi 0, %s232
      %s235 = sphi 0, %s234
      %s249 = sphi 0, %s235
      %s253 = sphi 0, %s253
      %s255 = sphi 0, %s253
      %s256 = sphi 0, %s255
      %s270 = sphi 0, %s256
      %s274 = sphi 0, %s274
      %s276 = sphi 0, %s274
      %s277 = sphi 0, %s276
      %s291 = sphi 0, %s277
      %s297 = sphi 0, %s299
      %s300 = sphi 0, %s297
      %s301 = sphi 0, %s300
      %s317 = sphi 0, %s301
    $region4: #{tpu_custom_call.1} parent=1 // loop_header_branch
      %33 = sbr.rel (%p31) target = $region8
    $region5: #{tpu_custom_call.1} parent=1 // loop_body
      %s35 = ssub.s32 %s30, 1
      %s36 = ssub.s32 %s30, 2
      %s37 = sadd.s32 %s30, 1
      %s38 = ssub.s32 %s30, %s37
      %p39 = scmp.eq.s32.totalorder %s38, 0
      %s41 = sadd.s32 %s40, 1
      %s42 = scalar_select %p39, %s40, %s41
      %p45 = pneg %p39
      %p46 = scmp.eq.s32.totalorder %s30, 1
      %p47 = por %p45, %p46
      %p48 = scmp.ne.s32.totalorder %s40, %s43
      %p49 = scmp.eq.s32.totalorder %s30, 0
      %p50 = por %p48, %p49
      %p51 = scmp.ne.s32.totalorder %s40, %s43
      %p52 = scmp.eq.s32.totalorder %s35, 1
      %p53 = por %p51, %p52
      %p54 = scmp.ne.s32.totalorder %s43, %s44
      %p55 = scmp.eq.s32.totalorder %s35, 0
      %p56 = por %p54, %p55
      %p57 = scmp.ne.s32.totalorder %s43, %s44
      %p58 = scmp.eq.s32.totalorder %s36, 1
      %p59 = por %p57, %p58
      %p61 = scmp.ne.s32.totalorder %s44, %s60
      %p62 = scmp.eq.s32.totalorder %s36, 0
      %p63 = por %p61, %p62
      %s65 = sadd.s32 %s64, 1
      %p68 = scmp.eq.s32.totalorder %s30, 1
      %p69 = scmp.ne.s32.totalorder %s64, %s66
      %p70 = scmp.eq.s32.totalorder %s30, 0
      %p71 = por %p69, %p70
      %p72 = scmp.ne.s32.totalorder %s64, %s66
      %p73 = scmp.eq.s32.totalorder %s35, 1
      %p74 = por %p72, %p73
      %p75 = scmp.ne.s32.totalorder %s66, %s67
      %p76 = scmp.eq.s32.totalorder %s35, 0
      %p77 = por %p75, %p76
      %p78 = scmp.ne.s32.totalorder %s66, %s67
      %p79 = scmp.eq.s32.totalorder %s36, 1
      %p80 = por %p78, %p79
      %p82 = scmp.ne.s32.totalorder %s67, %s81
      %p83 = scmp.eq.s32.totalorder %s36, 0
      %p84 = por %p82, %p83
      %s86 = sadd.s32 %s85, 1
      %p89 = scmp.eq.s32.totalorder %s30, 1
      %p90 = scmp.ne.s32.totalorder %s85, %s87
      %p91 = scmp.eq.s32.totalorder %s30, 0
      %p92 = por %p90, %p91
      %p93 = scmp.ne.s32.totalorder %s85, %s87
      %p94 = scmp.eq.s32.totalorder %s35, 1
      %p95 = por %p93, %p94
      %p96 = scmp.ne.s32.totalorder %s87, %s88
      %p97 = scmp.eq.s32.totalorder %s35, 0
      %p98 = por %p96, %p97
      %p99 = scmp.ne.s32.totalorder %s87, %s88
      %p100 = scmp.eq.s32.totalorder %s36, 1
      %p101 = por %p99, %p100
      %p103 = scmp.ne.s32.totalorder %s88, %s102
      %p104 = scmp.eq.s32.totalorder %s36, 0
      %p105 = por %p103, %p104
      %s107 = sadd.s32 %s106, 1
      %p110 = scmp.eq.s32.totalorder %s30, 1
      %p111 = scmp.ne.s32.totalorder %s106, %s108
      %p112 = scmp.eq.s32.totalorder %s30, 0
      %p113 = por %p111, %p112
      %p114 = scmp.ne.s32.totalorder %s106, %s108
      %p115 = scmp.eq.s32.totalorder %s35, 1
      %p116 = por %p114, %p115
      %p117 = scmp.ne.s32.totalorder %s108, %s109
      %p118 = scmp.eq.s32.totalorder %s35, 0
      %p119 = por %p117, %p118
      %p120 = scmp.ne.s32.totalorder %s108, %s109
      %p121 = scmp.eq.s32.totalorder %s36, 1
      %p122 = por %p120, %p121
      %p124 = scmp.ne.s32.totalorder %s109, %s123
      %p125 = scmp.eq.s32.totalorder %s36, 0
      %p126 = por %p124, %p125
      %s128 = sadd.s32 %s127, 1
      %p131 = scmp.eq.s32.totalorder %s30, 1
      %p132 = scmp.ne.s32.totalorder %s127, %s129
      %p133 = scmp.eq.s32.totalorder %s30, 0
      %p134 = por %p132, %p133
      %p135 = scmp.ne.s32.totalorder %s127, %s129
      %p136 = scmp.eq.s32.totalorder %s35, 1
      %p137 = por %p135, %p136
      %p138 = scmp.ne.s32.totalorder %s129, %s130
      %p139 = scmp.eq.s32.totalorder %s35, 0
      %p140 = por %p138, %p139
      %p141 = scmp.ne.s32.totalorder %s129, %s130
      %p142 = scmp.eq.s32.totalorder %s36, 1
      %p143 = por %p141, %p142
      %p145 = scmp.ne.s32.totalorder %s130, %s144
      %p146 = scmp.eq.s32.totalorder %s36, 0
      %p147 = por %p145, %p146
      %s149 = sadd.s32 %s148, 1
      %p152 = scmp.eq.s32.totalorder %s30, 1
      %p153 = scmp.ne.s32.totalorder %s148, %s150
      %p154 = scmp.eq.s32.totalorder %s30, 0
      %p155 = por %p153, %p154
      %p156 = scmp.ne.s32.totalorder %s148, %s150
      %p157 = scmp.eq.s32.totalorder %s35, 1
      %p158 = por %p156, %p157
      %p159 = scmp.ne.s32.totalorder %s150, %s151
      %p160 = scmp.eq.s32.totalorder %s35, 0
      %p161 = por %p159, %p160
      %p162 = scmp.ne.s32.totalorder %s150, %s151
      %p163 = scmp.eq.s32.totalorder %s36, 1
      %p164 = por %p162, %p163
      %p166 = scmp.ne.s32.totalorder %s151, %s165
      %p167 = scmp.eq.s32.totalorder %s36, 0
      %p168 = por %p166, %p167
      %s170 = sadd.s32 %s169, 1
      %p173 = scmp.eq.s32.totalorder %s30, 1
      %p174 = scmp.ne.s32.totalorder %s169, %s171
      %p175 = scmp.eq.s32.totalorder %s30, 0
      %p176 = por %p174, %p175
      %p177 = scmp.ne.s32.totalorder %s169, %s171
      %p178 = scmp.eq.s32.totalorder %s35, 1
      %p179 = por %p177, %p178
      %p180 = scmp.ne.s32.totalorder %s171, %s172
      %p181 = scmp.eq.s32.totalorder %s35, 0
      %p182 = por %p180, %p181
      %p183 = scmp.ne.s32.totalorder %s171, %s172
      %p184 = scmp.eq.s32.totalorder %s36, 1
      %p185 = por %p183, %p184
      %p187 = scmp.ne.s32.totalorder %s172, %s186
      %p188 = scmp.eq.s32.totalorder %s36, 0
      %p189 = por %p187, %p188
      %s191 = sadd.s32 %s190, 1
      %p194 = scmp.eq.s32.totalorder %s30, 1
      %p195 = scmp.ne.s32.totalorder %s190, %s192
      %p196 = scmp.eq.s32.totalorder %s30, 0
      %p197 = por %p195, %p196
      %p198 = scmp.ne.s32.totalorder %s190, %s192
      %p199 = scmp.eq.s32.totalorder %s35, 1
      %p200 = por %p198, %p199
      %p201 = scmp.ne.s32.totalorder %s192, %s193
      %p202 = scmp.eq.s32.totalorder %s35, 0
      %p203 = por %p201, %p202
      %p204 = scmp.ne.s32.totalorder %s192, %s193
      %p205 = scmp.eq.s32.totalorder %s36, 1
      %p206 = por %p204, %p205
      %p208 = scmp.ne.s32.totalorder %s193, %s207
      %p209 = scmp.eq.s32.totalorder %s36, 0
      %p210 = por %p208, %p209
      %s212 = sadd.s32 %s211, 1
      %p215 = scmp.eq.s32.totalorder %s30, 1
      %p216 = scmp.ne.s32.totalorder %s211, %s213
      %p217 = scmp.eq.s32.totalorder %s30, 0
      %p218 = por %p216, %p217
      %p219 = scmp.ne.s32.totalorder %s211, %s213
      %p220 = scmp.eq.s32.totalorder %s35, 1
      %p221 = por %p219, %p220
      %p222 = scmp.ne.s32.totalorder %s213, %s214
      %p223 = scmp.eq.s32.totalorder %s35, 0
      %p224 = por %p222, %p223
      %p225 = scmp.ne.s32.totalorder %s213, %s214
      %p226 = scmp.eq.s32.totalorder %s36, 1
      %p227 = por %p225, %p226
      %p229 = scmp.ne.s32.totalorder %s214, %s228
      %p230 = scmp.eq.s32.totalorder %s36, 0
      %p231 = por %p229, %p230
      %s233 = sadd.s32 %s232, 1
      %p236 = scmp.eq.s32.totalorder %s30, 1
      %p237 = scmp.ne.s32.totalorder %s232, %s234
      %p238 = scmp.eq.s32.totalorder %s30, 0
      %p239 = por %p237, %p238
      %p240 = scmp.ne.s32.totalorder %s232, %s234
      %p241 = scmp.eq.s32.totalorder %s35, 1
      %p242 = por %p240, %p241
      %p243 = scmp.ne.s32.totalorder %s234, %s235
      %p244 = scmp.eq.s32.totalorder %s35, 0
      %p245 = por %p243, %p244
      %p246 = scmp.ne.s32.totalorder %s234, %s235
      %p247 = scmp.eq.s32.totalorder %s36, 1
      %p248 = por %p246, %p247
      %p250 = scmp.ne.s32.totalorder %s235, %s249
      %p251 = scmp.eq.s32.totalorder %s36, 0
      %p252 = por %p250, %p251
      %s254 = sadd.s32 %s253, 1
      %p257 = scmp.eq.s32.totalorder %s30, 1
      %p258 = scmp.ne.s32.totalorder %s253, %s255
      %p259 = scmp.eq.s32.totalorder %s30, 0
      %p260 = por %p258, %p259
      %p261 = scmp.ne.s32.totalorder %s253, %s255
      %p262 = scmp.eq.s32.totalorder %s35, 1
      %p263 = por %p261, %p262
      %p264 = scmp.ne.s32.totalorder %s255, %s256
      %p265 = scmp.eq.s32.totalorder %s35, 0
      %p266 = por %p264, %p265
      %p267 = scmp.ne.s32.totalorder %s255, %s256
      %p268 = scmp.eq.s32.totalorder %s36, 1
      %p269 = por %p267, %p268
      %p271 = scmp.ne.s32.totalorder %s256, %s270
      %p272 = scmp.eq.s32.totalorder %s36, 0
      %p273 = por %p271, %p272
      %s275 = sadd.s32 %s274, 1
      %p278 = scmp.eq.s32.totalorder %s30, 1
      %p279 = scmp.ne.s32.totalorder %s274, %s276
      %p280 = scmp.eq.s32.totalorder %s30, 0
      %p281 = por %p279, %p280
      %p282 = scmp.ne.s32.totalorder %s274, %s276
      %p283 = scmp.eq.s32.totalorder %s35, 1
      %p284 = por %p282, %p283
      %p285 = scmp.ne.s32.totalorder %s276, %s277
      %p286 = scmp.eq.s32.totalorder %s35, 0
      %p287 = por %p285, %p286
      %p288 = scmp.ne.s32.totalorder %s276, %s277
      %p289 = scmp.eq.s32.totalorder %s36, 1
      %p290 = por %p288, %p289
      %p292 = scmp.ne.s32.totalorder %s277, %s291
      %p293 = scmp.eq.s32.totalorder %s36, 0
      %p294 = por %p292, %p293
      %s295 = ssub.s32 %s30, %s37
      %p296 = scmp.eq.s32.totalorder %s295, 0
      %s298 = sadd.s32 %s297, 1
      %s299 = scalar_select %p296, %s297, %s298
      %p302 = pneg %p296
      %p303 = scmp.eq.s32.totalorder %s30, 1
      %p304 = por %p302, %p303
      %p305 = scmp.ne.s32.totalorder %s297, %s300
      %p306 = scmp.eq.s32.totalorder %s30, 0
      %p307 = por %p305, %p306
      %p308 = scmp.ne.s32.totalorder %s297, %s300
      %p309 = scmp.eq.s32.totalorder %s35, 1
      %p310 = por %p308, %p309
      %p311 = scmp.ne.s32.totalorder %s300, %s301
      %p312 = scmp.eq.s32.totalorder %s35, 0
      %p313 = por %p311, %p312
      %p314 = scmp.ne.s32.totalorder %s300, %s301
      %p315 = scmp.eq.s32.totalorder %s36, 1
      %p316 = por %p314, %p315
      %p318 = scmp.ne.s32.totalorder %s301, %s317
      %p319 = scmp.eq.s32.totalorder %s36, 0
      %p320 = por %p318, %p319
      %p321 = scmp.le.s32.totalorder 1, %s30
      %p322 = scmp.lt.s32.totalorder %s30, 3
      %p323 = pnand %p321, %p322
      %p324 = pneg %p323
      // Predicated region
      $region9: #{tpu_custom_call.1} parent=5 // pred_check
        _
      $region10: #{tpu_custom_call.1} parent=5 // pred_check_branch
        %326 = sbr.rel (%p323) target = $region12
      $region11: #{tpu_custom_call.1} parent=5 // pred_region
        %s327 = ssub.s32 %s30, 1
        // Predicated region
        $region13: #{tpu_custom_call.1} parent=11 // pred_check
          %p328 = pneg %p77
        $region14: #{tpu_custom_call.1} parent=11 // pred_check_branch
          %330 = sbr.rel (%p328) target = $region16
        $region15: #{tpu_custom_call.1} parent=11 // pred_region
          %332 = vsyncadd [#allocation7], 0
          %s333 = sshll.u32 %s1, 4
          %s334 = int_to_ptr.hbm [resolvable:$true] %s333
          %s335 = sshll.u32 [#allocation6], 4
          %s336 = int_to_ptr.vmem [resolvable:$true] %s335
          %341 = dma.hbm_to_vmem [thread:$0]  %s334, 27648, %s336, [#allocation7], 576, 576, 36
        $region16: #{tpu_custom_call.1} parent=11 // pred_fallthru
          _
        // Predicated region
        $region17: #{tpu_custom_call.1} parent=11 // pred_check
          %p342 = pneg %p98
        $region18: #{tpu_custom_call.1} parent=11 // pred_check_branch
          %344 = sbr.rel (%p342) target = $region20
        $region19: #{tpu_custom_call.1} parent=11 // pred_region
          %346 = vsyncadd [#allocation7], 0
          %s347 = sshll.u32 %s2, 4
          %s348 = int_to_ptr.hbm [resolvable:$true] %s347
          %s349 = sshll.u32 [#allocation8], 4
          %s350 = int_to_ptr.vmem [resolvable:$true] %s349
          %355 = dma.hbm_to_vmem [thread:$0]  %s348, 9216, %s350, [#allocation7], 192, 192, 12
        $region20: #{tpu_custom_call.1} parent=11 // pred_fallthru
          _
        // Predicated region
        $region21: #{tpu_custom_call.1} parent=11 // pred_check
          %p356 = pneg %p119
        $region22: #{tpu_custom_call.1} parent=11 // pred_check_branch
          %358 = sbr.rel (%p356) target = $region24
        $region23: #{tpu_custom_call.1} parent=11 // pred_region
          %360 = vsyncadd [#allocation10], 0
          %s362 = sshll.u32 %s3, 4
          %s363 = int_to_ptr.hbm [resolvable:$true] %s362
          %s364 = sshll.u32 [#allocation9], 4
          %s365 = int_to_ptr.vmem [resolvable:$true] %s364
          %367 = dma.hbm_to_vmem [thread:$0]  %s363, 48, %s365, [#allocation10]
        $region24: #{tpu_custom_call.1} parent=11 // pred_fallthru
          _
        // Predicated region
        $region25: #{tpu_custom_call.1} parent=11 // pred_check
          %p368 = pneg %p140
        $region26: #{tpu_custom_call.1} parent=11 // pred_check_branch
          %370 = sbr.rel (%p368) target = $region28
        $region27: #{tpu_custom_call.1} parent=11 // pred_region
          %372 = vsyncadd [#allocation10], 0
          %s373 = sshll.u32 %s4, 4
          %s374 = int_to_ptr.hbm [resolvable:$true] %s373
          %s375 = sshll.u32 [#allocation11], 4
          %s376 = int_to_ptr.vmem [resolvable:$true] %s375
          %381 = dma.hbm_to_vmem [thread:$0]  %s374, 36864, %s376, [#allocation10], 768, 768, 48
        $region28: #{tpu_custom_call.1} parent=11 // pred_fallthru
          _
        // Predicated region
        $region29: #{tpu_custom_call.1} parent=11 // pred_check
          %p382 = pneg %p161
        $region30: #{tpu_custom_call.1} parent=11 // pred_check_branch
          %384 = sbr.rel (%p382) target = $region32
        $region31: #{tpu_custom_call.1} parent=11 // pred_region
          %386 = vsyncadd [#allocation13], 0
          %s388 = sshll.u32 %s5, 4
          %s389 = int_to_ptr.hbm [resolvable:$true] %s388
          %s390 = sshll.u32 [#allocation12], 4
          %s391 = int_to_ptr.vmem [resolvable:$true] %s390
          %393 = dma.hbm_to_vmem [thread:$0]  %s389, 192, %s391, [#allocation13]
        $region32: #{tpu_custom_call.1} parent=11 // pred_fallthru
          _
        // Predicated region
        $region33: #{tpu_custom_call.1} parent=11 // pred_check
          %p394 = pneg %p182
        $region34: #{tpu_custom_call.1} parent=11 // pred_check_branch
          %396 = sbr.rel (%p394) target = $region36
        $region35: #{tpu_custom_call.1} parent=11 // pred_region
          %398 = vsyncadd [#allocation13], 0
          %s399 = sshll.u32 %s6, 4
          %s400 = int_to_ptr.hbm [resolvable:$true] %s399
          %s401 = sshll.u32 [#allocation14], 4
          %s402 = int_to_ptr.vmem [resolvable:$true] %s401
          %407 = dma.hbm_to_vmem [thread:$0]  %s400, 36864, %s402, [#allocation13], 192, 192, 12
        $region36: #{tpu_custom_call.1} parent=11 // pred_fallthru
          _
        // Predicated region
        $region37: #{tpu_custom_call.1} parent=11 // pred_check
          %p408 = pneg %p203
        $region38: #{tpu_custom_call.1} parent=11 // pred_check_branch
          %410 = sbr.rel (%p408) target = $region40
        $region39: #{tpu_custom_call.1} parent=11 // pred_region
          %412 = vsyncadd [#allocation16], 0
          %s414 = sshll.u32 %s7, 4
          %s415 = int_to_ptr.hbm [resolvable:$true] %s414
          %s416 = sshll.u32 [#allocation15], 4
          %s417 = int_to_ptr.vmem [resolvable:$true] %s416
          %419 = dma.hbm_to_vmem [thread:$0]  %s415, 48, %s417, [#allocation16]
        $region40: #{tpu_custom_call.1} parent=11 // pred_fallthru
          _
        // Predicated region
        $region41: #{tpu_custom_call.1} parent=11 // pred_check
          %p420 = pneg %p224
        $region42: #{tpu_custom_call.1} parent=11 // pred_check_branch
          %422 = sbr.rel (%p420) target = $region44
        $region43: #{tpu_custom_call.1} parent=11 // pred_region
          %424 = vsyncadd [#allocation16], 0
          %s426 = sshll.u32 %s8, 4
          %s427 = int_to_ptr.hbm [resolvable:$true] %s426
          %s428 = sshll.u32 [#allocation17], 4
          %s429 = int_to_ptr.vmem [resolvable:$true] %s428
          %431 = dma.hbm_to_vmem [thread:$0]  %s427, 48, %s429, [#allocation16]
        $region44: #{tpu_custom_call.1} parent=11 // pred_fallthru
          _
        // Predicated region
        $region45: #{tpu_custom_call.1} parent=11 // pred_check
          %p432 = pneg %p245
        $region46: #{tpu_custom_call.1} parent=11 // pred_check_branch
          %434 = sbr.rel (%p432) target = $region48
        $region47: #{tpu_custom_call.1} parent=11 // pred_region
          %436 = vsyncadd [#allocation19], 0
          %s438 = sshll.u32 %s9, 4
          %s439 = int_to_ptr.hbm [resolvable:$true] %s438
          %s440 = sshll.u32 [#allocation18], 4
          %s441 = int_to_ptr.vmem [resolvable:$true] %s440
          %443 = dma.hbm_to_vmem [thread:$0]  %s439, 48, %s441, [#allocation19]
        $region48: #{tpu_custom_call.1} parent=11 // pred_fallthru
          _
        // Predicated region
        $region49: #{tpu_custom_call.1} parent=11 // pred_check
          %p444 = pneg %p266
        $region50: #{tpu_custom_call.1} parent=11 // pred_check_branch
          %446 = sbr.rel (%p444) target = $region52
        $region51: #{tpu_custom_call.1} parent=11 // pred_region
          %448 = vsyncadd [#allocation19], 0
          %s450 = sshll.u32 %s10, 4
          %s451 = int_to_ptr.hbm [resolvable:$true] %s450
          %s452 = sshll.u32 [#allocation20], 4
          %s453 = int_to_ptr.vmem [resolvable:$true] %s452
          %455 = dma.hbm_to_vmem [thread:$0]  %s451, 48, %s453, [#allocation19]
        $region52: #{tpu_custom_call.1} parent=11 // pred_fallthru
          _
        // Predicated region
        $region53: #{tpu_custom_call.1} parent=11 // pred_check
          %p456 = pneg %p287
        $region54: #{tpu_custom_call.1} parent=11 // pred_check_branch
          %458 = sbr.rel (%p456) target = $region56
        $region55: #{tpu_custom_call.1} parent=11 // pred_region
          %460 = vsyncadd [#allocation22], 0
          %s462 = sshll.u32 %s11, 4
          %s463 = int_to_ptr.hbm [resolvable:$true] %s462
          %s464 = sshll.u32 [#allocation21], 4
          %s465 = int_to_ptr.vmem [resolvable:$true] %s464
          %467 = dma.hbm_to_vmem [thread:$0]  %s463, 48, %s465, [#allocation22]
        $region56: #{tpu_custom_call.1} parent=11 // pred_fallthru
          _
      $region12: #{tpu_custom_call.1} parent=5 // pred_fallthru
        _
      %p468 = scmp.lt.s32.totalorder %s30, 2
      // Predicated region
      $region57: #{tpu_custom_call.1} parent=5 // pred_check
        %p469 = pneg %p468
      $region58: #{tpu_custom_call.1} parent=5 // pred_check_branch
        %471 = sbr.rel (%p469) target = $region60
      $region59: #{tpu_custom_call.1} parent=5 // pred_region
        // Predicated region
        $region61: #{tpu_custom_call.1} parent=59 // pred_check
          %p472 = pneg %p50
        $region62: #{tpu_custom_call.1} parent=59 // pred_check_branch
          %474 = sbr.rel (%p472) target = $region64
        $region63: #{tpu_custom_call.1} parent=59 // pred_region
          %s475 = sand.u32 %s40, 1
          %s476 = scalar_lea.sflag [#allocation4], %s475
          %s477 = sand.u32 %s40, 1
          %s478 = smul.addr %s477, 24
          %s479 = scalar_lea.vmem [#allocation3], %s478
          %481 = vsyncadd %s476, 0
          %s482 = smul.addr %s30, 3
          %s483 = smul.addr %s482, 8
          %s484 = scalar_lea.hbm %s0, %s483
          %s486 = sshll.u32 %s484, 4
          %s487 = int_to_ptr.hbm [resolvable:$true] %s486
          %s488 = sshll.u32 %s479, 4
          %s489 = int_to_ptr.vmem [resolvable:$true] %s488
          %491 = dma.hbm_to_vmem [thread:$0]  %s487, 384, %s489, %s476
        $region64: #{tpu_custom_call.1} parent=59 // pred_fallthru
          _
      $region60: #{tpu_custom_call.1} parent=5 // pred_fallthru
        _
      %p492 = scmp.le.s32.totalorder 1, %s30
      %p493 = scmp.lt.s32.totalorder %s30, 3
      %p494 = pnand %p492, %p493
      %p495 = pneg %p494
      // Predicated region
      $region65: #{tpu_custom_call.1} parent=5 // pred_check
        _
      $region66: #{tpu_custom_call.1} parent=5 // pred_check_branch
        %497 = sbr.rel (%p494) target = $region68
      $region67: #{tpu_custom_call.1} parent=5 // pred_region
        %s498 = ssub.s32 %s30, 1
        %s499 = sand.u32 %s43, 1
        %s500 = scalar_lea.sflag [#allocation4], %s499
        %s501 = sand.u32 %s43, 1
        %s502 = smul.addr %s501, 24
        %s503 = scalar_lea.vmem [#allocation3], %s502
        // Predicated region
        $region69: #{tpu_custom_call.1} parent=67 // pred_check
          %p504 = pneg %p56
        $region70: #{tpu_custom_call.1} parent=67 // pred_check_branch
          %506 = sbr.rel (%p504) target = $region72
        $region71: #{tpu_custom_call.1} parent=67 // pred_region
          %508 = dma.done %s500, 384
        $region72: #{tpu_custom_call.1} parent=67 // pred_fallthru
          _
        // Predicated region
        $region73: #{tpu_custom_call.1} parent=67 // pred_check
          %p509 = pneg %p77
        $region74: #{tpu_custom_call.1} parent=67 // pred_check_branch
          %511 = sbr.rel (%p509) target = $region76
        $region75: #{tpu_custom_call.1} parent=67 // pred_region
          %513 = dma.done [#allocation7], 27648
        $region76: #{tpu_custom_call.1} parent=67 // pred_fallthru
          _
        // Predicated region
        $region77: #{tpu_custom_call.1} parent=67 // pred_check
          %p514 = pneg %p98
        $region78: #{tpu_custom_call.1} parent=67 // pred_check_branch
          %516 = sbr.rel (%p514) target = $region80
        $region79: #{tpu_custom_call.1} parent=67 // pred_region
          %518 = dma.done [#allocation7], 9216
        $region80: #{tpu_custom_call.1} parent=67 // pred_fallthru
          _
        // Predicated region
        $region81: #{tpu_custom_call.1} parent=67 // pred_check
          %p519 = pneg %p119
        $region82: #{tpu_custom_call.1} parent=67 // pred_check_branch
          %521 = sbr.rel (%p519) target = $region84
        $region83: #{tpu_custom_call.1} parent=67 // pred_region
          %523 = dma.done [#allocation10], 48
        $region84: #{tpu_custom_call.1} parent=67 // pred_fallthru
          _
        // Predicated region
        $region85: #{tpu_custom_call.1} parent=67 // pred_check
          %p524 = pneg %p140
        $region86: #{tpu_custom_call.1} parent=67 // pred_check_branch
          %526 = sbr.rel (%p524) target = $region88
        $region87: #{tpu_custom_call.1} parent=67 // pred_region
          %528 = dma.done [#allocation10], 36864
        $region88: #{tpu_custom_call.1} parent=67 // pred_fallthru
          _
        // Predicated region
        $region89: #{tpu_custom_call.1} parent=67 // pred_check
          %p529 = pneg %p161
        $region90: #{tpu_custom_call.1} parent=67 // pred_check_branch
          %531 = sbr.rel (%p529) target = $region92
        $region91: #{tpu_custom_call.1} parent=67 // pred_region
          %533 = dma.done [#allocation13], 192
        $region92: #{tpu_custom_call.1} parent=67 // pred_fallthru
          _
        // Predicated region
        $region93: #{tpu_custom_call.1} parent=67 // pred_check
          %p534 = pneg %p182
        $region94: #{tpu_custom_call.1} parent=67 // pred_check_branch
          %536 = sbr.rel (%p534) target = $region96
        $region95: #{tpu_custom_call.1} parent=67 // pred_region
          %538 = dma.done [#allocation13], 36864
        $region96: #{tpu_custom_call.1} parent=67 // pred_fallthru
          _
        // Predicated region
        $region97: #{tpu_custom_call.1} parent=67 // pred_check
          %p539 = pneg %p203
        $region98: #{tpu_custom_call.1} parent=67 // pred_check_branch
          %541 = sbr.rel (%p539) target = $region100
        $region99: #{tpu_custom_call.1} parent=67 // pred_region
          %543 = dma.done [#allocation16], 48
        $region100: #{tpu_custom_call.1} parent=67 // pred_fallthru
          _
        // Predicated region
        $region101: #{tpu_custom_call.1} parent=67 // pred_check
          %p544 = pneg %p224
        $region102: #{tpu_custom_call.1} parent=67 // pred_check_branch
          %546 = sbr.rel (%p544) target = $region104
        $region103: #{tpu_custom_call.1} parent=67 // pred_region
          %548 = dma.done [#allocation16], 48
        $region104: #{tpu_custom_call.1} parent=67 // pred_fallthru
          _
        // Predicated region
        $region105: #{tpu_custom_call.1} parent=67 // pred_check
          %p549 = pneg %p245
        $region106: #{tpu_custom_call.1} parent=67 // pred_check_branch
          %551 = sbr.rel (%p549) target = $region108
        $region107: #{tpu_custom_call.1} parent=67 // pred_region
          %553 = dma.done [#allocation19], 48
        $region108: #{tpu_custom_call.1} parent=67 // pred_fallthru
          _
        // Predicated region
        $region109: #{tpu_custom_call.1} parent=67 // pred_check
          %p554 = pneg %p266
        $region110: #{tpu_custom_call.1} parent=67 // pred_check_branch
          %556 = sbr.rel (%p554) target = $region112
        $region111: #{tpu_custom_call.1} parent=67 // pred_region
          %558 = dma.done [#allocation19], 48
        $region112: #{tpu_custom_call.1} parent=67 // pred_fallthru
          _
        // Predicated region
        $region113: #{tpu_custom_call.1} parent=67 // pred_check
          %p559 = pneg %p287
        $region114: #{tpu_custom_call.1} parent=67 // pred_check_branch
          %561 = sbr.rel (%p559) target = $region116
        $region115: #{tpu_custom_call.1} parent=67 // pred_region
          %563 = dma.done [#allocation22], 48
        $region116: #{tpu_custom_call.1} parent=67 // pred_fallthru
          _
        %s564 = sand.u32 %s43, 1
        %s565 = scalar_lea.sflag [#allocation4], %s564
        %s566 = sand.u32 %s43, 1
        %s567 = smul.addr %s566, 24
        %s568 = scalar_lea.vmem [#allocation3], %s567
        %p569 = pneg %p56
        %p570 = pneg %p53
        %p571 = pneg %p77
        %p572 = pneg %p74
        %p573 = pneg %p98
        %p574 = pneg %p95
        %p575 = pneg %p119
        %p576 = pneg %p116
        %p577 = pneg %p140
        %p578 = pneg %p137
        %p579 = pneg %p161
        %p580 = pneg %p158
        %p581 = pneg %p182
        %p582 = pneg %p179
        %p583 = pneg %p203
        %p584 = pneg %p200
        %p585 = pneg %p224
        %p586 = pneg %p221
        %p587 = pneg %p245
        %p588 = pneg %p242
        %p589 = pneg %p266
        %p590 = pneg %p263
        %p591 = pneg %p287
        %p592 = pneg %p284
        %p593 = pneg %p313
        %p594 = pneg %p310
        %s595 = sand.u32 %s300, 1
        %s596 = scalar_lea.sflag [#allocation5], %s595
        %s597 = sand.u32 %s300, 1
        %s598 = smul.addr %s597, 24
        %s599 = scalar_lea.vmem [#allocation23], %s598
        %v601 = vld [vmem:[%s503] sm:$0xff]
        %v602 = vld [vmem:[%s503 + $0x8] sm:$0xff]
        %v603 = vld [vmem:[%s503 + $0x10] sm:$0xff]
        %v604 = vld [vmem:[#allocation17] sm:$0x7]
        %v605 = vld [vmem:[#allocation18] sm:$0x7]
        %v606 = vadd.f32 %v601, %v602
        %v607 = vadd.f32 %v606, %v603
        %608 = vadd.xlane.f32.xlu0 %v607
        %v609 = vpop.xlane.xlu0 %608
        %v610 = vrcp.pop 384.0
        %v611 = vmul.f32 384.0, %v610
        %v612 = vsub.f32 1.0, %v611
        %v613 = vmul.f32 %v610, %v612
        %v614 = vadd.f32 %v610, %v613
        %vm615 = vweird.f32 %v610
        %v616 = vsel %vm615, %v610, %v614
        %v617 = vmul.f32 %v609, %v616
        %v618 = vsub.f32 %v601, %v617
        %v619 = vsub.f32 %v602, %v617
        %v620 = vsub.f32 %v603, %v617
        %v621 = vmul.f32 %v618, %v618
        %v622 = vmul.f32 %v619, %v619
        %v623 = vmul.f32 %v620, %v620
        %v624 = vadd.f32 %v621, %v622
        %v625 = vadd.f32 %v624, %v623
        %626 = vadd.xlane.f32.xlu0 %v625
        %v627 = vpop.xlane.xlu0 %626
        %v628 = vmul.f32 %v627, %v616
        %v629 = vadd.f32 %v628, 1e-05
        %v630 = vrsqrt.pop %v629
        %v631 = vmul.f32 %v630, %v629
        %v632 = vmul.f32 %v631, %v630
        %v633 = vmul.f32 0.5, %v632
        %v634 = vsub.f32 1.5, %v633
        %v635 = vmul.f32 %v630, %v634
        %vm636 = vweird.f32 %v629
        %vm637 = vweird.f32 %v630
        %vm638 = vmor %vm636, %vm637
        %v639 = vsel %vm638, %v630, %v635
        %v640 = vmul.f32 %v618, %v639
        %v641 = vmul.f32 %v619, %v639
        %v642 = vmul.f32 %v620, %v639
        %v644 = vperm.slane %v604, 0
        %v645 = vperm.slane %v604, 1
        %v646 = vperm.slane %v604, 2
        %v650 = vmul.f32 %v640, %v644
        %v651 = vmul.f32 %v641, %v645
        %v652 = vmul.f32 %v642, %v646
        %v654 = vperm.slane %v605, 0
        %v655 = vperm.slane %v605, 1
        %v656 = vperm.slane %v605, 2
        %v660 = vadd.f32 %v650, %v654
        %v661 = vadd.f32 %v651, %v655
        %v662 = vadd.f32 %v652, %v656
        %v663 = vpack.c.bf16 %v660, %v660
        %v664 = vpack.c.bf16 %v661, %v661
        %v665 = vpack.c.bf16 %v662, %v662
        %v666 = vld [vmem:[#allocation6] sm:$0xff]
        %v667 = vld [vmem:[#allocation6 + $0x8] sm:$0xff]
        %v668 = vld [vmem:[#allocation6 + $0x10] sm:$0xff]
        %v669 = vld [vmem:[#allocation6 + $0x18] sm:$0xff]
        %v670 = vld [vmem:[#allocation6 + $0x20] sm:$0xf]
        %v671 = vld [vmem:[#allocation6 + $0x24] sm:$0xff]
        %v672 = vld [vmem:[#allocation6 + $0x2c] sm:$0xff]
        %v673 = vld [vmem:[#allocation6 + $0x34] sm:$0xff]
        %v674 = vld [vmem:[#allocation6 + $0x3c] sm:$0xff]
        %v675 = vld [vmem:[#allocation6 + $0x44] sm:$0xf]
        %v676 = vld [vmem:[#allocation6 + $0x48] sm:$0xff]
        %v677 = vld [vmem:[#allocation6 + $0x50] sm:$0xff]
        %v678 = vld [vmem:[#allocation6 + $0x58] sm:$0xff]
        %v679 = vld [vmem:[#allocation6 + $0x60] sm:$0xff]
        %v680 = vld [vmem:[#allocation6 + $0x68] sm:$0xf]
        %v681 = vld [vmem:[#allocation6 + $0x6c] sm:$0xff]
        %v682 = vld [vmem:[#allocation6 + $0x74] sm:$0xff]
        %v683 = vld [vmem:[#allocation6 + $0x7c] sm:$0xff]
        %v684 = vld [vmem:[#allocation6 + $0x84] sm:$0xff]
        %v685 = vld [vmem:[#allocation6 + $0x8c] sm:$0xf]
        %v686 = vld [vmem:[#allocation6 + $0x90] sm:$0xff]
        %v687 = vld [vmem:[#allocation6 + $0x98] sm:$0xff]
        %v688 = vld [vmem:[#allocation6 + $0xa0] sm:$0xff]
        %v689 = vld [vmem:[#allocation6 + $0xa8] sm:$0xff]
        %v690 = vld [vmem:[#allocation6 + $0xb0] sm:$0xf]
        %v691 = vld [vmem:[#allocation6 + $0xb4] sm:$0xff]
        %v692 = vld [vmem:[#allocation6 + $0xbc] sm:$0xff]
        %v693 = vld [vmem:[#allocation6 + $0xc4] sm:$0xff]
        %v694 = vld [vmem:[#allocation6 + $0xcc] sm:$0xff]
        %v695 = vld [vmem:[#allocation6 + $0xd4] sm:$0xf]
        %v696 = vld [vmem:[#allocation6 + $0xd8] sm:$0xff]
        %v697 = vld [vmem:[#allocation6 + $0xe0] sm:$0xff]
        %v698 = vld [vmem:[#allocation6 + $0xe8] sm:$0xff]
        %v699 = vld [vmem:[#allocation6 + $0xf0] sm:$0xff]
        %v700 = vld [vmem:[#allocation6 + $0xf8] sm:$0xf]
        %v701 = vld [vmem:[#allocation6 + $0xfc] sm:$0xff]
        %v702 = vld [vmem:[#allocation6 + $0x104] sm:$0xff]
        %v703 = vld [vmem:[#allocation6 + $0x10c] sm:$0xff]
        %v704 = vld [vmem:[#allocation6 + $0x114] sm:$0xff]
        %v705 = vld [vmem:[#allocation6 + $0x11c] sm:$0xf]
        %v706 = vld [vmem:[#allocation6 + $0x120] sm:$0xff]
        %v707 = vld [vmem:[#allocation6 + $0x128] sm:$0xff]
        %v708 = vld [vmem:[#allocation6 + $0x130] sm:$0xff]
        %v709 = vld [vmem:[#allocation6 + $0x138] sm:$0xff]
        %v710 = vld [vmem:[#allocation6 + $0x140] sm:$0xf]
        %v711 = vld [vmem:[#allocation6 + $0x144] sm:$0xff]
        %v712 = vld [vmem:[#allocation6 + $0x14c] sm:$0xff]
        %v713 = vld [vmem:[#allocation6 + $0x154] sm:$0xff]
        %v714 = vld [vmem:[#allocation6 + $0x15c] sm:$0xff]
        %v715 = vld [vmem:[#allocation6 + $0x164] sm:$0xf]
        %v716 = vld [vmem:[#allocation6 + $0x168] sm:$0xff]
        %v717 = vld [vmem:[#allocation6 + $0x170] sm:$0xff]
        %v718 = vld [vmem:[#allocation6 + $0x178] sm:$0xff]
        %v719 = vld [vmem:[#allocation6 + $0x180] sm:$0xff]
        %v720 = vld [vmem:[#allocation6 + $0x188] sm:$0xf]
        %v721 = vld [vmem:[#allocation6 + $0x18c] sm:$0xff]
        %v722 = vld [vmem:[#allocation6 + $0x194] sm:$0xff]
        %v723 = vld [vmem:[#allocation6 + $0x19c] sm:$0xff]
        %v724 = vld [vmem:[#allocation6 + $0x1a4] sm:$0xff]
        %v725 = vld [vmem:[#allocation6 + $0x1ac] sm:$0xf]
        %v726 = vld [vmem:[#allocation6 + $0x1b0] sm:$0xff]
        %v727 = vld [vmem:[#allocation6 + $0x1b8] sm:$0xff]
        %v728 = vld [vmem:[#allocation6 + $0x1c0] sm:$0xff]
        %v729 = vld [vmem:[#allocation6 + $0x1c8] sm:$0xff]
        %v730 = vld [vmem:[#allocation6 + $0x1d0] sm:$0xf]
        %v731 = vld [vmem:[#allocation6 + $0x1d4] sm:$0xff]
        %v732 = vld [vmem:[#allocation6 + $0x1dc] sm:$0xff]
        %v733 = vld [vmem:[#allocation6 + $0x1e4] sm:$0xff]
        %v734 = vld [vmem:[#allocation6 + $0x1ec] sm:$0xff]
        %v735 = vld [vmem:[#allocation6 + $0x1f4] sm:$0xf]
        %v736 = vld [vmem:[#allocation6 + $0x1f8] sm:$0xff]
        %v737 = vld [vmem:[#allocation6 + $0x200] sm:$0xff]
        %v738 = vld [vmem:[#allocation6 + $0x208] sm:$0xff]
        %v739 = vld [vmem:[#allocation6 + $0x210] sm:$0xff]
        %v740 = vld [vmem:[#allocation6 + $0x218] sm:$0xf]
        %v741 = vld [vmem:[#allocation6 + $0x21c] sm:$0xff]
        %v742 = vld [vmem:[#allocation6 + $0x224] sm:$0xff]
        %v743 = vld [vmem:[#allocation6 + $0x22c] sm:$0xff]
        %v744 = vld [vmem:[#allocation6 + $0x234] sm:$0xff]
        %v745 = vld [vmem:[#allocation6 + $0x23c] sm:$0xf]
        %v746 = vld [vmem:[#allocation6 + $0x240] sm:$0xff]
        %v747 = vld [vmem:[#allocation6 + $0x248] sm:$0xff]
        %v748 = vld [vmem:[#allocation6 + $0x250] sm:$0xff]
        %v749 = vld [vmem:[#allocation6 + $0x258] sm:$0xff]
        %v750 = vld [vmem:[#allocation6 + $0x260] sm:$0xf]
        %v751 = vld [vmem:[#allocation6 + $0x264] sm:$0xff]
        %v752 = vld [vmem:[#allocation6 + $0x26c] sm:$0xff]
        %v753 = vld [vmem:[#allocation6 + $0x274] sm:$0xff]
        %v754 = vld [vmem:[#allocation6 + $0x27c] sm:$0xff]
        %v755 = vld [vmem:[#allocation6 + $0x284] sm:$0xf]
        %v756 = vld [vmem:[#allocation6 + $0x288] sm:$0xff]
        %v757 = vld [vmem:[#allocation6 + $0x290] sm:$0xff]
        %v758 = vld [vmem:[#allocation6 + $0x298] sm:$0xff]
        %v759 = vld [vmem:[#allocation6 + $0x2a0] sm:$0xff]
        %v760 = vld [vmem:[#allocation6 + $0x2a8] sm:$0xf]
        %v761 = vld [vmem:[#allocation6 + $0x2ac] sm:$0xff]
        %v762 = vld [vmem:[#allocation6 + $0x2b4] sm:$0xff]
        %v763 = vld [vmem:[#allocation6 + $0x2bc] sm:$0xff]
        %v764 = vld [vmem:[#allocation6 + $0x2c4] sm:$0xff]
        %v765 = vld [vmem:[#allocation6 + $0x2cc] sm:$0xf]
        %v766 = vld [vmem:[#allocation6 + $0x2d0] sm:$0xff]
        %v767 = vld [vmem:[#allocation6 + $0x2d8] sm:$0xff]
        %v768 = vld [vmem:[#allocation6 + $0x2e0] sm:$0xff]
        %v769 = vld [vmem:[#allocation6 + $0x2e8] sm:$0xff]
        %v770 = vld [vmem:[#allocation6 + $0x2f0] sm:$0xf]
        %v771 = vld [vmem:[#allocation6 + $0x2f4] sm:$0xff]
        %v772 = vld [vmem:[#allocation6 + $0x2fc] sm:$0xff]
        %v773 = vld [vmem:[#allocation6 + $0x304] sm:$0xff]
        %v774 = vld [vmem:[#allocation6 + $0x30c] sm:$0xff]
        %v775 = vld [vmem:[#allocation6 + $0x314] sm:$0xf]
        %v776 = vld [vmem:[#allocation6 + $0x318] sm:$0xff]
        %v777 = vld [vmem:[#allocation6 + $0x320] sm:$0xff]
        %v778 = vld [vmem:[#allocation6 + $0x328] sm:$0xff]
        %v779 = vld [vmem:[#allocation6 + $0x330] sm:$0xff]
        %v780 = vld [vmem:[#allocation6 + $0x338] sm:$0xf]
        %v781 = vld [vmem:[#allocation6 + $0x33c] sm:$0xff]
        %v782 = vld [vmem:[#allocation6 + $0x344] sm:$0xff]
        %v783 = vld [vmem:[#allocation6 + $0x34c] sm:$0xff]
        %v784 = vld [vmem:[#allocation6 + $0x354] sm:$0xff]
        %v785 = vld [vmem:[#allocation6 + $0x35c] sm:$0xf]
        %v786 = vld [vmem:[#allocation6 + $0x360] sm:$0xff]
        %v787 = vld [vmem:[#allocation6 + $0x368] sm:$0xff]
        %v788 = vld [vmem:[#allocation6 + $0x370] sm:$0xff]
        %v789 = vld [vmem:[#allocation6 + $0x378] sm:$0xff]
        %v790 = vld [vmem:[#allocation6 + $0x380] sm:$0xf]
        %v791 = vld [vmem:[#allocation6 + $0x384] sm:$0xff]
        %v792 = vld [vmem:[#allocation6 + $0x38c] sm:$0xff]
        %v793 = vld [vmem:[#allocation6 + $0x394] sm:$0xff]
        %v794 = vld [vmem:[#allocation6 + $0x39c] sm:$0xff]
        %v795 = vld [vmem:[#allocation6 + $0x3a4] sm:$0xf]
        %v796 = vld [vmem:[#allocation6 + $0x3a8] sm:$0xff]
        %v797 = vld [vmem:[#allocation6 + $0x3b0] sm:$0xff]
        %v798 = vld [vmem:[#allocation6 + $0x3b8] sm:$0xff]
        %v799 = vld [vmem:[#allocation6 + $0x3c0] sm:$0xff]
        %v800 = vld [vmem:[#allocation6 + $0x3c8] sm:$0xf]
        %v801 = vld [vmem:[#allocation6 + $0x3cc] sm:$0xff]
        %v802 = vld [vmem:[#allocation6 + $0x3d4] sm:$0xff]
        %v803 = vld [vmem:[#allocation6 + $0x3dc] sm:$0xff]
        %v804 = vld [vmem:[#allocation6 + $0x3e4] sm:$0xff]
        %v805 = vld [vmem:[#allocation6 + $0x3ec] sm:$0xf]
        %v806 = vld [vmem:[#allocation6 + $0x3f0] sm:$0xff]
        %v807 = vld [vmem:[#allocation6 + $0x3f8] sm:$0xff]
        %v808 = vld [vmem:[#allocation6 + $0x400] sm:$0xff]
        %v809 = vld [vmem:[#allocation6 + $0x408] sm:$0xff]
        %v810 = vld [vmem:[#allocation6 + $0x410] sm:$0xf]
        %v811 = vld [vmem:[#allocation6 + $0x414] sm:$0xff]
        %v812 = vld [vmem:[#allocation6 + $0x41c] sm:$0xff]
        %v813 = vld [vmem:[#allocation6 + $0x424] sm:$0xff]
        %v814 = vld [vmem:[#allocation6 + $0x42c] sm:$0xff]
        %v815 = vld [vmem:[#allocation6 + $0x434] sm:$0xf]
        %v816 = vld [vmem:[#allocation6 + $0x438] sm:$0xff]
        %v817 = vld [vmem:[#allocation6 + $0x440] sm:$0xff]
        %v818 = vld [vmem:[#allocation6 + $0x448] sm:$0xff]
        %v819 = vld [vmem:[#allocation6 + $0x450] sm:$0xff]
        %v820 = vld [vmem:[#allocation6 + $0x458] sm:$0xf]
        %v821 = vld [vmem:[#allocation6 + $0x45c] sm:$0xff]
        %v822 = vld [vmem:[#allocation6 + $0x464] sm:$0xff]
        %v823 = vld [vmem:[#allocation6 + $0x46c] sm:$0xff]
        %v824 = vld [vmem:[#allocation6 + $0x474] sm:$0xff]
        %v825 = vld [vmem:[#allocation6 + $0x47c] sm:$0xf]
        %v826 = vld [vmem:[#allocation6 + $0x480] sm:$0xff]
        %v827 = vld [vmem:[#allocation6 + $0x488] sm:$0xff]
        %v828 = vld [vmem:[#allocation6 + $0x490] sm:$0xff]
        %v829 = vld [vmem:[#allocation6 + $0x498] sm:$0xff]
        %v830 = vld [vmem:[#allocation6 + $0x4a0] sm:$0xf]
        %v831 = vld [vmem:[#allocation6 + $0x4a4] sm:$0xff]
        %v832 = vld [vmem:[#allocation6 + $0x4ac] sm:$0xff]
        %v833 = vld [vmem:[#allocation6 + $0x4b4] sm:$0xff]
        %v834 = vld [vmem:[#allocation6 + $0x4bc] sm:$0xff]
        %v835 = vld [vmem:[#allocation6 + $0x4c4] sm:$0xf]
        %v836 = vld [vmem:[#allocation6 + $0x4c8] sm:$0xff]
        %v837 = vld [vmem:[#allocation6 + $0x4d0] sm:$0xff]
        %v838 = vld [vmem:[#allocation6 + $0x4d8] sm:$0xff]
        %v839 = vld [vmem:[#allocation6 + $0x4e0] sm:$0xff]
        %v840 = vld [vmem:[#allocation6 + $0x4e8] sm:$0xf]
        %v841 = vld [vmem:[#allocation6 + $0x4ec] sm:$0xff]
        %v842 = vld [vmem:[#allocation6 + $0x4f4] sm:$0xff]
        %v843 = vld [vmem:[#allocation6 + $0x4fc] sm:$0xff]
        %v844 = vld [vmem:[#allocation6 + $0x504] sm:$0xff]
        %v845 = vld [vmem:[#allocation6 + $0x50c] sm:$0xf]
        %v846 = vld [vmem:[#allocation6 + $0x510] sm:$0xff]
        %v847 = vld [vmem:[#allocation6 + $0x518] sm:$0xff]
        %v848 = vld [vmem:[#allocation6 + $0x520] sm:$0xff]
        %v849 = vld [vmem:[#allocation6 + $0x528] sm:$0xff]
        %v850 = vld [vmem:[#allocation6 + $0x530] sm:$0xf]
        %v851 = vld [vmem:[#allocation6 + $0x534] sm:$0xff]
        %v852 = vld [vmem:[#allocation6 + $0x53c] sm:$0xff]
        %v853 = vld [vmem:[#allocation6 + $0x544] sm:$0xff]
        %v854 = vld [vmem:[#allocation6 + $0x54c] sm:$0xff]
        %v855 = vld [vmem:[#allocation6 + $0x554] sm:$0xf]
        %v856 = vld [vmem:[#allocation6 + $0x558] sm:$0xff]
        %v857 = vld [vmem:[#allocation6 + $0x560] sm:$0xff]
        %v858 = vld [vmem:[#allocation6 + $0x568] sm:$0xff]
        %v859 = vld [vmem:[#allocation6 + $0x570] sm:$0xff]
        %v860 = vld [vmem:[#allocation6 + $0x578] sm:$0xf]
        %v861 = vld [vmem:[#allocation6 + $0x57c] sm:$0xff]
        %v862 = vld [vmem:[#allocation6 + $0x584] sm:$0xff]
        %v863 = vld [vmem:[#allocation6 + $0x58c] sm:$0xff]
        %v864 = vld [vmem:[#allocation6 + $0x594] sm:$0xff]
        %v865 = vld [vmem:[#allocation6 + $0x59c] sm:$0xf]
        %v866 = vld [vmem:[#allocation6 + $0x5a0] sm:$0xff]
        %v867 = vld [vmem:[#allocation6 + $0x5a8] sm:$0xff]
        %v868 = vld [vmem:[#allocation6 + $0x5b0] sm:$0xff]
        %v869 = vld [vmem:[#allocation6 + $0x5b8] sm:$0xff]
        %v870 = vld [vmem:[#allocation6 + $0x5c0] sm:$0xf]
        %v871 = vld [vmem:[#allocation6 + $0x5c4] sm:$0xff]
        %v872 = vld [vmem:[#allocation6 + $0x5cc] sm:$0xff]
        %v873 = vld [vmem:[#allocation6 + $0x5d4] sm:$0xff]
        %v874 = vld [vmem:[#allocation6 + $0x5dc] sm:$0xff]
        %v875 = vld [vmem:[#allocation6 + $0x5e4] sm:$0xf]
        %v876 = vld [vmem:[#allocation6 + $0x5e8] sm:$0xff]
        %v877 = vld [vmem:[#allocation6 + $0x5f0] sm:$0xff]
        %v878 = vld [vmem:[#allocation6 + $0x5f8] sm:$0xff]
        %v879 = vld [vmem:[#allocation6 + $0x600] sm:$0xff]
        %v880 = vld [vmem:[#allocation6 + $0x608] sm:$0xf]
        %v881 = vld [vmem:[#allocation6 + $0x60c] sm:$0xff]
        %v882 = vld [vmem:[#allocation6 + $0x614] sm:$0xff]
        %v883 = vld [vmem:[#allocation6 + $0x61c] sm:$0xff]
        %v884 = vld [vmem:[#allocation6 + $0x624] sm:$0xff]
        %v885 = vld [vmem:[#allocation6 + $0x62c] sm:$0xf]
        %v886 = vld [vmem:[#allocation6 + $0x630] sm:$0xff]
        %v887 = vld [vmem:[#allocation6 + $0x638] sm:$0xff]
        %v888 = vld [vmem:[#allocation6 + $0x640] sm:$0xff]
        %v889 = vld [vmem:[#allocation6 + $0x648] sm:$0xff]
        %v890 = vld [vmem:[#allocation6 + $0x650] sm:$0xf]
        %v891 = vld [vmem:[#allocation6 + $0x654] sm:$0xff]
        %v892 = vld [vmem:[#allocation6 + $0x65c] sm:$0xff]
        %v893 = vld [vmem:[#allocation6 + $0x664] sm:$0xff]
        %v894 = vld [vmem:[#allocation6 + $0x66c] sm:$0xff]
        %v895 = vld [vmem:[#allocation6 + $0x674] sm:$0xf]
        %v896 = vld [vmem:[#allocation6 + $0x678] sm:$0xff]
        %v897 = vld [vmem:[#allocation6 + $0x680] sm:$0xff]
        %v898 = vld [vmem:[#allocation6 + $0x688] sm:$0xff]
        %v899 = vld [vmem:[#allocation6 + $0x690] sm:$0xff]
        %v900 = vld [vmem:[#allocation6 + $0x698] sm:$0xf]
        %v901 = vld [vmem:[#allocation6 + $0x69c] sm:$0xff]
        %v902 = vld [vmem:[#allocation6 + $0x6a4] sm:$0xff]
        %v903 = vld [vmem:[#allocation6 + $0x6ac] sm:$0xff]
        %v904 = vld [vmem:[#allocation6 + $0x6b4] sm:$0xff]
        %v905 = vld [vmem:[#allocation6 + $0x6bc] sm:$0xf]
        %v1146 = vunpack.c.l.b16 %v666
        %v1147 = vunpack.c.h.b16 %v666
        %v1148 = vunpack.c.l.b16 %v667
        %v1149 = vunpack.c.h.b16 %v667
        %v1150 = vunpack.c.l.b16 %v668
        %v1151 = vunpack.c.h.b16 %v668
        %v1152 = vunpack.c.l.b16 %v669
        %v1153 = vunpack.c.h.b16 %v669
        %v1154 = vunpack.c.l.b16 %v670
        %v1155 = vunpack.c.l.b16 %v671
        %v1156 = vunpack.c.h.b16 %v671
        %v1157 = vunpack.c.l.b16 %v672
        %v1158 = vunpack.c.h.b16 %v672
        %v1159 = vunpack.c.l.b16 %v673
        %v1160 = vunpack.c.h.b16 %v673
        %v1161 = vunpack.c.l.b16 %v674
        %v1162 = vunpack.c.h.b16 %v674
        %v1163 = vunpack.c.l.b16 %v675
        %v1164 = vunpack.c.l.b16 %v676
        %v1165 = vunpack.c.h.b16 %v676
        %v1166 = vunpack.c.l.b16 %v677
        %v1167 = vunpack.c.h.b16 %v677
        %v1168 = vunpack.c.l.b16 %v678
        %v1169 = vunpack.c.h.b16 %v678
        %v1170 = vunpack.c.l.b16 %v679
        %v1171 = vunpack.c.h.b16 %v679
        %v1172 = vunpack.c.l.b16 %v680
        %v1173 = vunpack.c.l.b16 %v681
        %v1174 = vunpack.c.h.b16 %v681
        %v1175 = vunpack.c.l.b16 %v682
        %v1176 = vunpack.c.h.b16 %v682
        %v1177 = vunpack.c.l.b16 %v683
        %v1178 = vunpack.c.h.b16 %v683
        %v1179 = vunpack.c.l.b16 %v684
        %v1180 = vunpack.c.h.b16 %v684
        %v1181 = vunpack.c.l.b16 %v685
        %v1182 = vunpack.c.l.b16 %v686
        %v1183 = vunpack.c.h.b16 %v686
        %v1184 = vunpack.c.l.b16 %v687
        %v1185 = vunpack.c.h.b16 %v687
        %v1186 = vunpack.c.l.b16 %v688
        %v1187 = vunpack.c.h.b16 %v688
        %v1188 = vunpack.c.l.b16 %v689
        %v1189 = vunpack.c.h.b16 %v689
        %v1190 = vunpack.c.l.b16 %v690
        %v1191 = vunpack.c.l.b16 %v691
        %v1192 = vunpack.c.h.b16 %v691
        %v1193 = vunpack.c.l.b16 %v692
        %v1194 = vunpack.c.h.b16 %v692
        %v1195 = vunpack.c.l.b16 %v693
        %v1196 = vunpack.c.h.b16 %v693
        %v1197 = vunpack.c.l.b16 %v694
        %v1198 = vunpack.c.h.b16 %v694
        %v1199 = vunpack.c.l.b16 %v695
        %v1200 = vunpack.c.l.b16 %v696
        %v1201 = vunpack.c.h.b16 %v696
        %v1202 = vunpack.c.l.b16 %v697
        %v1203 = vunpack.c.h.b16 %v697
        %v1204 = vunpack.c.l.b16 %v698
        %v1205 = vunpack.c.h.b16 %v698
        %v1206 = vunpack.c.l.b16 %v699
        %v1207 = vunpack.c.h.b16 %v699
        %v1208 = vunpack.c.l.b16 %v700
        %v1209 = vunpack.c.l.b16 %v701
        %v1210 = vunpack.c.h.b16 %v701
        %v1211 = vunpack.c.l.b16 %v702
        %v1212 = vunpack.c.h.b16 %v702
        %v1213 = vunpack.c.l.b16 %v703
        %v1214 = vunpack.c.h.b16 %v703
        %v1215 = vunpack.c.l.b16 %v704
        %v1216 = vunpack.c.h.b16 %v704
        %v1217 = vunpack.c.l.b16 %v705
        %v1218 = vunpack.c.l.b16 %v706
        %v1219 = vunpack.c.h.b16 %v706
        %v1220 = vunpack.c.l.b16 %v707
        %v1221 = vunpack.c.h.b16 %v707
        %v1222 = vunpack.c.l.b16 %v708
        %v1223 = vunpack.c.h.b16 %v708
        %v1224 = vunpack.c.l.b16 %v709
        %v1225 = vunpack.c.h.b16 %v709
        %v1226 = vunpack.c.l.b16 %v710
        %v1227 = vunpack.c.l.b16 %v711
        %v1228 = vunpack.c.h.b16 %v711
        %v1229 = vunpack.c.l.b16 %v712
        %v1230 = vunpack.c.h.b16 %v712
        %v1231 = vunpack.c.l.b16 %v713
        %v1232 = vunpack.c.h.b16 %v713
        %v1233 = vunpack.c.l.b16 %v714
        %v1234 = vunpack.c.h.b16 %v714
        %v1235 = vunpack.c.l.b16 %v715
        %v1236 = vunpack.c.l.b16 %v716
        %v1237 = vunpack.c.h.b16 %v716
        %v1238 = vunpack.c.l.b16 %v717
        %v1239 = vunpack.c.h.b16 %v717
        %v1240 = vunpack.c.l.b16 %v718
        %v1241 = vunpack.c.h.b16 %v718
        %v1242 = vunpack.c.l.b16 %v719
        %v1243 = vunpack.c.h.b16 %v719
        %v1244 = vunpack.c.l.b16 %v720
        %v1245 = vunpack.c.l.b16 %v721
        %v1246 = vunpack.c.h.b16 %v721
        %v1247 = vunpack.c.l.b16 %v722
        %v1248 = vunpack.c.h.b16 %v722
        %v1249 = vunpack.c.l.b16 %v723
        %v1250 = vunpack.c.h.b16 %v723
        %v1251 = vunpack.c.l.b16 %v724
        %v1252 = vunpack.c.h.b16 %v724
        %v1253 = vunpack.c.l.b16 %v725
        %v1254 = vunpack.c.l.b16 %v726
        %v1255 = vunpack.c.h.b16 %v726
        %v1256 = vunpack.c.l.b16 %v727
        %v1257 = vunpack.c.h.b16 %v727
        %v1258 = vunpack.c.l.b16 %v728
        %v1259 = vunpack.c.h.b16 %v728
        %v1260 = vunpack.c.l.b16 %v729
        %v1261 = vunpack.c.h.b16 %v729
        %v1262 = vunpack.c.l.b16 %v730
        %v1263 = vunpack.c.l.b16 %v731
        %v1264 = vunpack.c.h.b16 %v731
        %v1265 = vunpack.c.l.b16 %v732
        %v1266 = vunpack.c.h.b16 %v732
        %v1267 = vunpack.c.l.b16 %v733
        %v1268 = vunpack.c.h.b16 %v733
        %v1269 = vunpack.c.l.b16 %v734
        %v1270 = vunpack.c.h.b16 %v734
        %v1271 = vunpack.c.l.b16 %v735
        %v1272 = vunpack.c.l.b16 %v736
        %v1273 = vunpack.c.h.b16 %v736
        %v1274 = vunpack.c.l.b16 %v737
        %v1275 = vunpack.c.h.b16 %v737
        %v1276 = vunpack.c.l.b16 %v738
        %v1277 = vunpack.c.h.b16 %v738
        %v1278 = vunpack.c.l.b16 %v739
        %v1279 = vunpack.c.h.b16 %v739
        %v1280 = vunpack.c.l.b16 %v740
        %v1281 = vunpack.c.l.b16 %v741
        %v1282 = vunpack.c.h.b16 %v741
        %v1283 = vunpack.c.l.b16 %v742
        %v1284 = vunpack.c.h.b16 %v742
        %v1285 = vunpack.c.l.b16 %v743
        %v1286 = vunpack.c.h.b16 %v743
        %v1287 = vunpack.c.l.b16 %v744
        %v1288 = vunpack.c.h.b16 %v744
        %v1289 = vunpack.c.l.b16 %v745
        %v1290 = vunpack.c.l.b16 %v746
        %v1291 = vunpack.c.h.b16 %v746
        %v1292 = vunpack.c.l.b16 %v747
        %v1293 = vunpack.c.h.b16 %v747
        %v1294 = vunpack.c.l.b16 %v748
        %v1295 = vunpack.c.h.b16 %v748
        %v1296 = vunpack.c.l.b16 %v749
        %v1297 = vunpack.c.h.b16 %v749
        %v1298 = vunpack.c.l.b16 %v750
        %v1299 = vunpack.c.l.b16 %v751
        %v1300 = vunpack.c.h.b16 %v751
        %v1301 = vunpack.c.l.b16 %v752
        %v1302 = vunpack.c.h.b16 %v752
        %v1303 = vunpack.c.l.b16 %v753
        %v1304 = vunpack.c.h.b16 %v753
        %v1305 = vunpack.c.l.b16 %v754
        %v1306 = vunpack.c.h.b16 %v754
        %v1307 = vunpack.c.l.b16 %v755
        %v1308 = vunpack.c.l.b16 %v756
        %v1309 = vunpack.c.h.b16 %v756
        %v1310 = vunpack.c.l.b16 %v757
        %v1311 = vunpack.c.h.b16 %v757
        %v1312 = vunpack.c.l.b16 %v758
        %v1313 = vunpack.c.h.b16 %v758
        %v1314 = vunpack.c.l.b16 %v759
        %v1315 = vunpack.c.h.b16 %v759
        %v1316 = vunpack.c.l.b16 %v760
        %v1317 = vunpack.c.l.b16 %v761
        %v1318 = vunpack.c.h.b16 %v761
        %v1319 = vunpack.c.l.b16 %v762
        %v1320 = vunpack.c.h.b16 %v762
        %v1321 = vunpack.c.l.b16 %v763
        %v1322 = vunpack.c.h.b16 %v763
        %v1323 = vunpack.c.l.b16 %v764
        %v1324 = vunpack.c.h.b16 %v764
        %v1325 = vunpack.c.l.b16 %v765
        %v1326 = vunpack.c.l.b16 %v766
        %v1327 = vunpack.c.h.b16 %v766
        %v1328 = vunpack.c.l.b16 %v767
        %v1329 = vunpack.c.h.b16 %v767
        %v1330 = vunpack.c.l.b16 %v768
        %v1331 = vunpack.c.h.b16 %v768
        %v1332 = vunpack.c.l.b16 %v769
        %v1333 = vunpack.c.h.b16 %v769
        %v1334 = vunpack.c.l.b16 %v770
        %v1335 = vunpack.c.l.b16 %v771
        %v1336 = vunpack.c.h.b16 %v771
        %v1337 = vunpack.c.l.b16 %v772
        %v1338 = vunpack.c.h.b16 %v772
        %v1339 = vunpack.c.l.b16 %v773
        %v1340 = vunpack.c.h.b16 %v773
        %v1341 = vunpack.c.l.b16 %v774
        %v1342 = vunpack.c.h.b16 %v774
        %v1343 = vunpack.c.l.b16 %v775
        %v1344 = vunpack.c.l.b16 %v776
        %v1345 = vunpack.c.h.b16 %v776
        %v1346 = vunpack.c.l.b16 %v777
        %v1347 = vunpack.c.h.b16 %v777
        %v1348 = vunpack.c.l.b16 %v778
        %v1349 = vunpack.c.h.b16 %v778
        %v1350 = vunpack.c.l.b16 %v779
        %v1351 = vunpack.c.h.b16 %v779
        %v1352 = vunpack.c.l.b16 %v780
        %v1353 = vunpack.c.l.b16 %v781
        %v1354 = vunpack.c.h.b16 %v781
        %v1355 = vunpack.c.l.b16 %v782
        %v1356 = vunpack.c.h.b16 %v782
        %v1357 = vunpack.c.l.b16 %v783
        %v1358 = vunpack.c.h.b16 %v783
        %v1359 = vunpack.c.l.b16 %v784
        %v1360 = vunpack.c.h.b16 %v784
        %v1361 = vunpack.c.l.b16 %v785
        %v1362 = vunpack.c.l.b16 %v786
        %v1363 = vunpack.c.h.b16 %v786
        %v1364 = vunpack.c.l.b16 %v787
        %v1365 = vunpack.c.h.b16 %v787
        %v1366 = vunpack.c.l.b16 %v788
        %v1367 = vunpack.c.h.b16 %v788
        %v1368 = vunpack.c.l.b16 %v789
        %v1369 = vunpack.c.h.b16 %v789
        %v1370 = vunpack.c.l.b16 %v790
        %v1371 = vunpack.c.l.b16 %v791
        %v1372 = vunpack.c.h.b16 %v791
        %v1373 = vunpack.c.l.b16 %v792
        %v1374 = vunpack.c.h.b16 %v792
        %v1375 = vunpack.c.l.b16 %v793
        %v1376 = vunpack.c.h.b16 %v793
        %v1377 = vunpack.c.l.b16 %v794
        %v1378 = vunpack.c.h.b16 %v794
        %v1379 = vunpack.c.l.b16 %v795
        %v1380 = vunpack.c.l.b16 %v796
        %v1381 = vunpack.c.h.b16 %v796
        %v1382 = vunpack.c.l.b16 %v797
        %v1383 = vunpack.c.h.b16 %v797
        %v1384 = vunpack.c.l.b16 %v798
        %v1385 = vunpack.c.h.b16 %v798
        %v1386 = vunpack.c.l.b16 %v799
        %v1387 = vunpack.c.h.b16 %v799
        %v1388 = vunpack.c.l.b16 %v800
        %v1389 = vunpack.c.l.b16 %v801
        %v1390 = vunpack.c.h.b16 %v801
        %v1391 = vunpack.c.l.b16 %v802
        %v1392 = vunpack.c.h.b16 %v802
        %v1393 = vunpack.c.l.b16 %v803
        %v1394 = vunpack.c.h.b16 %v803
        %v1395 = vunpack.c.l.b16 %v804
        %v1396 = vunpack.c.h.b16 %v804
        %v1397 = vunpack.c.l.b16 %v805
        %v1398 = vunpack.c.l.b16 %v806
        %v1399 = vunpack.c.h.b16 %v806
        %v1400 = vunpack.c.l.b16 %v807
        %v1401 = vunpack.c.h.b16 %v807
        %v1402 = vunpack.c.l.b16 %v808
        %v1403 = vunpack.c.h.b16 %v808
        %v1404 = vunpack.c.l.b16 %v809
        %v1405 = vunpack.c.h.b16 %v809
        %v1406 = vunpack.c.l.b16 %v810
        %v1407 = vunpack.c.l.b16 %v811
        %v1408 = vunpack.c.h.b16 %v811
        %v1409 = vunpack.c.l.b16 %v812
        %v1410 = vunpack.c.h.b16 %v812
        %v1411 = vunpack.c.l.b16 %v813
        %v1412 = vunpack.c.h.b16 %v813
        %v1413 = vunpack.c.l.b16 %v814
        %v1414 = vunpack.c.h.b16 %v814
        %v1415 = vunpack.c.l.b16 %v815
        %v1416 = vunpack.c.l.b16 %v816
        %v1417 = vunpack.c.h.b16 %v816
        %v1418 = vunpack.c.l.b16 %v817
        %v1419 = vunpack.c.h.b16 %v817
        %v1420 = vunpack.c.l.b16 %v818
        %v1421 = vunpack.c.h.b16 %v818
        %v1422 = vunpack.c.l.b16 %v819
        %v1423 = vunpack.c.h.b16 %v819
        %v1424 = vunpack.c.l.b16 %v820
        %v1425 = vunpack.c.l.b16 %v821
        %v1426 = vunpack.c.h.b16 %v821
        %v1427 = vunpack.c.l.b16 %v822
        %v1428 = vunpack.c.h.b16 %v822
        %v1429 = vunpack.c.l.b16 %v823
        %v1430 = vunpack.c.h.b16 %v823
        %v1431 = vunpack.c.l.b16 %v824
        %v1432 = vunpack.c.h.b16 %v824
        %v1433 = vunpack.c.l.b16 %v825
        %v1434 = vunpack.c.l.b16 %v826
        %v1435 = vunpack.c.h.b16 %v826
        %v1436 = vunpack.c.l.b16 %v827
        %v1437 = vunpack.c.h.b16 %v827
        %v1438 = vunpack.c.l.b16 %v828
        %v1439 = vunpack.c.h.b16 %v828
        %v1440 = vunpack.c.l.b16 %v829
        %v1441 = vunpack.c.h.b16 %v829
        %v1442 = vunpack.c.l.b16 %v830
        %v1443 = vunpack.c.l.b16 %v831
        %v1444 = vunpack.c.h.b16 %v831
        %v1445 = vunpack.c.l.b16 %v832
        %v1446 = vunpack.c.h.b16 %v832
        %v1447 = vunpack.c.l.b16 %v833
        %v1448 = vunpack.c.h.b16 %v833
        %v1449 = vunpack.c.l.b16 %v834
        %v1450 = vunpack.c.h.b16 %v834
        %v1451 = vunpack.c.l.b16 %v835
        %v1452 = vunpack.c.l.b16 %v836
        %v1453 = vunpack.c.h.b16 %v836
        %v1454 = vunpack.c.l.b16 %v837
        %v1455 = vunpack.c.h.b16 %v837
        %v1456 = vunpack.c.l.b16 %v838
        %v1457 = vunpack.c.h.b16 %v838
        %v1458 = vunpack.c.l.b16 %v839
        %v1459 = vunpack.c.h.b16 %v839
        %v1460 = vunpack.c.l.b16 %v840
        %v1461 = vunpack.c.l.b16 %v841
        %v1462 = vunpack.c.h.b16 %v841
        %v1463 = vunpack.c.l.b16 %v842
        %v1464 = vunpack.c.h.b16 %v842
        %v1465 = vunpack.c.l.b16 %v843
        %v1466 = vunpack.c.h.b16 %v843
        %v1467 = vunpack.c.l.b16 %v844
        %v1468 = vunpack.c.h.b16 %v844
        %v1469 = vunpack.c.l.b16 %v845
        %v1470 = vunpack.c.l.b16 %v846
        %v1471 = vunpack.c.h.b16 %v846
        %v1472 = vunpack.c.l.b16 %v847
        %v1473 = vunpack.c.h.b16 %v847
        %v1474 = vunpack.c.l.b16 %v848
        %v1475 = vunpack.c.h.b16 %v848
        %v1476 = vunpack.c.l.b16 %v849
        %v1477 = vunpack.c.h.b16 %v849
        %v1478 = vunpack.c.l.b16 %v850
        %v1479 = vunpack.c.l.b16 %v851
        %v1480 = vunpack.c.h.b16 %v851
        %v1481 = vunpack.c.l.b16 %v852
        %v1482 = vunpack.c.h.b16 %v852
        %v1483 = vunpack.c.l.b16 %v853
        %v1484 = vunpack.c.h.b16 %v853
        %v1485 = vunpack.c.l.b16 %v854
        %v1486 = vunpack.c.h.b16 %v854
        %v1487 = vunpack.c.l.b16 %v855
        %v1488 = vunpack.c.l.b16 %v856
        %v1489 = vunpack.c.h.b16 %v856
        %v1490 = vunpack.c.l.b16 %v857
        %v1491 = vunpack.c.h.b16 %v857
        %v1492 = vunpack.c.l.b16 %v858
        %v1493 = vunpack.c.h.b16 %v858
        %v1494 = vunpack.c.l.b16 %v859
        %v1495 = vunpack.c.h.b16 %v859
        %v1496 = vunpack.c.l.b16 %v860
        %v1497 = vunpack.c.l.b16 %v861
        %v1498 = vunpack.c.h.b16 %v861
        %v1499 = vunpack.c.l.b16 %v862
        %v1500 = vunpack.c.h.b16 %v862
        %v1501 = vunpack.c.l.b16 %v863
        %v1502 = vunpack.c.h.b16 %v863
        %v1503 = vunpack.c.l.b16 %v864
        %v1504 = vunpack.c.h.b16 %v864
        %v1505 = vunpack.c.l.b16 %v865
        %v1506 = vunpack.c.l.b16 %v866
        %v1507 = vunpack.c.h.b16 %v866
        %v1508 = vunpack.c.l.b16 %v867
        %v1509 = vunpack.c.h.b16 %v867
        %v1510 = vunpack.c.l.b16 %v868
        %v1511 = vunpack.c.h.b16 %v868
        %v1512 = vunpack.c.l.b16 %v869
        %v1513 = vunpack.c.h.b16 %v869
        %v1514 = vunpack.c.l.b16 %v870
        %v1515 = vunpack.c.l.b16 %v871
        %v1516 = vunpack.c.h.b16 %v871
        %v1517 = vunpack.c.l.b16 %v872
        %v1518 = vunpack.c.h.b16 %v872
        %v1519 = vunpack.c.l.b16 %v873
        %v1520 = vunpack.c.h.b16 %v873
        %v1521 = vunpack.c.l.b16 %v874
        %v1522 = vunpack.c.h.b16 %v874
        %v1523 = vunpack.c.l.b16 %v875
        %v1524 = vunpack.c.l.b16 %v876
        %v1525 = vunpack.c.h.b16 %v876
        %v1526 = vunpack.c.l.b16 %v877
        %v1527 = vunpack.c.h.b16 %v877
        %v1528 = vunpack.c.l.b16 %v878
        %v1529 = vunpack.c.h.b16 %v878
        %v1530 = vunpack.c.l.b16 %v879
        %v1531 = vunpack.c.h.b16 %v879
        %v1532 = vunpack.c.l.b16 %v880
        %v1533 = vunpack.c.l.b16 %v881
        %v1534 = vunpack.c.h.b16 %v881
        %v1535 = vunpack.c.l.b16 %v882
        %v1536 = vunpack.c.h.b16 %v882
        %v1537 = vunpack.c.l.b16 %v883
        %v1538 = vunpack.c.h.b16 %v883
        %v1539 = vunpack.c.l.b16 %v884
        %v1540 = vunpack.c.h.b16 %v884
        %v1541 = vunpack.c.l.b16 %v885
        %v1542 = vunpack.c.l.b16 %v886
        %v1543 = vunpack.c.h.b16 %v886
        %v1544 = vunpack.c.l.b16 %v887
        %v1545 = vunpack.c.h.b16 %v887
        %v1546 = vunpack.c.l.b16 %v888
        %v1547 = vunpack.c.h.b16 %v888
        %v1548 = vunpack.c.l.b16 %v889
        %v1549 = vunpack.c.h.b16 %v889
        %v1550 = vunpack.c.l.b16 %v890
        %v1551 = vunpack.c.l.b16 %v891
        %v1552 = vunpack.c.h.b16 %v891
        %v1553 = vunpack.c.l.b16 %v892
        %v1554 = vunpack.c.h.b16 %v892
        %v1555 = vunpack.c.l.b16 %v893
        %v1556 = vunpack.c.h.b16 %v893
        %v1557 = vunpack.c.l.b16 %v894
        %v1558 = vunpack.c.h.b16 %v894
        %v1559 = vunpack.c.l.b16 %v895
        %v1560 = vunpack.c.l.b16 %v896
        %v1561 = vunpack.c.h.b16 %v896
        %v1562 = vunpack.c.l.b16 %v897
        %v1563 = vunpack.c.h.b16 %v897
        %v1564 = vunpack.c.l.b16 %v898
        %v1565 = vunpack.c.h.b16 %v898
        %v1566 = vunpack.c.l.b16 %v899
        %v1567 = vunpack.c.h.b16 %v899
        %v1568 = vunpack.c.l.b16 %v900
        %v1569 = vunpack.c.l.b16 %v901
        %v1570 = vunpack.c.h.b16 %v901
        %v1571 = vunpack.c.l.b16 %v902
        %v1572 = vunpack.c.h.b16 %v902
        %v1573 = vunpack.c.l.b16 %v903
        %v1574 = vunpack.c.h.b16 %v903
        %v1575 = vunpack.c.l.b16 %v904
        %v1576 = vunpack.c.h.b16 %v904
        %v1577 = vunpack.c.l.b16 %v905
        %v1578 = vpack.c.b16 %v1155, %v1146
        %v1579 = vpack.c.b16 %v1156, %v1147
        %v1580 = vpack.c.b16 %v1157, %v1148
        %v1581 = vpack.c.b16 %v1158, %v1149
        %v1582 = vpack.c.b16 %v1159, %v1150
        %v1583 = vpack.c.b16 %v1160, %v1151
        %v1584 = vpack.c.b16 %v1161, %v1152
        %v1585 = vpack.c.b16 %v1162, %v1153
        %v1586 = vpack.c.b16 %v1163, %v1154
        %v1587 = vpack.c.b16 %v1173, %v1164
        %v1588 = vpack.c.b16 %v1174, %v1165
        %v1589 = vpack.c.b16 %v1175, %v1166
        %v1590 = vpack.c.b16 %v1176, %v1167
        %v1591 = vpack.c.b16 %v1177, %v1168
        %v1592 = vpack.c.b16 %v1178, %v1169
        %v1593 = vpack.c.b16 %v1179, %v1170
        %v1594 = vpack.c.b16 %v1180, %v1171
        %v1595 = vpack.c.b16 %v1181, %v1172
        %v1596 = vpack.c.b16 %v1191, %v1182
        %v1597 = vpack.c.b16 %v1192, %v1183
        %v1598 = vpack.c.b16 %v1193, %v1184
        %v1599 = vpack.c.b16 %v1194, %v1185
        %v1600 = vpack.c.b16 %v1195, %v1186
        %v1601 = vpack.c.b16 %v1196, %v1187
        %v1602 = vpack.c.b16 %v1197, %v1188
        %v1603 = vpack.c.b16 %v1198, %v1189
        %v1604 = vpack.c.b16 %v1199, %v1190
        %v1605 = vpack.c.b16 %v1209, %v1200
        %v1606 = vpack.c.b16 %v1210, %v1201
        %v1607 = vpack.c.b16 %v1211, %v1202
        %v1608 = vpack.c.b16 %v1212, %v1203
        %v1609 = vpack.c.b16 %v1213, %v1204
        %v1610 = vpack.c.b16 %v1214, %v1205
        %v1611 = vpack.c.b16 %v1215, %v1206
        %v1612 = vpack.c.b16 %v1216, %v1207
        %v1613 = vpack.c.b16 %v1217, %v1208
        %v1614 = vpack.c.b16 %v1227, %v1218
        %v1615 = vpack.c.b16 %v1228, %v1219
        %v1616 = vpack.c.b16 %v1229, %v1220
        %v1617 = vpack.c.b16 %v1230, %v1221
        %v1618 = vpack.c.b16 %v1231, %v1222
        %v1619 = vpack.c.b16 %v1232, %v1223
        %v1620 = vpack.c.b16 %v1233, %v1224
        %v1621 = vpack.c.b16 %v1234, %v1225
        %v1622 = vpack.c.b16 %v1235, %v1226
        %v1623 = vpack.c.b16 %v1245, %v1236
        %v1624 = vpack.c.b16 %v1246, %v1237
        %v1625 = vpack.c.b16 %v1247, %v1238
        %v1626 = vpack.c.b16 %v1248, %v1239
        %v1627 = vpack.c.b16 %v1249, %v1240
        %v1628 = vpack.c.b16 %v1250, %v1241
        %v1629 = vpack.c.b16 %v1251, %v1242
        %v1630 = vpack.c.b16 %v1252, %v1243
        %v1631 = vpack.c.b16 %v1253, %v1244
        %v1632 = vpack.c.b16 %v1263, %v1254
        %v1633 = vpack.c.b16 %v1264, %v1255
        %v1634 = vpack.c.b16 %v1265, %v1256
        %v1635 = vpack.c.b16 %v1266, %v1257
        %v1636 = vpack.c.b16 %v1267, %v1258
        %v1637 = vpack.c.b16 %v1268, %v1259
        %v1638 = vpack.c.b16 %v1269, %v1260
        %v1639 = vpack.c.b16 %v1270, %v1261
        %v1640 = vpack.c.b16 %v1271, %v1262
        %v1641 = vpack.c.b16 %v1281, %v1272
        %v1642 = vpack.c.b16 %v1282, %v1273
        %v1643 = vpack.c.b16 %v1283, %v1274
        %v1644 = vpack.c.b16 %v1284, %v1275
        %v1645 = vpack.c.b16 %v1285, %v1276
        %v1646 = vpack.c.b16 %v1286, %v1277
        %v1647 = vpack.c.b16 %v1287, %v1278
        %v1648 = vpack.c.b16 %v1288, %v1279
        %v1649 = vpack.c.b16 %v1289, %v1280
        %v1650 = vpack.c.b16 %v1299, %v1290
        %v1651 = vpack.c.b16 %v1300, %v1291
        %v1652 = vpack.c.b16 %v1301, %v1292
        %v1653 = vpack.c.b16 %v1302, %v1293
        %v1654 = vpack.c.b16 %v1303, %v1294
        %v1655 = vpack.c.b16 %v1304, %v1295
        %v1656 = vpack.c.b16 %v1305, %v1296
        %v1657 = vpack.c.b16 %v1306, %v1297
        %v1658 = vpack.c.b16 %v1307, %v1298
        %v1659 = vpack.c.b16 %v1317, %v1308
        %v1660 = vpack.c.b16 %v1318, %v1309
        %v1661 = vpack.c.b16 %v1319, %v1310
        %v1662 = vpack.c.b16 %v1320, %v1311
        %v1663 = vpack.c.b16 %v1321, %v1312
        %v1664 = vpack.c.b16 %v1322, %v1313
        %v1665 = vpack.c.b16 %v1323, %v1314
        %v1666 = vpack.c.b16 %v1324, %v1315
        %v1667 = vpack.c.b16 %v1325, %v1316
        %v1668 = vpack.c.b16 %v1335, %v1326
        %v1669 = vpack.c.b16 %v1336, %v1327
        %v1670 = vpack.c.b16 %v1337, %v1328
        %v1671 = vpack.c.b16 %v1338, %v1329
        %v1672 = vpack.c.b16 %v1339, %v1330
        %v1673 = vpack.c.b16 %v1340, %v1331
        %v1674 = vpack.c.b16 %v1341, %v1332
        %v1675 = vpack.c.b16 %v1342, %v1333
        %v1676 = vpack.c.b16 %v1343, %v1334
        %v1677 = vpack.c.b16 %v1353, %v1344
        %v1678 = vpack.c.b16 %v1354, %v1345
        %v1679 = vpack.c.b16 %v1355, %v1346
        %v1680 = vpack.c.b16 %v1356, %v1347
        %v1681 = vpack.c.b16 %v1357, %v1348
        %v1682 = vpack.c.b16 %v1358, %v1349
        %v1683 = vpack.c.b16 %v1359, %v1350
        %v1684 = vpack.c.b16 %v1360, %v1351
        %v1685 = vpack.c.b16 %v1361, %v1352
        %v1686 = vpack.c.b16 %v1371, %v1362
        %v1687 = vpack.c.b16 %v1372, %v1363
        %v1688 = vpack.c.b16 %v1373, %v1364
        %v1689 = vpack.c.b16 %v1374, %v1365
        %v1690 = vpack.c.b16 %v1375, %v1366
        %v1691 = vpack.c.b16 %v1376, %v1367
        %v1692 = vpack.c.b16 %v1377, %v1368
        %v1693 = vpack.c.b16 %v1378, %v1369
        %v1694 = vpack.c.b16 %v1379, %v1370
        %v1695 = vpack.c.b16 %v1389, %v1380
        %v1696 = vpack.c.b16 %v1390, %v1381
        %v1697 = vpack.c.b16 %v1391, %v1382
        %v1698 = vpack.c.b16 %v1392, %v1383
        %v1699 = vpack.c.b16 %v1393, %v1384
        %v1700 = vpack.c.b16 %v1394, %v1385
        %v1701 = vpack.c.b16 %v1395, %v1386
        %v1702 = vpack.c.b16 %v1396, %v1387
        %v1703 = vpack.c.b16 %v1397, %v1388
        %v1704 = vpack.c.b16 %v1407, %v1398
        %v1705 = vpack.c.b16 %v1408, %v1399
        %v1706 = vpack.c.b16 %v1409, %v1400
        %v1707 = vpack.c.b16 %v1410, %v1401
        %v1708 = vpack.c.b16 %v1411, %v1402
        %v1709 = vpack.c.b16 %v1412, %v1403
        %v1710 = vpack.c.b16 %v1413, %v1404
        %v1711 = vpack.c.b16 %v1414, %v1405
        %v1712 = vpack.c.b16 %v1415, %v1406
        %v1713 = vpack.c.b16 %v1425, %v1416
        %v1714 = vpack.c.b16 %v1426, %v1417
        %v1715 = vpack.c.b16 %v1427, %v1418
        %v1716 = vpack.c.b16 %v1428, %v1419
        %v1717 = vpack.c.b16 %v1429, %v1420
        %v1718 = vpack.c.b16 %v1430, %v1421
        %v1719 = vpack.c.b16 %v1431, %v1422
        %v1720 = vpack.c.b16 %v1432, %v1423
        %v1721 = vpack.c.b16 %v1433, %v1424
        %v1722 = vpack.c.b16 %v1443, %v1434
        %v1723 = vpack.c.b16 %v1444, %v1435
        %v1724 = vpack.c.b16 %v1445, %v1436
        %v1725 = vpack.c.b16 %v1446, %v1437
        %v1726 = vpack.c.b16 %v1447, %v1438
        %v1727 = vpack.c.b16 %v1448, %v1439
        %v1728 = vpack.c.b16 %v1449, %v1440
        %v1729 = vpack.c.b16 %v1450, %v1441
        %v1730 = vpack.c.b16 %v1451, %v1442
        %v1731 = vpack.c.b16 %v1461, %v1452
        %v1732 = vpack.c.b16 %v1462, %v1453
        %v1733 = vpack.c.b16 %v1463, %v1454
        %v1734 = vpack.c.b16 %v1464, %v1455
        %v1735 = vpack.c.b16 %v1465, %v1456
        %v1736 = vpack.c.b16 %v1466, %v1457
        %v1737 = vpack.c.b16 %v1467, %v1458
        %v1738 = vpack.c.b16 %v1468, %v1459
        %v1739 = vpack.c.b16 %v1469, %v1460
        %v1740 = vpack.c.b16 %v1479, %v1470
        %v1741 = vpack.c.b16 %v1480, %v1471
        %v1742 = vpack.c.b16 %v1481, %v1472
        %v1743 = vpack.c.b16 %v1482, %v1473
        %v1744 = vpack.c.b16 %v1483, %v1474
        %v1745 = vpack.c.b16 %v1484, %v1475
        %v1746 = vpack.c.b16 %v1485, %v1476
        %v1747 = vpack.c.b16 %v1486, %v1477
        %v1748 = vpack.c.b16 %v1487, %v1478
        %v1749 = vpack.c.b16 %v1497, %v1488
        %v1750 = vpack.c.b16 %v1498, %v1489
        %v1751 = vpack.c.b16 %v1499, %v1490
        %v1752 = vpack.c.b16 %v1500, %v1491
        %v1753 = vpack.c.b16 %v1501, %v1492
        %v1754 = vpack.c.b16 %v1502, %v1493
        %v1755 = vpack.c.b16 %v1503, %v1494
        %v1756 = vpack.c.b16 %v1504, %v1495
        %v1757 = vpack.c.b16 %v1505, %v1496
        %v1758 = vpack.c.b16 %v1515, %v1506
        %v1759 = vpack.c.b16 %v1516, %v1507
        %v1760 = vpack.c.b16 %v1517, %v1508
        %v1761 = vpack.c.b16 %v1518, %v1509
        %v1762 = vpack.c.b16 %v1519, %v1510
        %v1763 = vpack.c.b16 %v1520, %v1511
        %v1764 = vpack.c.b16 %v1521, %v1512
        %v1765 = vpack.c.b16 %v1522, %v1513
        %v1766 = vpack.c.b16 %v1523, %v1514
        %v1767 = vpack.c.b16 %v1533, %v1524
        %v1768 = vpack.c.b16 %v1534, %v1525
        %v1769 = vpack.c.b16 %v1535, %v1526
        %v1770 = vpack.c.b16 %v1536, %v1527
        %v1771 = vpack.c.b16 %v1537, %v1528
        %v1772 = vpack.c.b16 %v1538, %v1529
        %v1773 = vpack.c.b16 %v1539, %v1530
        %v1774 = vpack.c.b16 %v1540, %v1531
        %v1775 = vpack.c.b16 %v1541, %v1532
        %v1776 = vpack.c.b16 %v1551, %v1542
        %v1777 = vpack.c.b16 %v1552, %v1543
        %v1778 = vpack.c.b16 %v1553, %v1544
        %v1779 = vpack.c.b16 %v1554, %v1545
        %v1780 = vpack.c.b16 %v1555, %v1546
        %v1781 = vpack.c.b16 %v1556, %v1547
        %v1782 = vpack.c.b16 %v1557, %v1548
        %v1783 = vpack.c.b16 %v1558, %v1549
        %v1784 = vpack.c.b16 %v1559, %v1550
        %v1785 = vpack.c.b16 %v1569, %v1560
        %v1786 = vpack.c.b16 %v1570, %v1561
        %v1787 = vpack.c.b16 %v1571, %v1562
        %v1788 = vpack.c.b16 %v1572, %v1563
        %v1789 = vpack.c.b16 %v1573, %v1564
        %v1790 = vpack.c.b16 %v1574, %v1565
        %v1791 = vpack.c.b16 %v1575, %v1566
        %v1792 = vpack.c.b16 %v1576, %v1567
        %v1793 = vpack.c.b16 %v1577, %v1568
        %2010 = vmatpush.bf16.msra.mxu0 %v1641
        %2011 = vmatpush.bf16.msra.mxu0 %v1632
        %2012 = vmatpush.bf16.msra.mxu0 %v1623
        %2013 = vmatpush.bf16.msra.mxu0 %v1614
        %2014 = vmatpush.bf16.msra.mxu0 %v1605
        %2015 = vmatpush.bf16.msra.mxu0 %v1596
        %2016 = vmatpush.bf16.msra.mxu0 %v1587
        %2017 = vmatpush.bf16.msra.mxu0 %v1578
        %2018 = vmatmul.bf16.gmra.mxu0 %v663
        %v2019 = vpop.f32.mrf.mxu0
        %v2020 = vadd.f32 0.0, %v2019
        %v2021 = vpop.f32.mrf.mxu0
        %2022 = vdwg.mxu0
        %2023 = vmatpush.bf16.msra.mxu0 %v1713
        %2024 = vmatpush.bf16.msra.mxu0 %v1704
        %2025 = vmatpush.bf16.msra.mxu0 %v1695
        %2026 = vmatpush.bf16.msra.mxu0 %v1686
        %2027 = vmatpush.bf16.msra.mxu0 %v1677
        %2028 = vmatpush.bf16.msra.mxu0 %v1668
        %2029 = vmatpush.bf16.msra.mxu0 %v1659
        %2030 = vmatpush.bf16.msra.mxu0 %v1650
        %2031 = vmatmul.bf16.gmra.mxu0 %v664
        %v2032 = vpop.f32.mrf.mxu0
        %v2033 = vadd.f32 %v2020, %v2032
        %v2034 = vpop.f32.mrf.mxu0
        %2035 = vdwg.mxu0
        %2036 = vmatpush.bf16.msra.mxu0 %v1785
        %2037 = vmatpush.bf16.msra.mxu0 %v1776
        %2038 = vmatpush.bf16.msra.mxu0 %v1767
        %2039 = vmatpush.bf16.msra.mxu0 %v1758
        %2040 = vmatpush.bf16.msra.mxu0 %v1749
        %2041 = vmatpush.bf16.msra.mxu0 %v1740
        %2042 = vmatpush.bf16.msra.mxu0 %v1731
        %2043 = vmatpush.bf16.msra.mxu0 %v1722
        %2044 = vmatmul.bf16.gmra.mxu0 %v665
        %v2045 = vpop.f32.mrf.mxu0
        %v2046 = vadd.f32 %v2033, %v2045
        %v2047 = vpop.f32.mrf.mxu0
        %2048 = vdwg.mxu0
        %2049 = vmatpush.bf16.msra.mxu0 %v1642
        %2050 = vmatpush.bf16.msra.mxu0 %v1633
        %2051 = vmatpush.bf16.msra.mxu0 %v1624
        %2052 = vmatpush.bf16.msra.mxu0 %v1615
        %2053 = vmatpush.bf16.msra.mxu0 %v1606
        %2054 = vmatpush.bf16.msra.mxu0 %v1597
        %2055 = vmatpush.bf16.msra.mxu0 %v1588
        %2056 = vmatpush.bf16.msra.mxu0 %v1579
        %2057 = vmatmul.bf16.gmra.mxu0 %v663
        %v2058 = vpop.f32.mrf.mxu0
        %v2059 = vadd.f32 0.0, %v2058
        %v2060 = vpop.f32.mrf.mxu0
        %2061 = vdwg.mxu0
        %2062 = vmatpush.bf16.msra.mxu0 %v1714
        %2063 = vmatpush.bf16.msra.mxu0 %v1705
        %2064 = vmatpush.bf16.msra.mxu0 %v1696
        %2065 = vmatpush.bf16.msra.mxu0 %v1687
        %2066 = vmatpush.bf16.msra.mxu0 %v1678
        %2067 = vmatpush.bf16.msra.mxu0 %v1669
        %2068 = vmatpush.bf16.msra.mxu0 %v1660
        %2069 = vmatpush.bf16.msra.mxu0 %v1651
        %2070 = vmatmul.bf16.gmra.mxu0 %v664
        %v2071 = vpop.f32.mrf.mxu0
        %v2072 = vadd.f32 %v2059, %v2071
        %v2073 = vpop.f32.mrf.mxu0
        %2074 = vdwg.mxu0
        %2075 = vmatpush.bf16.msra.mxu0 %v1786
        %2076 = vmatpush.bf16.msra.mxu0 %v1777
        %2077 = vmatpush.bf16.msra.mxu0 %v1768
        %2078 = vmatpush.bf16.msra.mxu0 %v1759
        %2079 = vmatpush.bf16.msra.mxu0 %v1750
        %2080 = vmatpush.bf16.msra.mxu0 %v1741
        %2081 = vmatpush.bf16.msra.mxu0 %v1732
        %2082 = vmatpush.bf16.msra.mxu0 %v1723
        %2083 = vmatmul.bf16.gmra.mxu0 %v665
        %v2084 = vpop.f32.mrf.mxu0
        %v2085 = vadd.f32 %v2072, %v2084
        %v2086 = vpop.f32.mrf.mxu0
        %2087 = vdwg.mxu0
        %2088 = vmatpush.bf16.msra.mxu0 %v1643
        %2089 = vmatpush.bf16.msra.mxu0 %v1634
        %2090 = vmatpush.bf16.msra.mxu0 %v1625
        %2091 = vmatpush.bf16.msra.mxu0 %v1616
        %2092 = vmatpush.bf16.msra.mxu0 %v1607
        %2093 = vmatpush.bf16.msra.mxu0 %v1598
        %2094 = vmatpush.bf16.msra.mxu0 %v1589
        %2095 = vmatpush.bf16.msra.mxu0 %v1580
        %2096 = vmatmul.bf16.gmra.mxu0 %v663
        %v2097 = vpop.f32.mrf.mxu0
        %v2098 = vadd.f32 0.0, %v2097
        %v2099 = vpop.f32.mrf.mxu0
        %2100 = vdwg.mxu0
        %2101 = vmatpush.bf16.msra.mxu0 %v1715
        %2102 = vmatpush.bf16.msra.mxu0 %v1706
        %2103 = vmatpush.bf16.msra.mxu0 %v1697
        %2104 = vmatpush.bf16.msra.mxu0 %v1688
        %2105 = vmatpush.bf16.msra.mxu0 %v1679
        %2106 = vmatpush.bf16.msra.mxu0 %v1670
        %2107 = vmatpush.bf16.msra.mxu0 %v1661
        %2108 = vmatpush.bf16.msra.mxu0 %v1652
        %2109 = vmatmul.bf16.gmra.mxu0 %v664
        %v2110 = vpop.f32.mrf.mxu0
        %v2111 = vadd.f32 %v2098, %v2110
        %v2112 = vpop.f32.mrf.mxu0
        %2113 = vdwg.mxu0
        %2114 = vmatpush.bf16.msra.mxu0 %v1787
        %2115 = vmatpush.bf16.msra.mxu0 %v1778
        %2116 = vmatpush.bf16.msra.mxu0 %v1769
        %2117 = vmatpush.bf16.msra.mxu0 %v1760
        %2118 = vmatpush.bf16.msra.mxu0 %v1751
        %2119 = vmatpush.bf16.msra.mxu0 %v1742
        %2120 = vmatpush.bf16.msra.mxu0 %v1733
        %2121 = vmatpush.bf16.msra.mxu0 %v1724
        %2122 = vmatmul.bf16.gmra.mxu0 %v665
        %v2123 = vpop.f32.mrf.mxu0
        %v2124 = vadd.f32 %v2111, %v2123
        %v2125 = vpop.f32.mrf.mxu0
        %2126 = vdwg.mxu0
        %2127 = vmatpush.bf16.msra.mxu0 %v1644
        %2128 = vmatpush.bf16.msra.mxu0 %v1635
        %2129 = vmatpush.bf16.msra.mxu0 %v1626
        %2130 = vmatpush.bf16.msra.mxu0 %v1617
        %2131 = vmatpush.bf16.msra.mxu0 %v1608
        %2132 = vmatpush.bf16.msra.mxu0 %v1599
        %2133 = vmatpush.bf16.msra.mxu0 %v1590
        %2134 = vmatpush.bf16.msra.mxu0 %v1581
        %2135 = vmatmul.bf16.gmra.mxu0 %v663
        %v2136 = vpop.f32.mrf.mxu0
        %v2137 = vadd.f32 0.0, %v2136
        %v2138 = vpop.f32.mrf.mxu0
        %2139 = vdwg.mxu0
        %2140 = vmatpush.bf16.msra.mxu0 %v1716
        %2141 = vmatpush.bf16.msra.mxu0 %v1707
        %2142 = vmatpush.bf16.msra.mxu0 %v1698
        %2143 = vmatpush.bf16.msra.mxu0 %v1689
        %2144 = vmatpush.bf16.msra.mxu0 %v1680
        %2145 = vmatpush.bf16.msra.mxu0 %v1671
        %2146 = vmatpush.bf16.msra.mxu0 %v1662
        %2147 = vmatpush.bf16.msra.mxu0 %v1653
        %2148 = vmatmul.bf16.gmra.mxu0 %v664
        %v2149 = vpop.f32.mrf.mxu0
        %v2150 = vadd.f32 %v2137, %v2149
        %v2151 = vpop.f32.mrf.mxu0
        %2152 = vdwg.mxu0
        %2153 = vmatpush.bf16.msra.mxu0 %v1788
        %2154 = vmatpush.bf16.msra.mxu0 %v1779
        %2155 = vmatpush.bf16.msra.mxu0 %v1770
        %2156 = vmatpush.bf16.msra.mxu0 %v1761
        %2157 = vmatpush.bf16.msra.mxu0 %v1752
        %2158 = vmatpush.bf16.msra.mxu0 %v1743
        %2159 = vmatpush.bf16.msra.mxu0 %v1734
        %2160 = vmatpush.bf16.msra.mxu0 %v1725
        %2161 = vmatmul.bf16.gmra.mxu0 %v665
        %v2162 = vpop.f32.mrf.mxu0
        %v2163 = vadd.f32 %v2150, %v2162
        %v2164 = vpop.f32.mrf.mxu0
        %2165 = vdwg.mxu0
        %2166 = vmatpush.bf16.msra.mxu0 %v1645
        %2167 = vmatpush.bf16.msra.mxu0 %v1636
        %2168 = vmatpush.bf16.msra.mxu0 %v1627
        %2169 = vmatpush.bf16.msra.mxu0 %v1618
        %2170 = vmatpush.bf16.msra.mxu0 %v1609
        %2171 = vmatpush.bf16.msra.mxu0 %v1600
        %2172 = vmatpush.bf16.msra.mxu0 %v1591
        %2173 = vmatpush.bf16.msra.mxu0 %v1582
        %2174 = vmatmul.bf16.gmra.mxu0 %v663
        %v2175 = vpop.f32.mrf.mxu0
        %v2176 = vadd.f32 0.0, %v2175
        %v2177 = vpop.f32.mrf.mxu0
        %2178 = vdwg.mxu0
        %2179 = vmatpush.bf16.msra.mxu0 %v1717
        %2180 = vmatpush.bf16.msra.mxu0 %v1708
        %2181 = vmatpush.bf16.msra.mxu0 %v1699
        %2182 = vmatpush.bf16.msra.mxu0 %v1690
        %2183 = vmatpush.bf16.msra.mxu0 %v1681
        %2184 = vmatpush.bf16.msra.mxu0 %v1672
        %2185 = vmatpush.bf16.msra.mxu0 %v1663
        %2186 = vmatpush.bf16.msra.mxu0 %v1654
        %2187 = vmatmul.bf16.gmra.mxu0 %v664
        %v2188 = vpop.f32.mrf.mxu0
        %v2189 = vadd.f32 %v2176, %v2188
        %v2190 = vpop.f32.mrf.mxu0
        %2191 = vdwg.mxu0
        %2192 = vmatpush.bf16.msra.mxu0 %v1789
        %2193 = vmatpush.bf16.msra.mxu0 %v1780
        %2194 = vmatpush.bf16.msra.mxu0 %v1771
        %2195 = vmatpush.bf16.msra.mxu0 %v1762
        %2196 = vmatpush.bf16.msra.mxu0 %v1753
        %2197 = vmatpush.bf16.msra.mxu0 %v1744
        %2198 = vmatpush.bf16.msra.mxu0 %v1735
        %2199 = vmatpush.bf16.msra.mxu0 %v1726
        %2200 = vmatmul.bf16.gmra.mxu0 %v665
        %v2201 = vpop.f32.mrf.mxu0
        %v2202 = vadd.f32 %v2189, %v2201
        %v2203 = vpop.f32.mrf.mxu0
        %2204 = vdwg.mxu0
        %2205 = vmatpush.bf16.msra.mxu0 %v1646
        %2206 = vmatpush.bf16.msra.mxu0 %v1637
        %2207 = vmatpush.bf16.msra.mxu0 %v1628
        %2208 = vmatpush.bf16.msra.mxu0 %v1619
        %2209 = vmatpush.bf16.msra.mxu0 %v1610
        %2210 = vmatpush.bf16.msra.mxu0 %v1601
        %2211 = vmatpush.bf16.msra.mxu0 %v1592
        %2212 = vmatpush.bf16.msra.mxu0 %v1583
        %2213 = vmatmul.bf16.gmra.mxu0 %v663
        %v2214 = vpop.f32.mrf.mxu0
        %v2215 = vadd.f32 0.0, %v2214
        %v2216 = vpop.f32.mrf.mxu0
        %2217 = vdwg.mxu0
        %2218 = vmatpush.bf16.msra.mxu0 %v1718
        %2219 = vmatpush.bf16.msra.mxu0 %v1709
        %2220 = vmatpush.bf16.msra.mxu0 %v1700
        %2221 = vmatpush.bf16.msra.mxu0 %v1691
        %2222 = vmatpush.bf16.msra.mxu0 %v1682
        %2223 = vmatpush.bf16.msra.mxu0 %v1673
        %2224 = vmatpush.bf16.msra.mxu0 %v1664
        %2225 = vmatpush.bf16.msra.mxu0 %v1655
        %2226 = vmatmul.bf16.gmra.mxu0 %v664
        %v2227 = vpop.f32.mrf.mxu0
        %v2228 = vadd.f32 %v2215, %v2227
        %v2229 = vpop.f32.mrf.mxu0
        %2230 = vdwg.mxu0
        %2231 = vmatpush.bf16.msra.mxu0 %v1790
        %2232 = vmatpush.bf16.msra.mxu0 %v1781
        %2233 = vmatpush.bf16.msra.mxu0 %v1772
        %2234 = vmatpush.bf16.msra.mxu0 %v1763
        %2235 = vmatpush.bf16.msra.mxu0 %v1754
        %2236 = vmatpush.bf16.msra.mxu0 %v1745
        %2237 = vmatpush.bf16.msra.mxu0 %v1736
        %2238 = vmatpush.bf16.msra.mxu0 %v1727
        %2239 = vmatmul.bf16.gmra.mxu0 %v665
        %v2240 = vpop.f32.mrf.mxu0
        %v2241 = vadd.f32 %v2228, %v2240
        %v2242 = vpop.f32.mrf.mxu0
        %2243 = vdwg.mxu0
        %2244 = vmatpush.bf16.msra.mxu0 %v1647
        %2245 = vmatpush.bf16.msra.mxu0 %v1638
        %2246 = vmatpush.bf16.msra.mxu0 %v1629
        %2247 = vmatpush.bf16.msra.mxu0 %v1620
        %2248 = vmatpush.bf16.msra.mxu0 %v1611
        %2249 = vmatpush.bf16.msra.mxu0 %v1602
        %2250 = vmatpush.bf16.msra.mxu0 %v1593
        %2251 = vmatpush.bf16.msra.mxu0 %v1584
        %2252 = vmatmul.bf16.gmra.mxu0 %v663
        %v2253 = vpop.f32.mrf.mxu0
        %v2254 = vadd.f32 0.0, %v2253
        %v2255 = vpop.f32.mrf.mxu0
        %2256 = vdwg.mxu0
        %2257 = vmatpush.bf16.msra.mxu0 %v1719
        %2258 = vmatpush.bf16.msra.mxu0 %v1710
        %2259 = vmatpush.bf16.msra.mxu0 %v1701
        %2260 = vmatpush.bf16.msra.mxu0 %v1692
        %2261 = vmatpush.bf16.msra.mxu0 %v1683
        %2262 = vmatpush.bf16.msra.mxu0 %v1674
        %2263 = vmatpush.bf16.msra.mxu0 %v1665
        %2264 = vmatpush.bf16.msra.mxu0 %v1656
        %2265 = vmatmul.bf16.gmra.mxu0 %v664
        %v2266 = vpop.f32.mrf.mxu0
        %v2267 = vadd.f32 %v2254, %v2266
        %v2268 = vpop.f32.mrf.mxu0
        %2269 = vdwg.mxu0
        %2270 = vmatpush.bf16.msra.mxu0 %v1791
        %2271 = vmatpush.bf16.msra.mxu0 %v1782
        %2272 = vmatpush.bf16.msra.mxu0 %v1773
        %2273 = vmatpush.bf16.msra.mxu0 %v1764
        %2274 = vmatpush.bf16.msra.mxu0 %v1755
        %2275 = vmatpush.bf16.msra.mxu0 %v1746
        %2276 = vmatpush.bf16.msra.mxu0 %v1737
        %2277 = vmatpush.bf16.msra.mxu0 %v1728
        %2278 = vmatmul.bf16.gmra.mxu0 %v665
        %v2279 = vpop.f32.mrf.mxu0
        %v2280 = vadd.f32 %v2267, %v2279
        %v2281 = vpop.f32.mrf.mxu0
        %2282 = vdwg.mxu0
        %2283 = vmatpush.bf16.msra.mxu0 %v1648
        %2284 = vmatpush.bf16.msra.mxu0 %v1639
        %2285 = vmatpush.bf16.msra.mxu0 %v1630
        %2286 = vmatpush.bf16.msra.mxu0 %v1621
        %2287 = vmatpush.bf16.msra.mxu0 %v1612
        %2288 = vmatpush.bf16.msra.mxu0 %v1603
        %2289 = vmatpush.bf16.msra.mxu0 %v1594
        %2290 = vmatpush.bf16.msra.mxu0 %v1585
        %2291 = vmatmul.bf16.gmra.mxu0 %v663
        %v2292 = vpop.f32.mrf.mxu0
        %v2293 = vadd.f32 0.0, %v2292
        %v2294 = vpop.f32.mrf.mxu0
        %2295 = vdwg.mxu0
        %2296 = vmatpush.bf16.msra.mxu0 %v1720
        %2297 = vmatpush.bf16.msra.mxu0 %v1711
        %2298 = vmatpush.bf16.msra.mxu0 %v1702
        %2299 = vmatpush.bf16.msra.mxu0 %v1693
        %2300 = vmatpush.bf16.msra.mxu0 %v1684
        %2301 = vmatpush.bf16.msra.mxu0 %v1675
        %2302 = vmatpush.bf16.msra.mxu0 %v1666
        %2303 = vmatpush.bf16.msra.mxu0 %v1657
        %2304 = vmatmul.bf16.gmra.mxu0 %v664
        %v2305 = vpop.f32.mrf.mxu0
        %v2306 = vadd.f32 %v2293, %v2305
        %v2307 = vpop.f32.mrf.mxu0
        %2308 = vdwg.mxu0
        %2309 = vmatpush.bf16.msra.mxu0 %v1792
        %2310 = vmatpush.bf16.msra.mxu0 %v1783
        %2311 = vmatpush.bf16.msra.mxu0 %v1774
        %2312 = vmatpush.bf16.msra.mxu0 %v1765
        %2313 = vmatpush.bf16.msra.mxu0 %v1756
        %2314 = vmatpush.bf16.msra.mxu0 %v1747
        %2315 = vmatpush.bf16.msra.mxu0 %v1738
        %2316 = vmatpush.bf16.msra.mxu0 %v1729
        %2317 = vmatmul.bf16.gmra.mxu0 %v665
        %v2318 = vpop.f32.mrf.mxu0
        %v2319 = vadd.f32 %v2306, %v2318
        %v2320 = vpop.f32.mrf.mxu0
        %2321 = vdwg.mxu0
        %2322 = vmatpush.bf16.msra.mxu0 %v1649
        %2323 = vmatpush.bf16.msra.mxu0 %v1640
        %2324 = vmatpush.bf16.msra.mxu0 %v1631
        %2325 = vmatpush.bf16.msra.mxu0 %v1622
        %2326 = vmatpush.bf16.msra.mxu0 %v1613
        %2327 = vmatpush.bf16.msra.mxu0 %v1604
        %2328 = vmatpush.bf16.msra.mxu0 %v1595
        %2329 = vmatpush.bf16.msra.mxu0 %v1586
        %2330 = vmatmul.bf16.gmra.mxu0 %v663
        %v2331 = vpop.f32.mrf.mxu0
        %v2332 = vadd.f32 0.0, %v2331
        %v2333 = vpop.f32.mrf.mxu0
        %2334 = vdwg.mxu0
        %2335 = vmatpush.bf16.msra.mxu0 %v1721
        %2336 = vmatpush.bf16.msra.mxu0 %v1712
        %2337 = vmatpush.bf16.msra.mxu0 %v1703
        %2338 = vmatpush.bf16.msra.mxu0 %v1694
        %2339 = vmatpush.bf16.msra.mxu0 %v1685
        %2340 = vmatpush.bf16.msra.mxu0 %v1676
        %2341 = vmatpush.bf16.msra.mxu0 %v1667
        %2342 = vmatpush.bf16.msra.mxu0 %v1658
        %2343 = vmatmul.bf16.gmra.mxu0 %v664
        %v2344 = vpop.f32.mrf.mxu0
        %v2345 = vadd.f32 %v2332, %v2344
        %v2346 = vpop.f32.mrf.mxu0
        %2347 = vdwg.mxu0
        %2348 = vmatpush.bf16.msra.mxu0 %v1793
        %2349 = vmatpush.bf16.msra.mxu0 %v1784
        %2350 = vmatpush.bf16.msra.mxu0 %v1775
        %2351 = vmatpush.bf16.msra.mxu0 %v1766
        %2352 = vmatpush.bf16.msra.mxu0 %v1757
        %2353 = vmatpush.bf16.msra.mxu0 %v1748
        %2354 = vmatpush.bf16.msra.mxu0 %v1739
        %2355 = vmatpush.bf16.msra.mxu0 %v1730
        %2356 = vmatmul.bf16.gmra.mxu0 %v665
        %v2357 = vpop.f32.mrf.mxu0
        %v2358 = vadd.f32 %v2345, %v2357
        %v2359 = vpop.f32.mrf.mxu0
        %2360 = vdwg.mxu0
        %v2361 = vpack.c.bf16 %v2085, %v2046
        %v2362 = vpack.c.bf16 %v2163, %v2124
        %v2363 = vpack.c.bf16 %v2241, %v2202
        %v2364 = vpack.c.bf16 %v2319, %v2280
        %v2365 = vpack.c.bf16 %v2358, %v2358
        %v2366 = vlaneseq
        %v2367 = vshrl.u32 %v2366, 7
        %v2368 = vlaneseq
        %v2369 = vand.u32 %v2368, 127
        %vm2370 = vcmp.ge.s32.totalorder %v2367, %v2369
        %v2372 = vrot.slane %v2362, 4
        %vm2373 = vcmask 523264
        %v2375 = vsel %vm2373, %v2361, 0
        %v2378 = vsel %vm2373, %v2372, 0
        %2380 = vmatpush.bf16.xpose.msra.mxu0 0
        %2381 = vmatpush.bf16.xpose.msra.mxu0 0
        %2382 = vmatpush.bf16.xpose.msra.mxu0 0
        %2383 = vmatpush.bf16.xpose.msra.mxu0 0
        %2384 = vmatpush.bf16.xpose.msra.mxu0 0
        %2385 = vmatpush.bf16.xpose.msra.mxu0 0
        %2386 = vmatpush.bf16.xpose.msra.mxu0 0
        %2387 = vmatpush.bf16.xpose.msra.mxu0 %v2378
        %2388 = vmatmul.bf16.gmra.mxu0 %v2375
        %v2389 = vpop.f32.mrf.mxu0
        %v2390 = vadd.f32 0.0, %v2389
        %v2391 = vpop.f32.mrf.mxu0
        %2392 = vdwg.mxu0
        %v2393 = vmul.f32 %v2390, 0.05103104
        %v2394 = vsel %vm2370, %v2393, -inf
        %vm2395 = vcmask 64512
        %v2396 = vsel %vm2395, %v2394, -inf
        %2397 = vmax.xlane.f32.xlu0 %v2396
        %v2398 = vpop.xlane.xlu0 %2397
        %v2399 = vsub.f32 %v2394, %v2398
        %v2400 = vmul.f32 %v2399, 1.442695
        %v2401 = vpow.pop %v2400
        %v2402 = vsel %vm2395, %v2401, 0.0
        %2403 = vadd.xlane.f32.xlu0 %v2402
        %v2404 = vpop.xlane.xlu0 %2403
        %v2405 = vrcp.pop %v2404
        %v2406 = vmul.f32 %v2401, %v2405
        %v2407 = vpack.c.bf16 %v2406, %v2406
        %v2409 = vsel %vm2395, %v2407, 0
        %vm2411 = vcmask 1043456
        %v2413 = vsel %vm2411, %v2364, 0
        %2415 = vmatpush.bf16.msra.mxu0 0
        %2416 = vmatpush.bf16.msra.mxu0 0
        %2417 = vmatpush.bf16.msra.mxu0 0
        %2418 = vmatpush.bf16.msra.mxu0 0
        %2419 = vmatpush.bf16.msra.mxu0 0
        %2420 = vmatpush.bf16.msra.mxu0 0
        %2421 = vmatpush.bf16.msra.mxu0 0
        %2422 = vmatpush.bf16.msra.mxu0 %v2413
        %2423 = vmatmul.bf16.gmra.mxu0 %v2409
        %v2424 = vpop.f32.mrf.mxu0
        %v2425 = vadd.f32 0.0, %v2424
        %v2426 = vpop.f32.mrf.mxu0
        %2427 = vdwg.mxu0
        %2428 = vst.msk [vmem:[#allocation2] sm:$0xff] %vm2373, %v2425
        %2429 = vrot.lane.b32.xlu0 %v2362, 64
        %v2430 = vpop.permute.xlu0 %2429
        %v2431 = vrot.slane %v2430, 4
        %v2433 = vunpack.c.l.b16 %v2361
        %v2434 = vpack.c.b16 %v2433, %v2433
        %2435 = vrot.lane.b32.xlu0 %v2434, 64
        %v2436 = vpop.permute.xlu0 %2435
        %v2438 = vsel %vm2373, %v2436, 0
        %v2441 = vsel %vm2373, %v2431, 0
        %2443 = vmatpush.bf16.xpose.msra.mxu0 0
        %2444 = vmatpush.bf16.xpose.msra.mxu0 0
        %2445 = vmatpush.bf16.xpose.msra.mxu0 0
        %2446 = vmatpush.bf16.xpose.msra.mxu0 0
        %2447 = vmatpush.bf16.xpose.msra.mxu0 0
        %2448 = vmatpush.bf16.xpose.msra.mxu0 0
        %2449 = vmatpush.bf16.xpose.msra.mxu0 0
        %2450 = vmatpush.bf16.xpose.msra.mxu0 %v2441
        %2451 = vmatmul.bf16.gmra.mxu0 %v2438
        %v2452 = vpop.f32.mrf.mxu0
        %v2453 = vadd.f32 0.0, %v2452
        %v2454 = vpop.f32.mrf.mxu0
        %2455 = vdwg.mxu0
        %v2456 = vmul.f32 %v2453, 0.05103104
        %v2457 = vsel %vm2370, %v2456, -inf
        %v2458 = vsel %vm2395, %v2457, -inf
        %2459 = vmax.xlane.f32.xlu0 %v2458
        %v2460 = vpop.xlane.xlu0 %2459
        %v2461 = vsub.f32 %v2457, %v2460
        %v2462 = vmul.f32 %v2461, 1.442695
        %v2463 = vpow.pop %v2462
        %v2464 = vsel %vm2395, %v2463, 0.0
        %2465 = vadd.xlane.f32.xlu0 %v2464
        %v2466 = vpop.xlane.xlu0 %2465
        %v2467 = vrcp.pop %v2466
        %v2468 = vmul.f32 %v2463, %v2467
        %v2469 = vpack.c.bf16 %v2468, %v2468
        %v2471 = vunpack.c.l.b16 %v2364
        %v2472 = vpack.c.b16 %v2471, %v2471
        %2473 = vrot.lane.b32.xlu0 %v2472, 64
        %v2474 = vpop.permute.xlu0 %2473
        %v2476 = vsel %vm2395, %v2469, 0
        %v2479 = vsel %vm2411, %v2474, 0
        %2481 = vmatpush.bf16.msra.mxu0 0
        %2482 = vmatpush.bf16.msra.mxu0 0
        %2483 = vmatpush.bf16.msra.mxu0 0
        %2484 = vmatpush.bf16.msra.mxu0 0
        %2485 = vmatpush.bf16.msra.mxu0 0
        %2486 = vmatpush.bf16.msra.mxu0 0
        %2487 = vmatpush.bf16.msra.mxu0 0
        %2488 = vmatpush.bf16.msra.mxu0 %v2479
        %2489 = vmatmul.bf16.gmra.mxu0 %v2476
        %v2490 = vpop.f32.mrf.mxu0
        %v2491 = vadd.f32 0.0, %v2490
        %v2492 = vpop.f32.mrf.mxu0
        %2493 = vdwg.mxu0
        %2495 = vrot.lane.b32.xlu0 %v2491, 64
        %v2496 = vpop.permute.xlu0 %2495
        %vm2498 = vcmask 1048064
        %2499 = vst.msk [vmem:[#allocation2] sm:$0xff] %vm2498, %v2496
        %v2500 = vrot.slane %v2361, 4
        %v2502 = vsel %vm2373, %v2500, 0
        %v2505 = vsel %vm2373, %v2363, 0
        %2507 = vmatpush.bf16.xpose.msra.mxu0 0
        %2508 = vmatpush.bf16.xpose.msra.mxu0 0
        %2509 = vmatpush.bf16.xpose.msra.mxu0 0
        %2510 = vmatpush.bf16.xpose.msra.mxu0 0
        %2511 = vmatpush.bf16.xpose.msra.mxu0 0
        %2512 = vmatpush.bf16.xpose.msra.mxu0 0
        %2513 = vmatpush.bf16.xpose.msra.mxu0 0
        %2514 = vmatpush.bf16.xpose.msra.mxu0 %v2505
        %2515 = vmatmul.bf16.gmra.mxu0 %v2502
        %v2516 = vpop.f32.mrf.mxu0
        %v2517 = vadd.f32 0.0, %v2516
        %v2518 = vpop.f32.mrf.mxu0
        %2519 = vdwg.mxu0
        %v2520 = vmul.f32 %v2517, 0.05103104
        %v2521 = vsel %vm2370, %v2520, -inf
        %v2522 = vsel %vm2395, %v2521, -inf
        %2523 = vmax.xlane.f32.xlu0 %v2522
        %v2524 = vpop.xlane.xlu0 %2523
        %v2525 = vsub.f32 %v2521, %v2524
        %v2526 = vmul.f32 %v2525, 1.442695
        %v2527 = vpow.pop %v2526
        %v2528 = vsel %vm2395, %v2527, 0.0
        %2529 = vadd.xlane.f32.xlu0 %v2528
        %v2530 = vpop.xlane.xlu0 %2529
        %v2531 = vrcp.pop %v2530
        %v2532 = vmul.f32 %v2527, %v2531
        %v2533 = vpack.c.bf16 %v2532, %v2532
        %v2534 = vrot.slane %v2364, 4
        %v2536 = vsel %vm2395, %v2533, 0
        %v2539 = vsel %vm2411, %v2534, 0
        %2541 = vmatpush.bf16.msra.mxu0 0
        %2542 = vmatpush.bf16.msra.mxu0 0
        %2543 = vmatpush.bf16.msra.mxu0 0
        %2544 = vmatpush.bf16.msra.mxu0 0
        %2545 = vmatpush.bf16.msra.mxu0 0
        %2546 = vmatpush.bf16.msra.mxu0 0
        %2547 = vmatpush.bf16.msra.mxu0 0
        %2548 = vmatpush.bf16.msra.mxu0 %v2539
        %2549 = vmatmul.bf16.gmra.mxu0 %v2536
        %v2550 = vpop.f32.mrf.mxu0
        %v2551 = vadd.f32 0.0, %v2550
        %v2552 = vpop.f32.mrf.mxu0
        %2553 = vdwg.mxu0
        %2554 = vst.msk [vmem:[#allocation2 + $0x8] sm:$0xff] %vm2373, %v2551
        %2555 = vrot.lane.b32.xlu0 %v2361, 64
        %v2556 = vpop.permute.xlu0 %2555
        %v2557 = vrot.slane %v2556, 4
        %v2559 = vunpack.c.l.b16 %v2363
        %v2560 = vpack.c.b16 %v2559, %v2559
        %2561 = vrot.lane.b32.xlu0 %v2560, 64
        %v2562 = vpop.permute.xlu0 %2561
        %v2564 = vsel %vm2373, %v2557, 0
        %v2567 = vsel %vm2373, %v2562, 0
        %2569 = vmatpush.bf16.xpose.msra.mxu0 0
        %2570 = vmatpush.bf16.xpose.msra.mxu0 0
        %2571 = vmatpush.bf16.xpose.msra.mxu0 0
        %2572 = vmatpush.bf16.xpose.msra.mxu0 0
        %2573 = vmatpush.bf16.xpose.msra.mxu0 0
        %2574 = vmatpush.bf16.xpose.msra.mxu0 0
        %2575 = vmatpush.bf16.xpose.msra.mxu0 0
        %2576 = vmatpush.bf16.xpose.msra.mxu0 %v2567
        %2577 = vmatmul.bf16.gmra.mxu0 %v2564
        %v2578 = vpop.f32.mrf.mxu0
        %v2579 = vadd.f32 0.0, %v2578
        %v2580 = vpop.f32.mrf.mxu0
        %2581 = vdwg.mxu0
        %v2582 = vmul.f32 %v2579, 0.05103104
        %v2583 = vsel %vm2370, %v2582, -inf
        %v2584 = vsel %vm2395, %v2583, -inf
        %2585 = vmax.xlane.f32.xlu0 %v2584
        %v2586 = vpop.xlane.xlu0 %2585
        %v2587 = vsub.f32 %v2583, %v2586
        %v2588 = vmul.f32 %v2587, 1.442695
        %v2589 = vpow.pop %v2588
        %v2590 = vsel %vm2395, %v2589, 0.0
        %2591 = vadd.xlane.f32.xlu0 %v2590
        %v2592 = vpop.xlane.xlu0 %2591
        %v2593 = vrcp.pop %v2592
        %v2594 = vmul.f32 %v2589, %v2593
        %v2595 = vpack.c.bf16 %v2594, %v2594
        %2596 = vrot.lane.b32.xlu0 %v2364, 64
        %v2597 = vpop.permute.xlu0 %2596
        %v2598 = vrot.slane %v2597, 4
        %v2600 = vsel %vm2395, %v2595, 0
        %v2603 = vsel %vm2411, %v2598, 0
        %2605 = vmatpush.bf16.msra.mxu0 0
        %2606 = vmatpush.bf16.msra.mxu0 0
        %2607 = vmatpush.bf16.msra.mxu0 0
        %2608 = vmatpush.bf16.msra.mxu0 0
        %2609 = vmatpush.bf16.msra.mxu0 0
        %2610 = vmatpush.bf16.msra.mxu0 0
        %2611 = vmatpush.bf16.msra.mxu0 0
        %2612 = vmatpush.bf16.msra.mxu0 %v2603
        %2613 = vmatmul.bf16.gmra.mxu0 %v2600
        %v2614 = vpop.f32.mrf.mxu0
        %v2615 = vadd.f32 0.0, %v2614
        %v2616 = vpop.f32.mrf.mxu0
        %2617 = vdwg.mxu0
        %2619 = vrot.lane.b32.xlu0 %v2615, 64
        %v2620 = vpop.permute.xlu0 %2619
        %2622 = vst.msk [vmem:[#allocation2 + $0x8] sm:$0xff] %vm2498, %v2620
        %v2623 = vrot.slane %v2363, 4
        %v2625 = vsel %vm2373, %v2362, 0
        %v2628 = vsel %vm2373, %v2623, 0
        %2630 = vmatpush.bf16.xpose.msra.mxu0 0
        %2631 = vmatpush.bf16.xpose.msra.mxu0 0
        %2632 = vmatpush.bf16.xpose.msra.mxu0 0
        %2633 = vmatpush.bf16.xpose.msra.mxu0 0
        %2634 = vmatpush.bf16.xpose.msra.mxu0 0
        %2635 = vmatpush.bf16.xpose.msra.mxu0 0
        %2636 = vmatpush.bf16.xpose.msra.mxu0 0
        %2637 = vmatpush.bf16.xpose.msra.mxu0 %v2628
        %2638 = vmatmul.bf16.gmra.mxu0 %v2625
        %v2639 = vpop.f32.mrf.mxu0
        %v2640 = vadd.f32 0.0, %v2639
        %v2641 = vpop.f32.mrf.mxu0
        %2642 = vdwg.mxu0
        %v2643 = vmul.f32 %v2640, 0.05103104
        %v2644 = vsel %vm2370, %v2643, -inf
        %v2645 = vsel %vm2395, %v2644, -inf
        %2646 = vmax.xlane.f32.xlu0 %v2645
        %v2647 = vpop.xlane.xlu0 %2646
        %v2648 = vsub.f32 %v2644, %v2647
        %v2649 = vmul.f32 %v2648, 1.442695
        %v2650 = vpow.pop %v2649
        %v2651 = vsel %vm2395, %v2650, 0.0
        %2652 = vadd.xlane.f32.xlu0 %v2651
        %v2653 = vpop.xlane.xlu0 %2652
        %v2654 = vrcp.pop %v2653
        %v2655 = vmul.f32 %v2650, %v2654
        %v2656 = vpack.c.bf16 %v2655, %v2655
        %v2658 = vsel %vm2395, %v2656, 0
        %v2661 = vsel %vm2411, %v2365, 0
        %2663 = vmatpush.bf16.msra.mxu0 0
        %2664 = vmatpush.bf16.msra.mxu0 0
        %2665 = vmatpush.bf16.msra.mxu0 0
        %2666 = vmatpush.bf16.msra.mxu0 0
        %2667 = vmatpush.bf16.msra.mxu0 0
        %2668 = vmatpush.bf16.msra.mxu0 0
        %2669 = vmatpush.bf16.msra.mxu0 0
        %2670 = vmatpush.bf16.msra.mxu0 %v2661
        %2671 = vmatmul.bf16.gmra.mxu0 %v2658
        %v2672 = vpop.f32.mrf.mxu0
        %v2673 = vadd.f32 0.0, %v2672
        %v2674 = vpop.f32.mrf.mxu0
        %2675 = vdwg.mxu0
        %2676 = vst.msk [vmem:[#allocation2 + $0x10] sm:$0xff] %vm2373, %v2673
        %2677 = vrot.lane.b32.xlu0 %v2363, 64
        %v2678 = vpop.permute.xlu0 %2677
        %v2679 = vrot.slane %v2678, 4
        %v2680 = vunpack.c.l.b16 %v2362
        %v2681 = vpack.c.b16 %v2680, %v2680
        %2682 = vrot.lane.b32.xlu0 %v2681, 64
        %v2683 = vpop.permute.xlu0 %2682
        %v2685 = vsel %vm2373, %v2683, 0
        %v2688 = vsel %vm2373, %v2679, 0
        %2690 = vmatpush.bf16.xpose.msra.mxu0 0
        %2691 = vmatpush.bf16.xpose.msra.mxu0 0
        %2692 = vmatpush.bf16.xpose.msra.mxu0 0
        %2693 = vmatpush.bf16.xpose.msra.mxu0 0
        %2694 = vmatpush.bf16.xpose.msra.mxu0 0
        %2695 = vmatpush.bf16.xpose.msra.mxu0 0
        %2696 = vmatpush.bf16.xpose.msra.mxu0 0
        %2697 = vmatpush.bf16.xpose.msra.mxu0 %v2688
        %2698 = vmatmul.bf16.gmra.mxu0 %v2685
        %v2699 = vpop.f32.mrf.mxu0
        %v2700 = vadd.f32 0.0, %v2699
        %v2701 = vpop.f32.mrf.mxu0
        %2702 = vdwg.mxu0
        %v2703 = vmul.f32 %v2700, 0.05103104
        %v2704 = vsel %vm2370, %v2703, -inf
        %v2705 = vsel %vm2395, %v2704, -inf
        %2706 = vmax.xlane.f32.xlu0 %v2705
        %v2707 = vpop.xlane.xlu0 %2706
        %v2708 = vsub.f32 %v2704, %v2707
        %v2709 = vmul.f32 %v2708, 1.442695
        %v2710 = vpow.pop %v2709
        %v2711 = vsel %vm2395, %v2710, 0.0
        %2712 = vadd.xlane.f32.xlu0 %v2711
        %v2713 = vpop.xlane.xlu0 %2712
        %v2714 = vrcp.pop %v2713
        %v2715 = vmul.f32 %v2710, %v2714
        %v2716 = vpack.c.bf16 %v2715, %v2715
        %v2718 = vunpack.c.l.b16 %v2365
        %v2719 = vpack.c.b16 %v2718, %v2718
        %2720 = vrot.lane.b32.xlu0 %v2719, 64
        %v2721 = vpop.permute.xlu0 %2720
        %v2723 = vsel %vm2395, %v2716, 0
        %v2726 = vsel %vm2411, %v2721, 0
        %2728 = vmatpush.bf16.msra.mxu0 0
        %2729 = vmatpush.bf16.msra.mxu0 0
        %2730 = vmatpush.bf16.msra.mxu0 0
        %2731 = vmatpush.bf16.msra.mxu0 0
        %2732 = vmatpush.bf16.msra.mxu0 0
        %2733 = vmatpush.bf16.msra.mxu0 0
        %2734 = vmatpush.bf16.msra.mxu0 0
        %2735 = vmatpush.bf16.msra.mxu0 %v2726
        %2736 = vmatmul.bf16.gmra.mxu0 %v2723
        %v2737 = vpop.f32.mrf.mxu0
        %v2738 = vadd.f32 0.0, %v2737
        %v2739 = vpop.f32.mrf.mxu0
        %2740 = vdwg.mxu0
        %2742 = vrot.lane.b32.xlu0 %v2738, 64
        %v2743 = vpop.permute.xlu0 %2742
        %2745 = vst.msk [vmem:[#allocation2 + $0x10] sm:$0xff] %vm2498, %v2743
        %v2746 = vld [vmem:[#allocation2] sm:$0xff]
        %v2747 = vld [vmem:[#allocation2 + $0x8] sm:$0xff]
        %v2748 = vld [vmem:[#allocation2 + $0x10] sm:$0xff]
        %v2749 = vpack.c.bf16 %v2746, %v2746
        %v2750 = vpack.c.bf16 %v2747, %v2747
        %v2751 = vpack.c.bf16 %v2748, %v2748
        %v2752 = vld [vmem:[#allocation8] sm:$0xff]
        %v2753 = vld [vmem:[#allocation8 + $0x8] sm:$0xf]
        %v2754 = vld [vmem:[#allocation8 + $0xc] sm:$0xff]
        %v2755 = vld [vmem:[#allocation8 + $0x14] sm:$0xf]
        %v2756 = vld [vmem:[#allocation8 + $0x18] sm:$0xff]
        %v2757 = vld [vmem:[#allocation8 + $0x20] sm:$0xf]
        %v2758 = vld [vmem:[#allocation8 + $0x24] sm:$0xff]
        %v2759 = vld [vmem:[#allocation8 + $0x2c] sm:$0xf]
        %v2760 = vld [vmem:[#allocation8 + $0x30] sm:$0xff]
        %v2761 = vld [vmem:[#allocation8 + $0x38] sm:$0xf]
        %v2762 = vld [vmem:[#allocation8 + $0x3c] sm:$0xff]
        %v2763 = vld [vmem:[#allocation8 + $0x44] sm:$0xf]
        %v2764 = vld [vmem:[#allocation8 + $0x48] sm:$0xff]
        %v2765 = vld [vmem:[#allocation8 + $0x50] sm:$0xf]
        %v2766 = vld [vmem:[#allocation8 + $0x54] sm:$0xff]
        %v2767 = vld [vmem:[#allocation8 + $0x5c] sm:$0xf]
        %v2768 = vld [vmem:[#allocation8 + $0x60] sm:$0xff]
        %v2769 = vld [vmem:[#allocation8 + $0x68] sm:$0xf]
        %v2770 = vld [vmem:[#allocation8 + $0x6c] sm:$0xff]
        %v2771 = vld [vmem:[#allocation8 + $0x74] sm:$0xf]
        %v2772 = vld [vmem:[#allocation8 + $0x78] sm:$0xff]
        %v2773 = vld [vmem:[#allocation8 + $0x80] sm:$0xf]
        %v2774 = vld [vmem:[#allocation8 + $0x84] sm:$0xff]
        %v2775 = vld [vmem:[#allocation8 + $0x8c] sm:$0xf]
        %v2776 = vld [vmem:[#allocation8 + $0x90] sm:$0xff]
        %v2777 = vld [vmem:[#allocation8 + $0x98] sm:$0xf]
        %v2778 = vld [vmem:[#allocation8 + $0x9c] sm:$0xff]
        %v2779 = vld [vmem:[#allocation8 + $0xa4] sm:$0xf]
        %v2780 = vld [vmem:[#allocation8 + $0xa8] sm:$0xff]
        %v2781 = vld [vmem:[#allocation8 + $0xb0] sm:$0xf]
        %v2782 = vld [vmem:[#allocation8 + $0xb4] sm:$0xff]
        %v2783 = vld [vmem:[#allocation8 + $0xbc] sm:$0xf]
        %v2784 = vld [vmem:[#allocation8 + $0xc0] sm:$0xff]
        %v2785 = vld [vmem:[#allocation8 + $0xc8] sm:$0xf]
        %v2786 = vld [vmem:[#allocation8 + $0xcc] sm:$0xff]
        %v2787 = vld [vmem:[#allocation8 + $0xd4] sm:$0xf]
        %v2788 = vld [vmem:[#allocation8 + $0xd8] sm:$0xff]
        %v2789 = vld [vmem:[#allocation8 + $0xe0] sm:$0xf]
        %v2790 = vld [vmem:[#allocation8 + $0xe4] sm:$0xff]
        %v2791 = vld [vmem:[#allocation8 + $0xec] sm:$0xf]
        %v2792 = vld [vmem:[#allocation8 + $0xf0] sm:$0xff]
        %v2793 = vld [vmem:[#allocation8 + $0xf8] sm:$0xf]
        %v2794 = vld [vmem:[#allocation8 + $0xfc] sm:$0xff]
        %v2795 = vld [vmem:[#allocation8 + $0x104] sm:$0xf]
        %v2796 = vld [vmem:[#allocation8 + $0x108] sm:$0xff]
        %v2797 = vld [vmem:[#allocation8 + $0x110] sm:$0xf]
        %v2798 = vld [vmem:[#allocation8 + $0x114] sm:$0xff]
        %v2799 = vld [vmem:[#allocation8 + $0x11c] sm:$0xf]
        %v2800 = vld [vmem:[#allocation8 + $0x120] sm:$0xff]
        %v2801 = vld [vmem:[#allocation8 + $0x128] sm:$0xf]
        %v2802 = vld [vmem:[#allocation8 + $0x12c] sm:$0xff]
        %v2803 = vld [vmem:[#allocation8 + $0x134] sm:$0xf]
        %v2804 = vld [vmem:[#allocation8 + $0x138] sm:$0xff]
        %v2805 = vld [vmem:[#allocation8 + $0x140] sm:$0xf]
        %v2806 = vld [vmem:[#allocation8 + $0x144] sm:$0xff]
        %v2807 = vld [vmem:[#allocation8 + $0x14c] sm:$0xf]
        %v2808 = vld [vmem:[#allocation8 + $0x150] sm:$0xff]
        %v2809 = vld [vmem:[#allocation8 + $0x158] sm:$0xf]
        %v2810 = vld [vmem:[#allocation8 + $0x15c] sm:$0xff]
        %v2811 = vld [vmem:[#allocation8 + $0x164] sm:$0xf]
        %v2812 = vld [vmem:[#allocation8 + $0x168] sm:$0xff]
        %v2813 = vld [vmem:[#allocation8 + $0x170] sm:$0xf]
        %v2814 = vld [vmem:[#allocation8 + $0x174] sm:$0xff]
        %v2815 = vld [vmem:[#allocation8 + $0x17c] sm:$0xf]
        %v2816 = vld [vmem:[#allocation8 + $0x180] sm:$0xff]
        %v2817 = vld [vmem:[#allocation8 + $0x188] sm:$0xf]
        %v2818 = vld [vmem:[#allocation8 + $0x18c] sm:$0xff]
        %v2819 = vld [vmem:[#allocation8 + $0x194] sm:$0xf]
        %v2820 = vld [vmem:[#allocation8 + $0x198] sm:$0xff]
        %v2821 = vld [vmem:[#allocation8 + $0x1a0] sm:$0xf]
        %v2822 = vld [vmem:[#allocation8 + $0x1a4] sm:$0xff]
        %v2823 = vld [vmem:[#allocation8 + $0x1ac] sm:$0xf]
        %v2824 = vld [vmem:[#allocation8 + $0x1b0] sm:$0xff]
        %v2825 = vld [vmem:[#allocation8 + $0x1b8] sm:$0xf]
        %v2826 = vld [vmem:[#allocation8 + $0x1bc] sm:$0xff]
        %v2827 = vld [vmem:[#allocation8 + $0x1c4] sm:$0xf]
        %v2828 = vld [vmem:[#allocation8 + $0x1c8] sm:$0xff]
        %v2829 = vld [vmem:[#allocation8 + $0x1d0] sm:$0xf]
        %v2830 = vld [vmem:[#allocation8 + $0x1d4] sm:$0xff]
        %v2831 = vld [vmem:[#allocation8 + $0x1dc] sm:$0xf]
        %v2832 = vld [vmem:[#allocation8 + $0x1e0] sm:$0xff]
        %v2833 = vld [vmem:[#allocation8 + $0x1e8] sm:$0xf]
        %v2834 = vld [vmem:[#allocation8 + $0x1ec] sm:$0xff]
        %v2835 = vld [vmem:[#allocation8 + $0x1f4] sm:$0xf]
        %v2836 = vld [vmem:[#allocation8 + $0x1f8] sm:$0xff]
        %v2837 = vld [vmem:[#allocation8 + $0x200] sm:$0xf]
        %v2838 = vld [vmem:[#allocation8 + $0x204] sm:$0xff]
        %v2839 = vld [vmem:[#allocation8 + $0x20c] sm:$0xf]
        %v2840 = vld [vmem:[#allocation8 + $0x210] sm:$0xff]
        %v2841 = vld [vmem:[#allocation8 + $0x218] sm:$0xf]
        %v2842 = vld [vmem:[#allocation8 + $0x21c] sm:$0xff]
        %v2843 = vld [vmem:[#allocation8 + $0x224] sm:$0xf]
        %v2844 = vld [vmem:[#allocation8 + $0x228] sm:$0xff]
        %v2845 = vld [vmem:[#allocation8 + $0x230] sm:$0xf]
        %v2846 = vld [vmem:[#allocation8 + $0x234] sm:$0xff]
        %v2847 = vld [vmem:[#allocation8 + $0x23c] sm:$0xf]
        %v2848 = vld [vmem:[#allocation9] sm:$0x7]
        %v2850 = vperm.slane %v2848, 0
        %v2851 = vperm.slane %v2848, 1
        %v2852 = vperm.slane %v2848, 2
        %v2952 = vunpack.c.l.b16 %v2752
        %v2953 = vunpack.c.h.b16 %v2752
        %v2954 = vunpack.c.l.b16 %v2753
        %v2955 = vunpack.c.l.b16 %v2754
        %v2956 = vunpack.c.h.b16 %v2754
        %v2957 = vunpack.c.l.b16 %v2755
        %v2958 = vunpack.c.l.b16 %v2756
        %v2959 = vunpack.c.h.b16 %v2756
        %v2960 = vunpack.c.l.b16 %v2757
        %v2961 = vunpack.c.l.b16 %v2758
        %v2962 = vunpack.c.h.b16 %v2758
        %v2963 = vunpack.c.l.b16 %v2759
        %v2964 = vunpack.c.l.b16 %v2760
        %v2965 = vunpack.c.h.b16 %v2760
        %v2966 = vunpack.c.l.b16 %v2761
        %v2967 = vunpack.c.l.b16 %v2762
        %v2968 = vunpack.c.h.b16 %v2762
        %v2969 = vunpack.c.l.b16 %v2763
        %v2970 = vunpack.c.l.b16 %v2764
        %v2971 = vunpack.c.h.b16 %v2764
        %v2972 = vunpack.c.l.b16 %v2765
        %v2973 = vunpack.c.l.b16 %v2766
        %v2974 = vunpack.c.h.b16 %v2766
        %v2975 = vunpack.c.l.b16 %v2767
        %v2976 = vunpack.c.l.b16 %v2768
        %v2977 = vunpack.c.h.b16 %v2768
        %v2978 = vunpack.c.l.b16 %v2769
        %v2979 = vunpack.c.l.b16 %v2770
        %v2980 = vunpack.c.h.b16 %v2770
        %v2981 = vunpack.c.l.b16 %v2771
        %v2982 = vunpack.c.l.b16 %v2772
        %v2983 = vunpack.c.h.b16 %v2772
        %v2984 = vunpack.c.l.b16 %v2773
        %v2985 = vunpack.c.l.b16 %v2774
        %v2986 = vunpack.c.h.b16 %v2774
        %v2987 = vunpack.c.l.b16 %v2775
        %v2988 = vunpack.c.l.b16 %v2776
        %v2989 = vunpack.c.h.b16 %v2776
        %v2990 = vunpack.c.l.b16 %v2777
        %v2991 = vunpack.c.l.b16 %v2778
        %v2992 = vunpack.c.h.b16 %v2778
        %v2993 = vunpack.c.l.b16 %v2779
        %v2994 = vunpack.c.l.b16 %v2780
        %v2995 = vunpack.c.h.b16 %v2780
        %v2996 = vunpack.c.l.b16 %v2781
        %v2997 = vunpack.c.l.b16 %v2782
        %v2998 = vunpack.c.h.b16 %v2782
        %v2999 = vunpack.c.l.b16 %v2783
        %v3000 = vunpack.c.l.b16 %v2784
        %v3001 = vunpack.c.h.b16 %v2784
        %v3002 = vunpack.c.l.b16 %v2785
        %v3003 = vunpack.c.l.b16 %v2786
        %v3004 = vunpack.c.h.b16 %v2786
        %v3005 = vunpack.c.l.b16 %v2787
        %v3006 = vunpack.c.l.b16 %v2788
        %v3007 = vunpack.c.h.b16 %v2788
        %v3008 = vunpack.c.l.b16 %v2789
        %v3009 = vunpack.c.l.b16 %v2790
        %v3010 = vunpack.c.h.b16 %v2790
        %v3011 = vunpack.c.l.b16 %v2791
        %v3012 = vunpack.c.l.b16 %v2792
        %v3013 = vunpack.c.h.b16 %v2792
        %v3014 = vunpack.c.l.b16 %v2793
        %v3015 = vunpack.c.l.b16 %v2794
        %v3016 = vunpack.c.h.b16 %v2794
        %v3017 = vunpack.c.l.b16 %v2795
        %v3018 = vunpack.c.l.b16 %v2796
        %v3019 = vunpack.c.h.b16 %v2796
        %v3020 = vunpack.c.l.b16 %v2797
        %v3021 = vunpack.c.l.b16 %v2798
        %v3022 = vunpack.c.h.b16 %v2798
        %v3023 = vunpack.c.l.b16 %v2799
        %v3024 = vunpack.c.l.b16 %v2800
        %v3025 = vunpack.c.h.b16 %v2800
        %v3026 = vunpack.c.l.b16 %v2801
        %v3027 = vunpack.c.l.b16 %v2802
        %v3028 = vunpack.c.h.b16 %v2802
        %v3029 = vunpack.c.l.b16 %v2803
        %v3030 = vunpack.c.l.b16 %v2804
        %v3031 = vunpack.c.h.b16 %v2804
        %v3032 = vunpack.c.l.b16 %v2805
        %v3033 = vunpack.c.l.b16 %v2806
        %v3034 = vunpack.c.h.b16 %v2806
        %v3035 = vunpack.c.l.b16 %v2807
        %v3036 = vunpack.c.l.b16 %v2808
        %v3037 = vunpack.c.h.b16 %v2808
        %v3038 = vunpack.c.l.b16 %v2809
        %v3039 = vunpack.c.l.b16 %v2810
        %v3040 = vunpack.c.h.b16 %v2810
        %v3041 = vunpack.c.l.b16 %v2811
        %v3042 = vunpack.c.l.b16 %v2812
        %v3043 = vunpack.c.h.b16 %v2812
        %v3044 = vunpack.c.l.b16 %v2813
        %v3045 = vunpack.c.l.b16 %v2814
        %v3046 = vunpack.c.h.b16 %v2814
        %v3047 = vunpack.c.l.b16 %v2815
        %v3048 = vunpack.c.l.b16 %v2816
        %v3049 = vunpack.c.h.b16 %v2816
        %v3050 = vunpack.c.l.b16 %v2817
        %v3051 = vunpack.c.l.b16 %v2818
        %v3052 = vunpack.c.h.b16 %v2818
        %v3053 = vunpack.c.l.b16 %v2819
        %v3054 = vunpack.c.l.b16 %v2820
        %v3055 = vunpack.c.h.b16 %v2820
        %v3056 = vunpack.c.l.b16 %v2821
        %v3057 = vunpack.c.l.b16 %v2822
        %v3058 = vunpack.c.h.b16 %v2822
        %v3059 = vunpack.c.l.b16 %v2823
        %v3060 = vunpack.c.l.b16 %v2824
        %v3061 = vunpack.c.h.b16 %v2824
        %v3062 = vunpack.c.l.b16 %v2825
        %v3063 = vunpack.c.l.b16 %v2826
        %v3064 = vunpack.c.h.b16 %v2826
        %v3065 = vunpack.c.l.b16 %v2827
        %v3066 = vunpack.c.l.b16 %v2828
        %v3067 = vunpack.c.h.b16 %v2828
        %v3068 = vunpack.c.l.b16 %v2829
        %v3069 = vunpack.c.l.b16 %v2830
        %v3070 = vunpack.c.h.b16 %v2830
        %v3071 = vunpack.c.l.b16 %v2831
        %v3072 = vunpack.c.l.b16 %v2832
        %v3073 = vunpack.c.h.b16 %v2832
        %v3074 = vunpack.c.l.b16 %v2833
        %v3075 = vunpack.c.l.b16 %v2834
        %v3076 = vunpack.c.h.b16 %v2834
        %v3077 = vunpack.c.l.b16 %v2835
        %v3078 = vunpack.c.l.b16 %v2836
        %v3079 = vunpack.c.h.b16 %v2836
        %v3080 = vunpack.c.l.b16 %v2837
        %v3081 = vunpack.c.l.b16 %v2838
        %v3082 = vunpack.c.h.b16 %v2838
        %v3083 = vunpack.c.l.b16 %v2839
        %v3084 = vunpack.c.l.b16 %v2840
        %v3085 = vunpack.c.h.b16 %v2840
        %v3086 = vunpack.c.l.b16 %v2841
        %v3087 = vunpack.c.l.b16 %v2842
        %v3088 = vunpack.c.h.b16 %v2842
        %v3089 = vunpack.c.l.b16 %v2843
        %v3090 = vunpack.c.l.b16 %v2844
        %v3091 = vunpack.c.h.b16 %v2844
        %v3092 = vunpack.c.l.b16 %v2845
        %v3093 = vunpack.c.l.b16 %v2846
        %v3094 = vunpack.c.h.b16 %v2846
        %v3095 = vunpack.c.l.b16 %v2847
        %v3096 = vpack.c.b16 %v2955, %v2952
        %v3097 = vpack.c.b16 %v2956, %v2953
        %v3098 = vpack.c.b16 %v2957, %v2954
        %v3099 = vpack.c.b16 %v2961, %v2958
        %v3100 = vpack.c.b16 %v2962, %v2959
        %v3101 = vpack.c.b16 %v2963, %v2960
        %v3102 = vpack.c.b16 %v2967, %v2964
        %v3103 = vpack.c.b16 %v2968, %v2965
        %v3104 = vpack.c.b16 %v2969, %v2966
        %v3105 = vpack.c.b16 %v2973, %v2970
        %v3106 = vpack.c.b16 %v2974, %v2971
        %v3107 = vpack.c.b16 %v2975, %v2972
        %v3108 = vpack.c.b16 %v2979, %v2976
        %v3109 = vpack.c.b16 %v2980, %v2977
        %v3110 = vpack.c.b16 %v2981, %v2978
        %v3111 = vpack.c.b16 %v2985, %v2982
        %v3112 = vpack.c.b16 %v2986, %v2983
        %v3113 = vpack.c.b16 %v2987, %v2984
        %v3114 = vpack.c.b16 %v2991, %v2988
        %v3115 = vpack.c.b16 %v2992, %v2989
        %v3116 = vpack.c.b16 %v2993, %v2990
        %v3117 = vpack.c.b16 %v2997, %v2994
        %v3118 = vpack.c.b16 %v2998, %v2995
        %v3119 = vpack.c.b16 %v2999, %v2996
        %v3120 = vpack.c.b16 %v3003, %v3000
        %v3121 = vpack.c.b16 %v3004, %v3001
        %v3122 = vpack.c.b16 %v3005, %v3002
        %v3123 = vpack.c.b16 %v3009, %v3006
        %v3124 = vpack.c.b16 %v3010, %v3007
        %v3125 = vpack.c.b16 %v3011, %v3008
        %v3126 = vpack.c.b16 %v3015, %v3012
        %v3127 = vpack.c.b16 %v3016, %v3013
        %v3128 = vpack.c.b16 %v3017, %v3014
        %v3129 = vpack.c.b16 %v3021, %v3018
        %v3130 = vpack.c.b16 %v3022, %v3019
        %v3131 = vpack.c.b16 %v3023, %v3020
        %v3132 = vpack.c.b16 %v3027, %v3024
        %v3133 = vpack.c.b16 %v3028, %v3025
        %v3134 = vpack.c.b16 %v3029, %v3026
        %v3135 = vpack.c.b16 %v3033, %v3030
        %v3136 = vpack.c.b16 %v3034, %v3031
        %v3137 = vpack.c.b16 %v3035, %v3032
        %v3138 = vpack.c.b16 %v3039, %v3036
        %v3139 = vpack.c.b16 %v3040, %v3037
        %v3140 = vpack.c.b16 %v3041, %v3038
        %v3141 = vpack.c.b16 %v3045, %v3042
        %v3142 = vpack.c.b16 %v3046, %v3043
        %v3143 = vpack.c.b16 %v3047, %v3044
        %v3144 = vpack.c.b16 %v3051, %v3048
        %v3145 = vpack.c.b16 %v3052, %v3049
        %v3146 = vpack.c.b16 %v3053, %v3050
        %v3147 = vpack.c.b16 %v3057, %v3054
        %v3148 = vpack.c.b16 %v3058, %v3055
        %v3149 = vpack.c.b16 %v3059, %v3056
        %v3150 = vpack.c.b16 %v3063, %v3060
        %v3151 = vpack.c.b16 %v3064, %v3061
        %v3152 = vpack.c.b16 %v3065, %v3062
        %v3153 = vpack.c.b16 %v3069, %v3066
        %v3154 = vpack.c.b16 %v3070, %v3067
        %v3155 = vpack.c.b16 %v3071, %v3068
        %v3156 = vpack.c.b16 %v3075, %v3072
        %v3157 = vpack.c.b16 %v3076, %v3073
        %v3158 = vpack.c.b16 %v3077, %v3074
        %v3159 = vpack.c.b16 %v3081, %v3078
        %v3160 = vpack.c.b16 %v3082, %v3079
        %v3161 = vpack.c.b16 %v3083, %v3080
        %v3162 = vpack.c.b16 %v3087, %v3084
        %v3163 = vpack.c.b16 %v3088, %v3085
        %v3164 = vpack.c.b16 %v3089, %v3086
        %v3165 = vpack.c.b16 %v3093, %v3090
        %v3166 = vpack.c.b16 %v3094, %v3091
        %v3167 = vpack.c.b16 %v3095, %v3092
        %3240 = vmatpush.bf16.msra.mxu0 %v3117
        %3241 = vmatpush.bf16.msra.mxu0 %v3114
        %3242 = vmatpush.bf16.msra.mxu0 %v3111
        %3243 = vmatpush.bf16.msra.mxu0 %v3108
        %3244 = vmatpush.bf16.msra.mxu0 %v3105
        %3245 = vmatpush.bf16.msra.mxu0 %v3102
        %3246 = vmatpush.bf16.msra.mxu0 %v3099
        %3247 = vmatpush.bf16.msra.mxu0 %v3096
        %3248 = vmatmul.bf16.gmra.mxu0 %v2749
        %v3249 = vpop.f32.mrf.mxu0
        %v3250 = vadd.f32 %v2850, %v3249
        %v3251 = vpop.f32.mrf.mxu0
        %3252 = vdwg.mxu0
        %3253 = vmatpush.bf16.msra.mxu0 %v3141
        %3254 = vmatpush.bf16.msra.mxu0 %v3138
        %3255 = vmatpush.bf16.msra.mxu0 %v3135
        %3256 = vmatpush.bf16.msra.mxu0 %v3132
        %3257 = vmatpush.bf16.msra.mxu0 %v3129
        %3258 = vmatpush.bf16.msra.mxu0 %v3126
        %3259 = vmatpush.bf16.msra.mxu0 %v3123
        %3260 = vmatpush.bf16.msra.mxu0 %v3120
        %3261 = vmatmul.bf16.gmra.mxu0 %v2750
        %v3262 = vpop.f32.mrf.mxu0
        %v3263 = vadd.f32 %v3250, %v3262
        %v3264 = vpop.f32.mrf.mxu0
        %3265 = vdwg.mxu0
        %3266 = vmatpush.bf16.msra.mxu0 %v3165
        %3267 = vmatpush.bf16.msra.mxu0 %v3162
        %3268 = vmatpush.bf16.msra.mxu0 %v3159
        %3269 = vmatpush.bf16.msra.mxu0 %v3156
        %3270 = vmatpush.bf16.msra.mxu0 %v3153
        %3271 = vmatpush.bf16.msra.mxu0 %v3150
        %3272 = vmatpush.bf16.msra.mxu0 %v3147
        %3273 = vmatpush.bf16.msra.mxu0 %v3144
        %3274 = vmatmul.bf16.gmra.mxu0 %v2751
        %v3275 = vpop.f32.mrf.mxu0
        %v3276 = vadd.f32 %v3263, %v3275
        %v3277 = vpop.f32.mrf.mxu0
        %3278 = vdwg.mxu0
        %3279 = vmatpush.bf16.msra.mxu0 %v3118
        %3280 = vmatpush.bf16.msra.mxu0 %v3115
        %3281 = vmatpush.bf16.msra.mxu0 %v3112
        %3282 = vmatpush.bf16.msra.mxu0 %v3109
        %3283 = vmatpush.bf16.msra.mxu0 %v3106
        %3284 = vmatpush.bf16.msra.mxu0 %v3103
        %3285 = vmatpush.bf16.msra.mxu0 %v3100
        %3286 = vmatpush.bf16.msra.mxu0 %v3097
        %3287 = vmatmul.bf16.gmra.mxu0 %v2749
        %v3288 = vpop.f32.mrf.mxu0
        %v3289 = vadd.f32 %v2851, %v3288
        %v3290 = vpop.f32.mrf.mxu0
        %3291 = vdwg.mxu0
        %3292 = vmatpush.bf16.msra.mxu0 %v3142
        %3293 = vmatpush.bf16.msra.mxu0 %v3139
        %3294 = vmatpush.bf16.msra.mxu0 %v3136
        %3295 = vmatpush.bf16.msra.mxu0 %v3133
        %3296 = vmatpush.bf16.msra.mxu0 %v3130
        %3297 = vmatpush.bf16.msra.mxu0 %v3127
        %3298 = vmatpush.bf16.msra.mxu0 %v3124
        %3299 = vmatpush.bf16.msra.mxu0 %v3121
        %3300 = vmatmul.bf16.gmra.mxu0 %v2750
        %v3301 = vpop.f32.mrf.mxu0
        %v3302 = vadd.f32 %v3289, %v3301
        %v3303 = vpop.f32.mrf.mxu0
        %3304 = vdwg.mxu0
        %3305 = vmatpush.bf16.msra.mxu0 %v3166
        %3306 = vmatpush.bf16.msra.mxu0 %v3163
        %3307 = vmatpush.bf16.msra.mxu0 %v3160
        %3308 = vmatpush.bf16.msra.mxu0 %v3157
        %3309 = vmatpush.bf16.msra.mxu0 %v3154
        %3310 = vmatpush.bf16.msra.mxu0 %v3151
        %3311 = vmatpush.bf16.msra.mxu0 %v3148
        %3312 = vmatpush.bf16.msra.mxu0 %v3145
        %3313 = vmatmul.bf16.gmra.mxu0 %v2751
        %v3314 = vpop.f32.mrf.mxu0
        %v3315 = vadd.f32 %v3302, %v3314
        %v3316 = vpop.f32.mrf.mxu0
        %3317 = vdwg.mxu0
        %3318 = vmatpush.bf16.msra.mxu0 %v3119
        %3319 = vmatpush.bf16.msra.mxu0 %v3116
        %3320 = vmatpush.bf16.msra.mxu0 %v3113
        %3321 = vmatpush.bf16.msra.mxu0 %v3110
        %3322 = vmatpush.bf16.msra.mxu0 %v3107
        %3323 = vmatpush.bf16.msra.mxu0 %v3104
        %3324 = vmatpush.bf16.msra.mxu0 %v3101
        %3325 = vmatpush.bf16.msra.mxu0 %v3098
        %3326 = vmatmul.bf16.gmra.mxu0 %v2749
        %v3327 = vpop.f32.mrf.mxu0
        %v3328 = vadd.f32 %v2852, %v3327
        %v3329 = vpop.f32.mrf.mxu0
        %3330 = vdwg.mxu0
        %3331 = vmatpush.bf16.msra.mxu0 %v3143
        %3332 = vmatpush.bf16.msra.mxu0 %v3140
        %3333 = vmatpush.bf16.msra.mxu0 %v3137
        %3334 = vmatpush.bf16.msra.mxu0 %v3134
        %3335 = vmatpush.bf16.msra.mxu0 %v3131
        %3336 = vmatpush.bf16.msra.mxu0 %v3128
        %3337 = vmatpush.bf16.msra.mxu0 %v3125
        %3338 = vmatpush.bf16.msra.mxu0 %v3122
        %3339 = vmatmul.bf16.gmra.mxu0 %v2750
        %v3340 = vpop.f32.mrf.mxu0
        %v3341 = vadd.f32 %v3328, %v3340
        %v3342 = vpop.f32.mrf.mxu0
        %3343 = vdwg.mxu0
        %3344 = vmatpush.bf16.msra.mxu0 %v3167
        %3345 = vmatpush.bf16.msra.mxu0 %v3164
        %3346 = vmatpush.bf16.msra.mxu0 %v3161
        %3347 = vmatpush.bf16.msra.mxu0 %v3158
        %3348 = vmatpush.bf16.msra.mxu0 %v3155
        %3349 = vmatpush.bf16.msra.mxu0 %v3152
        %3350 = vmatpush.bf16.msra.mxu0 %v3149
        %3351 = vmatpush.bf16.msra.mxu0 %v3146
        %3352 = vmatmul.bf16.gmra.mxu0 %v2751
        %v3353 = vpop.f32.mrf.mxu0
        %v3354 = vadd.f32 %v3341, %v3353
        %v3355 = vpop.f32.mrf.mxu0
        %3356 = vdwg.mxu0
        %v3357 = vadd.f32 %v601, %v3276
        %v3358 = vadd.f32 %v602, %v3315
        %v3359 = vadd.f32 %v603, %v3354
        %v3360 = vld [vmem:[#allocation20] sm:$0x7]
        %v3361 = vld [vmem:[#allocation21] sm:$0x7]
        %v3362 = vadd.f32 %v3357, %v3358
        %v3363 = vadd.f32 %v3362, %v3359
        %3364 = vadd.xlane.f32.xlu0 %v3363
        %v3365 = vpop.xlane.xlu0 %3364
        %v3366 = vmul.f32 %v3365, %v616
        %v3367 = vsub.f32 %v3357, %v3366
        %v3368 = vsub.f32 %v3358, %v3366
        %v3369 = vsub.f32 %v3359, %v3366
        %v3370 = vmul.f32 %v3367, %v3367
        %v3371 = vmul.f32 %v3368, %v3368
        %v3372 = vmul.f32 %v3369, %v3369
        %v3373 = vadd.f32 %v3370, %v3371
        %v3374 = vadd.f32 %v3373, %v3372
        %3375 = vadd.xlane.f32.xlu0 %v3374
        %v3376 = vpop.xlane.xlu0 %3375
        %v3377 = vmul.f32 %v3376, %v616
        %v3378 = vadd.f32 %v3377, 1e-05
        %v3379 = vrsqrt.pop %v3378
        %v3380 = vmul.f32 %v3379, %v3378
        %v3381 = vmul.f32 %v3380, %v3379
        %v3382 = vmul.f32 0.5, %v3381
        %v3383 = vsub.f32 1.5, %v3382
        %v3384 = vmul.f32 %v3379, %v3383
        %vm3385 = vweird.f32 %v3378
        %vm3386 = vweird.f32 %v3379
        %vm3387 = vmor %vm3385, %vm3386
        %v3388 = vsel %vm3387, %v3379, %v3384
        %v3389 = vmul.f32 %v3367, %v3388
        %v3390 = vmul.f32 %v3368, %v3388
        %v3391 = vmul.f32 %v3369, %v3388
        %v3393 = vperm.slane %v3360, 0
        %v3394 = vperm.slane %v3360, 1
        %v3395 = vperm.slane %v3360, 2
        %v3399 = vmul.f32 %v3389, %v3393
        %v3400 = vmul.f32 %v3390, %v3394
        %v3401 = vmul.f32 %v3391, %v3395
        %v3403 = vperm.slane %v3361, 0
        %v3404 = vperm.slane %v3361, 1
        %v3405 = vperm.slane %v3361, 2
        %v3409 = vadd.f32 %v3399, %v3403
        %v3410 = vadd.f32 %v3400, %v3404
        %v3411 = vadd.f32 %v3401, %v3405
        %v3412 = vpack.c.bf16 %v3409, %v3409
        %v3413 = vpack.c.bf16 %v3410, %v3410
        %v3414 = vpack.c.bf16 %v3411, %v3411
        %v3415 = vld [vmem:[#allocation11] sm:$0xff]
        %v3416 = vld [vmem:[#allocation11 + $0x8] sm:$0xff]
        %v3417 = vld [vmem:[#allocation11 + $0x10] sm:$0xff]
        %v3418 = vld [vmem:[#allocation11 + $0x18] sm:$0xff]
        %v3419 = vld [vmem:[#allocation11 + $0x20] sm:$0xff]
        %v3420 = vld [vmem:[#allocation11 + $0x28] sm:$0xff]
        %v3421 = vld [vmem:[#allocation11 + $0x30] sm:$0xff]
        %v3422 = vld [vmem:[#allocation11 + $0x38] sm:$0xff]
        %v3423 = vld [vmem:[#allocation11 + $0x40] sm:$0xff]
        %v3424 = vld [vmem:[#allocation11 + $0x48] sm:$0xff]
        %v3425 = vld [vmem:[#allocation11 + $0x50] sm:$0xff]
        %v3426 = vld [vmem:[#allocation11 + $0x58] sm:$0xff]
        %v3427 = vld [vmem:[#allocation11 + $0x60] sm:$0xff]
        %v3428 = vld [vmem:[#allocation11 + $0x68] sm:$0xff]
        %v3429 = vld [vmem:[#allocation11 + $0x70] sm:$0xff]
        %v3430 = vld [vmem:[#allocation11 + $0x78] sm:$0xff]
        %v3431 = vld [vmem:[#allocation11 + $0x80] sm:$0xff]
        %v3432 = vld [vmem:[#allocation11 + $0x88] sm:$0xff]
        %v3433 = vld [vmem:[#allocation11 + $0x90] sm:$0xff]
        %v3434 = vld [vmem:[#allocation11 + $0x98] sm:$0xff]
        %v3435 = vld [vmem:[#allocation11 + $0xa0] sm:$0xff]
        %v3436 = vld [vmem:[#allocation11 + $0xa8] sm:$0xff]
        %v3437 = vld [vmem:[#allocation11 + $0xb0] sm:$0xff]
        %v3438 = vld [vmem:[#allocation11 + $0xb8] sm:$0xff]
        %v3439 = vld [vmem:[#allocation11 + $0xc0] sm:$0xff]
        %v3440 = vld [vmem:[#allocation11 + $0xc8] sm:$0xff]
        %v3441 = vld [vmem:[#allocation11 + $0xd0] sm:$0xff]
        %v3442 = vld [vmem:[#allocation11 + $0xd8] sm:$0xff]
        %v3443 = vld [vmem:[#allocation11 + $0xe0] sm:$0xff]
        %v3444 = vld [vmem:[#allocation11 + $0xe8] sm:$0xff]
        %v3445 = vld [vmem:[#allocation11 + $0xf0] sm:$0xff]
        %v3446 = vld [vmem:[#allocation11 + $0xf8] sm:$0xff]
        %v3447 = vld [vmem:[#allocation11 + $0x100] sm:$0xff]
        %v3448 = vld [vmem:[#allocation11 + $0x108] sm:$0xff]
        %v3449 = vld [vmem:[#allocation11 + $0x110] sm:$0xff]
        %v3450 = vld [vmem:[#allocation11 + $0x118] sm:$0xff]
        %v3451 = vld [vmem:[#allocation11 + $0x120] sm:$0xff]
        %v3452 = vld [vmem:[#allocation11 + $0x128] sm:$0xff]
        %v3453 = vld [vmem:[#allocation11 + $0x130] sm:$0xff]
        %v3454 = vld [vmem:[#allocation11 + $0x138] sm:$0xff]
        %v3455 = vld [vmem:[#allocation11 + $0x140] sm:$0xff]
        %v3456 = vld [vmem:[#allocation11 + $0x148] sm:$0xff]
        %v3457 = vld [vmem:[#allocation11 + $0x150] sm:$0xff]
        %v3458 = vld [vmem:[#allocation11 + $0x158] sm:$0xff]
        %v3459 = vld [vmem:[#allocation11 + $0x160] sm:$0xff]
        %v3460 = vld [vmem:[#allocation11 + $0x168] sm:$0xff]
        %v3461 = vld [vmem:[#allocation11 + $0x170] sm:$0xff]
        %v3462 = vld [vmem:[#allocation11 + $0x178] sm:$0xff]
        %v3463 = vld [vmem:[#allocation11 + $0x180] sm:$0xff]
        %v3464 = vld [vmem:[#allocation11 + $0x188] sm:$0xff]
        %v3465 = vld [vmem:[#allocation11 + $0x190] sm:$0xff]
        %v3466 = vld [vmem:[#allocation11 + $0x198] sm:$0xff]
        %v3467 = vld [vmem:[#allocation11 + $0x1a0] sm:$0xff]
        %v3468 = vld [vmem:[#allocation11 + $0x1a8] sm:$0xff]
        %v3469 = vld [vmem:[#allocation11 + $0x1b0] sm:$0xff]
        %v3470 = vld [vmem:[#allocation11 + $0x1b8] sm:$0xff]
        %v3471 = vld [vmem:[#allocation11 + $0x1c0] sm:$0xff]
        %v3472 = vld [vmem:[#allocation11 + $0x1c8] sm:$0xff]
        %v3473 = vld [vmem:[#allocation11 + $0x1d0] sm:$0xff]
        %v3474 = vld [vmem:[#allocation11 + $0x1d8] sm:$0xff]
        %v3475 = vld [vmem:[#allocation11 + $0x1e0] sm:$0xff]
        %v3476 = vld [vmem:[#allocation11 + $0x1e8] sm:$0xff]
        %v3477 = vld [vmem:[#allocation11 + $0x1f0] sm:$0xff]
        %v3478 = vld [vmem:[#allocation11 + $0x1f8] sm:$0xff]
        %v3479 = vld [vmem:[#allocation11 + $0x200] sm:$0xff]
        %v3480 = vld [vmem:[#allocation11 + $0x208] sm:$0xff]
        %v3481 = vld [vmem:[#allocation11 + $0x210] sm:$0xff]
        %v3482 = vld [vmem:[#allocation11 + $0x218] sm:$0xff]
        %v3483 = vld [vmem:[#allocation11 + $0x220] sm:$0xff]
        %v3484 = vld [vmem:[#allocation11 + $0x228] sm:$0xff]
        %v3485 = vld [vmem:[#allocation11 + $0x230] sm:$0xff]
        %v3486 = vld [vmem:[#allocation11 + $0x238] sm:$0xff]
        %v3487 = vld [vmem:[#allocation11 + $0x240] sm:$0xff]
        %v3488 = vld [vmem:[#allocation11 + $0x248] sm:$0xff]
        %v3489 = vld [vmem:[#allocation11 + $0x250] sm:$0xff]
        %v3490 = vld [vmem:[#allocation11 + $0x258] sm:$0xff]
        %v3491 = vld [vmem:[#allocation11 + $0x260] sm:$0xff]
        %v3492 = vld [vmem:[#allocation11 + $0x268] sm:$0xff]
        %v3493 = vld [vmem:[#allocation11 + $0x270] sm:$0xff]
        %v3494 = vld [vmem:[#allocation11 + $0x278] sm:$0xff]
        %v3495 = vld [vmem:[#allocation11 + $0x280] sm:$0xff]
        %v3496 = vld [vmem:[#allocation11 + $0x288] sm:$0xff]
        %v3497 = vld [vmem:[#allocation11 + $0x290] sm:$0xff]
        %v3498 = vld [vmem:[#allocation11 + $0x298] sm:$0xff]
        %v3499 = vld [vmem:[#allocation11 + $0x2a0] sm:$0xff]
        %v3500 = vld [vmem:[#allocation11 + $0x2a8] sm:$0xff]
        %v3501 = vld [vmem:[#allocation11 + $0x2b0] sm:$0xff]
        %v3502 = vld [vmem:[#allocation11 + $0x2b8] sm:$0xff]
        %v3503 = vld [vmem:[#allocation11 + $0x2c0] sm:$0xff]
        %v3504 = vld [vmem:[#allocation11 + $0x2c8] sm:$0xff]
        %v3505 = vld [vmem:[#allocation11 + $0x2d0] sm:$0xff]
        %v3506 = vld [vmem:[#allocation11 + $0x2d8] sm:$0xff]
        %v3507 = vld [vmem:[#allocation11 + $0x2e0] sm:$0xff]
        %v3508 = vld [vmem:[#allocation11 + $0x2e8] sm:$0xff]
        %v3509 = vld [vmem:[#allocation11 + $0x2f0] sm:$0xff]
        %v3510 = vld [vmem:[#allocation11 + $0x2f8] sm:$0xff]
        %v3511 = vld [vmem:[#allocation11 + $0x300] sm:$0xff]
        %v3512 = vld [vmem:[#allocation11 + $0x308] sm:$0xff]
        %v3513 = vld [vmem:[#allocation11 + $0x310] sm:$0xff]
        %v3514 = vld [vmem:[#allocation11 + $0x318] sm:$0xff]
        %v3515 = vld [vmem:[#allocation11 + $0x320] sm:$0xff]
        %v3516 = vld [vmem:[#allocation11 + $0x328] sm:$0xff]
        %v3517 = vld [vmem:[#allocation11 + $0x330] sm:$0xff]
        %v3518 = vld [vmem:[#allocation11 + $0x338] sm:$0xff]
        %v3519 = vld [vmem:[#allocation11 + $0x340] sm:$0xff]
        %v3520 = vld [vmem:[#allocation11 + $0x348] sm:$0xff]
        %v3521 = vld [vmem:[#allocation11 + $0x350] sm:$0xff]
        %v3522 = vld [vmem:[#allocation11 + $0x358] sm:$0xff]
        %v3523 = vld [vmem:[#allocation11 + $0x360] sm:$0xff]
        %v3524 = vld [vmem:[#allocation11 + $0x368] sm:$0xff]
        %v3525 = vld [vmem:[#allocation11 + $0x370] sm:$0xff]
        %v3526 = vld [vmem:[#allocation11 + $0x378] sm:$0xff]
        %v3527 = vld [vmem:[#allocation11 + $0x380] sm:$0xff]
        %v3528 = vld [vmem:[#allocation11 + $0x388] sm:$0xff]
        %v3529 = vld [vmem:[#allocation11 + $0x390] sm:$0xff]
        %v3530 = vld [vmem:[#allocation11 + $0x398] sm:$0xff]
        %v3531 = vld [vmem:[#allocation11 + $0x3a0] sm:$0xff]
        %v3532 = vld [vmem:[#allocation11 + $0x3a8] sm:$0xff]
        %v3533 = vld [vmem:[#allocation11 + $0x3b0] sm:$0xff]
        %v3534 = vld [vmem:[#allocation11 + $0x3b8] sm:$0xff]
        %v3535 = vld [vmem:[#allocation11 + $0x3c0] sm:$0xff]
        %v3536 = vld [vmem:[#allocation11 + $0x3c8] sm:$0xff]
        %v3537 = vld [vmem:[#allocation11 + $0x3d0] sm:$0xff]
        %v3538 = vld [vmem:[#allocation11 + $0x3d8] sm:$0xff]
        %v3539 = vld [vmem:[#allocation11 + $0x3e0] sm:$0xff]
        %v3540 = vld [vmem:[#allocation11 + $0x3e8] sm:$0xff]
        %v3541 = vld [vmem:[#allocation11 + $0x3f0] sm:$0xff]
        %v3542 = vld [vmem:[#allocation11 + $0x3f8] sm:$0xff]
        %v3543 = vld [vmem:[#allocation11 + $0x400] sm:$0xff]
        %v3544 = vld [vmem:[#allocation11 + $0x408] sm:$0xff]
        %v3545 = vld [vmem:[#allocation11 + $0x410] sm:$0xff]
        %v3546 = vld [vmem:[#allocation11 + $0x418] sm:$0xff]
        %v3547 = vld [vmem:[#allocation11 + $0x420] sm:$0xff]
        %v3548 = vld [vmem:[#allocation11 + $0x428] sm:$0xff]
        %v3549 = vld [vmem:[#allocation11 + $0x430] sm:$0xff]
        %v3550 = vld [vmem:[#allocation11 + $0x438] sm:$0xff]
        %v3551 = vld [vmem:[#allocation11 + $0x440] sm:$0xff]
        %v3552 = vld [vmem:[#allocation11 + $0x448] sm:$0xff]
        %v3553 = vld [vmem:[#allocation11 + $0x450] sm:$0xff]
        %v3554 = vld [vmem:[#allocation11 + $0x458] sm:$0xff]
        %v3555 = vld [vmem:[#allocation11 + $0x460] sm:$0xff]
        %v3556 = vld [vmem:[#allocation11 + $0x468] sm:$0xff]
        %v3557 = vld [vmem:[#allocation11 + $0x470] sm:$0xff]
        %v3558 = vld [vmem:[#allocation11 + $0x478] sm:$0xff]
        %v3559 = vld [vmem:[#allocation11 + $0x480] sm:$0xff]
        %v3560 = vld [vmem:[#allocation11 + $0x488] sm:$0xff]
        %v3561 = vld [vmem:[#allocation11 + $0x490] sm:$0xff]
        %v3562 = vld [vmem:[#allocation11 + $0x498] sm:$0xff]
        %v3563 = vld [vmem:[#allocation11 + $0x4a0] sm:$0xff]
        %v3564 = vld [vmem:[#allocation11 + $0x4a8] sm:$0xff]
        %v3565 = vld [vmem:[#allocation11 + $0x4b0] sm:$0xff]
        %v3566 = vld [vmem:[#allocation11 + $0x4b8] sm:$0xff]
        %v3567 = vld [vmem:[#allocation11 + $0x4c0] sm:$0xff]
        %v3568 = vld [vmem:[#allocation11 + $0x4c8] sm:$0xff]
        %v3569 = vld [vmem:[#allocation11 + $0x4d0] sm:$0xff]
        %v3570 = vld [vmem:[#allocation11 + $0x4d8] sm:$0xff]
        %v3571 = vld [vmem:[#allocation11 + $0x4e0] sm:$0xff]
        %v3572 = vld [vmem:[#allocation11 + $0x4e8] sm:$0xff]
        %v3573 = vld [vmem:[#allocation11 + $0x4f0] sm:$0xff]
        %v3574 = vld [vmem:[#allocation11 + $0x4f8] sm:$0xff]
        %v3575 = vld [vmem:[#allocation11 + $0x500] sm:$0xff]
        %v3576 = vld [vmem:[#allocation11 + $0x508] sm:$0xff]
        %v3577 = vld [vmem:[#allocation11 + $0x510] sm:$0xff]
        %v3578 = vld [vmem:[#allocation11 + $0x518] sm:$0xff]
        %v3579 = vld [vmem:[#allocation11 + $0x520] sm:$0xff]
        %v3580 = vld [vmem:[#allocation11 + $0x528] sm:$0xff]
        %v3581 = vld [vmem:[#allocation11 + $0x530] sm:$0xff]
        %v3582 = vld [vmem:[#allocation11 + $0x538] sm:$0xff]
        %v3583 = vld [vmem:[#allocation11 + $0x540] sm:$0xff]
        %v3584 = vld [vmem:[#allocation11 + $0x548] sm:$0xff]
        %v3585 = vld [vmem:[#allocation11 + $0x550] sm:$0xff]
        %v3586 = vld [vmem:[#allocation11 + $0x558] sm:$0xff]
        %v3587 = vld [vmem:[#allocation11 + $0x560] sm:$0xff]
        %v3588 = vld [vmem:[#allocation11 + $0x568] sm:$0xff]
        %v3589 = vld [vmem:[#allocation11 + $0x570] sm:$0xff]
        %v3590 = vld [vmem:[#allocation11 + $0x578] sm:$0xff]
        %v3591 = vld [vmem:[#allocation11 + $0x580] sm:$0xff]
        %v3592 = vld [vmem:[#allocation11 + $0x588] sm:$0xff]
        %v3593 = vld [vmem:[#allocation11 + $0x590] sm:$0xff]
        %v3594 = vld [vmem:[#allocation11 + $0x598] sm:$0xff]
        %v3595 = vld [vmem:[#allocation11 + $0x5a0] sm:$0xff]
        %v3596 = vld [vmem:[#allocation11 + $0x5a8] sm:$0xff]
        %v3597 = vld [vmem:[#allocation11 + $0x5b0] sm:$0xff]
        %v3598 = vld [vmem:[#allocation11 + $0x5b8] sm:$0xff]
        %v3599 = vld [vmem:[#allocation11 + $0x5c0] sm:$0xff]
        %v3600 = vld [vmem:[#allocation11 + $0x5c8] sm:$0xff]
        %v3601 = vld [vmem:[#allocation11 + $0x5d0] sm:$0xff]
        %v3602 = vld [vmem:[#allocation11 + $0x5d8] sm:$0xff]
        %v3603 = vld [vmem:[#allocation11 + $0x5e0] sm:$0xff]
        %v3604 = vld [vmem:[#allocation11 + $0x5e8] sm:$0xff]
        %v3605 = vld [vmem:[#allocation11 + $0x5f0] sm:$0xff]
        %v3606 = vld [vmem:[#allocation11 + $0x5f8] sm:$0xff]
        %v3607 = vld [vmem:[#allocation11 + $0x600] sm:$0xff]
        %v3608 = vld [vmem:[#allocation11 + $0x608] sm:$0xff]
        %v3609 = vld [vmem:[#allocation11 + $0x610] sm:$0xff]
        %v3610 = vld [vmem:[#allocation11 + $0x618] sm:$0xff]
        %v3611 = vld [vmem:[#allocation11 + $0x620] sm:$0xff]
        %v3612 = vld [vmem:[#allocation11 + $0x628] sm:$0xff]
        %v3613 = vld [vmem:[#allocation11 + $0x630] sm:$0xff]
        %v3614 = vld [vmem:[#allocation11 + $0x638] sm:$0xff]
        %v3615 = vld [vmem:[#allocation11 + $0x640] sm:$0xff]
        %v3616 = vld [vmem:[#allocation11 + $0x648] sm:$0xff]
        %v3617 = vld [vmem:[#allocation11 + $0x650] sm:$0xff]
        %v3618 = vld [vmem:[#allocation11 + $0x658] sm:$0xff]
        %v3619 = vld [vmem:[#allocation11 + $0x660] sm:$0xff]
        %v3620 = vld [vmem:[#allocation11 + $0x668] sm:$0xff]
        %v3621 = vld [vmem:[#allocation11 + $0x670] sm:$0xff]
        %v3622 = vld [vmem:[#allocation11 + $0x678] sm:$0xff]
        %v3623 = vld [vmem:[#allocation11 + $0x680] sm:$0xff]
        %v3624 = vld [vmem:[#allocation11 + $0x688] sm:$0xff]
        %v3625 = vld [vmem:[#allocation11 + $0x690] sm:$0xff]
        %v3626 = vld [vmem:[#allocation11 + $0x698] sm:$0xff]
        %v3627 = vld [vmem:[#allocation11 + $0x6a0] sm:$0xff]
        %v3628 = vld [vmem:[#allocation11 + $0x6a8] sm:$0xff]
        %v3629 = vld [vmem:[#allocation11 + $0x6b0] sm:$0xff]
        %v3630 = vld [vmem:[#allocation11 + $0x6b8] sm:$0xff]
        %v3631 = vld [vmem:[#allocation11 + $0x6c0] sm:$0xff]
        %v3632 = vld [vmem:[#allocation11 + $0x6c8] sm:$0xff]
        %v3633 = vld [vmem:[#allocation11 + $0x6d0] sm:$0xff]
        %v3634 = vld [vmem:[#allocation11 + $0x6d8] sm:$0xff]
        %v3635 = vld [vmem:[#allocation11 + $0x6e0] sm:$0xff]
        %v3636 = vld [vmem:[#allocation11 + $0x6e8] sm:$0xff]
        %v3637 = vld [vmem:[#allocation11 + $0x6f0] sm:$0xff]
        %v3638 = vld [vmem:[#allocation11 + $0x6f8] sm:$0xff]
        %v3639 = vld [vmem:[#allocation11 + $0x700] sm:$0xff]
        %v3640 = vld [vmem:[#allocation11 + $0x708] sm:$0xff]
        %v3641 = vld [vmem:[#allocation11 + $0x710] sm:$0xff]
        %v3642 = vld [vmem:[#allocation11 + $0x718] sm:$0xff]
        %v3643 = vld [vmem:[#allocation11 + $0x720] sm:$0xff]
        %v3644 = vld [vmem:[#allocation11 + $0x728] sm:$0xff]
        %v3645 = vld [vmem:[#allocation11 + $0x730] sm:$0xff]
        %v3646 = vld [vmem:[#allocation11 + $0x738] sm:$0xff]
        %v3647 = vld [vmem:[#allocation11 + $0x740] sm:$0xff]
        %v3648 = vld [vmem:[#allocation11 + $0x748] sm:$0xff]
        %v3649 = vld [vmem:[#allocation11 + $0x750] sm:$0xff]
        %v3650 = vld [vmem:[#allocation11 + $0x758] sm:$0xff]
        %v3651 = vld [vmem:[#allocation11 + $0x760] sm:$0xff]
        %v3652 = vld [vmem:[#allocation11 + $0x768] sm:$0xff]
        %v3653 = vld [vmem:[#allocation11 + $0x770] sm:$0xff]
        %v3654 = vld [vmem:[#allocation11 + $0x778] sm:$0xff]
        %v3655 = vld [vmem:[#allocation11 + $0x780] sm:$0xff]
        %v3656 = vld [vmem:[#allocation11 + $0x788] sm:$0xff]
        %v3657 = vld [vmem:[#allocation11 + $0x790] sm:$0xff]
        %v3658 = vld [vmem:[#allocation11 + $0x798] sm:$0xff]
        %v3659 = vld [vmem:[#allocation11 + $0x7a0] sm:$0xff]
        %v3660 = vld [vmem:[#allocation11 + $0x7a8] sm:$0xff]
        %v3661 = vld [vmem:[#allocation11 + $0x7b0] sm:$0xff]
        %v3662 = vld [vmem:[#allocation11 + $0x7b8] sm:$0xff]
        %v3663 = vld [vmem:[#allocation11 + $0x7c0] sm:$0xff]
        %v3664 = vld [vmem:[#allocation11 + $0x7c8] sm:$0xff]
        %v3665 = vld [vmem:[#allocation11 + $0x7d0] sm:$0xff]
        %v3666 = vld [vmem:[#allocation11 + $0x7d8] sm:$0xff]
        %v3667 = vld [vmem:[#allocation11 + $0x7e0] sm:$0xff]
        %v3668 = vld [vmem:[#allocation11 + $0x7e8] sm:$0xff]
        %v3669 = vld [vmem:[#allocation11 + $0x7f0] sm:$0xff]
        %v3670 = vld [vmem:[#allocation11 + $0x7f8] sm:$0xff]
        %v3671 = vld [vmem:[#allocation11 + $0x800] sm:$0xff]
        %v3672 = vld [vmem:[#allocation11 + $0x808] sm:$0xff]
        %v3673 = vld [vmem:[#allocation11 + $0x810] sm:$0xff]
        %v3674 = vld [vmem:[#allocation11 + $0x818] sm:$0xff]
        %v3675 = vld [vmem:[#allocation11 + $0x820] sm:$0xff]
        %v3676 = vld [vmem:[#allocation11 + $0x828] sm:$0xff]
        %v3677 = vld [vmem:[#allocation11 + $0x830] sm:$0xff]
        %v3678 = vld [vmem:[#allocation11 + $0x838] sm:$0xff]
        %v3679 = vld [vmem:[#allocation11 + $0x840] sm:$0xff]
        %v3680 = vld [vmem:[#allocation11 + $0x848] sm:$0xff]
        %v3681 = vld [vmem:[#allocation11 + $0x850] sm:$0xff]
        %v3682 = vld [vmem:[#allocation11 + $0x858] sm:$0xff]
        %v3683 = vld [vmem:[#allocation11 + $0x860] sm:$0xff]
        %v3684 = vld [vmem:[#allocation11 + $0x868] sm:$0xff]
        %v3685 = vld [vmem:[#allocation11 + $0x870] sm:$0xff]
        %v3686 = vld [vmem:[#allocation11 + $0x878] sm:$0xff]
        %v3687 = vld [vmem:[#allocation11 + $0x880] sm:$0xff]
        %v3688 = vld [vmem:[#allocation11 + $0x888] sm:$0xff]
        %v3689 = vld [vmem:[#allocation11 + $0x890] sm:$0xff]
        %v3690 = vld [vmem:[#allocation11 + $0x898] sm:$0xff]
        %v3691 = vld [vmem:[#allocation11 + $0x8a0] sm:$0xff]
        %v3692 = vld [vmem:[#allocation11 + $0x8a8] sm:$0xff]
        %v3693 = vld [vmem:[#allocation11 + $0x8b0] sm:$0xff]
        %v3694 = vld [vmem:[#allocation11 + $0x8b8] sm:$0xff]
        %v3695 = vld [vmem:[#allocation11 + $0x8c0] sm:$0xff]
        %v3696 = vld [vmem:[#allocation11 + $0x8c8] sm:$0xff]
        %v3697 = vld [vmem:[#allocation11 + $0x8d0] sm:$0xff]
        %v3698 = vld [vmem:[#allocation11 + $0x8d8] sm:$0xff]
        %v3699 = vld [vmem:[#allocation11 + $0x8e0] sm:$0xff]
        %v3700 = vld [vmem:[#allocation11 + $0x8e8] sm:$0xff]
        %v3701 = vld [vmem:[#allocation11 + $0x8f0] sm:$0xff]
        %v3702 = vld [vmem:[#allocation11 + $0x8f8] sm:$0xff]
        %v3703 = vld [vmem:[#allocation12] sm:$0xff]
        %v3704 = vld [vmem:[#allocation12 + $0x8] sm:$0xf]
        %v3707 = vperm.slane %v3703, 0
        %v3708 = vperm.slane %v3703, 1
        %v3709 = vperm.slane %v3703, 2
        %v3710 = vperm.slane %v3703, 3
        %v3711 = vperm.slane %v3703, 4
        %v3712 = vperm.slane %v3703, 5
        %v3713 = vperm.slane %v3703, 6
        %v3714 = vperm.slane %v3703, 7
        %v3715 = vperm.slane %v3704, 0
        %v3716 = vperm.slane %v3704, 1
        %v3717 = vperm.slane %v3704, 2
        %v3718 = vperm.slane %v3704, 3
        %v4019 = vunpack.c.l.b16 %v3415
        %v4020 = vunpack.c.h.b16 %v3415
        %v4021 = vunpack.c.l.b16 %v3416
        %v4022 = vunpack.c.h.b16 %v3416
        %v4023 = vunpack.c.l.b16 %v3417
        %v4024 = vunpack.c.h.b16 %v3417
        %v4025 = vunpack.c.l.b16 %v3418
        %v4026 = vunpack.c.h.b16 %v3418
        %v4027 = vunpack.c.l.b16 %v3419
        %v4028 = vunpack.c.h.b16 %v3419
        %v4029 = vunpack.c.l.b16 %v3420
        %v4030 = vunpack.c.h.b16 %v3420
        %v4031 = vunpack.c.l.b16 %v3421
        %v4032 = vunpack.c.h.b16 %v3421
        %v4033 = vunpack.c.l.b16 %v3422
        %v4034 = vunpack.c.h.b16 %v3422
        %v4035 = vunpack.c.l.b16 %v3423
        %v4036 = vunpack.c.h.b16 %v3423
        %v4037 = vunpack.c.l.b16 %v3424
        %v4038 = vunpack.c.h.b16 %v3424
        %v4039 = vunpack.c.l.b16 %v3425
        %v4040 = vunpack.c.h.b16 %v3425
        %v4041 = vunpack.c.l.b16 %v3426
        %v4042 = vunpack.c.h.b16 %v3426
        %v4043 = vunpack.c.l.b16 %v3427
        %v4044 = vunpack.c.h.b16 %v3427
        %v4045 = vunpack.c.l.b16 %v3428
        %v4046 = vunpack.c.h.b16 %v3428
        %v4047 = vunpack.c.l.b16 %v3429
        %v4048 = vunpack.c.h.b16 %v3429
        %v4049 = vunpack.c.l.b16 %v3430
        %v4050 = vunpack.c.h.b16 %v3430
        %v4051 = vunpack.c.l.b16 %v3431
        %v4052 = vunpack.c.h.b16 %v3431
        %v4053 = vunpack.c.l.b16 %v3432
        %v4054 = vunpack.c.h.b16 %v3432
        %v4055 = vunpack.c.l.b16 %v3433
        %v4056 = vunpack.c.h.b16 %v3433
        %v4057 = vunpack.c.l.b16 %v3434
        %v4058 = vunpack.c.h.b16 %v3434
        %v4059 = vunpack.c.l.b16 %v3435
        %v4060 = vunpack.c.h.b16 %v3435
        %v4061 = vunpack.c.l.b16 %v3436
        %v4062 = vunpack.c.h.b16 %v3436
        %v4063 = vunpack.c.l.b16 %v3437
        %v4064 = vunpack.c.h.b16 %v3437
        %v4065 = vunpack.c.l.b16 %v3438
        %v4066 = vunpack.c.h.b16 %v3438
        %v4067 = vunpack.c.l.b16 %v3439
        %v4068 = vunpack.c.h.b16 %v3439
        %v4069 = vunpack.c.l.b16 %v3440
        %v4070 = vunpack.c.h.b16 %v3440
        %v4071 = vunpack.c.l.b16 %v3441
        %v4072 = vunpack.c.h.b16 %v3441
        %v4073 = vunpack.c.l.b16 %v3442
        %v4074 = vunpack.c.h.b16 %v3442
        %v4075 = vunpack.c.l.b16 %v3443
        %v4076 = vunpack.c.h.b16 %v3443
        %v4077 = vunpack.c.l.b16 %v3444
        %v4078 = vunpack.c.h.b16 %v3444
        %v4079 = vunpack.c.l.b16 %v3445
        %v4080 = vunpack.c.h.b16 %v3445
        %v4081 = vunpack.c.l.b16 %v3446
        %v4082 = vunpack.c.h.b16 %v3446
        %v4083 = vunpack.c.l.b16 %v3447
        %v4084 = vunpack.c.h.b16 %v3447
        %v4085 = vunpack.c.l.b16 %v3448
        %v4086 = vunpack.c.h.b16 %v3448
        %v4087 = vunpack.c.l.b16 %v3449
        %v4088 = vunpack.c.h.b16 %v3449
        %v4089 = vunpack.c.l.b16 %v3450
        %v4090 = vunpack.c.h.b16 %v3450
        %v4091 = vunpack.c.l.b16 %v3451
        %v4092 = vunpack.c.h.b16 %v3451
        %v4093 = vunpack.c.l.b16 %v3452
        %v4094 = vunpack.c.h.b16 %v3452
        %v4095 = vunpack.c.l.b16 %v3453
        %v4096 = vunpack.c.h.b16 %v3453
        %v4097 = vunpack.c.l.b16 %v3454
        %v4098 = vunpack.c.h.b16 %v3454
        %v4099 = vunpack.c.l.b16 %v3455
        %v4100 = vunpack.c.h.b16 %v3455
        %v4101 = vunpack.c.l.b16 %v3456
        %v4102 = vunpack.c.h.b16 %v3456
        %v4103 = vunpack.c.l.b16 %v3457
        %v4104 = vunpack.c.h.b16 %v3457
        %v4105 = vunpack.c.l.b16 %v3458
        %v4106 = vunpack.c.h.b16 %v3458
        %v4107 = vunpack.c.l.b16 %v3459
        %v4108 = vunpack.c.h.b16 %v3459
        %v4109 = vunpack.c.l.b16 %v3460
        %v4110 = vunpack.c.h.b16 %v3460
        %v4111 = vunpack.c.l.b16 %v3461
        %v4112 = vunpack.c.h.b16 %v3461
        %v4113 = vunpack.c.l.b16 %v3462
        %v4114 = vunpack.c.h.b16 %v3462
        %v4115 = vunpack.c.l.b16 %v3463
        %v4116 = vunpack.c.h.b16 %v3463
        %v4117 = vunpack.c.l.b16 %v3464
        %v4118 = vunpack.c.h.b16 %v3464
        %v4119 = vunpack.c.l.b16 %v3465
        %v4120 = vunpack.c.h.b16 %v3465
        %v4121 = vunpack.c.l.b16 %v3466
        %v4122 = vunpack.c.h.b16 %v3466
        %v4123 = vunpack.c.l.b16 %v3467
        %v4124 = vunpack.c.h.b16 %v3467
        %v4125 = vunpack.c.l.b16 %v3468
        %v4126 = vunpack.c.h.b16 %v3468
        %v4127 = vunpack.c.l.b16 %v3469
        %v4128 = vunpack.c.h.b16 %v3469
        %v4129 = vunpack.c.l.b16 %v3470
        %v4130 = vunpack.c.h.b16 %v3470
        %v4131 = vunpack.c.l.b16 %v3471
        %v4132 = vunpack.c.h.b16 %v3471
        %v4133 = vunpack.c.l.b16 %v3472
        %v4134 = vunpack.c.h.b16 %v3472
        %v4135 = vunpack.c.l.b16 %v3473
        %v4136 = vunpack.c.h.b16 %v3473
        %v4137 = vunpack.c.l.b16 %v3474
        %v4138 = vunpack.c.h.b16 %v3474
        %v4139 = vunpack.c.l.b16 %v3475
        %v4140 = vunpack.c.h.b16 %v3475
        %v4141 = vunpack.c.l.b16 %v3476
        %v4142 = vunpack.c.h.b16 %v3476
        %v4143 = vunpack.c.l.b16 %v3477
        %v4144 = vunpack.c.h.b16 %v3477
        %v4145 = vunpack.c.l.b16 %v3478
        %v4146 = vunpack.c.h.b16 %v3478
        %v4147 = vunpack.c.l.b16 %v3479
        %v4148 = vunpack.c.h.b16 %v3479
        %v4149 = vunpack.c.l.b16 %v3480
        %v4150 = vunpack.c.h.b16 %v3480
        %v4151 = vunpack.c.l.b16 %v3481
        %v4152 = vunpack.c.h.b16 %v3481
        %v4153 = vunpack.c.l.b16 %v3482
        %v4154 = vunpack.c.h.b16 %v3482
        %v4155 = vunpack.c.l.b16 %v3483
        %v4156 = vunpack.c.h.b16 %v3483
        %v4157 = vunpack.c.l.b16 %v3484
        %v4158 = vunpack.c.h.b16 %v3484
        %v4159 = vunpack.c.l.b16 %v3485
        %v4160 = vunpack.c.h.b16 %v3485
        %v4161 = vunpack.c.l.b16 %v3486
        %v4162 = vunpack.c.h.b16 %v3486
        %v4163 = vunpack.c.l.b16 %v3487
        %v4164 = vunpack.c.h.b16 %v3487
        %v4165 = vunpack.c.l.b16 %v3488
        %v4166 = vunpack.c.h.b16 %v3488
        %v4167 = vunpack.c.l.b16 %v3489
        %v4168 = vunpack.c.h.b16 %v3489
        %v4169 = vunpack.c.l.b16 %v3490
        %v4170 = vunpack.c.h.b16 %v3490
        %v4171 = vunpack.c.l.b16 %v3491
        %v4172 = vunpack.c.h.b16 %v3491
        %v4173 = vunpack.c.l.b16 %v3492
        %v4174 = vunpack.c.h.b16 %v3492
        %v4175 = vunpack.c.l.b16 %v3493
        %v4176 = vunpack.c.h.b16 %v3493
        %v4177 = vunpack.c.l.b16 %v3494
        %v4178 = vunpack.c.h.b16 %v3494
        %v4179 = vunpack.c.l.b16 %v3495
        %v4180 = vunpack.c.h.b16 %v3495
        %v4181 = vunpack.c.l.b16 %v3496
        %v4182 = vunpack.c.h.b16 %v3496
        %v4183 = vunpack.c.l.b16 %v3497
        %v4184 = vunpack.c.h.b16 %v3497
        %v4185 = vunpack.c.l.b16 %v3498
        %v4186 = vunpack.c.h.b16 %v3498
        %v4187 = vunpack.c.l.b16 %v3499
        %v4188 = vunpack.c.h.b16 %v3499
        %v4189 = vunpack.c.l.b16 %v3500
        %v4190 = vunpack.c.h.b16 %v3500
        %v4191 = vunpack.c.l.b16 %v3501
        %v4192 = vunpack.c.h.b16 %v3501
        %v4193 = vunpack.c.l.b16 %v3502
        %v4194 = vunpack.c.h.b16 %v3502
        %v4195 = vunpack.c.l.b16 %v3503
        %v4196 = vunpack.c.h.b16 %v3503
        %v4197 = vunpack.c.l.b16 %v3504
        %v4198 = vunpack.c.h.b16 %v3504
        %v4199 = vunpack.c.l.b16 %v3505
        %v4200 = vunpack.c.h.b16 %v3505
        %v4201 = vunpack.c.l.b16 %v3506
        %v4202 = vunpack.c.h.b16 %v3506
        %v4203 = vunpack.c.l.b16 %v3507
        %v4204 = vunpack.c.h.b16 %v3507
        %v4205 = vunpack.c.l.b16 %v3508
        %v4206 = vunpack.c.h.b16 %v3508
        %v4207 = vunpack.c.l.b16 %v3509
        %v4208 = vunpack.c.h.b16 %v3509
        %v4209 = vunpack.c.l.b16 %v3510
        %v4210 = vunpack.c.h.b16 %v3510
        %v4211 = vunpack.c.l.b16 %v3511
        %v4212 = vunpack.c.h.b16 %v3511
        %v4213 = vunpack.c.l.b16 %v3512
        %v4214 = vunpack.c.h.b16 %v3512
        %v4215 = vunpack.c.l.b16 %v3513
        %v4216 = vunpack.c.h.b16 %v3513
        %v4217 = vunpack.c.l.b16 %v3514
        %v4218 = vunpack.c.h.b16 %v3514
        %v4219 = vunpack.c.l.b16 %v3515
        %v4220 = vunpack.c.h.b16 %v3515
        %v4221 = vunpack.c.l.b16 %v3516
        %v4222 = vunpack.c.h.b16 %v3516
        %v4223 = vunpack.c.l.b16 %v3517
        %v4224 = vunpack.c.h.b16 %v3517
        %v4225 = vunpack.c.l.b16 %v3518
        %v4226 = vunpack.c.h.b16 %v3518
        %v4227 = vunpack.c.l.b16 %v3519
        %v4228 = vunpack.c.h.b16 %v3519
        %v4229 = vunpack.c.l.b16 %v3520
        %v4230 = vunpack.c.h.b16 %v3520
        %v4231 = vunpack.c.l.b16 %v3521
        %v4232 = vunpack.c.h.b16 %v3521
        %v4233 = vunpack.c.l.b16 %v3522
        %v4234 = vunpack.c.h.b16 %v3522
        %v4235 = vunpack.c.l.b16 %v3523
        %v4236 = vunpack.c.h.b16 %v3523
        %v4237 = vunpack.c.l.b16 %v3524
        %v4238 = vunpack.c.h.b16 %v3524
        %v4239 = vunpack.c.l.b16 %v3525
        %v4240 = vunpack.c.h.b16 %v3525
        %v4241 = vunpack.c.l.b16 %v3526
        %v4242 = vunpack.c.h.b16 %v3526
        %v4243 = vunpack.c.l.b16 %v3527
        %v4244 = vunpack.c.h.b16 %v3527
        %v4245 = vunpack.c.l.b16 %v3528
        %v4246 = vunpack.c.h.b16 %v3528
        %v4247 = vunpack.c.l.b16 %v3529
        %v4248 = vunpack.c.h.b16 %v3529
        %v4249 = vunpack.c.l.b16 %v3530
        %v4250 = vunpack.c.h.b16 %v3530
        %v4251 = vunpack.c.l.b16 %v3531
        %v4252 = vunpack.c.h.b16 %v3531
        %v4253 = vunpack.c.l.b16 %v3532
        %v4254 = vunpack.c.h.b16 %v3532
        %v4255 = vunpack.c.l.b16 %v3533
        %v4256 = vunpack.c.h.b16 %v3533
        %v4257 = vunpack.c.l.b16 %v3534
        %v4258 = vunpack.c.h.b16 %v3534
        %v4259 = vunpack.c.l.b16 %v3535
        %v4260 = vunpack.c.h.b16 %v3535
        %v4261 = vunpack.c.l.b16 %v3536
        %v4262 = vunpack.c.h.b16 %v3536
        %v4263 = vunpack.c.l.b16 %v3537
        %v4264 = vunpack.c.h.b16 %v3537
        %v4265 = vunpack.c.l.b16 %v3538
        %v4266 = vunpack.c.h.b16 %v3538
        %v4267 = vunpack.c.l.b16 %v3539
        %v4268 = vunpack.c.h.b16 %v3539
        %v4269 = vunpack.c.l.b16 %v3540
        %v4270 = vunpack.c.h.b16 %v3540
        %v4271 = vunpack.c.l.b16 %v3541
        %v4272 = vunpack.c.h.b16 %v3541
        %v4273 = vunpack.c.l.b16 %v3542
        %v4274 = vunpack.c.h.b16 %v3542
        %v4275 = vunpack.c.l.b16 %v3543
        %v4276 = vunpack.c.h.b16 %v3543
        %v4277 = vunpack.c.l.b16 %v3544
        %v4278 = vunpack.c.h.b16 %v3544
        %v4279 = vunpack.c.l.b16 %v3545
        %v4280 = vunpack.c.h.b16 %v3545
        %v4281 = vunpack.c.l.b16 %v3546
        %v4282 = vunpack.c.h.b16 %v3546
        %v4283 = vunpack.c.l.b16 %v3547
        %v4284 = vunpack.c.h.b16 %v3547
        %v4285 = vunpack.c.l.b16 %v3548
        %v4286 = vunpack.c.h.b16 %v3548
        %v4287 = vunpack.c.l.b16 %v3549
        %v4288 = vunpack.c.h.b16 %v3549
        %v4289 = vunpack.c.l.b16 %v3550
        %v4290 = vunpack.c.h.b16 %v3550
        %v4291 = vunpack.c.l.b16 %v3551
        %v4292 = vunpack.c.h.b16 %v3551
        %v4293 = vunpack.c.l.b16 %v3552
        %v4294 = vunpack.c.h.b16 %v3552
        %v4295 = vunpack.c.l.b16 %v3553
        %v4296 = vunpack.c.h.b16 %v3553
        %v4297 = vunpack.c.l.b16 %v3554
        %v4298 = vunpack.c.h.b16 %v3554
        %v4299 = vunpack.c.l.b16 %v3555
        %v4300 = vunpack.c.h.b16 %v3555
        %v4301 = vunpack.c.l.b16 %v3556
        %v4302 = vunpack.c.h.b16 %v3556
        %v4303 = vunpack.c.l.b16 %v3557
        %v4304 = vunpack.c.h.b16 %v3557
        %v4305 = vunpack.c.l.b16 %v3558
        %v4306 = vunpack.c.h.b16 %v3558
        %v4307 = vunpack.c.l.b16 %v3559
        %v4308 = vunpack.c.h.b16 %v3559
        %v4309 = vunpack.c.l.b16 %v3560
        %v4310 = vunpack.c.h.b16 %v3560
        %v4311 = vunpack.c.l.b16 %v3561
        %v4312 = vunpack.c.h.b16 %v3561
        %v4313 = vunpack.c.l.b16 %v3562
        %v4314 = vunpack.c.h.b16 %v3562
        %v4315 = vunpack.c.l.b16 %v3563
        %v4316 = vunpack.c.h.b16 %v3563
        %v4317 = vunpack.c.l.b16 %v3564
        %v4318 = vunpack.c.h.b16 %v3564
        %v4319 = vunpack.c.l.b16 %v3565
        %v4320 = vunpack.c.h.b16 %v3565
        %v4321 = vunpack.c.l.b16 %v3566
        %v4322 = vunpack.c.h.b16 %v3566
        %v4323 = vunpack.c.l.b16 %v3567
        %v4324 = vunpack.c.h.b16 %v3567
        %v4325 = vunpack.c.l.b16 %v3568
        %v4326 = vunpack.c.h.b16 %v3568
        %v4327 = vunpack.c.l.b16 %v3569
        %v4328 = vunpack.c.h.b16 %v3569
        %v4329 = vunpack.c.l.b16 %v3570
        %v4330 = vunpack.c.h.b16 %v3570
        %v4331 = vunpack.c.l.b16 %v3571
        %v4332 = vunpack.c.h.b16 %v3571
        %v4333 = vunpack.c.l.b16 %v3572
        %v4334 = vunpack.c.h.b16 %v3572
        %v4335 = vunpack.c.l.b16 %v3573
        %v4336 = vunpack.c.h.b16 %v3573
        %v4337 = vunpack.c.l.b16 %v3574
        %v4338 = vunpack.c.h.b16 %v3574
        %v4339 = vunpack.c.l.b16 %v3575
        %v4340 = vunpack.c.h.b16 %v3575
        %v4341 = vunpack.c.l.b16 %v3576
        %v4342 = vunpack.c.h.b16 %v3576
        %v4343 = vunpack.c.l.b16 %v3577
        %v4344 = vunpack.c.h.b16 %v3577
        %v4345 = vunpack.c.l.b16 %v3578
        %v4346 = vunpack.c.h.b16 %v3578
        %v4347 = vunpack.c.l.b16 %v3579
        %v4348 = vunpack.c.h.b16 %v3579
        %v4349 = vunpack.c.l.b16 %v3580
        %v4350 = vunpack.c.h.b16 %v3580
        %v4351 = vunpack.c.l.b16 %v3581
        %v4352 = vunpack.c.h.b16 %v3581
        %v4353 = vunpack.c.l.b16 %v3582
        %v4354 = vunpack.c.h.b16 %v3582
        %v4355 = vunpack.c.l.b16 %v3583
        %v4356 = vunpack.c.h.b16 %v3583
        %v4357 = vunpack.c.l.b16 %v3584
        %v4358 = vunpack.c.h.b16 %v3584
        %v4359 = vunpack.c.l.b16 %v3585
        %v4360 = vunpack.c.h.b16 %v3585
        %v4361 = vunpack.c.l.b16 %v3586
        %v4362 = vunpack.c.h.b16 %v3586
        %v4363 = vunpack.c.l.b16 %v3587
        %v4364 = vunpack.c.h.b16 %v3587
        %v4365 = vunpack.c.l.b16 %v3588
        %v4366 = vunpack.c.h.b16 %v3588
        %v4367 = vunpack.c.l.b16 %v3589
        %v4368 = vunpack.c.h.b16 %v3589
        %v4369 = vunpack.c.l.b16 %v3590
        %v4370 = vunpack.c.h.b16 %v3590
        %v4371 = vunpack.c.l.b16 %v3591
        %v4372 = vunpack.c.h.b16 %v3591
        %v4373 = vunpack.c.l.b16 %v3592
        %v4374 = vunpack.c.h.b16 %v3592
        %v4375 = vunpack.c.l.b16 %v3593
        %v4376 = vunpack.c.h.b16 %v3593
        %v4377 = vunpack.c.l.b16 %v3594
        %v4378 = vunpack.c.h.b16 %v3594
        %v4379 = vunpack.c.l.b16 %v3595
        %v4380 = vunpack.c.h.b16 %v3595
        %v4381 = vunpack.c.l.b16 %v3596
        %v4382 = vunpack.c.h.b16 %v3596
        %v4383 = vunpack.c.l.b16 %v3597
        %v4384 = vunpack.c.h.b16 %v3597
        %v4385 = vunpack.c.l.b16 %v3598
        %v4386 = vunpack.c.h.b16 %v3598
        %v4387 = vunpack.c.l.b16 %v3599
        %v4388 = vunpack.c.h.b16 %v3599
        %v4389 = vunpack.c.l.b16 %v3600
        %v4390 = vunpack.c.h.b16 %v3600
        %v4391 = vunpack.c.l.b16 %v3601
        %v4392 = vunpack.c.h.b16 %v3601
        %v4393 = vunpack.c.l.b16 %v3602
        %v4394 = vunpack.c.h.b16 %v3602
        %v4395 = vunpack.c.l.b16 %v3603
        %v4396 = vunpack.c.h.b16 %v3603
        %v4397 = vunpack.c.l.b16 %v3604
        %v4398 = vunpack.c.h.b16 %v3604
        %v4399 = vunpack.c.l.b16 %v3605
        %v4400 = vunpack.c.h.b16 %v3605
        %v4401 = vunpack.c.l.b16 %v3606
        %v4402 = vunpack.c.h.b16 %v3606
        %v4403 = vunpack.c.l.b16 %v3607
        %v4404 = vunpack.c.h.b16 %v3607
        %v4405 = vunpack.c.l.b16 %v3608
        %v4406 = vunpack.c.h.b16 %v3608
        %v4407 = vunpack.c.l.b16 %v3609
        %v4408 = vunpack.c.h.b16 %v3609
        %v4409 = vunpack.c.l.b16 %v3610
        %v4410 = vunpack.c.h.b16 %v3610
        %v4411 = vunpack.c.l.b16 %v3611
        %v4412 = vunpack.c.h.b16 %v3611
        %v4413 = vunpack.c.l.b16 %v3612
        %v4414 = vunpack.c.h.b16 %v3612
        %v4415 = vunpack.c.l.b16 %v3613
        %v4416 = vunpack.c.h.b16 %v3613
        %v4417 = vunpack.c.l.b16 %v3614
        %v4418 = vunpack.c.h.b16 %v3614
        %v4419 = vunpack.c.l.b16 %v3615
        %v4420 = vunpack.c.h.b16 %v3615
        %v4421 = vunpack.c.l.b16 %v3616
        %v4422 = vunpack.c.h.b16 %v3616
        %v4423 = vunpack.c.l.b16 %v3617
        %v4424 = vunpack.c.h.b16 %v3617
        %v4425 = vunpack.c.l.b16 %v3618
        %v4426 = vunpack.c.h.b16 %v3618
        %v4427 = vunpack.c.l.b16 %v3619
        %v4428 = vunpack.c.h.b16 %v3619
        %v4429 = vunpack.c.l.b16 %v3620
        %v4430 = vunpack.c.h.b16 %v3620
        %v4431 = vunpack.c.l.b16 %v3621
        %v4432 = vunpack.c.h.b16 %v3621
        %v4433 = vunpack.c.l.b16 %v3622
        %v4434 = vunpack.c.h.b16 %v3622
        %v4435 = vunpack.c.l.b16 %v3623
        %v4436 = vunpack.c.h.b16 %v3623
        %v4437 = vunpack.c.l.b16 %v3624
        %v4438 = vunpack.c.h.b16 %v3624
        %v4439 = vunpack.c.l.b16 %v3625
        %v4440 = vunpack.c.h.b16 %v3625
        %v4441 = vunpack.c.l.b16 %v3626
        %v4442 = vunpack.c.h.b16 %v3626
        %v4443 = vunpack.c.l.b16 %v3627
        %v4444 = vunpack.c.h.b16 %v3627
        %v4445 = vunpack.c.l.b16 %v3628
        %v4446 = vunpack.c.h.b16 %v3628
        %v4447 = vunpack.c.l.b16 %v3629
        %v4448 = vunpack.c.h.b16 %v3629
        %v4449 = vunpack.c.l.b16 %v3630
        %v4450 = vunpack.c.h.b16 %v3630
        %v4451 = vunpack.c.l.b16 %v3631
        %v4452 = vunpack.c.h.b16 %v3631
        %v4453 = vunpack.c.l.b16 %v3632
        %v4454 = vunpack.c.h.b16 %v3632
        %v4455 = vunpack.c.l.b16 %v3633
        %v4456 = vunpack.c.h.b16 %v3633
        %v4457 = vunpack.c.l.b16 %v3634
        %v4458 = vunpack.c.h.b16 %v3634
        %v4459 = vunpack.c.l.b16 %v3635
        %v4460 = vunpack.c.h.b16 %v3635
        %v4461 = vunpack.c.l.b16 %v3636
        %v4462 = vunpack.c.h.b16 %v3636
        %v4463 = vunpack.c.l.b16 %v3637
        %v4464 = vunpack.c.h.b16 %v3637
        %v4465 = vunpack.c.l.b16 %v3638
        %v4466 = vunpack.c.h.b16 %v3638
        %v4467 = vunpack.c.l.b16 %v3639
        %v4468 = vunpack.c.h.b16 %v3639
        %v4469 = vunpack.c.l.b16 %v3640
        %v4470 = vunpack.c.h.b16 %v3640
        %v4471 = vunpack.c.l.b16 %v3641
        %v4472 = vunpack.c.h.b16 %v3641
        %v4473 = vunpack.c.l.b16 %v3642
        %v4474 = vunpack.c.h.b16 %v3642
        %v4475 = vunpack.c.l.b16 %v3643
        %v4476 = vunpack.c.h.b16 %v3643
        %v4477 = vunpack.c.l.b16 %v3644
        %v4478 = vunpack.c.h.b16 %v3644
        %v4479 = vunpack.c.l.b16 %v3645
        %v4480 = vunpack.c.h.b16 %v3645
        %v4481 = vunpack.c.l.b16 %v3646
        %v4482 = vunpack.c.h.b16 %v3646
        %v4483 = vunpack.c.l.b16 %v3647
        %v4484 = vunpack.c.h.b16 %v3647
        %v4485 = vunpack.c.l.b16 %v3648
        %v4486 = vunpack.c.h.b16 %v3648
        %v4487 = vunpack.c.l.b16 %v3649
        %v4488 = vunpack.c.h.b16 %v3649
        %v4489 = vunpack.c.l.b16 %v3650
        %v4490 = vunpack.c.h.b16 %v3650
        %v4491 = vunpack.c.l.b16 %v3651
        %v4492 = vunpack.c.h.b16 %v3651
        %v4493 = vunpack.c.l.b16 %v3652
        %v4494 = vunpack.c.h.b16 %v3652
        %v4495 = vunpack.c.l.b16 %v3653
        %v4496 = vunpack.c.h.b16 %v3653
        %v4497 = vunpack.c.l.b16 %v3654
        %v4498 = vunpack.c.h.b16 %v3654
        %v4499 = vunpack.c.l.b16 %v3655
        %v4500 = vunpack.c.h.b16 %v3655
        %v4501 = vunpack.c.l.b16 %v3656
        %v4502 = vunpack.c.h.b16 %v3656
        %v4503 = vunpack.c.l.b16 %v3657
        %v4504 = vunpack.c.h.b16 %v3657
        %v4505 = vunpack.c.l.b16 %v3658
        %v4506 = vunpack.c.h.b16 %v3658
        %v4507 = vunpack.c.l.b16 %v3659
        %v4508 = vunpack.c.h.b16 %v3659
        %v4509 = vunpack.c.l.b16 %v3660
        %v4510 = vunpack.c.h.b16 %v3660
        %v4511 = vunpack.c.l.b16 %v3661
        %v4512 = vunpack.c.h.b16 %v3661
        %v4513 = vunpack.c.l.b16 %v3662
        %v4514 = vunpack.c.h.b16 %v3662
        %v4515 = vunpack.c.l.b16 %v3663
        %v4516 = vunpack.c.h.b16 %v3663
        %v4517 = vunpack.c.l.b16 %v3664
        %v4518 = vunpack.c.h.b16 %v3664
        %v4519 = vunpack.c.l.b16 %v3665
        %v4520 = vunpack.c.h.b16 %v3665
        %v4521 = vunpack.c.l.b16 %v3666
        %v4522 = vunpack.c.h.b16 %v3666
        %v4523 = vunpack.c.l.b16 %v3667
        %v4524 = vunpack.c.h.b16 %v3667
        %v4525 = vunpack.c.l.b16 %v3668
        %v4526 = vunpack.c.h.b16 %v3668
        %v4527 = vunpack.c.l.b16 %v3669
        %v4528 = vunpack.c.h.b16 %v3669
        %v4529 = vunpack.c.l.b16 %v3670
        %v4530 = vunpack.c.h.b16 %v3670
        %v4531 = vunpack.c.l.b16 %v3671
        %v4532 = vunpack.c.h.b16 %v3671
        %v4533 = vunpack.c.l.b16 %v3672
        %v4534 = vunpack.c.h.b16 %v3672
        %v4535 = vunpack.c.l.b16 %v3673
        %v4536 = vunpack.c.h.b16 %v3673
        %v4537 = vunpack.c.l.b16 %v3674
        %v4538 = vunpack.c.h.b16 %v3674
        %v4539 = vunpack.c.l.b16 %v3675
        %v4540 = vunpack.c.h.b16 %v3675
        %v4541 = vunpack.c.l.b16 %v3676
        %v4542 = vunpack.c.h.b16 %v3676
        %v4543 = vunpack.c.l.b16 %v3677
        %v4544 = vunpack.c.h.b16 %v3677
        %v4545 = vunpack.c.l.b16 %v3678
        %v4546 = vunpack.c.h.b16 %v3678
        %v4547 = vunpack.c.l.b16 %v3679
        %v4548 = vunpack.c.h.b16 %v3679
        %v4549 = vunpack.c.l.b16 %v3680
        %v4550 = vunpack.c.h.b16 %v3680
        %v4551 = vunpack.c.l.b16 %v3681
        %v4552 = vunpack.c.h.b16 %v3681
        %v4553 = vunpack.c.l.b16 %v3682
        %v4554 = vunpack.c.h.b16 %v3682
        %v4555 = vunpack.c.l.b16 %v3683
        %v4556 = vunpack.c.h.b16 %v3683
        %v4557 = vunpack.c.l.b16 %v3684
        %v4558 = vunpack.c.h.b16 %v3684
        %v4559 = vunpack.c.l.b16 %v3685
        %v4560 = vunpack.c.h.b16 %v3685
        %v4561 = vunpack.c.l.b16 %v3686
        %v4562 = vunpack.c.h.b16 %v3686
        %v4563 = vunpack.c.l.b16 %v3687
        %v4564 = vunpack.c.h.b16 %v3687
        %v4565 = vunpack.c.l.b16 %v3688
        %v4566 = vunpack.c.h.b16 %v3688
        %v4567 = vunpack.c.l.b16 %v3689
        %v4568 = vunpack.c.h.b16 %v3689
        %v4569 = vunpack.c.l.b16 %v3690
        %v4570 = vunpack.c.h.b16 %v3690
        %v4571 = vunpack.c.l.b16 %v3691
        %v4572 = vunpack.c.h.b16 %v3691
        %v4573 = vunpack.c.l.b16 %v3692
        %v4574 = vunpack.c.h.b16 %v3692
        %v4575 = vunpack.c.l.b16 %v3693
        %v4576 = vunpack.c.h.b16 %v3693
        %v4577 = vunpack.c.l.b16 %v3694
        %v4578 = vunpack.c.h.b16 %v3694
        %v4579 = vunpack.c.l.b16 %v3695
        %v4580 = vunpack.c.h.b16 %v3695
        %v4581 = vunpack.c.l.b16 %v3696
        %v4582 = vunpack.c.h.b16 %v3696
        %v4583 = vunpack.c.l.b16 %v3697
        %v4584 = vunpack.c.h.b16 %v3697
        %v4585 = vunpack.c.l.b16 %v3698
        %v4586 = vunpack.c.h.b16 %v3698
        %v4587 = vunpack.c.l.b16 %v3699
        %v4588 = vunpack.c.h.b16 %v3699
        %v4589 = vunpack.c.l.b16 %v3700
        %v4590 = vunpack.c.h.b16 %v3700
        %v4591 = vunpack.c.l.b16 %v3701
        %v4592 = vunpack.c.h.b16 %v3701
        %v4593 = vunpack.c.l.b16 %v3702
        %v4594 = vunpack.c.h.b16 %v3702
        %v4595 = vpack.c.b16 %v4031, %v4019
        %v4596 = vpack.c.b16 %v4032, %v4020
        %v4597 = vpack.c.b16 %v4033, %v4021
        %v4598 = vpack.c.b16 %v4034, %v4022
        %v4599 = vpack.c.b16 %v4035, %v4023
        %v4600 = vpack.c.b16 %v4036, %v4024
        %v4601 = vpack.c.b16 %v4037, %v4025
        %v4602 = vpack.c.b16 %v4038, %v4026
        %v4603 = vpack.c.b16 %v4039, %v4027
        %v4604 = vpack.c.b16 %v4040, %v4028
        %v4605 = vpack.c.b16 %v4041, %v4029
        %v4606 = vpack.c.b16 %v4042, %v4030
        %v4607 = vpack.c.b16 %v4055, %v4043
        %v4608 = vpack.c.b16 %v4056, %v4044
        %v4609 = vpack.c.b16 %v4057, %v4045
        %v4610 = vpack.c.b16 %v4058, %v4046
        %v4611 = vpack.c.b16 %v4059, %v4047
        %v4612 = vpack.c.b16 %v4060, %v4048
        %v4613 = vpack.c.b16 %v4061, %v4049
        %v4614 = vpack.c.b16 %v4062, %v4050
        %v4615 = vpack.c.b16 %v4063, %v4051
        %v4616 = vpack.c.b16 %v4064, %v4052
        %v4617 = vpack.c.b16 %v4065, %v4053
        %v4618 = vpack.c.b16 %v4066, %v4054
        %v4619 = vpack.c.b16 %v4079, %v4067
        %v4620 = vpack.c.b16 %v4080, %v4068
        %v4621 = vpack.c.b16 %v4081, %v4069
        %v4622 = vpack.c.b16 %v4082, %v4070
        %v4623 = vpack.c.b16 %v4083, %v4071
        %v4624 = vpack.c.b16 %v4084, %v4072
        %v4625 = vpack.c.b16 %v4085, %v4073
        %v4626 = vpack.c.b16 %v4086, %v4074
        %v4627 = vpack.c.b16 %v4087, %v4075
        %v4628 = vpack.c.b16 %v4088, %v4076
        %v4629 = vpack.c.b16 %v4089, %v4077
        %v4630 = vpack.c.b16 %v4090, %v4078
        %v4631 = vpack.c.b16 %v4103, %v4091
        %v4632 = vpack.c.b16 %v4104, %v4092
        %v4633 = vpack.c.b16 %v4105, %v4093
        %v4634 = vpack.c.b16 %v4106, %v4094
        %v4635 = vpack.c.b16 %v4107, %v4095
        %v4636 = vpack.c.b16 %v4108, %v4096
        %v4637 = vpack.c.b16 %v4109, %v4097
        %v4638 = vpack.c.b16 %v4110, %v4098
        %v4639 = vpack.c.b16 %v4111, %v4099
        %v4640 = vpack.c.b16 %v4112, %v4100
        %v4641 = vpack.c.b16 %v4113, %v4101
        %v4642 = vpack.c.b16 %v4114, %v4102
        %v4643 = vpack.c.b16 %v4127, %v4115
        %v4644 = vpack.c.b16 %v4128, %v4116
        %v4645 = vpack.c.b16 %v4129, %v4117
        %v4646 = vpack.c.b16 %v4130, %v4118
        %v4647 = vpack.c.b16 %v4131, %v4119
        %v4648 = vpack.c.b16 %v4132, %v4120
        %v4649 = vpack.c.b16 %v4133, %v4121
        %v4650 = vpack.c.b16 %v4134, %v4122
        %v4651 = vpack.c.b16 %v4135, %v4123
        %v4652 = vpack.c.b16 %v4136, %v4124
        %v4653 = vpack.c.b16 %v4137, %v4125
        %v4654 = vpack.c.b16 %v4138, %v4126
        %v4655 = vpack.c.b16 %v4151, %v4139
        %v4656 = vpack.c.b16 %v4152, %v4140
        %v4657 = vpack.c.b16 %v4153, %v4141
        %v4658 = vpack.c.b16 %v4154, %v4142
        %v4659 = vpack.c.b16 %v4155, %v4143
        %v4660 = vpack.c.b16 %v4156, %v4144
        %v4661 = vpack.c.b16 %v4157, %v4145
        %v4662 = vpack.c.b16 %v4158, %v4146
        %v4663 = vpack.c.b16 %v4159, %v4147
        %v4664 = vpack.c.b16 %v4160, %v4148
        %v4665 = vpack.c.b16 %v4161, %v4149
        %v4666 = vpack.c.b16 %v4162, %v4150
        %v4667 = vpack.c.b16 %v4175, %v4163
        %v4668 = vpack.c.b16 %v4176, %v4164
        %v4669 = vpack.c.b16 %v4177, %v4165
        %v4670 = vpack.c.b16 %v4178, %v4166
        %v4671 = vpack.c.b16 %v4179, %v4167
        %v4672 = vpack.c.b16 %v4180, %v4168
        %v4673 = vpack.c.b16 %v4181, %v4169
        %v4674 = vpack.c.b16 %v4182, %v4170
        %v4675 = vpack.c.b16 %v4183, %v4171
        %v4676 = vpack.c.b16 %v4184, %v4172
        %v4677 = vpack.c.b16 %v4185, %v4173
        %v4678 = vpack.c.b16 %v4186, %v4174
        %v4679 = vpack.c.b16 %v4199, %v4187
        %v4680 = vpack.c.b16 %v4200, %v4188
        %v4681 = vpack.c.b16 %v4201, %v4189
        %v4682 = vpack.c.b16 %v4202, %v4190
        %v4683 = vpack.c.b16 %v4203, %v4191
        %v4684 = vpack.c.b16 %v4204, %v4192
        %v4685 = vpack.c.b16 %v4205, %v4193
        %v4686 = vpack.c.b16 %v4206, %v4194
        %v4687 = vpack.c.b16 %v4207, %v4195
        %v4688 = vpack.c.b16 %v4208, %v4196
        %v4689 = vpack.c.b16 %v4209, %v4197
        %v4690 = vpack.c.b16 %v4210, %v4198
        %v4691 = vpack.c.b16 %v4223, %v4211
        %v4692 = vpack.c.b16 %v4224, %v4212
        %v4693 = vpack.c.b16 %v4225, %v4213
        %v4694 = vpack.c.b16 %v4226, %v4214
        %v4695 = vpack.c.b16 %v4227, %v4215
        %v4696 = vpack.c.b16 %v4228, %v4216
        %v4697 = vpack.c.b16 %v4229, %v4217
        %v4698 = vpack.c.b16 %v4230, %v4218
        %v4699 = vpack.c.b16 %v4231, %v4219
        %v4700 = vpack.c.b16 %v4232, %v4220
        %v4701 = vpack.c.b16 %v4233, %v4221
        %v4702 = vpack.c.b16 %v4234, %v4222
        %v4703 = vpack.c.b16 %v4247, %v4235
        %v4704 = vpack.c.b16 %v4248, %v4236
        %v4705 = vpack.c.b16 %v4249, %v4237
        %v4706 = vpack.c.b16 %v4250, %v4238
        %v4707 = vpack.c.b16 %v4251, %v4239
        %v4708 = vpack.c.b16 %v4252, %v4240
        %v4709 = vpack.c.b16 %v4253, %v4241
        %v4710 = vpack.c.b16 %v4254, %v4242
        %v4711 = vpack.c.b16 %v4255, %v4243
        %v4712 = vpack.c.b16 %v4256, %v4244
        %v4713 = vpack.c.b16 %v4257, %v4245
        %v4714 = vpack.c.b16 %v4258, %v4246
        %v4715 = vpack.c.b16 %v4271, %v4259
        %v4716 = vpack.c.b16 %v4272, %v4260
        %v4717 = vpack.c.b16 %v4273, %v4261
        %v4718 = vpack.c.b16 %v4274, %v4262
        %v4719 = vpack.c.b16 %v4275, %v4263
        %v4720 = vpack.c.b16 %v4276, %v4264
        %v4721 = vpack.c.b16 %v4277, %v4265
        %v4722 = vpack.c.b16 %v4278, %v4266
        %v4723 = vpack.c.b16 %v4279, %v4267
        %v4724 = vpack.c.b16 %v4280, %v4268
        %v4725 = vpack.c.b16 %v4281, %v4269
        %v4726 = vpack.c.b16 %v4282, %v4270
        %v4727 = vpack.c.b16 %v4295, %v4283
        %v4728 = vpack.c.b16 %v4296, %v4284
        %v4729 = vpack.c.b16 %v4297, %v4285
        %v4730 = vpack.c.b16 %v4298, %v4286
        %v4731 = vpack.c.b16 %v4299, %v4287
        %v4732 = vpack.c.b16 %v4300, %v4288
        %v4733 = vpack.c.b16 %v4301, %v4289
        %v4734 = vpack.c.b16 %v4302, %v4290
        %v4735 = vpack.c.b16 %v4303, %v4291
        %v4736 = vpack.c.b16 %v4304, %v4292
        %v4737 = vpack.c.b16 %v4305, %v4293
        %v4738 = vpack.c.b16 %v4306, %v4294
        %v4739 = vpack.c.b16 %v4319, %v4307
        %v4740 = vpack.c.b16 %v4320, %v4308
        %v4741 = vpack.c.b16 %v4321, %v4309
        %v4742 = vpack.c.b16 %v4322, %v4310
        %v4743 = vpack.c.b16 %v4323, %v4311
        %v4744 = vpack.c.b16 %v4324, %v4312
        %v4745 = vpack.c.b16 %v4325, %v4313
        %v4746 = vpack.c.b16 %v4326, %v4314
        %v4747 = vpack.c.b16 %v4327, %v4315
        %v4748 = vpack.c.b16 %v4328, %v4316
        %v4749 = vpack.c.b16 %v4329, %v4317
        %v4750 = vpack.c.b16 %v4330, %v4318
        %v4751 = vpack.c.b16 %v4343, %v4331
        %v4752 = vpack.c.b16 %v4344, %v4332
        %v4753 = vpack.c.b16 %v4345, %v4333
        %v4754 = vpack.c.b16 %v4346, %v4334
        %v4755 = vpack.c.b16 %v4347, %v4335
        %v4756 = vpack.c.b16 %v4348, %v4336
        %v4757 = vpack.c.b16 %v4349, %v4337
        %v4758 = vpack.c.b16 %v4350, %v4338
        %v4759 = vpack.c.b16 %v4351, %v4339
        %v4760 = vpack.c.b16 %v4352, %v4340
        %v4761 = vpack.c.b16 %v4353, %v4341
        %v4762 = vpack.c.b16 %v4354, %v4342
        %v4763 = vpack.c.b16 %v4367, %v4355
        %v4764 = vpack.c.b16 %v4368, %v4356
        %v4765 = vpack.c.b16 %v4369, %v4357
        %v4766 = vpack.c.b16 %v4370, %v4358
        %v4767 = vpack.c.b16 %v4371, %v4359
        %v4768 = vpack.c.b16 %v4372, %v4360
        %v4769 = vpack.c.b16 %v4373, %v4361
        %v4770 = vpack.c.b16 %v4374, %v4362
        %v4771 = vpack.c.b16 %v4375, %v4363
        %v4772 = vpack.c.b16 %v4376, %v4364
        %v4773 = vpack.c.b16 %v4377, %v4365
        %v4774 = vpack.c.b16 %v4378, %v4366
        %v4775 = vpack.c.b16 %v4391, %v4379
        %v4776 = vpack.c.b16 %v4392, %v4380
        %v4777 = vpack.c.b16 %v4393, %v4381
        %v4778 = vpack.c.b16 %v4394, %v4382
        %v4779 = vpack.c.b16 %v4395, %v4383
        %v4780 = vpack.c.b16 %v4396, %v4384
        %v4781 = vpack.c.b16 %v4397, %v4385
        %v4782 = vpack.c.b16 %v4398, %v4386
        %v4783 = vpack.c.b16 %v4399, %v4387
        %v4784 = vpack.c.b16 %v4400, %v4388
        %v4785 = vpack.c.b16 %v4401, %v4389
        %v4786 = vpack.c.b16 %v4402, %v4390
        %v4787 = vpack.c.b16 %v4415, %v4403
        %v4788 = vpack.c.b16 %v4416, %v4404
        %v4789 = vpack.c.b16 %v4417, %v4405
        %v4790 = vpack.c.b16 %v4418, %v4406
        %v4791 = vpack.c.b16 %v4419, %v4407
        %v4792 = vpack.c.b16 %v4420, %v4408
        %v4793 = vpack.c.b16 %v4421, %v4409
        %v4794 = vpack.c.b16 %v4422, %v4410
        %v4795 = vpack.c.b16 %v4423, %v4411
        %v4796 = vpack.c.b16 %v4424, %v4412
        %v4797 = vpack.c.b16 %v4425, %v4413
        %v4798 = vpack.c.b16 %v4426, %v4414
        %v4799 = vpack.c.b16 %v4439, %v4427
        %v4800 = vpack.c.b16 %v4440, %v4428
        %v4801 = vpack.c.b16 %v4441, %v4429
        %v4802 = vpack.c.b16 %v4442, %v4430
        %v4803 = vpack.c.b16 %v4443, %v4431
        %v4804 = vpack.c.b16 %v4444, %v4432
        %v4805 = vpack.c.b16 %v4445, %v4433
        %v4806 = vpack.c.b16 %v4446, %v4434
        %v4807 = vpack.c.b16 %v4447, %v4435
        %v4808 = vpack.c.b16 %v4448, %v4436
        %v4809 = vpack.c.b16 %v4449, %v4437
        %v4810 = vpack.c.b16 %v4450, %v4438
        %v4811 = vpack.c.b16 %v4463, %v4451
        %v4812 = vpack.c.b16 %v4464, %v4452
        %v4813 = vpack.c.b16 %v4465, %v4453
        %v4814 = vpack.c.b16 %v4466, %v4454
        %v4815 = vpack.c.b16 %v4467, %v4455
        %v4816 = vpack.c.b16 %v4468, %v4456
        %v4817 = vpack.c.b16 %v4469, %v4457
        %v4818 = vpack.c.b16 %v4470, %v4458
        %v4819 = vpack.c.b16 %v4471, %v4459
        %v4820 = vpack.c.b16 %v4472, %v4460
        %v4821 = vpack.c.b16 %v4473, %v4461
        %v4822 = vpack.c.b16 %v4474, %v4462
        %v4823 = vpack.c.b16 %v4487, %v4475
        %v4824 = vpack.c.b16 %v4488, %v4476
        %v4825 = vpack.c.b16 %v4489, %v4477
        %v4826 = vpack.c.b16 %v4490, %v4478
        %v4827 = vpack.c.b16 %v4491, %v4479
        %v4828 = vpack.c.b16 %v4492, %v4480
        %v4829 = vpack.c.b16 %v4493, %v4481
        %v4830 = vpack.c.b16 %v4494, %v4482
        %v4831 = vpack.c.b16 %v4495, %v4483
        %v4832 = vpack.c.b16 %v4496, %v4484
        %v4833 = vpack.c.b16 %v4497, %v4485
        %v4834 = vpack.c.b16 %v4498, %v4486
        %v4835 = vpack.c.b16 %v4511, %v4499
        %v4836 = vpack.c.b16 %v4512, %v4500
        %v4837 = vpack.c.b16 %v4513, %v4501
        %v4838 = vpack.c.b16 %v4514, %v4502
        %v4839 = vpack.c.b16 %v4515, %v4503
        %v4840 = vpack.c.b16 %v4516, %v4504
        %v4841 = vpack.c.b16 %v4517, %v4505
        %v4842 = vpack.c.b16 %v4518, %v4506
        %v4843 = vpack.c.b16 %v4519, %v4507
        %v4844 = vpack.c.b16 %v4520, %v4508
        %v4845 = vpack.c.b16 %v4521, %v4509
        %v4846 = vpack.c.b16 %v4522, %v4510
        %v4847 = vpack.c.b16 %v4535, %v4523
        %v4848 = vpack.c.b16 %v4536, %v4524
        %v4849 = vpack.c.b16 %v4537, %v4525
        %v4850 = vpack.c.b16 %v4538, %v4526
        %v4851 = vpack.c.b16 %v4539, %v4527
        %v4852 = vpack.c.b16 %v4540, %v4528
        %v4853 = vpack.c.b16 %v4541, %v4529
        %v4854 = vpack.c.b16 %v4542, %v4530
        %v4855 = vpack.c.b16 %v4543, %v4531
        %v4856 = vpack.c.b16 %v4544, %v4532
        %v4857 = vpack.c.b16 %v4545, %v4533
        %v4858 = vpack.c.b16 %v4546, %v4534
        %v4859 = vpack.c.b16 %v4559, %v4547
        %v4860 = vpack.c.b16 %v4560, %v4548
        %v4861 = vpack.c.b16 %v4561, %v4549
        %v4862 = vpack.c.b16 %v4562, %v4550
        %v4863 = vpack.c.b16 %v4563, %v4551
        %v4864 = vpack.c.b16 %v4564, %v4552
        %v4865 = vpack.c.b16 %v4565, %v4553
        %v4866 = vpack.c.b16 %v4566, %v4554
        %v4867 = vpack.c.b16 %v4567, %v4555
        %v4868 = vpack.c.b16 %v4568, %v4556
        %v4869 = vpack.c.b16 %v4569, %v4557
        %v4870 = vpack.c.b16 %v4570, %v4558
        %v4871 = vpack.c.b16 %v4583, %v4571
        %v4872 = vpack.c.b16 %v4584, %v4572
        %v4873 = vpack.c.b16 %v4585, %v4573
        %v4874 = vpack.c.b16 %v4586, %v4574
        %v4875 = vpack.c.b16 %v4587, %v4575
        %v4876 = vpack.c.b16 %v4588, %v4576
        %v4877 = vpack.c.b16 %v4589, %v4577
        %v4878 = vpack.c.b16 %v4590, %v4578
        %v4879 = vpack.c.b16 %v4591, %v4579
        %v4880 = vpack.c.b16 %v4592, %v4580
        %v4881 = vpack.c.b16 %v4593, %v4581
        %v4882 = vpack.c.b16 %v4594, %v4582
        %5171 = vmatpush.bf16.msra.mxu0 %v4679
        %5172 = vmatpush.bf16.msra.mxu0 %v4667
        %5173 = vmatpush.bf16.msra.mxu0 %v4655
        %5174 = vmatpush.bf16.msra.mxu0 %v4643
        %5175 = vmatpush.bf16.msra.mxu0 %v4631
        %5176 = vmatpush.bf16.msra.mxu0 %v4619
        %5177 = vmatpush.bf16.msra.mxu0 %v4607
        %5178 = vmatpush.bf16.msra.mxu0 %v4595
        %5179 = vmatmul.bf16.gmra.mxu0 %v3412
        %v5180 = vpop.f32.mrf.mxu0
        %v5181 = vadd.f32 %v3707, %v5180
        %v5182 = vpop.f32.mrf.mxu0
        %5183 = vdwg.mxu0
        %5184 = vmatpush.bf16.msra.mxu0 %v4775
        %5185 = vmatpush.bf16.msra.mxu0 %v4763
        %5186 = vmatpush.bf16.msra.mxu0 %v4751
        %5187 = vmatpush.bf16.msra.mxu0 %v4739
        %5188 = vmatpush.bf16.msra.mxu0 %v4727
        %5189 = vmatpush.bf16.msra.mxu0 %v4715
        %5190 = vmatpush.bf16.msra.mxu0 %v4703
        %5191 = vmatpush.bf16.msra.mxu0 %v4691
        %5192 = vmatmul.bf16.gmra.mxu0 %v3413
        %v5193 = vpop.f32.mrf.mxu0
        %v5194 = vadd.f32 %v5181, %v5193
        %v5195 = vpop.f32.mrf.mxu0
        %5196 = vdwg.mxu0
        %5197 = vmatpush.bf16.msra.mxu0 %v4871
        %5198 = vmatpush.bf16.msra.mxu0 %v4859
        %5199 = vmatpush.bf16.msra.mxu0 %v4847
        %5200 = vmatpush.bf16.msra.mxu0 %v4835
        %5201 = vmatpush.bf16.msra.mxu0 %v4823
        %5202 = vmatpush.bf16.msra.mxu0 %v4811
        %5203 = vmatpush.bf16.msra.mxu0 %v4799
        %5204 = vmatpush.bf16.msra.mxu0 %v4787
        %5205 = vmatmul.bf16.gmra.mxu0 %v3414
        %v5206 = vpop.f32.mrf.mxu0
        %v5207 = vadd.f32 %v5194, %v5206
        %v5208 = vpop.f32.mrf.mxu0
        %5209 = vdwg.mxu0
        %5210 = vmatpush.bf16.msra.mxu0 %v4680
        %5211 = vmatpush.bf16.msra.mxu0 %v4668
        %5212 = vmatpush.bf16.msra.mxu0 %v4656
        %5213 = vmatpush.bf16.msra.mxu0 %v4644
        %5214 = vmatpush.bf16.msra.mxu0 %v4632
        %5215 = vmatpush.bf16.msra.mxu0 %v4620
        %5216 = vmatpush.bf16.msra.mxu0 %v4608
        %5217 = vmatpush.bf16.msra.mxu0 %v4596
        %5218 = vmatmul.bf16.gmra.mxu0 %v3412
        %v5219 = vpop.f32.mrf.mxu0
        %v5220 = vadd.f32 %v3708, %v5219
        %v5221 = vpop.f32.mrf.mxu0
        %5222 = vdwg.mxu0
        %5223 = vmatpush.bf16.msra.mxu0 %v4776
        %5224 = vmatpush.bf16.msra.mxu0 %v4764
        %5225 = vmatpush.bf16.msra.mxu0 %v4752
        %5226 = vmatpush.bf16.msra.mxu0 %v4740
        %5227 = vmatpush.bf16.msra.mxu0 %v4728
        %5228 = vmatpush.bf16.msra.mxu0 %v4716
        %5229 = vmatpush.bf16.msra.mxu0 %v4704
        %5230 = vmatpush.bf16.msra.mxu0 %v4692
        %5231 = vmatmul.bf16.gmra.mxu0 %v3413
        %v5232 = vpop.f32.mrf.mxu0
        %v5233 = vadd.f32 %v5220, %v5232
        %v5234 = vpop.f32.mrf.mxu0
        %5235 = vdwg.mxu0
        %5236 = vmatpush.bf16.msra.mxu0 %v4872
        %5237 = vmatpush.bf16.msra.mxu0 %v4860
        %5238 = vmatpush.bf16.msra.mxu0 %v4848
        %5239 = vmatpush.bf16.msra.mxu0 %v4836
        %5240 = vmatpush.bf16.msra.mxu0 %v4824
        %5241 = vmatpush.bf16.msra.mxu0 %v4812
        %5242 = vmatpush.bf16.msra.mxu0 %v4800
        %5243 = vmatpush.bf16.msra.mxu0 %v4788
        %5244 = vmatmul.bf16.gmra.mxu0 %v3414
        %v5245 = vpop.f32.mrf.mxu0
        %v5246 = vadd.f32 %v5233, %v5245
        %v5247 = vpop.f32.mrf.mxu0
        %5248 = vdwg.mxu0
        %5249 = vmatpush.bf16.msra.mxu0 %v4681
        %5250 = vmatpush.bf16.msra.mxu0 %v4669
        %5251 = vmatpush.bf16.msra.mxu0 %v4657
        %5252 = vmatpush.bf16.msra.mxu0 %v4645
        %5253 = vmatpush.bf16.msra.mxu0 %v4633
        %5254 = vmatpush.bf16.msra.mxu0 %v4621
        %5255 = vmatpush.bf16.msra.mxu0 %v4609
        %5256 = vmatpush.bf16.msra.mxu0 %v4597
        %5257 = vmatmul.bf16.gmra.mxu0 %v3412
        %v5258 = vpop.f32.mrf.mxu0
        %v5259 = vadd.f32 %v3709, %v5258
        %v5260 = vpop.f32.mrf.mxu0
        %5261 = vdwg.mxu0
        %5262 = vmatpush.bf16.msra.mxu0 %v4777
        %5263 = vmatpush.bf16.msra.mxu0 %v4765
        %5264 = vmatpush.bf16.msra.mxu0 %v4753
        %5265 = vmatpush.bf16.msra.mxu0 %v4741
        %5266 = vmatpush.bf16.msra.mxu0 %v4729
        %5267 = vmatpush.bf16.msra.mxu0 %v4717
        %5268 = vmatpush.bf16.msra.mxu0 %v4705
        %5269 = vmatpush.bf16.msra.mxu0 %v4693
        %5270 = vmatmul.bf16.gmra.mxu0 %v3413
        %v5271 = vpop.f32.mrf.mxu0
        %v5272 = vadd.f32 %v5259, %v5271
        %v5273 = vpop.f32.mrf.mxu0
        %5274 = vdwg.mxu0
        %5275 = vmatpush.bf16.msra.mxu0 %v4873
        %5276 = vmatpush.bf16.msra.mxu0 %v4861
        %5277 = vmatpush.bf16.msra.mxu0 %v4849
        %5278 = vmatpush.bf16.msra.mxu0 %v4837
        %5279 = vmatpush.bf16.msra.mxu0 %v4825
        %5280 = vmatpush.bf16.msra.mxu0 %v4813
        %5281 = vmatpush.bf16.msra.mxu0 %v4801
        %5282 = vmatpush.bf16.msra.mxu0 %v4789
        %5283 = vmatmul.bf16.gmra.mxu0 %v3414
        %v5284 = vpop.f32.mrf.mxu0
        %v5285 = vadd.f32 %v5272, %v5284
        %v5286 = vpop.f32.mrf.mxu0
        %5287 = vdwg.mxu0
        %5288 = vmatpush.bf16.msra.mxu0 %v4682
        %5289 = vmatpush.bf16.msra.mxu0 %v4670
        %5290 = vmatpush.bf16.msra.mxu0 %v4658
        %5291 = vmatpush.bf16.msra.mxu0 %v4646
        %5292 = vmatpush.bf16.msra.mxu0 %v4634
        %5293 = vmatpush.bf16.msra.mxu0 %v4622
        %5294 = vmatpush.bf16.msra.mxu0 %v4610
        %5295 = vmatpush.bf16.msra.mxu0 %v4598
        %5296 = vmatmul.bf16.gmra.mxu0 %v3412
        %v5297 = vpop.f32.mrf.mxu0
        %v5298 = vadd.f32 %v3710, %v5297
        %v5299 = vpop.f32.mrf.mxu0
        %5300 = vdwg.mxu0
        %5301 = vmatpush.bf16.msra.mxu0 %v4778
        %5302 = vmatpush.bf16.msra.mxu0 %v4766
        %5303 = vmatpush.bf16.msra.mxu0 %v4754
        %5304 = vmatpush.bf16.msra.mxu0 %v4742
        %5305 = vmatpush.bf16.msra.mxu0 %v4730
        %5306 = vmatpush.bf16.msra.mxu0 %v4718
        %5307 = vmatpush.bf16.msra.mxu0 %v4706
        %5308 = vmatpush.bf16.msra.mxu0 %v4694
        %5309 = vmatmul.bf16.gmra.mxu0 %v3413
        %v5310 = vpop.f32.mrf.mxu0
        %v5311 = vadd.f32 %v5298, %v5310
        %v5312 = vpop.f32.mrf.mxu0
        %5313 = vdwg.mxu0
        %5314 = vmatpush.bf16.msra.mxu0 %v4874
        %5315 = vmatpush.bf16.msra.mxu0 %v4862
        %5316 = vmatpush.bf16.msra.mxu0 %v4850
        %5317 = vmatpush.bf16.msra.mxu0 %v4838
        %5318 = vmatpush.bf16.msra.mxu0 %v4826
        %5319 = vmatpush.bf16.msra.mxu0 %v4814
        %5320 = vmatpush.bf16.msra.mxu0 %v4802
        %5321 = vmatpush.bf16.msra.mxu0 %v4790
        %5322 = vmatmul.bf16.gmra.mxu0 %v3414
        %v5323 = vpop.f32.mrf.mxu0
        %v5324 = vadd.f32 %v5311, %v5323
        %v5325 = vpop.f32.mrf.mxu0
        %5326 = vdwg.mxu0
        %5327 = vmatpush.bf16.msra.mxu0 %v4683
        %5328 = vmatpush.bf16.msra.mxu0 %v4671
        %5329 = vmatpush.bf16.msra.mxu0 %v4659
        %5330 = vmatpush.bf16.msra.mxu0 %v4647
        %5331 = vmatpush.bf16.msra.mxu0 %v4635
        %5332 = vmatpush.bf16.msra.mxu0 %v4623
        %5333 = vmatpush.bf16.msra.mxu0 %v4611
        %5334 = vmatpush.bf16.msra.mxu0 %v4599
        %5335 = vmatmul.bf16.gmra.mxu0 %v3412
        %v5336 = vpop.f32.mrf.mxu0
        %v5337 = vadd.f32 %v3711, %v5336
        %v5338 = vpop.f32.mrf.mxu0
        %5339 = vdwg.mxu0
        %5340 = vmatpush.bf16.msra.mxu0 %v4779
        %5341 = vmatpush.bf16.msra.mxu0 %v4767
        %5342 = vmatpush.bf16.msra.mxu0 %v4755
        %5343 = vmatpush.bf16.msra.mxu0 %v4743
        %5344 = vmatpush.bf16.msra.mxu0 %v4731
        %5345 = vmatpush.bf16.msra.mxu0 %v4719
        %5346 = vmatpush.bf16.msra.mxu0 %v4707
        %5347 = vmatpush.bf16.msra.mxu0 %v4695
        %5348 = vmatmul.bf16.gmra.mxu0 %v3413
        %v5349 = vpop.f32.mrf.mxu0
        %v5350 = vadd.f32 %v5337, %v5349
        %v5351 = vpop.f32.mrf.mxu0
        %5352 = vdwg.mxu0
        %5353 = vmatpush.bf16.msra.mxu0 %v4875
        %5354 = vmatpush.bf16.msra.mxu0 %v4863
        %5355 = vmatpush.bf16.msra.mxu0 %v4851
        %5356 = vmatpush.bf16.msra.mxu0 %v4839
        %5357 = vmatpush.bf16.msra.mxu0 %v4827
        %5358 = vmatpush.bf16.msra.mxu0 %v4815
        %5359 = vmatpush.bf16.msra.mxu0 %v4803
        %5360 = vmatpush.bf16.msra.mxu0 %v4791
        %5361 = vmatmul.bf16.gmra.mxu0 %v3414
        %v5362 = vpop.f32.mrf.mxu0
        %v5363 = vadd.f32 %v5350, %v5362
        %v5364 = vpop.f32.mrf.mxu0
        %5365 = vdwg.mxu0
        %5366 = vmatpush.bf16.msra.mxu0 %v4684
        %5367 = vmatpush.bf16.msra.mxu0 %v4672
        %5368 = vmatpush.bf16.msra.mxu0 %v4660
        %5369 = vmatpush.bf16.msra.mxu0 %v4648
        %5370 = vmatpush.bf16.msra.mxu0 %v4636
        %5371 = vmatpush.bf16.msra.mxu0 %v4624
        %5372 = vmatpush.bf16.msra.mxu0 %v4612
        %5373 = vmatpush.bf16.msra.mxu0 %v4600
        %5374 = vmatmul.bf16.gmra.mxu0 %v3412
        %v5375 = vpop.f32.mrf.mxu0
        %v5376 = vadd.f32 %v3712, %v5375
        %v5377 = vpop.f32.mrf.mxu0
        %5378 = vdwg.mxu0
        %5379 = vmatpush.bf16.msra.mxu0 %v4780
        %5380 = vmatpush.bf16.msra.mxu0 %v4768
        %5381 = vmatpush.bf16.msra.mxu0 %v4756
        %5382 = vmatpush.bf16.msra.mxu0 %v4744
        %5383 = vmatpush.bf16.msra.mxu0 %v4732
        %5384 = vmatpush.bf16.msra.mxu0 %v4720
        %5385 = vmatpush.bf16.msra.mxu0 %v4708
        %5386 = vmatpush.bf16.msra.mxu0 %v4696
        %5387 = vmatmul.bf16.gmra.mxu0 %v3413
        %v5388 = vpop.f32.mrf.mxu0
        %v5389 = vadd.f32 %v5376, %v5388
        %v5390 = vpop.f32.mrf.mxu0
        %5391 = vdwg.mxu0
        %5392 = vmatpush.bf16.msra.mxu0 %v4876
        %5393 = vmatpush.bf16.msra.mxu0 %v4864
        %5394 = vmatpush.bf16.msra.mxu0 %v4852
        %5395 = vmatpush.bf16.msra.mxu0 %v4840
        %5396 = vmatpush.bf16.msra.mxu0 %v4828
        %5397 = vmatpush.bf16.msra.mxu0 %v4816
        %5398 = vmatpush.bf16.msra.mxu0 %v4804
        %5399 = vmatpush.bf16.msra.mxu0 %v4792
        %5400 = vmatmul.bf16.gmra.mxu0 %v3414
        %v5401 = vpop.f32.mrf.mxu0
        %v5402 = vadd.f32 %v5389, %v5401
        %v5403 = vpop.f32.mrf.mxu0
        %5404 = vdwg.mxu0
        %5405 = vmatpush.bf16.msra.mxu0 %v4685
        %5406 = vmatpush.bf16.msra.mxu0 %v4673
        %5407 = vmatpush.bf16.msra.mxu0 %v4661
        %5408 = vmatpush.bf16.msra.mxu0 %v4649
        %5409 = vmatpush.bf16.msra.mxu0 %v4637
        %5410 = vmatpush.bf16.msra.mxu0 %v4625
        %5411 = vmatpush.bf16.msra.mxu0 %v4613
        %5412 = vmatpush.bf16.msra.mxu0 %v4601
        %5413 = vmatmul.bf16.gmra.mxu0 %v3412
        %v5414 = vpop.f32.mrf.mxu0
        %v5415 = vadd.f32 %v3713, %v5414
        %v5416 = vpop.f32.mrf.mxu0
        %5417 = vdwg.mxu0
        %5418 = vmatpush.bf16.msra.mxu0 %v4781
        %5419 = vmatpush.bf16.msra.mxu0 %v4769
        %5420 = vmatpush.bf16.msra.mxu0 %v4757
        %5421 = vmatpush.bf16.msra.mxu0 %v4745
        %5422 = vmatpush.bf16.msra.mxu0 %v4733
        %5423 = vmatpush.bf16.msra.mxu0 %v4721
        %5424 = vmatpush.bf16.msra.mxu0 %v4709
        %5425 = vmatpush.bf16.msra.mxu0 %v4697
        %5426 = vmatmul.bf16.gmra.mxu0 %v3413
        %v5427 = vpop.f32.mrf.mxu0
        %v5428 = vadd.f32 %v5415, %v5427
        %v5429 = vpop.f32.mrf.mxu0
        %5430 = vdwg.mxu0
        %5431 = vmatpush.bf16.msra.mxu0 %v4877
        %5432 = vmatpush.bf16.msra.mxu0 %v4865
        %5433 = vmatpush.bf16.msra.mxu0 %v4853
        %5434 = vmatpush.bf16.msra.mxu0 %v4841
        %5435 = vmatpush.bf16.msra.mxu0 %v4829
        %5436 = vmatpush.bf16.msra.mxu0 %v4817
        %5437 = vmatpush.bf16.msra.mxu0 %v4805
        %5438 = vmatpush.bf16.msra.mxu0 %v4793
        %5439 = vmatmul.bf16.gmra.mxu0 %v3414
        %v5440 = vpop.f32.mrf.mxu0
        %v5441 = vadd.f32 %v5428, %v5440
        %v5442 = vpop.f32.mrf.mxu0
        %5443 = vdwg.mxu0
        %5444 = vmatpush.bf16.msra.mxu0 %v4686
        %5445 = vmatpush.bf16.msra.mxu0 %v4674
        %5446 = vmatpush.bf16.msra.mxu0 %v4662
        %5447 = vmatpush.bf16.msra.mxu0 %v4650
        %5448 = vmatpush.bf16.msra.mxu0 %v4638
        %5449 = vmatpush.bf16.msra.mxu0 %v4626
        %5450 = vmatpush.bf16.msra.mxu0 %v4614
        %5451 = vmatpush.bf16.msra.mxu0 %v4602
        %5452 = vmatmul.bf16.gmra.mxu0 %v3412
        %v5453 = vpop.f32.mrf.mxu0
        %v5454 = vadd.f32 %v3714, %v5453
        %v5455 = vpop.f32.mrf.mxu0
        %5456 = vdwg.mxu0
        %5457 = vmatpush.bf16.msra.mxu0 %v4782
        %5458 = vmatpush.bf16.msra.mxu0 %v4770
        %5459 = vmatpush.bf16.msra.mxu0 %v4758
        %5460 = vmatpush.bf16.msra.mxu0 %v4746
        %5461 = vmatpush.bf16.msra.mxu0 %v4734
        %5462 = vmatpush.bf16.msra.mxu0 %v4722
        %5463 = vmatpush.bf16.msra.mxu0 %v4710
        %5464 = vmatpush.bf16.msra.mxu0 %v4698
        %5465 = vmatmul.bf16.gmra.mxu0 %v3413
        %v5466 = vpop.f32.mrf.mxu0
        %v5467 = vadd.f32 %v5454, %v5466
        %v5468 = vpop.f32.mrf.mxu0
        %5469 = vdwg.mxu0
        %5470 = vmatpush.bf16.msra.mxu0 %v4878
        %5471 = vmatpush.bf16.msra.mxu0 %v4866
        %5472 = vmatpush.bf16.msra.mxu0 %v4854
        %5473 = vmatpush.bf16.msra.mxu0 %v4842
        %5474 = vmatpush.bf16.msra.mxu0 %v4830
        %5475 = vmatpush.bf16.msra.mxu0 %v4818
        %5476 = vmatpush.bf16.msra.mxu0 %v4806
        %5477 = vmatpush.bf16.msra.mxu0 %v4794
        %5478 = vmatmul.bf16.gmra.mxu0 %v3414
        %v5479 = vpop.f32.mrf.mxu0
        %v5480 = vadd.f32 %v5467, %v5479
        %v5481 = vpop.f32.mrf.mxu0
        %5482 = vdwg.mxu0
        %5483 = vmatpush.bf16.msra.mxu0 %v4687
        %5484 = vmatpush.bf16.msra.mxu0 %v4675
        %5485 = vmatpush.bf16.msra.mxu0 %v4663
        %5486 = vmatpush.bf16.msra.mxu0 %v4651
        %5487 = vmatpush.bf16.msra.mxu0 %v4639
        %5488 = vmatpush.bf16.msra.mxu0 %v4627
        %5489 = vmatpush.bf16.msra.mxu0 %v4615
        %5490 = vmatpush.bf16.msra.mxu0 %v4603
        %5491 = vmatmul.bf16.gmra.mxu0 %v3412
        %v5492 = vpop.f32.mrf.mxu0
        %v5493 = vadd.f32 %v3715, %v5492
        %v5494 = vpop.f32.mrf.mxu0
        %5495 = vdwg.mxu0
        %5496 = vmatpush.bf16.msra.mxu0 %v4783
        %5497 = vmatpush.bf16.msra.mxu0 %v4771
        %5498 = vmatpush.bf16.msra.mxu0 %v4759
        %5499 = vmatpush.bf16.msra.mxu0 %v4747
        %5500 = vmatpush.bf16.msra.mxu0 %v4735
        %5501 = vmatpush.bf16.msra.mxu0 %v4723
        %5502 = vmatpush.bf16.msra.mxu0 %v4711
        %5503 = vmatpush.bf16.msra.mxu0 %v4699
        %5504 = vmatmul.bf16.gmra.mxu0 %v3413
        %v5505 = vpop.f32.mrf.mxu0
        %v5506 = vadd.f32 %v5493, %v5505
        %v5507 = vpop.f32.mrf.mxu0
        %5508 = vdwg.mxu0
        %5509 = vmatpush.bf16.msra.mxu0 %v4879
        %5510 = vmatpush.bf16.msra.mxu0 %v4867
        %5511 = vmatpush.bf16.msra.mxu0 %v4855
        %5512 = vmatpush.bf16.msra.mxu0 %v4843
        %5513 = vmatpush.bf16.msra.mxu0 %v4831
        %5514 = vmatpush.bf16.msra.mxu0 %v4819
        %5515 = vmatpush.bf16.msra.mxu0 %v4807
        %5516 = vmatpush.bf16.msra.mxu0 %v4795
        %5517 = vmatmul.bf16.gmra.mxu0 %v3414
        %v5518 = vpop.f32.mrf.mxu0
        %v5519 = vadd.f32 %v5506, %v5518
        %v5520 = vpop.f32.mrf.mxu0
        %5521 = vdwg.mxu0
        %5522 = vmatpush.bf16.msra.mxu0 %v4688
        %5523 = vmatpush.bf16.msra.mxu0 %v4676
        %5524 = vmatpush.bf16.msra.mxu0 %v4664
        %5525 = vmatpush.bf16.msra.mxu0 %v4652
        %5526 = vmatpush.bf16.msra.mxu0 %v4640
        %5527 = vmatpush.bf16.msra.mxu0 %v4628
        %5528 = vmatpush.bf16.msra.mxu0 %v4616
        %5529 = vmatpush.bf16.msra.mxu0 %v4604
        %5530 = vmatmul.bf16.gmra.mxu0 %v3412
        %v5531 = vpop.f32.mrf.mxu0
        %v5532 = vadd.f32 %v3716, %v5531
        %v5533 = vpop.f32.mrf.mxu0
        %5534 = vdwg.mxu0
        %5535 = vmatpush.bf16.msra.mxu0 %v4784
        %5536 = vmatpush.bf16.msra.mxu0 %v4772
        %5537 = vmatpush.bf16.msra.mxu0 %v4760
        %5538 = vmatpush.bf16.msra.mxu0 %v4748
        %5539 = vmatpush.bf16.msra.mxu0 %v4736
        %5540 = vmatpush.bf16.msra.mxu0 %v4724
        %5541 = vmatpush.bf16.msra.mxu0 %v4712
        %5542 = vmatpush.bf16.msra.mxu0 %v4700
        %5543 = vmatmul.bf16.gmra.mxu0 %v3413
        %v5544 = vpop.f32.mrf.mxu0
        %v5545 = vadd.f32 %v5532, %v5544
        %v5546 = vpop.f32.mrf.mxu0
        %5547 = vdwg.mxu0
        %5548 = vmatpush.bf16.msra.mxu0 %v4880
        %5549 = vmatpush.bf16.msra.mxu0 %v4868
        %5550 = vmatpush.bf16.msra.mxu0 %v4856
        %5551 = vmatpush.bf16.msra.mxu0 %v4844
        %5552 = vmatpush.bf16.msra.mxu0 %v4832
        %5553 = vmatpush.bf16.msra.mxu0 %v4820
        %5554 = vmatpush.bf16.msra.mxu0 %v4808
        %5555 = vmatpush.bf16.msra.mxu0 %v4796
        %5556 = vmatmul.bf16.gmra.mxu0 %v3414
        %v5557 = vpop.f32.mrf.mxu0
        %v5558 = vadd.f32 %v5545, %v5557
        %v5559 = vpop.f32.mrf.mxu0
        %5560 = vdwg.mxu0
        %5561 = vmatpush.bf16.msra.mxu0 %v4689
        %5562 = vmatpush.bf16.msra.mxu0 %v4677
        %5563 = vmatpush.bf16.msra.mxu0 %v4665
        %5564 = vmatpush.bf16.msra.mxu0 %v4653
        %5565 = vmatpush.bf16.msra.mxu0 %v4641
        %5566 = vmatpush.bf16.msra.mxu0 %v4629
        %5567 = vmatpush.bf16.msra.mxu0 %v4617
        %5568 = vmatpush.bf16.msra.mxu0 %v4605
        %5569 = vmatmul.bf16.gmra.mxu0 %v3412
        %v5570 = vpop.f32.mrf.mxu0
        %v5571 = vadd.f32 %v3717, %v5570
        %v5572 = vpop.f32.mrf.mxu0
        %5573 = vdwg.mxu0
        %5574 = vmatpush.bf16.msra.mxu0 %v4785
        %5575 = vmatpush.bf16.msra.mxu0 %v4773
        %5576 = vmatpush.bf16.msra.mxu0 %v4761
        %5577 = vmatpush.bf16.msra.mxu0 %v4749
        %5578 = vmatpush.bf16.msra.mxu0 %v4737
        %5579 = vmatpush.bf16.msra.mxu0 %v4725
        %5580 = vmatpush.bf16.msra.mxu0 %v4713
        %5581 = vmatpush.bf16.msra.mxu0 %v4701
        %5582 = vmatmul.bf16.gmra.mxu0 %v3413
        %v5583 = vpop.f32.mrf.mxu0
        %v5584 = vadd.f32 %v5571, %v5583
        %v5585 = vpop.f32.mrf.mxu0
        %5586 = vdwg.mxu0
        %5587 = vmatpush.bf16.msra.mxu0 %v4881
        %5588 = vmatpush.bf16.msra.mxu0 %v4869
        %5589 = vmatpush.bf16.msra.mxu0 %v4857
        %5590 = vmatpush.bf16.msra.mxu0 %v4845
        %5591 = vmatpush.bf16.msra.mxu0 %v4833
        %5592 = vmatpush.bf16.msra.mxu0 %v4821
        %5593 = vmatpush.bf16.msra.mxu0 %v4809
        %5594 = vmatpush.bf16.msra.mxu0 %v4797
        %5595 = vmatmul.bf16.gmra.mxu0 %v3414
        %v5596 = vpop.f32.mrf.mxu0
        %v5597 = vadd.f32 %v5584, %v5596
        %v5598 = vpop.f32.mrf.mxu0
        %5599 = vdwg.mxu0
        %5600 = vmatpush.bf16.msra.mxu0 %v4690
        %5601 = vmatpush.bf16.msra.mxu0 %v4678
        %5602 = vmatpush.bf16.msra.mxu0 %v4666
        %5603 = vmatpush.bf16.msra.mxu0 %v4654
        %5604 = vmatpush.bf16.msra.mxu0 %v4642
        %5605 = vmatpush.bf16.msra.mxu0 %v4630
        %5606 = vmatpush.bf16.msra.mxu0 %v4618
        %5607 = vmatpush.bf16.msra.mxu0 %v4606
        %5608 = vmatmul.bf16.gmra.mxu0 %v3412
        %v5609 = vpop.f32.mrf.mxu0
        %v5610 = vadd.f32 %v3718, %v5609
        %v5611 = vpop.f32.mrf.mxu0
        %5612 = vdwg.mxu0
        %5613 = vmatpush.bf16.msra.mxu0 %v4786
        %5614 = vmatpush.bf16.msra.mxu0 %v4774
        %5615 = vmatpush.bf16.msra.mxu0 %v4762
        %5616 = vmatpush.bf16.msra.mxu0 %v4750
        %5617 = vmatpush.bf16.msra.mxu0 %v4738
        %5618 = vmatpush.bf16.msra.mxu0 %v4726
        %5619 = vmatpush.bf16.msra.mxu0 %v4714
        %5620 = vmatpush.bf16.msra.mxu0 %v4702
        %5621 = vmatmul.bf16.gmra.mxu0 %v3413
        %v5622 = vpop.f32.mrf.mxu0
        %v5623 = vadd.f32 %v5610, %v5622
        %v5624 = vpop.f32.mrf.mxu0
        %5625 = vdwg.mxu0
        %5626 = vmatpush.bf16.msra.mxu0 %v4882
        %5627 = vmatpush.bf16.msra.mxu0 %v4870
        %5628 = vmatpush.bf16.msra.mxu0 %v4858
        %5629 = vmatpush.bf16.msra.mxu0 %v4846
        %5630 = vmatpush.bf16.msra.mxu0 %v4834
        %5631 = vmatpush.bf16.msra.mxu0 %v4822
        %5632 = vmatpush.bf16.msra.mxu0 %v4810
        %5633 = vmatpush.bf16.msra.mxu0 %v4798
        %5634 = vmatmul.bf16.gmra.mxu0 %v3414
        %v5635 = vpop.f32.mrf.mxu0
        %v5636 = vadd.f32 %v5623, %v5635
        %v5637 = vpop.f32.mrf.mxu0
        %5638 = vdwg.mxu0
        %v5639 = vmax.f32 %v5207, 0.0
        %v5640 = vmax.f32 %v5246, 0.0
        %v5641 = vmax.f32 %v5285, 0.0
        %v5642 = vmax.f32 %v5324, 0.0
        %v5643 = vmax.f32 %v5363, 0.0
        %v5644 = vmax.f32 %v5402, 0.0
        %v5645 = vmax.f32 %v5441, 0.0
        %v5646 = vmax.f32 %v5480, 0.0
        %v5647 = vmax.f32 %v5519, 0.0
        %v5648 = vmax.f32 %v5558, 0.0
        %v5649 = vmax.f32 %v5597, 0.0
        %v5650 = vmax.f32 %v5636, 0.0
        %v5651 = vpack.c.bf16 %v5639, %v5639
        %v5652 = vpack.c.bf16 %v5640, %v5640
        %v5653 = vpack.c.bf16 %v5641, %v5641
        %v5654 = vpack.c.bf16 %v5642, %v5642
        %v5655 = vpack.c.bf16 %v5643, %v5643
        %v5656 = vpack.c.bf16 %v5644, %v5644
        %v5657 = vpack.c.bf16 %v5645, %v5645
        %v5658 = vpack.c.bf16 %v5646, %v5646
        %v5659 = vpack.c.bf16 %v5647, %v5647
        %v5660 = vpack.c.bf16 %v5648, %v5648
        %v5661 = vpack.c.bf16 %v5649, %v5649
        %v5662 = vpack.c.bf16 %v5650, %v5650
        %v5663 = vld [vmem:[#allocation14] sm:$0xff]
        %v5664 = vld [vmem:[#allocation14 + $0x8] sm:$0xf]
        %v5665 = vld [vmem:[#allocation14 + $0xc] sm:$0xff]
        %v5666 = vld [vmem:[#allocation14 + $0x14] sm:$0xf]
        %v5667 = vld [vmem:[#allocation14 + $0x18] sm:$0xff]
        %v5668 = vld [vmem:[#allocation14 + $0x20] sm:$0xf]
        %v5669 = vld [vmem:[#allocation14 + $0x24] sm:$0xff]
        %v5670 = vld [vmem:[#allocation14 + $0x2c] sm:$0xf]
        %v5671 = vld [vmem:[#allocation14 + $0x30] sm:$0xff]
        %v5672 = vld [vmem:[#allocation14 + $0x38] sm:$0xf]
        %v5673 = vld [vmem:[#allocation14 + $0x3c] sm:$0xff]
        %v5674 = vld [vmem:[#allocation14 + $0x44] sm:$0xf]
        %v5675 = vld [vmem:[#allocation14 + $0x48] sm:$0xff]
        %v5676 = vld [vmem:[#allocation14 + $0x50] sm:$0xf]
        %v5677 = vld [vmem:[#allocation14 + $0x54] sm:$0xff]
        %v5678 = vld [vmem:[#allocation14 + $0x5c] sm:$0xf]
        %v5679 = vld [vmem:[#allocation14 + $0x60] sm:$0xff]
        %v5680 = vld [vmem:[#allocation14 + $0x68] sm:$0xf]
        %v5681 = vld [vmem:[#allocation14 + $0x6c] sm:$0xff]
        %v5682 = vld [vmem:[#allocation14 + $0x74] sm:$0xf]
        %v5683 = vld [vmem:[#allocation14 + $0x78] sm:$0xff]
        %v5684 = vld [vmem:[#allocation14 + $0x80] sm:$0xf]
        %v5685 = vld [vmem:[#allocation14 + $0x84] sm:$0xff]
        %v5686 = vld [vmem:[#allocation14 + $0x8c] sm:$0xf]
        %v5687 = vld [vmem:[#allocation14 + $0x90] sm:$0xff]
        %v5688 = vld [vmem:[#allocation14 + $0x98] sm:$0xf]
        %v5689 = vld [vmem:[#allocation14 + $0x9c] sm:$0xff]
        %v5690 = vld [vmem:[#allocation14 + $0xa4] sm:$0xf]
        %v5691 = vld [vmem:[#allocation14 + $0xa8] sm:$0xff]
        %v5692 = vld [vmem:[#allocation14 + $0xb0] sm:$0xf]
        %v5693 = vld [vmem:[#allocation14 + $0xb4] sm:$0xff]
        %v5694 = vld [vmem:[#allocation14 + $0xbc] sm:$0xf]
        %v5695 = vld [vmem:[#allocation14 + $0xc0] sm:$0xff]
        %v5696 = vld [vmem:[#allocation14 + $0xc8] sm:$0xf]
        %v5697 = vld [vmem:[#allocation14 + $0xcc] sm:$0xff]
        %v5698 = vld [vmem:[#allocation14 + $0xd4] sm:$0xf]
        %v5699 = vld [vmem:[#allocation14 + $0xd8] sm:$0xff]
        %v5700 = vld [vmem:[#allocation14 + $0xe0] sm:$0xf]
        %v5701 = vld [vmem:[#allocation14 + $0xe4] sm:$0xff]
        %v5702 = vld [vmem:[#allocation14 + $0xec] sm:$0xf]
        %v5703 = vld [vmem:[#allocation14 + $0xf0] sm:$0xff]
        %v5704 = vld [vmem:[#allocation14 + $0xf8] sm:$0xf]
        %v5705 = vld [vmem:[#allocation14 + $0xfc] sm:$0xff]
        %v5706 = vld [vmem:[#allocation14 + $0x104] sm:$0xf]
        %v5707 = vld [vmem:[#allocation14 + $0x108] sm:$0xff]
        %v5708 = vld [vmem:[#allocation14 + $0x110] sm:$0xf]
        %v5709 = vld [vmem:[#allocation14 + $0x114] sm:$0xff]
        %v5710 = vld [vmem:[#allocation14 + $0x11c] sm:$0xf]
        %v5711 = vld [vmem:[#allocation14 + $0x120] sm:$0xff]
        %v5712 = vld [vmem:[#allocation14 + $0x128] sm:$0xf]
        %v5713 = vld [vmem:[#allocation14 + $0x12c] sm:$0xff]
        %v5714 = vld [vmem:[#allocation14 + $0x134] sm:$0xf]
        %v5715 = vld [vmem:[#allocation14 + $0x138] sm:$0xff]
        %v5716 = vld [vmem:[#allocation14 + $0x140] sm:$0xf]
        %v5717 = vld [vmem:[#allocation14 + $0x144] sm:$0xff]
        %v5718 = vld [vmem:[#allocation14 + $0x14c] sm:$0xf]
        %v5719 = vld [vmem:[#allocation14 + $0x150] sm:$0xff]
        %v5720 = vld [vmem:[#allocation14 + $0x158] sm:$0xf]
        %v5721 = vld [vmem:[#allocation14 + $0x15c] sm:$0xff]
        %v5722 = vld [vmem:[#allocation14 + $0x164] sm:$0xf]
        %v5723 = vld [vmem:[#allocation14 + $0x168] sm:$0xff]
        %v5724 = vld [vmem:[#allocation14 + $0x170] sm:$0xf]
        %v5725 = vld [vmem:[#allocation14 + $0x174] sm:$0xff]
        %v5726 = vld [vmem:[#allocation14 + $0x17c] sm:$0xf]
        %v5727 = vld [vmem:[#allocation14 + $0x180] sm:$0xff]
        %v5728 = vld [vmem:[#allocation14 + $0x188] sm:$0xf]
        %v5729 = vld [vmem:[#allocation14 + $0x18c] sm:$0xff]
        %v5730 = vld [vmem:[#allocation14 + $0x194] sm:$0xf]
        %v5731 = vld [vmem:[#allocation14 + $0x198] sm:$0xff]
        %v5732 = vld [vmem:[#allocation14 + $0x1a0] sm:$0xf]
        %v5733 = vld [vmem:[#allocation14 + $0x1a4] sm:$0xff]
        %v5734 = vld [vmem:[#allocation14 + $0x1ac] sm:$0xf]
        %v5735 = vld [vmem:[#allocation14 + $0x1b0] sm:$0xff]
        %v5736 = vld [vmem:[#allocation14 + $0x1b8] sm:$0xf]
        %v5737 = vld [vmem:[#allocation14 + $0x1bc] sm:$0xff]
        %v5738 = vld [vmem:[#allocation14 + $0x1c4] sm:$0xf]
        %v5739 = vld [vmem:[#allocation14 + $0x1c8] sm:$0xff]
        %v5740 = vld [vmem:[#allocation14 + $0x1d0] sm:$0xf]
        %v5741 = vld [vmem:[#allocation14 + $0x1d4] sm:$0xff]
        %v5742 = vld [vmem:[#allocation14 + $0x1dc] sm:$0xf]
        %v5743 = vld [vmem:[#allocation14 + $0x1e0] sm:$0xff]
        %v5744 = vld [vmem:[#allocation14 + $0x1e8] sm:$0xf]
        %v5745 = vld [vmem:[#allocation14 + $0x1ec] sm:$0xff]
        %v5746 = vld [vmem:[#allocation14 + $0x1f4] sm:$0xf]
        %v5747 = vld [vmem:[#allocation14 + $0x1f8] sm:$0xff]
        %v5748 = vld [vmem:[#allocation14 + $0x200] sm:$0xf]
        %v5749 = vld [vmem:[#allocation14 + $0x204] sm:$0xff]
        %v5750 = vld [vmem:[#allocation14 + $0x20c] sm:$0xf]
        %v5751 = vld [vmem:[#allocation14 + $0x210] sm:$0xff]
        %v5752 = vld [vmem:[#allocation14 + $0x218] sm:$0xf]
        %v5753 = vld [vmem:[#allocation14 + $0x21c] sm:$0xff]
        %v5754 = vld [vmem:[#allocation14 + $0x224] sm:$0xf]
        %v5755 = vld [vmem:[#allocation14 + $0x228] sm:$0xff]
        %v5756 = vld [vmem:[#allocation14 + $0x230] sm:$0xf]
        %v5757 = vld [vmem:[#allocation14 + $0x234] sm:$0xff]
        %v5758 = vld [vmem:[#allocation14 + $0x23c] sm:$0xf]
        %v5759 = vld [vmem:[#allocation14 + $0x240] sm:$0xff]
        %v5760 = vld [vmem:[#allocation14 + $0x248] sm:$0xf]
        %v5761 = vld [vmem:[#allocation14 + $0x24c] sm:$0xff]
        %v5762 = vld [vmem:[#allocation14 + $0x254] sm:$0xf]
        %v5763 = vld [vmem:[#allocation14 + $0x258] sm:$0xff]
        %v5764 = vld [vmem:[#allocation14 + $0x260] sm:$0xf]
        %v5765 = vld [vmem:[#allocation14 + $0x264] sm:$0xff]
        %v5766 = vld [vmem:[#allocation14 + $0x26c] sm:$0xf]
        %v5767 = vld [vmem:[#allocation14 + $0x270] sm:$0xff]
        %v5768 = vld [vmem:[#allocation14 + $0x278] sm:$0xf]
        %v5769 = vld [vmem:[#allocation14 + $0x27c] sm:$0xff]
        %v5770 = vld [vmem:[#allocation14 + $0x284] sm:$0xf]
        %v5771 = vld [vmem:[#allocation14 + $0x288] sm:$0xff]
        %v5772 = vld [vmem:[#allocation14 + $0x290] sm:$0xf]
        %v5773 = vld [vmem:[#allocation14 + $0x294] sm:$0xff]
        %v5774 = vld [vmem:[#allocation14 + $0x29c] sm:$0xf]
        %v5775 = vld [vmem:[#allocation14 + $0x2a0] sm:$0xff]
        %v5776 = vld [vmem:[#allocation14 + $0x2a8] sm:$0xf]
        %v5777 = vld [vmem:[#allocation14 + $0x2ac] sm:$0xff]
        %v5778 = vld [vmem:[#allocation14 + $0x2b4] sm:$0xf]
        %v5779 = vld [vmem:[#allocation14 + $0x2b8] sm:$0xff]
        %v5780 = vld [vmem:[#allocation14 + $0x2c0] sm:$0xf]
        %v5781 = vld [vmem:[#allocation14 + $0x2c4] sm:$0xff]
        %v5782 = vld [vmem:[#allocation14 + $0x2cc] sm:$0xf]
        %v5783 = vld [vmem:[#allocation14 + $0x2d0] sm:$0xff]
        %v5784 = vld [vmem:[#allocation14 + $0x2d8] sm:$0xf]
        %v5785 = vld [vmem:[#allocation14 + $0x2dc] sm:$0xff]
        %v5786 = vld [vmem:[#allocation14 + $0x2e4] sm:$0xf]
        %v5787 = vld [vmem:[#allocation14 + $0x2e8] sm:$0xff]
        %v5788 = vld [vmem:[#allocation14 + $0x2f0] sm:$0xf]
        %v5789 = vld [vmem:[#allocation14 + $0x2f4] sm:$0xff]
        %v5790 = vld [vmem:[#allocation14 + $0x2fc] sm:$0xf]
        %v5791 = vld [vmem:[#allocation14 + $0x300] sm:$0xff]
        %v5792 = vld [vmem:[#allocation14 + $0x308] sm:$0xf]
        %v5793 = vld [vmem:[#allocation14 + $0x30c] sm:$0xff]
        %v5794 = vld [vmem:[#allocation14 + $0x314] sm:$0xf]
        %v5795 = vld [vmem:[#allocation14 + $0x318] sm:$0xff]
        %v5796 = vld [vmem:[#allocation14 + $0x320] sm:$0xf]
        %v5797 = vld [vmem:[#allocation14 + $0x324] sm:$0xff]
        %v5798 = vld [vmem:[#allocation14 + $0x32c] sm:$0xf]
        %v5799 = vld [vmem:[#allocation14 + $0x330] sm:$0xff]
        %v5800 = vld [vmem:[#allocation14 + $0x338] sm:$0xf]
        %v5801 = vld [vmem:[#allocation14 + $0x33c] sm:$0xff]
        %v5802 = vld [vmem:[#allocation14 + $0x344] sm:$0xf]
        %v5803 = vld [vmem:[#allocation14 + $0x348] sm:$0xff]
        %v5804 = vld [vmem:[#allocation14 + $0x350] sm:$0xf]
        %v5805 = vld [vmem:[#allocation14 + $0x354] sm:$0xff]
        %v5806 = vld [vmem:[#allocation14 + $0x35c] sm:$0xf]
        %v5807 = vld [vmem:[#allocation14 + $0x360] sm:$0xff]
        %v5808 = vld [vmem:[#allocation14 + $0x368] sm:$0xf]
        %v5809 = vld [vmem:[#allocation14 + $0x36c] sm:$0xff]
        %v5810 = vld [vmem:[#allocation14 + $0x374] sm:$0xf]
        %v5811 = vld [vmem:[#allocation14 + $0x378] sm:$0xff]
        %v5812 = vld [vmem:[#allocation14 + $0x380] sm:$0xf]
        %v5813 = vld [vmem:[#allocation14 + $0x384] sm:$0xff]
        %v5814 = vld [vmem:[#allocation14 + $0x38c] sm:$0xf]
        %v5815 = vld [vmem:[#allocation14 + $0x390] sm:$0xff]
        %v5816 = vld [vmem:[#allocation14 + $0x398] sm:$0xf]
        %v5817 = vld [vmem:[#allocation14 + $0x39c] sm:$0xff]
        %v5818 = vld [vmem:[#allocation14 + $0x3a4] sm:$0xf]
        %v5819 = vld [vmem:[#allocation14 + $0x3a8] sm:$0xff]
        %v5820 = vld [vmem:[#allocation14 + $0x3b0] sm:$0xf]
        %v5821 = vld [vmem:[#allocation14 + $0x3b4] sm:$0xff]
        %v5822 = vld [vmem:[#allocation14 + $0x3bc] sm:$0xf]
        %v5823 = vld [vmem:[#allocation14 + $0x3c0] sm:$0xff]
        %v5824 = vld [vmem:[#allocation14 + $0x3c8] sm:$0xf]
        %v5825 = vld [vmem:[#allocation14 + $0x3cc] sm:$0xff]
        %v5826 = vld [vmem:[#allocation14 + $0x3d4] sm:$0xf]
        %v5827 = vld [vmem:[#allocation14 + $0x3d8] sm:$0xff]
        %v5828 = vld [vmem:[#allocation14 + $0x3e0] sm:$0xf]
        %v5829 = vld [vmem:[#allocation14 + $0x3e4] sm:$0xff]
        %v5830 = vld [vmem:[#allocation14 + $0x3ec] sm:$0xf]
        %v5831 = vld [vmem:[#allocation14 + $0x3f0] sm:$0xff]
        %v5832 = vld [vmem:[#allocation14 + $0x3f8] sm:$0xf]
        %v5833 = vld [vmem:[#allocation14 + $0x3fc] sm:$0xff]
        %v5834 = vld [vmem:[#allocation14 + $0x404] sm:$0xf]
        %v5835 = vld [vmem:[#allocation14 + $0x408] sm:$0xff]
        %v5836 = vld [vmem:[#allocation14 + $0x410] sm:$0xf]
        %v5837 = vld [vmem:[#allocation14 + $0x414] sm:$0xff]
        %v5838 = vld [vmem:[#allocation14 + $0x41c] sm:$0xf]
        %v5839 = vld [vmem:[#allocation14 + $0x420] sm:$0xff]
        %v5840 = vld [vmem:[#allocation14 + $0x428] sm:$0xf]
        %v5841 = vld [vmem:[#allocation14 + $0x42c] sm:$0xff]
        %v5842 = vld [vmem:[#allocation14 + $0x434] sm:$0xf]
        %v5843 = vld [vmem:[#allocation14 + $0x438] sm:$0xff]
        %v5844 = vld [vmem:[#allocation14 + $0x440] sm:$0xf]
        %v5845 = vld [vmem:[#allocation14 + $0x444] sm:$0xff]
        %v5846 = vld [vmem:[#allocation14 + $0x44c] sm:$0xf]
        %v5847 = vld [vmem:[#allocation14 + $0x450] sm:$0xff]
        %v5848 = vld [vmem:[#allocation14 + $0x458] sm:$0xf]
        %v5849 = vld [vmem:[#allocation14 + $0x45c] sm:$0xff]
        %v5850 = vld [vmem:[#allocation14 + $0x464] sm:$0xf]
        %v5851 = vld [vmem:[#allocation14 + $0x468] sm:$0xff]
        %v5852 = vld [vmem:[#allocation14 + $0x470] sm:$0xf]
        %v5853 = vld [vmem:[#allocation14 + $0x474] sm:$0xff]
        %v5854 = vld [vmem:[#allocation14 + $0x47c] sm:$0xf]
        %v5855 = vld [vmem:[#allocation14 + $0x480] sm:$0xff]
        %v5856 = vld [vmem:[#allocation14 + $0x488] sm:$0xf]
        %v5857 = vld [vmem:[#allocation14 + $0x48c] sm:$0xff]
        %v5858 = vld [vmem:[#allocation14 + $0x494] sm:$0xf]
        %v5859 = vld [vmem:[#allocation14 + $0x498] sm:$0xff]
        %v5860 = vld [vmem:[#allocation14 + $0x4a0] sm:$0xf]
        %v5861 = vld [vmem:[#allocation14 + $0x4a4] sm:$0xff]
        %v5862 = vld [vmem:[#allocation14 + $0x4ac] sm:$0xf]
        %v5863 = vld [vmem:[#allocation14 + $0x4b0] sm:$0xff]
        %v5864 = vld [vmem:[#allocation14 + $0x4b8] sm:$0xf]
        %v5865 = vld [vmem:[#allocation14 + $0x4bc] sm:$0xff]
        %v5866 = vld [vmem:[#allocation14 + $0x4c4] sm:$0xf]
        %v5867 = vld [vmem:[#allocation14 + $0x4c8] sm:$0xff]
        %v5868 = vld [vmem:[#allocation14 + $0x4d0] sm:$0xf]
        %v5869 = vld [vmem:[#allocation14 + $0x4d4] sm:$0xff]
        %v5870 = vld [vmem:[#allocation14 + $0x4dc] sm:$0xf]
        %v5871 = vld [vmem:[#allocation14 + $0x4e0] sm:$0xff]
        %v5872 = vld [vmem:[#allocation14 + $0x4e8] sm:$0xf]
        %v5873 = vld [vmem:[#allocation14 + $0x4ec] sm:$0xff]
        %v5874 = vld [vmem:[#allocation14 + $0x4f4] sm:$0xf]
        %v5875 = vld [vmem:[#allocation14 + $0x4f8] sm:$0xff]
        %v5876 = vld [vmem:[#allocation14 + $0x500] sm:$0xf]
        %v5877 = vld [vmem:[#allocation14 + $0x504] sm:$0xff]
        %v5878 = vld [vmem:[#allocation14 + $0x50c] sm:$0xf]
        %v5879 = vld [vmem:[#allocation14 + $0x510] sm:$0xff]
        %v5880 = vld [vmem:[#allocation14 + $0x518] sm:$0xf]
        %v5881 = vld [vmem:[#allocation14 + $0x51c] sm:$0xff]
        %v5882 = vld [vmem:[#allocation14 + $0x524] sm:$0xf]
        %v5883 = vld [vmem:[#allocation14 + $0x528] sm:$0xff]
        %v5884 = vld [vmem:[#allocation14 + $0x530] sm:$0xf]
        %v5885 = vld [vmem:[#allocation14 + $0x534] sm:$0xff]
        %v5886 = vld [vmem:[#allocation14 + $0x53c] sm:$0xf]
        %v5887 = vld [vmem:[#allocation14 + $0x540] sm:$0xff]
        %v5888 = vld [vmem:[#allocation14 + $0x548] sm:$0xf]
        %v5889 = vld [vmem:[#allocation14 + $0x54c] sm:$0xff]
        %v5890 = vld [vmem:[#allocation14 + $0x554] sm:$0xf]
        %v5891 = vld [vmem:[#allocation14 + $0x558] sm:$0xff]
        %v5892 = vld [vmem:[#allocation14 + $0x560] sm:$0xf]
        %v5893 = vld [vmem:[#allocation14 + $0x564] sm:$0xff]
        %v5894 = vld [vmem:[#allocation14 + $0x56c] sm:$0xf]
        %v5895 = vld [vmem:[#allocation14 + $0x570] sm:$0xff]
        %v5896 = vld [vmem:[#allocation14 + $0x578] sm:$0xf]
        %v5897 = vld [vmem:[#allocation14 + $0x57c] sm:$0xff]
        %v5898 = vld [vmem:[#allocation14 + $0x584] sm:$0xf]
        %v5899 = vld [vmem:[#allocation14 + $0x588] sm:$0xff]
        %v5900 = vld [vmem:[#allocation14 + $0x590] sm:$0xf]
        %v5901 = vld [vmem:[#allocation14 + $0x594] sm:$0xff]
        %v5902 = vld [vmem:[#allocation14 + $0x59c] sm:$0xf]
        %v5903 = vld [vmem:[#allocation14 + $0x5a0] sm:$0xff]
        %v5904 = vld [vmem:[#allocation14 + $0x5a8] sm:$0xf]
        %v5905 = vld [vmem:[#allocation14 + $0x5ac] sm:$0xff]
        %v5906 = vld [vmem:[#allocation14 + $0x5b4] sm:$0xf]
        %v5907 = vld [vmem:[#allocation14 + $0x5b8] sm:$0xff]
        %v5908 = vld [vmem:[#allocation14 + $0x5c0] sm:$0xf]
        %v5909 = vld [vmem:[#allocation14 + $0x5c4] sm:$0xff]
        %v5910 = vld [vmem:[#allocation14 + $0x5cc] sm:$0xf]
        %v5911 = vld [vmem:[#allocation14 + $0x5d0] sm:$0xff]
        %v5912 = vld [vmem:[#allocation14 + $0x5d8] sm:$0xf]
        %v5913 = vld [vmem:[#allocation14 + $0x5dc] sm:$0xff]
        %v5914 = vld [vmem:[#allocation14 + $0x5e4] sm:$0xf]
        %v5915 = vld [vmem:[#allocation14 + $0x5e8] sm:$0xff]
        %v5916 = vld [vmem:[#allocation14 + $0x5f0] sm:$0xf]
        %v5917 = vld [vmem:[#allocation14 + $0x5f4] sm:$0xff]
        %v5918 = vld [vmem:[#allocation14 + $0x5fc] sm:$0xf]
        %v5919 = vld [vmem:[#allocation14 + $0x600] sm:$0xff]
        %v5920 = vld [vmem:[#allocation14 + $0x608] sm:$0xf]
        %v5921 = vld [vmem:[#allocation14 + $0x60c] sm:$0xff]
        %v5922 = vld [vmem:[#allocation14 + $0x614] sm:$0xf]
        %v5923 = vld [vmem:[#allocation14 + $0x618] sm:$0xff]
        %v5924 = vld [vmem:[#allocation14 + $0x620] sm:$0xf]
        %v5925 = vld [vmem:[#allocation14 + $0x624] sm:$0xff]
        %v5926 = vld [vmem:[#allocation14 + $0x62c] sm:$0xf]
        %v5927 = vld [vmem:[#allocation14 + $0x630] sm:$0xff]
        %v5928 = vld [vmem:[#allocation14 + $0x638] sm:$0xf]
        %v5929 = vld [vmem:[#allocation14 + $0x63c] sm:$0xff]
        %v5930 = vld [vmem:[#allocation14 + $0x644] sm:$0xf]
        %v5931 = vld [vmem:[#allocation14 + $0x648] sm:$0xff]
        %v5932 = vld [vmem:[#allocation14 + $0x650] sm:$0xf]
        %v5933 = vld [vmem:[#allocation14 + $0x654] sm:$0xff]
        %v5934 = vld [vmem:[#allocation14 + $0x65c] sm:$0xf]
        %v5935 = vld [vmem:[#allocation14 + $0x660] sm:$0xff]
        %v5936 = vld [vmem:[#allocation14 + $0x668] sm:$0xf]
        %v5937 = vld [vmem:[#allocation14 + $0x66c] sm:$0xff]
        %v5938 = vld [vmem:[#allocation14 + $0x674] sm:$0xf]
        %v5939 = vld [vmem:[#allocation14 + $0x678] sm:$0xff]
        %v5940 = vld [vmem:[#allocation14 + $0x680] sm:$0xf]
        %v5941 = vld [vmem:[#allocation14 + $0x684] sm:$0xff]
        %v5942 = vld [vmem:[#allocation14 + $0x68c] sm:$0xf]
        %v5943 = vld [vmem:[#allocation14 + $0x690] sm:$0xff]
        %v5944 = vld [vmem:[#allocation14 + $0x698] sm:$0xf]
        %v5945 = vld [vmem:[#allocation14 + $0x69c] sm:$0xff]
        %v5946 = vld [vmem:[#allocation14 + $0x6a4] sm:$0xf]
        %v5947 = vld [vmem:[#allocation14 + $0x6a8] sm:$0xff]
        %v5948 = vld [vmem:[#allocation14 + $0x6b0] sm:$0xf]
        %v5949 = vld [vmem:[#allocation14 + $0x6b4] sm:$0xff]
        %v5950 = vld [vmem:[#allocation14 + $0x6bc] sm:$0xf]
        %v5951 = vld [vmem:[#allocation14 + $0x6c0] sm:$0xff]
        %v5952 = vld [vmem:[#allocation14 + $0x6c8] sm:$0xf]
        %v5953 = vld [vmem:[#allocation14 + $0x6cc] sm:$0xff]
        %v5954 = vld [vmem:[#allocation14 + $0x6d4] sm:$0xf]
        %v5955 = vld [vmem:[#allocation14 + $0x6d8] sm:$0xff]
        %v5956 = vld [vmem:[#allocation14 + $0x6e0] sm:$0xf]
        %v5957 = vld [vmem:[#allocation14 + $0x6e4] sm:$0xff]
        %v5958 = vld [vmem:[#allocation14 + $0x6ec] sm:$0xf]
        %v5959 = vld [vmem:[#allocation14 + $0x6f0] sm:$0xff]
        %v5960 = vld [vmem:[#allocation14 + $0x6f8] sm:$0xf]
        %v5961 = vld [vmem:[#allocation14 + $0x6fc] sm:$0xff]
        %v5962 = vld [vmem:[#allocation14 + $0x704] sm:$0xf]
        %v5963 = vld [vmem:[#allocation14 + $0x708] sm:$0xff]
        %v5964 = vld [vmem:[#allocation14 + $0x710] sm:$0xf]
        %v5965 = vld [vmem:[#allocation14 + $0x714] sm:$0xff]
        %v5966 = vld [vmem:[#allocation14 + $0x71c] sm:$0xf]
        %v5967 = vld [vmem:[#allocation14 + $0x720] sm:$0xff]
        %v5968 = vld [vmem:[#allocation14 + $0x728] sm:$0xf]
        %v5969 = vld [vmem:[#allocation14 + $0x72c] sm:$0xff]
        %v5970 = vld [vmem:[#allocation14 + $0x734] sm:$0xf]
        %v5971 = vld [vmem:[#allocation14 + $0x738] sm:$0xff]
        %v5972 = vld [vmem:[#allocation14 + $0x740] sm:$0xf]
        %v5973 = vld [vmem:[#allocation14 + $0x744] sm:$0xff]
        %v5974 = vld [vmem:[#allocation14 + $0x74c] sm:$0xf]
        %v5975 = vld [vmem:[#allocation14 + $0x750] sm:$0xff]
        %v5976 = vld [vmem:[#allocation14 + $0x758] sm:$0xf]
        %v5977 = vld [vmem:[#allocation14 + $0x75c] sm:$0xff]
        %v5978 = vld [vmem:[#allocation14 + $0x764] sm:$0xf]
        %v5979 = vld [vmem:[#allocation14 + $0x768] sm:$0xff]
        %v5980 = vld [vmem:[#allocation14 + $0x770] sm:$0xf]
        %v5981 = vld [vmem:[#allocation14 + $0x774] sm:$0xff]
        %v5982 = vld [vmem:[#allocation14 + $0x77c] sm:$0xf]
        %v5983 = vld [vmem:[#allocation14 + $0x780] sm:$0xff]
        %v5984 = vld [vmem:[#allocation14 + $0x788] sm:$0xf]
        %v5985 = vld [vmem:[#allocation14 + $0x78c] sm:$0xff]
        %v5986 = vld [vmem:[#allocation14 + $0x794] sm:$0xf]
        %v5987 = vld [vmem:[#allocation14 + $0x798] sm:$0xff]
        %v5988 = vld [vmem:[#allocation14 + $0x7a0] sm:$0xf]
        %v5989 = vld [vmem:[#allocation14 + $0x7a4] sm:$0xff]
        %v5990 = vld [vmem:[#allocation14 + $0x7ac] sm:$0xf]
        %v5991 = vld [vmem:[#allocation14 + $0x7b0] sm:$0xff]
        %v5992 = vld [vmem:[#allocation14 + $0x7b8] sm:$0xf]
        %v5993 = vld [vmem:[#allocation14 + $0x7bc] sm:$0xff]
        %v5994 = vld [vmem:[#allocation14 + $0x7c4] sm:$0xf]
        %v5995 = vld [vmem:[#allocation14 + $0x7c8] sm:$0xff]
        %v5996 = vld [vmem:[#allocation14 + $0x7d0] sm:$0xf]
        %v5997 = vld [vmem:[#allocation14 + $0x7d4] sm:$0xff]
        %v5998 = vld [vmem:[#allocation14 + $0x7dc] sm:$0xf]
        %v5999 = vld [vmem:[#allocation14 + $0x7e0] sm:$0xff]
        %v6000 = vld [vmem:[#allocation14 + $0x7e8] sm:$0xf]
        %v6001 = vld [vmem:[#allocation14 + $0x7ec] sm:$0xff]
        %v6002 = vld [vmem:[#allocation14 + $0x7f4] sm:$0xf]
        %v6003 = vld [vmem:[#allocation14 + $0x7f8] sm:$0xff]
        %v6004 = vld [vmem:[#allocation14 + $0x800] sm:$0xf]
        %v6005 = vld [vmem:[#allocation14 + $0x804] sm:$0xff]
        %v6006 = vld [vmem:[#allocation14 + $0x80c] sm:$0xf]
        %v6007 = vld [vmem:[#allocation14 + $0x810] sm:$0xff]
        %v6008 = vld [vmem:[#allocation14 + $0x818] sm:$0xf]
        %v6009 = vld [vmem:[#allocation14 + $0x81c] sm:$0xff]
        %v6010 = vld [vmem:[#allocation14 + $0x824] sm:$0xf]
        %v6011 = vld [vmem:[#allocation14 + $0x828] sm:$0xff]
        %v6012 = vld [vmem:[#allocation14 + $0x830] sm:$0xf]
        %v6013 = vld [vmem:[#allocation14 + $0x834] sm:$0xff]
        %v6014 = vld [vmem:[#allocation14 + $0x83c] sm:$0xf]
        %v6015 = vld [vmem:[#allocation14 + $0x840] sm:$0xff]
        %v6016 = vld [vmem:[#allocation14 + $0x848] sm:$0xf]
        %v6017 = vld [vmem:[#allocation14 + $0x84c] sm:$0xff]
        %v6018 = vld [vmem:[#allocation14 + $0x854] sm:$0xf]
        %v6019 = vld [vmem:[#allocation14 + $0x858] sm:$0xff]
        %v6020 = vld [vmem:[#allocation14 + $0x860] sm:$0xf]
        %v6021 = vld [vmem:[#allocation14 + $0x864] sm:$0xff]
        %v6022 = vld [vmem:[#allocation14 + $0x86c] sm:$0xf]
        %v6023 = vld [vmem:[#allocation14 + $0x870] sm:$0xff]
        %v6024 = vld [vmem:[#allocation14 + $0x878] sm:$0xf]
        %v6025 = vld [vmem:[#allocation14 + $0x87c] sm:$0xff]
        %v6026 = vld [vmem:[#allocation14 + $0x884] sm:$0xf]
        %v6027 = vld [vmem:[#allocation14 + $0x888] sm:$0xff]
        %v6028 = vld [vmem:[#allocation14 + $0x890] sm:$0xf]
        %v6029 = vld [vmem:[#allocation14 + $0x894] sm:$0xff]
        %v6030 = vld [vmem:[#allocation14 + $0x89c] sm:$0xf]
        %v6031 = vld [vmem:[#allocation14 + $0x8a0] sm:$0xff]
        %v6032 = vld [vmem:[#allocation14 + $0x8a8] sm:$0xf]
        %v6033 = vld [vmem:[#allocation14 + $0x8ac] sm:$0xff]
        %v6034 = vld [vmem:[#allocation14 + $0x8b4] sm:$0xf]
        %v6035 = vld [vmem:[#allocation14 + $0x8b8] sm:$0xff]
        %v6036 = vld [vmem:[#allocation14 + $0x8c0] sm:$0xf]
        %v6037 = vld [vmem:[#allocation14 + $0x8c4] sm:$0xff]
        %v6038 = vld [vmem:[#allocation14 + $0x8cc] sm:$0xf]
        %v6039 = vld [vmem:[#allocation14 + $0x8d0] sm:$0xff]
        %v6040 = vld [vmem:[#allocation14 + $0x8d8] sm:$0xf]
        %v6041 = vld [vmem:[#allocation14 + $0x8dc] sm:$0xff]
        %v6042 = vld [vmem:[#allocation14 + $0x8e4] sm:$0xf]
        %v6043 = vld [vmem:[#allocation14 + $0x8e8] sm:$0xff]
        %v6044 = vld [vmem:[#allocation14 + $0x8f0] sm:$0xf]
        %v6045 = vld [vmem:[#allocation14 + $0x8f4] sm:$0xff]
        %v6046 = vld [vmem:[#allocation14 + $0x8fc] sm:$0xf]
        %v6047 = vld [vmem:[#allocation15] sm:$0x7]
        %v6049 = vperm.slane %v6047, 0
        %v6050 = vperm.slane %v6047, 1
        %v6051 = vperm.slane %v6047, 2
        %v6439 = vunpack.c.l.b16 %v5663
        %v6440 = vunpack.c.h.b16 %v5663
        %v6441 = vunpack.c.l.b16 %v5664
        %v6442 = vunpack.c.l.b16 %v5665
        %v6443 = vunpack.c.h.b16 %v5665
        %v6444 = vunpack.c.l.b16 %v5666
        %v6445 = vunpack.c.l.b16 %v5667
        %v6446 = vunpack.c.h.b16 %v5667
        %v6447 = vunpack.c.l.b16 %v5668
        %v6448 = vunpack.c.l.b16 %v5669
        %v6449 = vunpack.c.h.b16 %v5669
        %v6450 = vunpack.c.l.b16 %v5670
        %v6451 = vunpack.c.l.b16 %v5671
        %v6452 = vunpack.c.h.b16 %v5671
        %v6453 = vunpack.c.l.b16 %v5672
        %v6454 = vunpack.c.l.b16 %v5673
        %v6455 = vunpack.c.h.b16 %v5673
        %v6456 = vunpack.c.l.b16 %v5674
        %v6457 = vunpack.c.l.b16 %v5675
        %v6458 = vunpack.c.h.b16 %v5675
        %v6459 = vunpack.c.l.b16 %v5676
        %v6460 = vunpack.c.l.b16 %v5677
        %v6461 = vunpack.c.h.b16 %v5677
        %v6462 = vunpack.c.l.b16 %v5678
        %v6463 = vunpack.c.l.b16 %v5679
        %v6464 = vunpack.c.h.b16 %v5679
        %v6465 = vunpack.c.l.b16 %v5680
        %v6466 = vunpack.c.l.b16 %v5681
        %v6467 = vunpack.c.h.b16 %v5681
        %v6468 = vunpack.c.l.b16 %v5682
        %v6469 = vunpack.c.l.b16 %v5683
        %v6470 = vunpack.c.h.b16 %v5683
        %v6471 = vunpack.c.l.b16 %v5684
        %v6472 = vunpack.c.l.b16 %v5685
        %v6473 = vunpack.c.h.b16 %v5685
        %v6474 = vunpack.c.l.b16 %v5686
        %v6475 = vunpack.c.l.b16 %v5687
        %v6476 = vunpack.c.h.b16 %v5687
        %v6477 = vunpack.c.l.b16 %v5688
        %v6478 = vunpack.c.l.b16 %v5689
        %v6479 = vunpack.c.h.b16 %v5689
        %v6480 = vunpack.c.l.b16 %v5690
        %v6481 = vunpack.c.l.b16 %v5691
        %v6482 = vunpack.c.h.b16 %v5691
        %v6483 = vunpack.c.l.b16 %v5692
        %v6484 = vunpack.c.l.b16 %v5693
        %v6485 = vunpack.c.h.b16 %v5693
        %v6486 = vunpack.c.l.b16 %v5694
        %v6487 = vunpack.c.l.b16 %v5695
        %v6488 = vunpack.c.h.b16 %v5695
        %v6489 = vunpack.c.l.b16 %v5696
        %v6490 = vunpack.c.l.b16 %v5697
        %v6491 = vunpack.c.h.b16 %v5697
        %v6492 = vunpack.c.l.b16 %v5698
        %v6493 = vunpack.c.l.b16 %v5699
        %v6494 = vunpack.c.h.b16 %v5699
        %v6495 = vunpack.c.l.b16 %v5700
        %v6496 = vunpack.c.l.b16 %v5701
        %v6497 = vunpack.c.h.b16 %v5701
        %v6498 = vunpack.c.l.b16 %v5702
        %v6499 = vunpack.c.l.b16 %v5703
        %v6500 = vunpack.c.h.b16 %v5703
        %v6501 = vunpack.c.l.b16 %v5704
        %v6502 = vunpack.c.l.b16 %v5705
        %v6503 = vunpack.c.h.b16 %v5705
        %v6504 = vunpack.c.l.b16 %v5706
        %v6505 = vunpack.c.l.b16 %v5707
        %v6506 = vunpack.c.h.b16 %v5707
        %v6507 = vunpack.c.l.b16 %v5708
        %v6508 = vunpack.c.l.b16 %v5709
        %v6509 = vunpack.c.h.b16 %v5709
        %v6510 = vunpack.c.l.b16 %v5710
        %v6511 = vunpack.c.l.b16 %v5711
        %v6512 = vunpack.c.h.b16 %v5711
        %v6513 = vunpack.c.l.b16 %v5712
        %v6514 = vunpack.c.l.b16 %v5713
        %v6515 = vunpack.c.h.b16 %v5713
        %v6516 = vunpack.c.l.b16 %v5714
        %v6517 = vunpack.c.l.b16 %v5715
        %v6518 = vunpack.c.h.b16 %v5715
        %v6519 = vunpack.c.l.b16 %v5716
        %v6520 = vunpack.c.l.b16 %v5717
        %v6521 = vunpack.c.h.b16 %v5717
        %v6522 = vunpack.c.l.b16 %v5718
        %v6523 = vunpack.c.l.b16 %v5719
        %v6524 = vunpack.c.h.b16 %v5719
        %v6525 = vunpack.c.l.b16 %v5720
        %v6526 = vunpack.c.l.b16 %v5721
        %v6527 = vunpack.c.h.b16 %v5721
        %v6528 = vunpack.c.l.b16 %v5722
        %v6529 = vunpack.c.l.b16 %v5723
        %v6530 = vunpack.c.h.b16 %v5723
        %v6531 = vunpack.c.l.b16 %v5724
        %v6532 = vunpack.c.l.b16 %v5725
        %v6533 = vunpack.c.h.b16 %v5725
        %v6534 = vunpack.c.l.b16 %v5726
        %v6535 = vunpack.c.l.b16 %v5727
        %v6536 = vunpack.c.h.b16 %v5727
        %v6537 = vunpack.c.l.b16 %v5728
        %v6538 = vunpack.c.l.b16 %v5729
        %v6539 = vunpack.c.h.b16 %v5729
        %v6540 = vunpack.c.l.b16 %v5730
        %v6541 = vunpack.c.l.b16 %v5731
        %v6542 = vunpack.c.h.b16 %v5731
        %v6543 = vunpack.c.l.b16 %v5732
        %v6544 = vunpack.c.l.b16 %v5733
        %v6545 = vunpack.c.h.b16 %v5733
        %v6546 = vunpack.c.l.b16 %v5734
        %v6547 = vunpack.c.l.b16 %v5735
        %v6548 = vunpack.c.h.b16 %v5735
        %v6549 = vunpack.c.l.b16 %v5736
        %v6550 = vunpack.c.l.b16 %v5737
        %v6551 = vunpack.c.h.b16 %v5737
        %v6552 = vunpack.c.l.b16 %v5738
        %v6553 = vunpack.c.l.b16 %v5739
        %v6554 = vunpack.c.h.b16 %v5739
        %v6555 = vunpack.c.l.b16 %v5740
        %v6556 = vunpack.c.l.b16 %v5741
        %v6557 = vunpack.c.h.b16 %v5741
        %v6558 = vunpack.c.l.b16 %v5742
        %v6559 = vunpack.c.l.b16 %v5743
        %v6560 = vunpack.c.h.b16 %v5743
        %v6561 = vunpack.c.l.b16 %v5744
        %v6562 = vunpack.c.l.b16 %v5745
        %v6563 = vunpack.c.h.b16 %v5745
        %v6564 = vunpack.c.l.b16 %v5746
        %v6565 = vunpack.c.l.b16 %v5747
        %v6566 = vunpack.c.h.b16 %v5747
        %v6567 = vunpack.c.l.b16 %v5748
        %v6568 = vunpack.c.l.b16 %v5749
        %v6569 = vunpack.c.h.b16 %v5749
        %v6570 = vunpack.c.l.b16 %v5750
        %v6571 = vunpack.c.l.b16 %v5751
        %v6572 = vunpack.c.h.b16 %v5751
        %v6573 = vunpack.c.l.b16 %v5752
        %v6574 = vunpack.c.l.b16 %v5753
        %v6575 = vunpack.c.h.b16 %v5753
        %v6576 = vunpack.c.l.b16 %v5754
        %v6577 = vunpack.c.l.b16 %v5755
        %v6578 = vunpack.c.h.b16 %v5755
        %v6579 = vunpack.c.l.b16 %v5756
        %v6580 = vunpack.c.l.b16 %v5757
        %v6581 = vunpack.c.h.b16 %v5757
        %v6582 = vunpack.c.l.b16 %v5758
        %v6583 = vunpack.c.l.b16 %v5759
        %v6584 = vunpack.c.h.b16 %v5759
        %v6585 = vunpack.c.l.b16 %v5760
        %v6586 = vunpack.c.l.b16 %v5761
        %v6587 = vunpack.c.h.b16 %v5761
        %v6588 = vunpack.c.l.b16 %v5762
        %v6589 = vunpack.c.l.b16 %v5763
        %v6590 = vunpack.c.h.b16 %v5763
        %v6591 = vunpack.c.l.b16 %v5764
        %v6592 = vunpack.c.l.b16 %v5765
        %v6593 = vunpack.c.h.b16 %v5765
        %v6594 = vunpack.c.l.b16 %v5766
        %v6595 = vunpack.c.l.b16 %v5767
        %v6596 = vunpack.c.h.b16 %v5767
        %v6597 = vunpack.c.l.b16 %v5768
        %v6598 = vunpack.c.l.b16 %v5769
        %v6599 = vunpack.c.h.b16 %v5769
        %v6600 = vunpack.c.l.b16 %v5770
        %v6601 = vunpack.c.l.b16 %v5771
        %v6602 = vunpack.c.h.b16 %v5771
        %v6603 = vunpack.c.l.b16 %v5772
        %v6604 = vunpack.c.l.b16 %v5773
        %v6605 = vunpack.c.h.b16 %v5773
        %v6606 = vunpack.c.l.b16 %v5774
        %v6607 = vunpack.c.l.b16 %v5775
        %v6608 = vunpack.c.h.b16 %v5775
        %v6609 = vunpack.c.l.b16 %v5776
        %v6610 = vunpack.c.l.b16 %v5777
        %v6611 = vunpack.c.h.b16 %v5777
        %v6612 = vunpack.c.l.b16 %v5778
        %v6613 = vunpack.c.l.b16 %v5779
        %v6614 = vunpack.c.h.b16 %v5779
        %v6615 = vunpack.c.l.b16 %v5780
        %v6616 = vunpack.c.l.b16 %v5781
        %v6617 = vunpack.c.h.b16 %v5781
        %v6618 = vunpack.c.l.b16 %v5782
        %v6619 = vunpack.c.l.b16 %v5783
        %v6620 = vunpack.c.h.b16 %v5783
        %v6621 = vunpack.c.l.b16 %v5784
        %v6622 = vunpack.c.l.b16 %v5785
        %v6623 = vunpack.c.h.b16 %v5785
        %v6624 = vunpack.c.l.b16 %v5786
        %v6625 = vunpack.c.l.b16 %v5787
        %v6626 = vunpack.c.h.b16 %v5787
        %v6627 = vunpack.c.l.b16 %v5788
        %v6628 = vunpack.c.l.b16 %v5789
        %v6629 = vunpack.c.h.b16 %v5789
        %v6630 = vunpack.c.l.b16 %v5790
        %v6631 = vunpack.c.l.b16 %v5791
        %v6632 = vunpack.c.h.b16 %v5791
        %v6633 = vunpack.c.l.b16 %v5792
        %v6634 = vunpack.c.l.b16 %v5793
        %v6635 = vunpack.c.h.b16 %v5793
        %v6636 = vunpack.c.l.b16 %v5794
        %v6637 = vunpack.c.l.b16 %v5795
        %v6638 = vunpack.c.h.b16 %v5795
        %v6639 = vunpack.c.l.b16 %v5796
        %v6640 = vunpack.c.l.b16 %v5797
        %v6641 = vunpack.c.h.b16 %v5797
        %v6642 = vunpack.c.l.b16 %v5798
        %v6643 = vunpack.c.l.b16 %v5799
        %v6644 = vunpack.c.h.b16 %v5799
        %v6645 = vunpack.c.l.b16 %v5800
        %v6646 = vunpack.c.l.b16 %v5801
        %v6647 = vunpack.c.h.b16 %v5801
        %v6648 = vunpack.c.l.b16 %v5802
        %v6649 = vunpack.c.l.b16 %v5803
        %v6650 = vunpack.c.h.b16 %v5803
        %v6651 = vunpack.c.l.b16 %v5804
        %v6652 = vunpack.c.l.b16 %v5805
        %v6653 = vunpack.c.h.b16 %v5805
        %v6654 = vunpack.c.l.b16 %v5806
        %v6655 = vunpack.c.l.b16 %v5807
        %v6656 = vunpack.c.h.b16 %v5807
        %v6657 = vunpack.c.l.b16 %v5808
        %v6658 = vunpack.c.l.b16 %v5809
        %v6659 = vunpack.c.h.b16 %v5809
        %v6660 = vunpack.c.l.b16 %v5810
        %v6661 = vunpack.c.l.b16 %v5811
        %v6662 = vunpack.c.h.b16 %v5811
        %v6663 = vunpack.c.l.b16 %v5812
        %v6664 = vunpack.c.l.b16 %v5813
        %v6665 = vunpack.c.h.b16 %v5813
        %v6666 = vunpack.c.l.b16 %v5814
        %v6667 = vunpack.c.l.b16 %v5815
        %v6668 = vunpack.c.h.b16 %v5815
        %v6669 = vunpack.c.l.b16 %v5816
        %v6670 = vunpack.c.l.b16 %v5817
        %v6671 = vunpack.c.h.b16 %v5817
        %v6672 = vunpack.c.l.b16 %v5818
        %v6673 = vunpack.c.l.b16 %v5819
        %v6674 = vunpack.c.h.b16 %v5819
        %v6675 = vunpack.c.l.b16 %v5820
        %v6676 = vunpack.c.l.b16 %v5821
        %v6677 = vunpack.c.h.b16 %v5821
        %v6678 = vunpack.c.l.b16 %v5822
        %v6679 = vunpack.c.l.b16 %v5823
        %v6680 = vunpack.c.h.b16 %v5823
        %v6681 = vunpack.c.l.b16 %v5824
        %v6682 = vunpack.c.l.b16 %v5825
        %v6683 = vunpack.c.h.b16 %v5825
        %v6684 = vunpack.c.l.b16 %v5826
        %v6685 = vunpack.c.l.b16 %v5827
        %v6686 = vunpack.c.h.b16 %v5827
        %v6687 = vunpack.c.l.b16 %v5828
        %v6688 = vunpack.c.l.b16 %v5829
        %v6689 = vunpack.c.h.b16 %v5829
        %v6690 = vunpack.c.l.b16 %v5830
        %v6691 = vunpack.c.l.b16 %v5831
        %v6692 = vunpack.c.h.b16 %v5831
        %v6693 = vunpack.c.l.b16 %v5832
        %v6694 = vunpack.c.l.b16 %v5833
        %v6695 = vunpack.c.h.b16 %v5833
        %v6696 = vunpack.c.l.b16 %v5834
        %v6697 = vunpack.c.l.b16 %v5835
        %v6698 = vunpack.c.h.b16 %v5835
        %v6699 = vunpack.c.l.b16 %v5836
        %v6700 = vunpack.c.l.b16 %v5837
        %v6701 = vunpack.c.h.b16 %v5837
        %v6702 = vunpack.c.l.b16 %v5838
        %v6703 = vunpack.c.l.b16 %v5839
        %v6704 = vunpack.c.h.b16 %v5839
        %v6705 = vunpack.c.l.b16 %v5840
        %v6706 = vunpack.c.l.b16 %v5841
        %v6707 = vunpack.c.h.b16 %v5841
        %v6708 = vunpack.c.l.b16 %v5842
        %v6709 = vunpack.c.l.b16 %v5843
        %v6710 = vunpack.c.h.b16 %v5843
        %v6711 = vunpack.c.l.b16 %v5844
        %v6712 = vunpack.c.l.b16 %v5845
        %v6713 = vunpack.c.h.b16 %v5845
        %v6714 = vunpack.c.l.b16 %v5846
        %v6715 = vunpack.c.l.b16 %v5847
        %v6716 = vunpack.c.h.b16 %v5847
        %v6717 = vunpack.c.l.b16 %v5848
        %v6718 = vunpack.c.l.b16 %v5849
        %v6719 = vunpack.c.h.b16 %v5849
        %v6720 = vunpack.c.l.b16 %v5850
        %v6721 = vunpack.c.l.b16 %v5851
        %v6722 = vunpack.c.h.b16 %v5851
        %v6723 = vunpack.c.l.b16 %v5852
        %v6724 = vunpack.c.l.b16 %v5853
        %v6725 = vunpack.c.h.b16 %v5853
        %v6726 = vunpack.c.l.b16 %v5854
        %v6727 = vunpack.c.l.b16 %v5855
        %v6728 = vunpack.c.h.b16 %v5855
        %v6729 = vunpack.c.l.b16 %v5856
        %v6730 = vunpack.c.l.b16 %v5857
        %v6731 = vunpack.c.h.b16 %v5857
        %v6732 = vunpack.c.l.b16 %v5858
        %v6733 = vunpack.c.l.b16 %v5859
        %v6734 = vunpack.c.h.b16 %v5859
        %v6735 = vunpack.c.l.b16 %v5860
        %v6736 = vunpack.c.l.b16 %v5861
        %v6737 = vunpack.c.h.b16 %v5861
        %v6738 = vunpack.c.l.b16 %v5862
        %v6739 = vunpack.c.l.b16 %v5863
        %v6740 = vunpack.c.h.b16 %v5863
        %v6741 = vunpack.c.l.b16 %v5864
        %v6742 = vunpack.c.l.b16 %v5865
        %v6743 = vunpack.c.h.b16 %v5865
        %v6744 = vunpack.c.l.b16 %v5866
        %v6745 = vunpack.c.l.b16 %v5867
        %v6746 = vunpack.c.h.b16 %v5867
        %v6747 = vunpack.c.l.b16 %v5868
        %v6748 = vunpack.c.l.b16 %v5869
        %v6749 = vunpack.c.h.b16 %v5869
        %v6750 = vunpack.c.l.b16 %v5870
        %v6751 = vunpack.c.l.b16 %v5871
        %v6752 = vunpack.c.h.b16 %v5871
        %v6753 = vunpack.c.l.b16 %v5872
        %v6754 = vunpack.c.l.b16 %v5873
        %v6755 = vunpack.c.h.b16 %v5873
        %v6756 = vunpack.c.l.b16 %v5874
        %v6757 = vunpack.c.l.b16 %v5875
        %v6758 = vunpack.c.h.b16 %v5875
        %v6759 = vunpack.c.l.b16 %v5876
        %v6760 = vunpack.c.l.b16 %v5877
        %v6761 = vunpack.c.h.b16 %v5877
        %v6762 = vunpack.c.l.b16 %v5878
        %v6763 = vunpack.c.l.b16 %v5879
        %v6764 = vunpack.c.h.b16 %v5879
        %v6765 = vunpack.c.l.b16 %v5880
        %v6766 = vunpack.c.l.b16 %v5881
        %v6767 = vunpack.c.h.b16 %v5881
        %v6768 = vunpack.c.l.b16 %v5882
        %v6769 = vunpack.c.l.b16 %v5883
        %v6770 = vunpack.c.h.b16 %v5883
        %v6771 = vunpack.c.l.b16 %v5884
        %v6772 = vunpack.c.l.b16 %v5885
        %v6773 = vunpack.c.h.b16 %v5885
        %v6774 = vunpack.c.l.b16 %v5886
        %v6775 = vunpack.c.l.b16 %v5887
        %v6776 = vunpack.c.h.b16 %v5887
        %v6777 = vunpack.c.l.b16 %v5888
        %v6778 = vunpack.c.l.b16 %v5889
        %v6779 = vunpack.c.h.b16 %v5889
        %v6780 = vunpack.c.l.b16 %v5890
        %v6781 = vunpack.c.l.b16 %v5891
        %v6782 = vunpack.c.h.b16 %v5891
        %v6783 = vunpack.c.l.b16 %v5892
        %v6784 = vunpack.c.l.b16 %v5893
        %v6785 = vunpack.c.h.b16 %v5893
        %v6786 = vunpack.c.l.b16 %v5894
        %v6787 = vunpack.c.l.b16 %v5895
        %v6788 = vunpack.c.h.b16 %v5895
        %v6789 = vunpack.c.l.b16 %v5896
        %v6790 = vunpack.c.l.b16 %v5897
        %v6791 = vunpack.c.h.b16 %v5897
        %v6792 = vunpack.c.l.b16 %v5898
        %v6793 = vunpack.c.l.b16 %v5899
        %v6794 = vunpack.c.h.b16 %v5899
        %v6795 = vunpack.c.l.b16 %v5900
        %v6796 = vunpack.c.l.b16 %v5901
        %v6797 = vunpack.c.h.b16 %v5901
        %v6798 = vunpack.c.l.b16 %v5902
        %v6799 = vunpack.c.l.b16 %v5903
        %v6800 = vunpack.c.h.b16 %v5903
        %v6801 = vunpack.c.l.b16 %v5904
        %v6802 = vunpack.c.l.b16 %v5905
        %v6803 = vunpack.c.h.b16 %v5905
        %v6804 = vunpack.c.l.b16 %v5906
        %v6805 = vunpack.c.l.b16 %v5907
        %v6806 = vunpack.c.h.b16 %v5907
        %v6807 = vunpack.c.l.b16 %v5908
        %v6808 = vunpack.c.l.b16 %v5909
        %v6809 = vunpack.c.h.b16 %v5909
        %v6810 = vunpack.c.l.b16 %v5910
        %v6811 = vunpack.c.l.b16 %v5911
        %v6812 = vunpack.c.h.b16 %v5911
        %v6813 = vunpack.c.l.b16 %v5912
        %v6814 = vunpack.c.l.b16 %v5913
        %v6815 = vunpack.c.h.b16 %v5913
        %v6816 = vunpack.c.l.b16 %v5914
        %v6817 = vunpack.c.l.b16 %v5915
        %v6818 = vunpack.c.h.b16 %v5915
        %v6819 = vunpack.c.l.b16 %v5916
        %v6820 = vunpack.c.l.b16 %v5917
        %v6821 = vunpack.c.h.b16 %v5917
        %v6822 = vunpack.c.l.b16 %v5918
        %v6823 = vunpack.c.l.b16 %v5919
        %v6824 = vunpack.c.h.b16 %v5919
        %v6825 = vunpack.c.l.b16 %v5920
        %v6826 = vunpack.c.l.b16 %v5921
        %v6827 = vunpack.c.h.b16 %v5921
        %v6828 = vunpack.c.l.b16 %v5922
        %v6829 = vunpack.c.l.b16 %v5923
        %v6830 = vunpack.c.h.b16 %v5923
        %v6831 = vunpack.c.l.b16 %v5924
        %v6832 = vunpack.c.l.b16 %v5925
        %v6833 = vunpack.c.h.b16 %v5925
        %v6834 = vunpack.c.l.b16 %v5926
        %v6835 = vunpack.c.l.b16 %v5927
        %v6836 = vunpack.c.h.b16 %v5927
        %v6837 = vunpack.c.l.b16 %v5928
        %v6838 = vunpack.c.l.b16 %v5929
        %v6839 = vunpack.c.h.b16 %v5929
        %v6840 = vunpack.c.l.b16 %v5930
        %v6841 = vunpack.c.l.b16 %v5931
        %v6842 = vunpack.c.h.b16 %v5931
        %v6843 = vunpack.c.l.b16 %v5932
        %v6844 = vunpack.c.l.b16 %v5933
        %v6845 = vunpack.c.h.b16 %v5933
        %v6846 = vunpack.c.l.b16 %v5934
        %v6847 = vunpack.c.l.b16 %v5935
        %v6848 = vunpack.c.h.b16 %v5935
        %v6849 = vunpack.c.l.b16 %v5936
        %v6850 = vunpack.c.l.b16 %v5937
        %v6851 = vunpack.c.h.b16 %v5937
        %v6852 = vunpack.c.l.b16 %v5938
        %v6853 = vunpack.c.l.b16 %v5939
        %v6854 = vunpack.c.h.b16 %v5939
        %v6855 = vunpack.c.l.b16 %v5940
        %v6856 = vunpack.c.l.b16 %v5941
        %v6857 = vunpack.c.h.b16 %v5941
        %v6858 = vunpack.c.l.b16 %v5942
        %v6859 = vunpack.c.l.b16 %v5943
        %v6860 = vunpack.c.h.b16 %v5943
        %v6861 = vunpack.c.l.b16 %v5944
        %v6862 = vunpack.c.l.b16 %v5945
        %v6863 = vunpack.c.h.b16 %v5945
        %v6864 = vunpack.c.l.b16 %v5946
        %v6865 = vunpack.c.l.b16 %v5947
        %v6866 = vunpack.c.h.b16 %v5947
        %v6867 = vunpack.c.l.b16 %v5948
        %v6868 = vunpack.c.l.b16 %v5949
        %v6869 = vunpack.c.h.b16 %v5949
        %v6870 = vunpack.c.l.b16 %v5950
        %v6871 = vunpack.c.l.b16 %v5951
        %v6872 = vunpack.c.h.b16 %v5951
        %v6873 = vunpack.c.l.b16 %v5952
        %v6874 = vunpack.c.l.b16 %v5953
        %v6875 = vunpack.c.h.b16 %v5953
        %v6876 = vunpack.c.l.b16 %v5954
        %v6877 = vunpack.c.l.b16 %v5955
        %v6878 = vunpack.c.h.b16 %v5955
        %v6879 = vunpack.c.l.b16 %v5956
        %v6880 = vunpack.c.l.b16 %v5957
        %v6881 = vunpack.c.h.b16 %v5957
        %v6882 = vunpack.c.l.b16 %v5958
        %v6883 = vunpack.c.l.b16 %v5959
        %v6884 = vunpack.c.h.b16 %v5959
        %v6885 = vunpack.c.l.b16 %v5960
        %v6886 = vunpack.c.l.b16 %v5961
        %v6887 = vunpack.c.h.b16 %v5961
        %v6888 = vunpack.c.l.b16 %v5962
        %v6889 = vunpack.c.l.b16 %v5963
        %v6890 = vunpack.c.h.b16 %v5963
        %v6891 = vunpack.c.l.b16 %v5964
        %v6892 = vunpack.c.l.b16 %v5965
        %v6893 = vunpack.c.h.b16 %v5965
        %v6894 = vunpack.c.l.b16 %v5966
        %v6895 = vunpack.c.l.b16 %v5967
        %v6896 = vunpack.c.h.b16 %v5967
        %v6897 = vunpack.c.l.b16 %v5968
        %v6898 = vunpack.c.l.b16 %v5969
        %v6899 = vunpack.c.h.b16 %v5969
        %v6900 = vunpack.c.l.b16 %v5970
        %v6901 = vunpack.c.l.b16 %v5971
        %v6902 = vunpack.c.h.b16 %v5971
        %v6903 = vunpack.c.l.b16 %v5972
        %v6904 = vunpack.c.l.b16 %v5973
        %v6905 = vunpack.c.h.b16 %v5973
        %v6906 = vunpack.c.l.b16 %v5974
        %v6907 = vunpack.c.l.b16 %v5975
        %v6908 = vunpack.c.h.b16 %v5975
        %v6909 = vunpack.c.l.b16 %v5976
        %v6910 = vunpack.c.l.b16 %v5977
        %v6911 = vunpack.c.h.b16 %v5977
        %v6912 = vunpack.c.l.b16 %v5978
        %v6913 = vunpack.c.l.b16 %v5979
        %v6914 = vunpack.c.h.b16 %v5979
        %v6915 = vunpack.c.l.b16 %v5980
        %v6916 = vunpack.c.l.b16 %v5981
        %v6917 = vunpack.c.h.b16 %v5981
        %v6918 = vunpack.c.l.b16 %v5982
        %v6919 = vunpack.c.l.b16 %v5983
        %v6920 = vunpack.c.h.b16 %v5983
        %v6921 = vunpack.c.l.b16 %v5984
        %v6922 = vunpack.c.l.b16 %v5985
        %v6923 = vunpack.c.h.b16 %v5985
        %v6924 = vunpack.c.l.b16 %v5986
        %v6925 = vunpack.c.l.b16 %v5987
        %v6926 = vunpack.c.h.b16 %v5987
        %v6927 = vunpack.c.l.b16 %v5988
        %v6928 = vunpack.c.l.b16 %v5989
        %v6929 = vunpack.c.h.b16 %v5989
        %v6930 = vunpack.c.l.b16 %v5990
        %v6931 = vunpack.c.l.b16 %v5991
        %v6932 = vunpack.c.h.b16 %v5991
        %v6933 = vunpack.c.l.b16 %v5992
        %v6934 = vunpack.c.l.b16 %v5993
        %v6935 = vunpack.c.h.b16 %v5993
        %v6936 = vunpack.c.l.b16 %v5994
        %v6937 = vunpack.c.l.b16 %v5995
        %v6938 = vunpack.c.h.b16 %v5995
        %v6939 = vunpack.c.l.b16 %v5996
        %v6940 = vunpack.c.l.b16 %v5997
        %v6941 = vunpack.c.h.b16 %v5997
        %v6942 = vunpack.c.l.b16 %v5998
        %v6943 = vunpack.c.l.b16 %v5999
        %v6944 = vunpack.c.h.b16 %v5999
        %v6945 = vunpack.c.l.b16 %v6000
        %v6946 = vunpack.c.l.b16 %v6001
        %v6947 = vunpack.c.h.b16 %v6001
        %v6948 = vunpack.c.l.b16 %v6002
        %v6949 = vunpack.c.l.b16 %v6003
        %v6950 = vunpack.c.h.b16 %v6003
        %v6951 = vunpack.c.l.b16 %v6004
        %v6952 = vunpack.c.l.b16 %v6005
        %v6953 = vunpack.c.h.b16 %v6005
        %v6954 = vunpack.c.l.b16 %v6006
        %v6955 = vunpack.c.l.b16 %v6007
        %v6956 = vunpack.c.h.b16 %v6007
        %v6957 = vunpack.c.l.b16 %v6008
        %v6958 = vunpack.c.l.b16 %v6009
        %v6959 = vunpack.c.h.b16 %v6009
        %v6960 = vunpack.c.l.b16 %v6010
        %v6961 = vunpack.c.l.b16 %v6011
        %v6962 = vunpack.c.h.b16 %v6011
        %v6963 = vunpack.c.l.b16 %v6012
        %v6964 = vunpack.c.l.b16 %v6013
        %v6965 = vunpack.c.h.b16 %v6013
        %v6966 = vunpack.c.l.b16 %v6014
        %v6967 = vunpack.c.l.b16 %v6015
        %v6968 = vunpack.c.h.b16 %v6015
        %v6969 = vunpack.c.l.b16 %v6016
        %v6970 = vunpack.c.l.b16 %v6017
        %v6971 = vunpack.c.h.b16 %v6017
        %v6972 = vunpack.c.l.b16 %v6018
        %v6973 = vunpack.c.l.b16 %v6019
        %v6974 = vunpack.c.h.b16 %v6019
        %v6975 = vunpack.c.l.b16 %v6020
        %v6976 = vunpack.c.l.b16 %v6021
        %v6977 = vunpack.c.h.b16 %v6021
        %v6978 = vunpack.c.l.b16 %v6022
        %v6979 = vunpack.c.l.b16 %v6023
        %v6980 = vunpack.c.h.b16 %v6023
        %v6981 = vunpack.c.l.b16 %v6024
        %v6982 = vunpack.c.l.b16 %v6025
        %v6983 = vunpack.c.h.b16 %v6025
        %v6984 = vunpack.c.l.b16 %v6026
        %v6985 = vunpack.c.l.b16 %v6027
        %v6986 = vunpack.c.h.b16 %v6027
        %v6987 = vunpack.c.l.b16 %v6028
        %v6988 = vunpack.c.l.b16 %v6029
        %v6989 = vunpack.c.h.b16 %v6029
        %v6990 = vunpack.c.l.b16 %v6030
        %v6991 = vunpack.c.l.b16 %v6031
        %v6992 = vunpack.c.h.b16 %v6031
        %v6993 = vunpack.c.l.b16 %v6032
        %v6994 = vunpack.c.l.b16 %v6033
        %v6995 = vunpack.c.h.b16 %v6033
        %v6996 = vunpack.c.l.b16 %v6034
        %v6997 = vunpack.c.l.b16 %v6035
        %v6998 = vunpack.c.h.b16 %v6035
        %v6999 = vunpack.c.l.b16 %v6036
        %v7000 = vunpack.c.l.b16 %v6037
        %v7001 = vunpack.c.h.b16 %v6037
        %v7002 = vunpack.c.l.b16 %v6038
        %v7003 = vunpack.c.l.b16 %v6039
        %v7004 = vunpack.c.h.b16 %v6039
        %v7005 = vunpack.c.l.b16 %v6040
        %v7006 = vunpack.c.l.b16 %v6041
        %v7007 = vunpack.c.h.b16 %v6041
        %v7008 = vunpack.c.l.b16 %v6042
        %v7009 = vunpack.c.l.b16 %v6043
        %v7010 = vunpack.c.h.b16 %v6043
        %v7011 = vunpack.c.l.b16 %v6044
        %v7012 = vunpack.c.l.b16 %v6045
        %v7013 = vunpack.c.h.b16 %v6045
        %v7014 = vunpack.c.l.b16 %v6046
        %v7015 = vpack.c.b16 %v6442, %v6439
        %v7016 = vpack.c.b16 %v6443, %v6440
        %v7017 = vpack.c.b16 %v6444, %v6441
        %v7018 = vpack.c.b16 %v6448, %v6445
        %v7019 = vpack.c.b16 %v6449, %v6446
        %v7020 = vpack.c.b16 %v6450, %v6447
        %v7021 = vpack.c.b16 %v6454, %v6451
        %v7022 = vpack.c.b16 %v6455, %v6452
        %v7023 = vpack.c.b16 %v6456, %v6453
        %v7024 = vpack.c.b16 %v6460, %v6457
        %v7025 = vpack.c.b16 %v6461, %v6458
        %v7026 = vpack.c.b16 %v6462, %v6459
        %v7027 = vpack.c.b16 %v6466, %v6463
        %v7028 = vpack.c.b16 %v6467, %v6464
        %v7029 = vpack.c.b16 %v6468, %v6465
        %v7030 = vpack.c.b16 %v6472, %v6469
        %v7031 = vpack.c.b16 %v6473, %v6470
        %v7032 = vpack.c.b16 %v6474, %v6471
        %v7033 = vpack.c.b16 %v6478, %v6475
        %v7034 = vpack.c.b16 %v6479, %v6476
        %v7035 = vpack.c.b16 %v6480, %v6477
        %v7036 = vpack.c.b16 %v6484, %v6481
        %v7037 = vpack.c.b16 %v6485, %v6482
        %v7038 = vpack.c.b16 %v6486, %v6483
        %v7039 = vpack.c.b16 %v6490, %v6487
        %v7040 = vpack.c.b16 %v6491, %v6488
        %v7041 = vpack.c.b16 %v6492, %v6489
        %v7042 = vpack.c.b16 %v6496, %v6493
        %v7043 = vpack.c.b16 %v6497, %v6494
        %v7044 = vpack.c.b16 %v6498, %v6495
        %v7045 = vpack.c.b16 %v6502, %v6499
        %v7046 = vpack.c.b16 %v6503, %v6500
        %v7047 = vpack.c.b16 %v6504, %v6501
        %v7048 = vpack.c.b16 %v6508, %v6505
        %v7049 = vpack.c.b16 %v6509, %v6506
        %v7050 = vpack.c.b16 %v6510, %v6507
        %v7051 = vpack.c.b16 %v6514, %v6511
        %v7052 = vpack.c.b16 %v6515, %v6512
        %v7053 = vpack.c.b16 %v6516, %v6513
        %v7054 = vpack.c.b16 %v6520, %v6517
        %v7055 = vpack.c.b16 %v6521, %v6518
        %v7056 = vpack.c.b16 %v6522, %v6519
        %v7057 = vpack.c.b16 %v6526, %v6523
        %v7058 = vpack.c.b16 %v6527, %v6524
        %v7059 = vpack.c.b16 %v6528, %v6525
        %v7060 = vpack.c.b16 %v6532, %v6529
        %v7061 = vpack.c.b16 %v6533, %v6530
        %v7062 = vpack.c.b16 %v6534, %v6531
        %v7063 = vpack.c.b16 %v6538, %v6535
        %v7064 = vpack.c.b16 %v6539, %v6536
        %v7065 = vpack.c.b16 %v6540, %v6537
        %v7066 = vpack.c.b16 %v6544, %v6541
        %v7067 = vpack.c.b16 %v6545, %v6542
        %v7068 = vpack.c.b16 %v6546, %v6543
        %v7069 = vpack.c.b16 %v6550, %v6547
        %v7070 = vpack.c.b16 %v6551, %v6548
        %v7071 = vpack.c.b16 %v6552, %v6549
        %v7072 = vpack.c.b16 %v6556, %v6553
        %v7073 = vpack.c.b16 %v6557, %v6554
        %v7074 = vpack.c.b16 %v6558, %v6555
        %v7075 = vpack.c.b16 %v6562, %v6559
        %v7076 = vpack.c.b16 %v6563, %v6560
        %v7077 = vpack.c.b16 %v6564, %v6561
        %v7078 = vpack.c.b16 %v6568, %v6565
        %v7079 = vpack.c.b16 %v6569, %v6566
        %v7080 = vpack.c.b16 %v6570, %v6567
        %v7081 = vpack.c.b16 %v6574, %v6571
        %v7082 = vpack.c.b16 %v6575, %v6572
        %v7083 = vpack.c.b16 %v6576, %v6573
        %v7084 = vpack.c.b16 %v6580, %v6577
        %v7085 = vpack.c.b16 %v6581, %v6578
        %v7086 = vpack.c.b16 %v6582, %v6579
        %v7087 = vpack.c.b16 %v6586, %v6583
        %v7088 = vpack.c.b16 %v6587, %v6584
        %v7089 = vpack.c.b16 %v6588, %v6585
        %v7090 = vpack.c.b16 %v6592, %v6589
        %v7091 = vpack.c.b16 %v6593, %v6590
        %v7092 = vpack.c.b16 %v6594, %v6591
        %v7093 = vpack.c.b16 %v6598, %v6595
        %v7094 = vpack.c.b16 %v6599, %v6596
        %v7095 = vpack.c.b16 %v6600, %v6597
        %v7096 = vpack.c.b16 %v6604, %v6601
        %v7097 = vpack.c.b16 %v6605, %v6602
        %v7098 = vpack.c.b16 %v6606, %v6603
        %v7099 = vpack.c.b16 %v6610, %v6607
        %v7100 = vpack.c.b16 %v6611, %v6608
        %v7101 = vpack.c.b16 %v6612, %v6609
        %v7102 = vpack.c.b16 %v6616, %v6613
        %v7103 = vpack.c.b16 %v6617, %v6614
        %v7104 = vpack.c.b16 %v6618, %v6615
        %v7105 = vpack.c.b16 %v6622, %v6619
        %v7106 = vpack.c.b16 %v6623, %v6620
        %v7107 = vpack.c.b16 %v6624, %v6621
        %v7108 = vpack.c.b16 %v6628, %v6625
        %v7109 = vpack.c.b16 %v6629, %v6626
        %v7110 = vpack.c.b16 %v6630, %v6627
        %v7111 = vpack.c.b16 %v6634, %v6631
        %v7112 = vpack.c.b16 %v6635, %v6632
        %v7113 = vpack.c.b16 %v6636, %v6633
        %v7114 = vpack.c.b16 %v6640, %v6637
        %v7115 = vpack.c.b16 %v6641, %v6638
        %v7116 = vpack.c.b16 %v6642, %v6639
        %v7117 = vpack.c.b16 %v6646, %v6643
        %v7118 = vpack.c.b16 %v6647, %v6644
        %v7119 = vpack.c.b16 %v6648, %v6645
        %v7120 = vpack.c.b16 %v6652, %v6649
        %v7121 = vpack.c.b16 %v6653, %v6650
        %v7122 = vpack.c.b16 %v6654, %v6651
        %v7123 = vpack.c.b16 %v6658, %v6655
        %v7124 = vpack.c.b16 %v6659, %v6656
        %v7125 = vpack.c.b16 %v6660, %v6657
        %v7126 = vpack.c.b16 %v6664, %v6661
        %v7127 = vpack.c.b16 %v6665, %v6662
        %v7128 = vpack.c.b16 %v6666, %v6663
        %v7129 = vpack.c.b16 %v6670, %v6667
        %v7130 = vpack.c.b16 %v6671, %v6668
        %v7131 = vpack.c.b16 %v6672, %v6669
        %v7132 = vpack.c.b16 %v6676, %v6673
        %v7133 = vpack.c.b16 %v6677, %v6674
        %v7134 = vpack.c.b16 %v6678, %v6675
        %v7135 = vpack.c.b16 %v6682, %v6679
        %v7136 = vpack.c.b16 %v6683, %v6680
        %v7137 = vpack.c.b16 %v6684, %v6681
        %v7138 = vpack.c.b16 %v6688, %v6685
        %v7139 = vpack.c.b16 %v6689, %v6686
        %v7140 = vpack.c.b16 %v6690, %v6687
        %v7141 = vpack.c.b16 %v6694, %v6691
        %v7142 = vpack.c.b16 %v6695, %v6692
        %v7143 = vpack.c.b16 %v6696, %v6693
        %v7144 = vpack.c.b16 %v6700, %v6697
        %v7145 = vpack.c.b16 %v6701, %v6698
        %v7146 = vpack.c.b16 %v6702, %v6699
        %v7147 = vpack.c.b16 %v6706, %v6703
        %v7148 = vpack.c.b16 %v6707, %v6704
        %v7149 = vpack.c.b16 %v6708, %v6705
        %v7150 = vpack.c.b16 %v6712, %v6709
        %v7151 = vpack.c.b16 %v6713, %v6710
        %v7152 = vpack.c.b16 %v6714, %v6711
        %v7153 = vpack.c.b16 %v6718, %v6715
        %v7154 = vpack.c.b16 %v6719, %v6716
        %v7155 = vpack.c.b16 %v6720, %v6717
        %v7156 = vpack.c.b16 %v6724, %v6721
        %v7157 = vpack.c.b16 %v6725, %v6722
        %v7158 = vpack.c.b16 %v6726, %v6723
        %v7159 = vpack.c.b16 %v6730, %v6727
        %v7160 = vpack.c.b16 %v6731, %v6728
        %v7161 = vpack.c.b16 %v6732, %v6729
        %v7162 = vpack.c.b16 %v6736, %v6733
        %v7163 = vpack.c.b16 %v6737, %v6734
        %v7164 = vpack.c.b16 %v6738, %v6735
        %v7165 = vpack.c.b16 %v6742, %v6739
        %v7166 = vpack.c.b16 %v6743, %v6740
        %v7167 = vpack.c.b16 %v6744, %v6741
        %v7168 = vpack.c.b16 %v6748, %v6745
        %v7169 = vpack.c.b16 %v6749, %v6746
        %v7170 = vpack.c.b16 %v6750, %v6747
        %v7171 = vpack.c.b16 %v6754, %v6751
        %v7172 = vpack.c.b16 %v6755, %v6752
        %v7173 = vpack.c.b16 %v6756, %v6753
        %v7174 = vpack.c.b16 %v6760, %v6757
        %v7175 = vpack.c.b16 %v6761, %v6758
        %v7176 = vpack.c.b16 %v6762, %v6759
        %v7177 = vpack.c.b16 %v6766, %v6763
        %v7178 = vpack.c.b16 %v6767, %v6764
        %v7179 = vpack.c.b16 %v6768, %v6765
        %v7180 = vpack.c.b16 %v6772, %v6769
        %v7181 = vpack.c.b16 %v6773, %v6770
        %v7182 = vpack.c.b16 %v6774, %v6771
        %v7183 = vpack.c.b16 %v6778, %v6775
        %v7184 = vpack.c.b16 %v6779, %v6776
        %v7185 = vpack.c.b16 %v6780, %v6777
        %v7186 = vpack.c.b16 %v6784, %v6781
        %v7187 = vpack.c.b16 %v6785, %v6782
        %v7188 = vpack.c.b16 %v6786, %v6783
        %v7189 = vpack.c.b16 %v6790, %v6787
        %v7190 = vpack.c.b16 %v6791, %v6788
        %v7191 = vpack.c.b16 %v6792, %v6789
        %v7192 = vpack.c.b16 %v6796, %v6793
        %v7193 = vpack.c.b16 %v6797, %v6794
        %v7194 = vpack.c.b16 %v6798, %v6795
        %v7195 = vpack.c.b16 %v6802, %v6799
        %v7196 = vpack.c.b16 %v6803, %v6800
        %v7197 = vpack.c.b16 %v6804, %v6801
        %v7198 = vpack.c.b16 %v6808, %v6805
        %v7199 = vpack.c.b16 %v6809, %v6806
        %v7200 = vpack.c.b16 %v6810, %v6807
        %v7201 = vpack.c.b16 %v6814, %v6811
        %v7202 = vpack.c.b16 %v6815, %v6812
        %v7203 = vpack.c.b16 %v6816, %v6813
        %v7204 = vpack.c.b16 %v6820, %v6817
        %v7205 = vpack.c.b16 %v6821, %v6818
        %v7206 = vpack.c.b16 %v6822, %v6819
        %v7207 = vpack.c.b16 %v6826, %v6823
        %v7208 = vpack.c.b16 %v6827, %v6824
        %v7209 = vpack.c.b16 %v6828, %v6825
        %v7210 = vpack.c.b16 %v6832, %v6829
        %v7211 = vpack.c.b16 %v6833, %v6830
        %v7212 = vpack.c.b16 %v6834, %v6831
        %v7213 = vpack.c.b16 %v6838, %v6835
        %v7214 = vpack.c.b16 %v6839, %v6836
        %v7215 = vpack.c.b16 %v6840, %v6837
        %v7216 = vpack.c.b16 %v6844, %v6841
        %v7217 = vpack.c.b16 %v6845, %v6842
        %v7218 = vpack.c.b16 %v6846, %v6843
        %v7219 = vpack.c.b16 %v6850, %v6847
        %v7220 = vpack.c.b16 %v6851, %v6848
        %v7221 = vpack.c.b16 %v6852, %v6849
        %v7222 = vpack.c.b16 %v6856, %v6853
        %v7223 = vpack.c.b16 %v6857, %v6854
        %v7224 = vpack.c.b16 %v6858, %v6855
        %v7225 = vpack.c.b16 %v6862, %v6859
        %v7226 = vpack.c.b16 %v6863, %v6860
        %v7227 = vpack.c.b16 %v6864, %v6861
        %v7228 = vpack.c.b16 %v6868, %v6865
        %v7229 = vpack.c.b16 %v6869, %v6866
        %v7230 = vpack.c.b16 %v6870, %v6867
        %v7231 = vpack.c.b16 %v6874, %v6871
        %v7232 = vpack.c.b16 %v6875, %v6872
        %v7233 = vpack.c.b16 %v6876, %v6873
        %v7234 = vpack.c.b16 %v6880, %v6877
        %v7235 = vpack.c.b16 %v6881, %v6878
        %v7236 = vpack.c.b16 %v6882, %v6879
        %v7237 = vpack.c.b16 %v6886, %v6883
        %v7238 = vpack.c.b16 %v6887, %v6884
        %v7239 = vpack.c.b16 %v6888, %v6885
        %v7240 = vpack.c.b16 %v6892, %v6889
        %v7241 = vpack.c.b16 %v6893, %v6890
        %v7242 = vpack.c.b16 %v6894, %v6891
        %v7243 = vpack.c.b16 %v6898, %v6895
        %v7244 = vpack.c.b16 %v6899, %v6896
        %v7245 = vpack.c.b16 %v6900, %v6897
        %v7246 = vpack.c.b16 %v6904, %v6901
        %v7247 = vpack.c.b16 %v6905, %v6902
        %v7248 = vpack.c.b16 %v6906, %v6903
        %v7249 = vpack.c.b16 %v6910, %v6907
        %v7250 = vpack.c.b16 %v6911, %v6908
        %v7251 = vpack.c.b16 %v6912, %v6909
        %v7252 = vpack.c.b16 %v6916, %v6913
        %v7253 = vpack.c.b16 %v6917, %v6914
        %v7254 = vpack.c.b16 %v6918, %v6915
        %v7255 = vpack.c.b16 %v6922, %v6919
        %v7256 = vpack.c.b16 %v6923, %v6920
        %v7257 = vpack.c.b16 %v6924, %v6921
        %v7258 = vpack.c.b16 %v6928, %v6925
        %v7259 = vpack.c.b16 %v6929, %v6926
        %v7260 = vpack.c.b16 %v6930, %v6927
        %v7261 = vpack.c.b16 %v6934, %v6931
        %v7262 = vpack.c.b16 %v6935, %v6932
        %v7263 = vpack.c.b16 %v6936, %v6933
        %v7264 = vpack.c.b16 %v6940, %v6937
        %v7265 = vpack.c.b16 %v6941, %v6938
        %v7266 = vpack.c.b16 %v6942, %v6939
        %v7267 = vpack.c.b16 %v6946, %v6943
        %v7268 = vpack.c.b16 %v6947, %v6944
        %v7269 = vpack.c.b16 %v6948, %v6945
        %v7270 = vpack.c.b16 %v6952, %v6949
        %v7271 = vpack.c.b16 %v6953, %v6950
        %v7272 = vpack.c.b16 %v6954, %v6951
        %v7273 = vpack.c.b16 %v6958, %v6955
        %v7274 = vpack.c.b16 %v6959, %v6956
        %v7275 = vpack.c.b16 %v6960, %v6957
        %v7276 = vpack.c.b16 %v6964, %v6961
        %v7277 = vpack.c.b16 %v6965, %v6962
        %v7278 = vpack.c.b16 %v6966, %v6963
        %v7279 = vpack.c.b16 %v6970, %v6967
        %v7280 = vpack.c.b16 %v6971, %v6968
        %v7281 = vpack.c.b16 %v6972, %v6969
        %v7282 = vpack.c.b16 %v6976, %v6973
        %v7283 = vpack.c.b16 %v6977, %v6974
        %v7284 = vpack.c.b16 %v6978, %v6975
        %v7285 = vpack.c.b16 %v6982, %v6979
        %v7286 = vpack.c.b16 %v6983, %v6980
        %v7287 = vpack.c.b16 %v6984, %v6981
        %v7288 = vpack.c.b16 %v6988, %v6985
        %v7289 = vpack.c.b16 %v6989, %v6986
        %v7290 = vpack.c.b16 %v6990, %v6987
        %v7291 = vpack.c.b16 %v6994, %v6991
        %v7292 = vpack.c.b16 %v6995, %v6992
        %v7293 = vpack.c.b16 %v6996, %v6993
        %v7294 = vpack.c.b16 %v7000, %v6997
        %v7295 = vpack.c.b16 %v7001, %v6998
        %v7296 = vpack.c.b16 %v7002, %v6999
        %v7297 = vpack.c.b16 %v7006, %v7003
        %v7298 = vpack.c.b16 %v7007, %v7004
        %v7299 = vpack.c.b16 %v7008, %v7005
        %v7300 = vpack.c.b16 %v7012, %v7009
        %v7301 = vpack.c.b16 %v7013, %v7010
        %v7302 = vpack.c.b16 %v7014, %v7011
        %7591 = vmatpush.bf16.msra.mxu0 %v7036
        %7592 = vmatpush.bf16.msra.mxu0 %v7033
        %7593 = vmatpush.bf16.msra.mxu0 %v7030
        %7594 = vmatpush.bf16.msra.mxu0 %v7027
        %7595 = vmatpush.bf16.msra.mxu0 %v7024
        %7596 = vmatpush.bf16.msra.mxu0 %v7021
        %7597 = vmatpush.bf16.msra.mxu0 %v7018
        %7598 = vmatpush.bf16.msra.mxu0 %v7015
        %7599 = vmatmul.bf16.gmra.mxu0 %v5651
        %v7600 = vpop.f32.mrf.mxu0
        %v7601 = vadd.f32 %v6049, %v7600
        %v7602 = vpop.f32.mrf.mxu0
        %7603 = vdwg.mxu0
        %7604 = vmatpush.bf16.msra.mxu0 %v7060
        %7605 = vmatpush.bf16.msra.mxu0 %v7057
        %7606 = vmatpush.bf16.msra.mxu0 %v7054
        %7607 = vmatpush.bf16.msra.mxu0 %v7051
        %7608 = vmatpush.bf16.msra.mxu0 %v7048
        %7609 = vmatpush.bf16.msra.mxu0 %v7045
        %7610 = vmatpush.bf16.msra.mxu0 %v7042
        %7611 = vmatpush.bf16.msra.mxu0 %v7039
        %7612 = vmatmul.bf16.gmra.mxu0 %v5652
        %v7613 = vpop.f32.mrf.mxu0
        %v7614 = vadd.f32 %v7601, %v7613
        %v7615 = vpop.f32.mrf.mxu0
        %7616 = vdwg.mxu0
        %7617 = vmatpush.bf16.msra.mxu0 %v7084
        %7618 = vmatpush.bf16.msra.mxu0 %v7081
        %7619 = vmatpush.bf16.msra.mxu0 %v7078
        %7620 = vmatpush.bf16.msra.mxu0 %v7075
        %7621 = vmatpush.bf16.msra.mxu0 %v7072
        %7622 = vmatpush.bf16.msra.mxu0 %v7069
        %7623 = vmatpush.bf16.msra.mxu0 %v7066
        %7624 = vmatpush.bf16.msra.mxu0 %v7063
        %7625 = vmatmul.bf16.gmra.mxu0 %v5653
        %v7626 = vpop.f32.mrf.mxu0
        %v7627 = vadd.f32 %v7614, %v7626
        %v7628 = vpop.f32.mrf.mxu0
        %7629 = vdwg.mxu0
        %7630 = vmatpush.bf16.msra.mxu0 %v7108
        %7631 = vmatpush.bf16.msra.mxu0 %v7105
        %7632 = vmatpush.bf16.msra.mxu0 %v7102
        %7633 = vmatpush.bf16.msra.mxu0 %v7099
        %7634 = vmatpush.bf16.msra.mxu0 %v7096
        %7635 = vmatpush.bf16.msra.mxu0 %v7093
        %7636 = vmatpush.bf16.msra.mxu0 %v7090
        %7637 = vmatpush.bf16.msra.mxu0 %v7087
        %7638 = vmatmul.bf16.gmra.mxu0 %v5654
        %v7639 = vpop.f32.mrf.mxu0
        %v7640 = vadd.f32 %v7627, %v7639
        %v7641 = vpop.f32.mrf.mxu0
        %7642 = vdwg.mxu0
        %7643 = vmatpush.bf16.msra.mxu0 %v7132
        %7644 = vmatpush.bf16.msra.mxu0 %v7129
        %7645 = vmatpush.bf16.msra.mxu0 %v7126
        %7646 = vmatpush.bf16.msra.mxu0 %v7123
        %7647 = vmatpush.bf16.msra.mxu0 %v7120
        %7648 = vmatpush.bf16.msra.mxu0 %v7117
        %7649 = vmatpush.bf16.msra.mxu0 %v7114
        %7650 = vmatpush.bf16.msra.mxu0 %v7111
        %7651 = vmatmul.bf16.gmra.mxu0 %v5655
        %v7652 = vpop.f32.mrf.mxu0
        %v7653 = vadd.f32 %v7640, %v7652
        %v7654 = vpop.f32.mrf.mxu0
        %7655 = vdwg.mxu0
        %7656 = vmatpush.bf16.msra.mxu0 %v7156
        %7657 = vmatpush.bf16.msra.mxu0 %v7153
        %7658 = vmatpush.bf16.msra.mxu0 %v7150
        %7659 = vmatpush.bf16.msra.mxu0 %v7147
        %7660 = vmatpush.bf16.msra.mxu0 %v7144
        %7661 = vmatpush.bf16.msra.mxu0 %v7141
        %7662 = vmatpush.bf16.msra.mxu0 %v7138
        %7663 = vmatpush.bf16.msra.mxu0 %v7135
        %7664 = vmatmul.bf16.gmra.mxu0 %v5656
        %v7665 = vpop.f32.mrf.mxu0
        %v7666 = vadd.f32 %v7653, %v7665
        %v7667 = vpop.f32.mrf.mxu0
        %7668 = vdwg.mxu0
        %7669 = vmatpush.bf16.msra.mxu0 %v7180
        %7670 = vmatpush.bf16.msra.mxu0 %v7177
        %7671 = vmatpush.bf16.msra.mxu0 %v7174
        %7672 = vmatpush.bf16.msra.mxu0 %v7171
        %7673 = vmatpush.bf16.msra.mxu0 %v7168
        %7674 = vmatpush.bf16.msra.mxu0 %v7165
        %7675 = vmatpush.bf16.msra.mxu0 %v7162
        %7676 = vmatpush.bf16.msra.mxu0 %v7159
        %7677 = vmatmul.bf16.gmra.mxu0 %v5657
        %v7678 = vpop.f32.mrf.mxu0
        %v7679 = vadd.f32 %v7666, %v7678
        %v7680 = vpop.f32.mrf.mxu0
        %7681 = vdwg.mxu0
        %7682 = vmatpush.bf16.msra.mxu0 %v7204
        %7683 = vmatpush.bf16.msra.mxu0 %v7201
        %7684 = vmatpush.bf16.msra.mxu0 %v7198
        %7685 = vmatpush.bf16.msra.mxu0 %v7195
        %7686 = vmatpush.bf16.msra.mxu0 %v7192
        %7687 = vmatpush.bf16.msra.mxu0 %v7189
        %7688 = vmatpush.bf16.msra.mxu0 %v7186
        %7689 = vmatpush.bf16.msra.mxu0 %v7183
        %7690 = vmatmul.bf16.gmra.mxu0 %v5658
        %v7691 = vpop.f32.mrf.mxu0
        %v7692 = vadd.f32 %v7679, %v7691
        %v7693 = vpop.f32.mrf.mxu0
        %7694 = vdwg.mxu0
        %7695 = vmatpush.bf16.msra.mxu0 %v7228
        %7696 = vmatpush.bf16.msra.mxu0 %v7225
        %7697 = vmatpush.bf16.msra.mxu0 %v7222
        %7698 = vmatpush.bf16.msra.mxu0 %v7219
        %7699 = vmatpush.bf16.msra.mxu0 %v7216
        %7700 = vmatpush.bf16.msra.mxu0 %v7213
        %7701 = vmatpush.bf16.msra.mxu0 %v7210
        %7702 = vmatpush.bf16.msra.mxu0 %v7207
        %7703 = vmatmul.bf16.gmra.mxu0 %v5659
        %v7704 = vpop.f32.mrf.mxu0
        %v7705 = vadd.f32 %v7692, %v7704
        %v7706 = vpop.f32.mrf.mxu0
        %7707 = vdwg.mxu0
        %7708 = vmatpush.bf16.msra.mxu0 %v7252
        %7709 = vmatpush.bf16.msra.mxu0 %v7249
        %7710 = vmatpush.bf16.msra.mxu0 %v7246
        %7711 = vmatpush.bf16.msra.mxu0 %v7243
        %7712 = vmatpush.bf16.msra.mxu0 %v7240
        %7713 = vmatpush.bf16.msra.mxu0 %v7237
        %7714 = vmatpush.bf16.msra.mxu0 %v7234
        %7715 = vmatpush.bf16.msra.mxu0 %v7231
        %7716 = vmatmul.bf16.gmra.mxu0 %v5660
        %v7717 = vpop.f32.mrf.mxu0
        %v7718 = vadd.f32 %v7705, %v7717
        %v7719 = vpop.f32.mrf.mxu0
        %7720 = vdwg.mxu0
        %7721 = vmatpush.bf16.msra.mxu0 %v7276
        %7722 = vmatpush.bf16.msra.mxu0 %v7273
        %7723 = vmatpush.bf16.msra.mxu0 %v7270
        %7724 = vmatpush.bf16.msra.mxu0 %v7267
        %7725 = vmatpush.bf16.msra.mxu0 %v7264
        %7726 = vmatpush.bf16.msra.mxu0 %v7261
        %7727 = vmatpush.bf16.msra.mxu0 %v7258
        %7728 = vmatpush.bf16.msra.mxu0 %v7255
        %7729 = vmatmul.bf16.gmra.mxu0 %v5661
        %v7730 = vpop.f32.mrf.mxu0
        %v7731 = vadd.f32 %v7718, %v7730
        %v7732 = vpop.f32.mrf.mxu0
        %7733 = vdwg.mxu0
        %7734 = vmatpush.bf16.msra.mxu0 %v7300
        %7735 = vmatpush.bf16.msra.mxu0 %v7297
        %7736 = vmatpush.bf16.msra.mxu0 %v7294
        %7737 = vmatpush.bf16.msra.mxu0 %v7291
        %7738 = vmatpush.bf16.msra.mxu0 %v7288
        %7739 = vmatpush.bf16.msra.mxu0 %v7285
        %7740 = vmatpush.bf16.msra.mxu0 %v7282
        %7741 = vmatpush.bf16.msra.mxu0 %v7279
        %7742 = vmatmul.bf16.gmra.mxu0 %v5662
        %v7743 = vpop.f32.mrf.mxu0
        %v7744 = vadd.f32 %v7731, %v7743
        %v7745 = vpop.f32.mrf.mxu0
        %7746 = vdwg.mxu0
        %7747 = vmatpush.bf16.msra.mxu0 %v7037
        %7748 = vmatpush.bf16.msra.mxu0 %v7034
        %7749 = vmatpush.bf16.msra.mxu0 %v7031
        %7750 = vmatpush.bf16.msra.mxu0 %v7028
        %7751 = vmatpush.bf16.msra.mxu0 %v7025
        %7752 = vmatpush.bf16.msra.mxu0 %v7022
        %7753 = vmatpush.bf16.msra.mxu0 %v7019
        %7754 = vmatpush.bf16.msra.mxu0 %v7016
        %7755 = vmatmul.bf16.gmra.mxu0 %v5651
        %v7756 = vpop.f32.mrf.mxu0
        %v7757 = vadd.f32 %v6050, %v7756
        %v7758 = vpop.f32.mrf.mxu0
        %7759 = vdwg.mxu0
        %7760 = vmatpush.bf16.msra.mxu0 %v7061
        %7761 = vmatpush.bf16.msra.mxu0 %v7058
        %7762 = vmatpush.bf16.msra.mxu0 %v7055
        %7763 = vmatpush.bf16.msra.mxu0 %v7052
        %7764 = vmatpush.bf16.msra.mxu0 %v7049
        %7765 = vmatpush.bf16.msra.mxu0 %v7046
        %7766 = vmatpush.bf16.msra.mxu0 %v7043
        %7767 = vmatpush.bf16.msra.mxu0 %v7040
        %7768 = vmatmul.bf16.gmra.mxu0 %v5652
        %v7769 = vpop.f32.mrf.mxu0
        %v7770 = vadd.f32 %v7757, %v7769
        %v7771 = vpop.f32.mrf.mxu0
        %7772 = vdwg.mxu0
        %7773 = vmatpush.bf16.msra.mxu0 %v7085
        %7774 = vmatpush.bf16.msra.mxu0 %v7082
        %7775 = vmatpush.bf16.msra.mxu0 %v7079
        %7776 = vmatpush.bf16.msra.mxu0 %v7076
        %7777 = vmatpush.bf16.msra.mxu0 %v7073
        %7778 = vmatpush.bf16.msra.mxu0 %v7070
        %7779 = vmatpush.bf16.msra.mxu0 %v7067
        %7780 = vmatpush.bf16.msra.mxu0 %v7064
        %7781 = vmatmul.bf16.gmra.mxu0 %v5653
        %v7782 = vpop.f32.mrf.mxu0
        %v7783 = vadd.f32 %v7770, %v7782
        %v7784 = vpop.f32.mrf.mxu0
        %7785 = vdwg.mxu0
        %7786 = vmatpush.bf16.msra.mxu0 %v7109
        %7787 = vmatpush.bf16.msra.mxu0 %v7106
        %7788 = vmatpush.bf16.msra.mxu0 %v7103
        %7789 = vmatpush.bf16.msra.mxu0 %v7100
        %7790 = vmatpush.bf16.msra.mxu0 %v7097
        %7791 = vmatpush.bf16.msra.mxu0 %v7094
        %7792 = vmatpush.bf16.msra.mxu0 %v7091
        %7793 = vmatpush.bf16.msra.mxu0 %v7088
        %7794 = vmatmul.bf16.gmra.mxu0 %v5654
        %v7795 = vpop.f32.mrf.mxu0
        %v7796 = vadd.f32 %v7783, %v7795
        %v7797 = vpop.f32.mrf.mxu0
        %7798 = vdwg.mxu0
        %7799 = vmatpush.bf16.msra.mxu0 %v7133
        %7800 = vmatpush.bf16.msra.mxu0 %v7130
        %7801 = vmatpush.bf16.msra.mxu0 %v7127
        %7802 = vmatpush.bf16.msra.mxu0 %v7124
        %7803 = vmatpush.bf16.msra.mxu0 %v7121
        %7804 = vmatpush.bf16.msra.mxu0 %v7118
        %7805 = vmatpush.bf16.msra.mxu0 %v7115
        %7806 = vmatpush.bf16.msra.mxu0 %v7112
        %7807 = vmatmul.bf16.gmra.mxu0 %v5655
        %v7808 = vpop.f32.mrf.mxu0
        %v7809 = vadd.f32 %v7796, %v7808
        %v7810 = vpop.f32.mrf.mxu0
        %7811 = vdwg.mxu0
        %7812 = vmatpush.bf16.msra.mxu0 %v7157
        %7813 = vmatpush.bf16.msra.mxu0 %v7154
        %7814 = vmatpush.bf16.msra.mxu0 %v7151
        %7815 = vmatpush.bf16.msra.mxu0 %v7148
        %7816 = vmatpush.bf16.msra.mxu0 %v7145
        %7817 = vmatpush.bf16.msra.mxu0 %v7142
        %7818 = vmatpush.bf16.msra.mxu0 %v7139
        %7819 = vmatpush.bf16.msra.mxu0 %v7136
        %7820 = vmatmul.bf16.gmra.mxu0 %v5656
        %v7821 = vpop.f32.mrf.mxu0
        %v7822 = vadd.f32 %v7809, %v7821
        %v7823 = vpop.f32.mrf.mxu0
        %7824 = vdwg.mxu0
        %7825 = vmatpush.bf16.msra.mxu0 %v7181
        %7826 = vmatpush.bf16.msra.mxu0 %v7178
        %7827 = vmatpush.bf16.msra.mxu0 %v7175
        %7828 = vmatpush.bf16.msra.mxu0 %v7172
        %7829 = vmatpush.bf16.msra.mxu0 %v7169
        %7830 = vmatpush.bf16.msra.mxu0 %v7166
        %7831 = vmatpush.bf16.msra.mxu0 %v7163
        %7832 = vmatpush.bf16.msra.mxu0 %v7160
        %7833 = vmatmul.bf16.gmra.mxu0 %v5657
        %v7834 = vpop.f32.mrf.mxu0
        %v7835 = vadd.f32 %v7822, %v7834
        %v7836 = vpop.f32.mrf.mxu0
        %7837 = vdwg.mxu0
        %7838 = vmatpush.bf16.msra.mxu0 %v7205
        %7839 = vmatpush.bf16.msra.mxu0 %v7202
        %7840 = vmatpush.bf16.msra.mxu0 %v7199
        %7841 = vmatpush.bf16.msra.mxu0 %v7196
        %7842 = vmatpush.bf16.msra.mxu0 %v7193
        %7843 = vmatpush.bf16.msra.mxu0 %v7190
        %7844 = vmatpush.bf16.msra.mxu0 %v7187
        %7845 = vmatpush.bf16.msra.mxu0 %v7184
        %7846 = vmatmul.bf16.gmra.mxu0 %v5658
        %v7847 = vpop.f32.mrf.mxu0
        %v7848 = vadd.f32 %v7835, %v7847
        %v7849 = vpop.f32.mrf.mxu0
        %7850 = vdwg.mxu0
        %7851 = vmatpush.bf16.msra.mxu0 %v7229
        %7852 = vmatpush.bf16.msra.mxu0 %v7226
        %7853 = vmatpush.bf16.msra.mxu0 %v7223
        %7854 = vmatpush.bf16.msra.mxu0 %v7220
        %7855 = vmatpush.bf16.msra.mxu0 %v7217
        %7856 = vmatpush.bf16.msra.mxu0 %v7214
        %7857 = vmatpush.bf16.msra.mxu0 %v7211
        %7858 = vmatpush.bf16.msra.mxu0 %v7208
        %7859 = vmatmul.bf16.gmra.mxu0 %v5659
        %v7860 = vpop.f32.mrf.mxu0
        %v7861 = vadd.f32 %v7848, %v7860
        %v7862 = vpop.f32.mrf.mxu0
        %7863 = vdwg.mxu0
        %7864 = vmatpush.bf16.msra.mxu0 %v7253
        %7865 = vmatpush.bf16.msra.mxu0 %v7250
        %7866 = vmatpush.bf16.msra.mxu0 %v7247
        %7867 = vmatpush.bf16.msra.mxu0 %v7244
        %7868 = vmatpush.bf16.msra.mxu0 %v7241
        %7869 = vmatpush.bf16.msra.mxu0 %v7238
        %7870 = vmatpush.bf16.msra.mxu0 %v7235
        %7871 = vmatpush.bf16.msra.mxu0 %v7232
        %7872 = vmatmul.bf16.gmra.mxu0 %v5660
        %v7873 = vpop.f32.mrf.mxu0
        %v7874 = vadd.f32 %v7861, %v7873
        %v7875 = vpop.f32.mrf.mxu0
        %7876 = vdwg.mxu0
        %7877 = vmatpush.bf16.msra.mxu0 %v7277
        %7878 = vmatpush.bf16.msra.mxu0 %v7274
        %7879 = vmatpush.bf16.msra.mxu0 %v7271
        %7880 = vmatpush.bf16.msra.mxu0 %v7268
        %7881 = vmatpush.bf16.msra.mxu0 %v7265
        %7882 = vmatpush.bf16.msra.mxu0 %v7262
        %7883 = vmatpush.bf16.msra.mxu0 %v7259
        %7884 = vmatpush.bf16.msra.mxu0 %v7256
        %7885 = vmatmul.bf16.gmra.mxu0 %v5661
        %v7886 = vpop.f32.mrf.mxu0
        %v7887 = vadd.f32 %v7874, %v7886
        %v7888 = vpop.f32.mrf.mxu0
        %7889 = vdwg.mxu0
        %7890 = vmatpush.bf16.msra.mxu0 %v7301
        %7891 = vmatpush.bf16.msra.mxu0 %v7298
        %7892 = vmatpush.bf16.msra.mxu0 %v7295
        %7893 = vmatpush.bf16.msra.mxu0 %v7292
        %7894 = vmatpush.bf16.msra.mxu0 %v7289
        %7895 = vmatpush.bf16.msra.mxu0 %v7286
        %7896 = vmatpush.bf16.msra.mxu0 %v7283
        %7897 = vmatpush.bf16.msra.mxu0 %v7280
        %7898 = vmatmul.bf16.gmra.mxu0 %v5662
        %v7899 = vpop.f32.mrf.mxu0
        %v7900 = vadd.f32 %v7887, %v7899
        %v7901 = vpop.f32.mrf.mxu0
        %7902 = vdwg.mxu0
        %7903 = vmatpush.bf16.msra.mxu0 %v7038
        %7904 = vmatpush.bf16.msra.mxu0 %v7035
        %7905 = vmatpush.bf16.msra.mxu0 %v7032
        %7906 = vmatpush.bf16.msra.mxu0 %v7029
        %7907 = vmatpush.bf16.msra.mxu0 %v7026
        %7908 = vmatpush.bf16.msra.mxu0 %v7023
        %7909 = vmatpush.bf16.msra.mxu0 %v7020
        %7910 = vmatpush.bf16.msra.mxu0 %v7017
        %7911 = vmatmul.bf16.gmra.mxu0 %v5651
        %v7912 = vpop.f32.mrf.mxu0
        %v7913 = vadd.f32 %v6051, %v7912
        %v7914 = vpop.f32.mrf.mxu0
        %7915 = vdwg.mxu0
        %7916 = vmatpush.bf16.msra.mxu0 %v7062
        %7917 = vmatpush.bf16.msra.mxu0 %v7059
        %7918 = vmatpush.bf16.msra.mxu0 %v7056
        %7919 = vmatpush.bf16.msra.mxu0 %v7053
        %7920 = vmatpush.bf16.msra.mxu0 %v7050
        %7921 = vmatpush.bf16.msra.mxu0 %v7047
        %7922 = vmatpush.bf16.msra.mxu0 %v7044
        %7923 = vmatpush.bf16.msra.mxu0 %v7041
        %7924 = vmatmul.bf16.gmra.mxu0 %v5652
        %v7925 = vpop.f32.mrf.mxu0
        %v7926 = vadd.f32 %v7913, %v7925
        %v7927 = vpop.f32.mrf.mxu0
        %7928 = vdwg.mxu0
        %7929 = vmatpush.bf16.msra.mxu0 %v7086
        %7930 = vmatpush.bf16.msra.mxu0 %v7083
        %7931 = vmatpush.bf16.msra.mxu0 %v7080
        %7932 = vmatpush.bf16.msra.mxu0 %v7077
        %7933 = vmatpush.bf16.msra.mxu0 %v7074
        %7934 = vmatpush.bf16.msra.mxu0 %v7071
        %7935 = vmatpush.bf16.msra.mxu0 %v7068
        %7936 = vmatpush.bf16.msra.mxu0 %v7065
        %7937 = vmatmul.bf16.gmra.mxu0 %v5653
        %v7938 = vpop.f32.mrf.mxu0
        %v7939 = vadd.f32 %v7926, %v7938
        %v7940 = vpop.f32.mrf.mxu0
        %7941 = vdwg.mxu0
        %7942 = vmatpush.bf16.msra.mxu0 %v7110
        %7943 = vmatpush.bf16.msra.mxu0 %v7107
        %7944 = vmatpush.bf16.msra.mxu0 %v7104
        %7945 = vmatpush.bf16.msra.mxu0 %v7101
        %7946 = vmatpush.bf16.msra.mxu0 %v7098
        %7947 = vmatpush.bf16.msra.mxu0 %v7095
        %7948 = vmatpush.bf16.msra.mxu0 %v7092
        %7949 = vmatpush.bf16.msra.mxu0 %v7089
        %7950 = vmatmul.bf16.gmra.mxu0 %v5654
        %v7951 = vpop.f32.mrf.mxu0
        %v7952 = vadd.f32 %v7939, %v7951
        %v7953 = vpop.f32.mrf.mxu0
        %7954 = vdwg.mxu0
        %7955 = vmatpush.bf16.msra.mxu0 %v7134
        %7956 = vmatpush.bf16.msra.mxu0 %v7131
        %7957 = vmatpush.bf16.msra.mxu0 %v7128
        %7958 = vmatpush.bf16.msra.mxu0 %v7125
        %7959 = vmatpush.bf16.msra.mxu0 %v7122
        %7960 = vmatpush.bf16.msra.mxu0 %v7119
        %7961 = vmatpush.bf16.msra.mxu0 %v7116
        %7962 = vmatpush.bf16.msra.mxu0 %v7113
        %7963 = vmatmul.bf16.gmra.mxu0 %v5655
        %v7964 = vpop.f32.mrf.mxu0
        %v7965 = vadd.f32 %v7952, %v7964
        %v7966 = vpop.f32.mrf.mxu0
        %7967 = vdwg.mxu0
        %7968 = vmatpush.bf16.msra.mxu0 %v7158
        %7969 = vmatpush.bf16.msra.mxu0 %v7155
        %7970 = vmatpush.bf16.msra.mxu0 %v7152
        %7971 = vmatpush.bf16.msra.mxu0 %v7149
        %7972 = vmatpush.bf16.msra.mxu0 %v7146
        %7973 = vmatpush.bf16.msra.mxu0 %v7143
        %7974 = vmatpush.bf16.msra.mxu0 %v7140
        %7975 = vmatpush.bf16.msra.mxu0 %v7137
        %7976 = vmatmul.bf16.gmra.mxu0 %v5656
        %v7977 = vpop.f32.mrf.mxu0
        %v7978 = vadd.f32 %v7965, %v7977
        %v7979 = vpop.f32.mrf.mxu0
        %7980 = vdwg.mxu0
        %7981 = vmatpush.bf16.msra.mxu0 %v7182
        %7982 = vmatpush.bf16.msra.mxu0 %v7179
        %7983 = vmatpush.bf16.msra.mxu0 %v7176
        %7984 = vmatpush.bf16.msra.mxu0 %v7173
        %7985 = vmatpush.bf16.msra.mxu0 %v7170
        %7986 = vmatpush.bf16.msra.mxu0 %v7167
        %7987 = vmatpush.bf16.msra.mxu0 %v7164
        %7988 = vmatpush.bf16.msra.mxu0 %v7161
        %7989 = vmatmul.bf16.gmra.mxu0 %v5657
        %v7990 = vpop.f32.mrf.mxu0
        %v7991 = vadd.f32 %v7978, %v7990
        %v7992 = vpop.f32.mrf.mxu0
        %7993 = vdwg.mxu0
        %7994 = vmatpush.bf16.msra.mxu0 %v7206
        %7995 = vmatpush.bf16.msra.mxu0 %v7203
        %7996 = vmatpush.bf16.msra.mxu0 %v7200
        %7997 = vmatpush.bf16.msra.mxu0 %v7197
        %7998 = vmatpush.bf16.msra.mxu0 %v7194
        %7999 = vmatpush.bf16.msra.mxu0 %v7191
        %8000 = vmatpush.bf16.msra.mxu0 %v7188
        %8001 = vmatpush.bf16.msra.mxu0 %v7185
        %8002 = vmatmul.bf16.gmra.mxu0 %v5658
        %v8003 = vpop.f32.mrf.mxu0
        %v8004 = vadd.f32 %v7991, %v8003
        %v8005 = vpop.f32.mrf.mxu0
        %8006 = vdwg.mxu0
        %8007 = vmatpush.bf16.msra.mxu0 %v7230
        %8008 = vmatpush.bf16.msra.mxu0 %v7227
        %8009 = vmatpush.bf16.msra.mxu0 %v7224
        %8010 = vmatpush.bf16.msra.mxu0 %v7221
        %8011 = vmatpush.bf16.msra.mxu0 %v7218
        %8012 = vmatpush.bf16.msra.mxu0 %v7215
        %8013 = vmatpush.bf16.msra.mxu0 %v7212
        %8014 = vmatpush.bf16.msra.mxu0 %v7209
        %8015 = vmatmul.bf16.gmra.mxu0 %v5659
        %v8016 = vpop.f32.mrf.mxu0
        %v8017 = vadd.f32 %v8004, %v8016
        %v8018 = vpop.f32.mrf.mxu0
        %8019 = vdwg.mxu0
        %8020 = vmatpush.bf16.msra.mxu0 %v7254
        %8021 = vmatpush.bf16.msra.mxu0 %v7251
        %8022 = vmatpush.bf16.msra.mxu0 %v7248
        %8023 = vmatpush.bf16.msra.mxu0 %v7245
        %8024 = vmatpush.bf16.msra.mxu0 %v7242
        %8025 = vmatpush.bf16.msra.mxu0 %v7239
        %8026 = vmatpush.bf16.msra.mxu0 %v7236
        %8027 = vmatpush.bf16.msra.mxu0 %v7233
        %8028 = vmatmul.bf16.gmra.mxu0 %v5660
        %v8029 = vpop.f32.mrf.mxu0
        %v8030 = vadd.f32 %v8017, %v8029
        %v8031 = vpop.f32.mrf.mxu0
        %8032 = vdwg.mxu0
        %8033 = vmatpush.bf16.msra.mxu0 %v7278
        %8034 = vmatpush.bf16.msra.mxu0 %v7275
        %8035 = vmatpush.bf16.msra.mxu0 %v7272
        %8036 = vmatpush.bf16.msra.mxu0 %v7269
        %8037 = vmatpush.bf16.msra.mxu0 %v7266
        %8038 = vmatpush.bf16.msra.mxu0 %v7263
        %8039 = vmatpush.bf16.msra.mxu0 %v7260
        %8040 = vmatpush.bf16.msra.mxu0 %v7257
        %8041 = vmatmul.bf16.gmra.mxu0 %v5661
        %v8042 = vpop.f32.mrf.mxu0
        %v8043 = vadd.f32 %v8030, %v8042
        %v8044 = vpop.f32.mrf.mxu0
        %8045 = vdwg.mxu0
        %8046 = vmatpush.bf16.msra.mxu0 %v7302
        %8047 = vmatpush.bf16.msra.mxu0 %v7299
        %8048 = vmatpush.bf16.msra.mxu0 %v7296
        %8049 = vmatpush.bf16.msra.mxu0 %v7293
        %8050 = vmatpush.bf16.msra.mxu0 %v7290
        %8051 = vmatpush.bf16.msra.mxu0 %v7287
        %8052 = vmatpush.bf16.msra.mxu0 %v7284
        %8053 = vmatpush.bf16.msra.mxu0 %v7281
        %8054 = vmatmul.bf16.gmra.mxu0 %v5662
        %v8055 = vpop.f32.mrf.mxu0
        %v8056 = vadd.f32 %v8043, %v8055
        %v8057 = vpop.f32.mrf.mxu0
        %8058 = vdwg.mxu0
        %v8059 = vadd.f32 %v3357, %v7744
        %v8060 = vadd.f32 %v3358, %v7900
        %v8061 = vadd.f32 %v3359, %v8056
        %8062 = vst [vmem:[%s599] sm:$0xff] %v8059
        %8063 = vst [vmem:[%s599 + $0x8] sm:$0xff] %v8060
        %8064 = vst [vmem:[%s599 + $0x10] sm:$0xff] %v8061
        %s8065 = sand.u32 %s300, 1
        %s8066 = scalar_lea.sflag [#allocation5], %s8065
        %s8067 = sand.u32 %s300, 1
        %s8068 = smul.addr %s8067, 24
        %s8069 = scalar_lea.vmem [#allocation23], %s8068
        // Predicated region
        $region117: #{tpu_custom_call.1} parent=67 // pred_check
          %p8070 = pneg %p310
        $region118: #{tpu_custom_call.1} parent=67 // pred_check_branch
          %8072 = sbr.rel (%p8070) target = $region120
        $region119: #{tpu_custom_call.1} parent=67 // pred_region
          %8074 = vsyncadd %s8066, 0
          %s8075 = smul.addr %s35, 3
          %s8076 = smul.addr %s8075, 8
          %s8077 = scalar_lea.hbm %s12, %s8076
          %s8079 = sshll.u32 %s8069, 4
          %s8080 = int_to_ptr.vmem [resolvable:$true] %s8079
          %s8081 = sshll.u32 %s8077, 4
          %s8082 = int_to_ptr.hbm [resolvable:$true] %s8081
          %8084 = dma.vmem_to_hbm [thread:$0]  %s8080, 384, %s8082, %s8066
        $region120: #{tpu_custom_call.1} parent=67 // pred_fallthru
          _
      $region68: #{tpu_custom_call.1} parent=5 // pred_fallthru
        _
      %p8085 = scmp.le.s32.totalorder 2, %s30
      // Predicated region
      $region121: #{tpu_custom_call.1} parent=5 // pred_check
        %p8086 = pneg %p8085
      $region122: #{tpu_custom_call.1} parent=5 // pred_check_branch
        %8088 = sbr.rel (%p8086) target = $region124
      $region123: #{tpu_custom_call.1} parent=5 // pred_region
        %s8089 = ssub.s32 %s30, 2
        // Predicated region
        $region125: #{tpu_custom_call.1} parent=123 // pred_check
          %p8090 = pneg %p316
        $region126: #{tpu_custom_call.1} parent=123 // pred_check_branch
          %8092 = sbr.rel (%p8090) target = $region128
        $region127: #{tpu_custom_call.1} parent=123 // pred_region
          %s8093 = sand.u32 %s301, 1
          %s8094 = scalar_lea.sflag [#allocation5], %s8093
          %s8095 = sand.u32 %s301, 1
          %s8096 = smul.addr %s8095, 24
          %s8097 = scalar_lea.vmem [#allocation23], %s8096
          %8099 = dma.done %s8094, 384
        $region128: #{tpu_custom_call.1} parent=123 // pred_fallthru
          _
      $region124: #{tpu_custom_call.1} parent=5 // pred_fallthru
        _
    $region6: #{tpu_custom_call.1} parent=1 // loop_footer
      %s34 = sadd.s32 1, %s30
    $region7: #{tpu_custom_call.1} parent=1 // loop_footer_branch
      %29 = sbr.rel target = $region3
    $region8: #{tpu_custom_call.1} parent=1 // loop_exit
      _
    %8100 = vsyncpa [#allocation4], 1
    %s8101 = scalar_lea.sflag [#allocation4], 1
    %8102 = vsyncpa %s8101, 1
    %8103 = vsyncpa [#allocation7], 1
    %8104 = vsyncpa [#allocation10], 1
    %8105 = vsyncpa [#allocation13], 1
    %8106 = vsyncpa [#allocation16], 1
    %8107 = vsyncpa [#allocation19], 1
    %8108 = vsyncpa [#allocation22], 1
    %8109 = vsyncpa [#allocation5], 1
    %s8110 = scalar_lea.sflag [#allocation5], 1
    %8111 = vsyncpa %s8110, 1

</llo_original>
